<compile_context>
chip_gen: v5e
topology: v5e:2x2
jax: 0.10.0
libtpu: 0.0.40
codegen_flags: <defaults>
</compile_context>

<pallas_src>
import functools

import jax
import jax.numpy as jnp
from jax import lax
from jax.experimental import pallas as pl
from jax.experimental.pallas import tpu as pltpu

_SEQ = pltpu.CompilerParams(dimension_semantics=("arbitrary",))
_PAR = pltpu.CompilerParams(dimension_semantics=("parallel",))


# ----------------------------------------------------------------------------- kernels

def _mm_relu_kernel(w_ref, x_ref, o_ref, *, relu):
    # w_ref: (Cout, K) bf16   x_ref: (K, L) bf16   o_ref: (Cout, L) f32, L lane-dense.
    acc = jnp.dot(w_ref[...], x_ref[...], preferred_element_type=jnp.float32)
    if relu:
        acc = jnp.maximum(acc, 0.0)
    o_ref[...] = acc.astype(o_ref.dtype)


def _final_kernel(cca_ref, ca_ref, ta_ref, res_ref, w_ref, b_ref, o_ref):
    # Fused: feat_sum = cca + ca + ta ; out = W_1x1 @ feat_sum + b + residual.
    feat = cca_ref[...] + ca_ref[...] + ta_ref[...]                      # (C, L) f32
    acc = jnp.dot(w_ref[...], feat.astype(jnp.bfloat16),
                  preferred_element_type=jnp.float32)                    # (C, L) f32
    o_ref[...] = (acc + b_ref[...] + res_ref[...]).astype(o_ref.dtype)


def _cam_kernel(x_ref, o_ref, *, gamma):
    # Channel (CAM) / temporal (TAM) attention, whole batch in one invocation.
    # x_ref: (BB, C, L) f32.
    x = x_ref[...].astype(jnp.float32)
    energy = jnp.einsum('bcl,bdl->bcd', x, x,
                        preferred_element_type=jnp.float32)              # (BB, C, C)
    # softmax(rowmax(energy) - energy) == softmax(-energy): use the row min as the
    # stability shift (exponent <= 0) -> one cross-lane reduce fewer than the original
    # max(energy_new) formulation; division goes to the EUP via approx reciprocal.
    m = jnp.min(energy, axis=-1, keepdims=True)
    p = jnp.exp(m - energy)
    att = p * pl.reciprocal(jnp.sum(p, axis=-1, keepdims=True), approx=True)
    out = jnp.einsum('bcd,bdl->bcl', att, x,
                     preferred_element_type=jnp.float32)                 # (BB, C, L)
    o_ref[...] = (gamma * out + x).astype(o_ref.dtype)


def _swap01(a):
    # (A, B, C) -> (B, A, C) for tiny in-VMEM blocks: unrolled middle-dim slices plus a
    # leading-dim stack, so we do not rely on general 3-D transpose lowering.
    return jnp.stack([a[:, j, :] for j in range(a.shape[1])], axis=0)


def _cca_step(x, wqkv, bqkv, gamma, c8):
    # One CrissCross attention application.  x: (H, W, C) f32.
    Hd, Wd, Cd = x.shape
    K = 2 * c8 + Cd

    # Fused q|k|v 1x1 projections as a single flat lane-dense matmul (bf16 on the MXU).
    proj = jnp.dot(x.reshape(Hd * Wd, Cd).astype(jnp.bfloat16), wqkv,
                   preferred_element_type=jnp.float32) + bqkv            # (H*W, K)
    proj_w = proj.reshape(Hd, Wd, K)                                     # (H, W, K)
    proj_h = _swap01(proj_w)                                             # (W, H, K)
    qw, kw, vw = proj_w[..., :c8], proj_w[..., c8:2 * c8], proj_w[..., 2 * c8:]
    qh, kh, vh = proj_h[..., :c8], proj_h[..., c8:2 * c8], proj_h[..., 2 * c8:]

    # Energies along the H direction (batched over w) and W direction (batched over h).
    eH = jnp.einsum('whq,wpq->whp', qh, kh,
                    preferred_element_type=jnp.float32)                  # (W, H, H)
    eW = jnp.einsum('hwq,hpq->hwp', qw, kw,
                    preferred_element_type=jnp.float32)                  # (H, W, W)

    # -inf on the H-direction diagonal (self position); -1e30 == -inf after softmax.
    hh = lax.broadcasted_iota(jnp.int32, (Hd, Hd), 0)
    pp = lax.broadcasted_iota(jnp.int32, (Hd, Hd), 1)
    eH = eH + jnp.where(hh == pp, jnp.float32(-1e30), jnp.float32(0.0))[None, :, :]

    # Joint softmax over the concatenated (H + W) axis, done as split max / split sum.
    mH = jnp.max(eH, axis=-1)                                            # (W, H)
    mW = jnp.max(eW, axis=-1)                                            # (H, W)
    m = jnp.maximum(mH.T, mW)                                            # (H, W)
    pH = jnp.exp(eH - m.T[:, :, None])                                   # (W, H, H)
    pW = jnp.exp(eW - m[:, :, None])                                     # (H, W, W)
    denom = jnp.sum(pH, axis=-1).T + jnp.sum(pW, axis=-1)                # (H, W)
    inv = pl.reciprocal(denom, approx=True)                              # (H, W)
    attH = pH * inv.T[:, :, None]
    attW = pW * inv[:, :, None]

    # Aggregation + combined residual output, produced directly in (H, W, C).
    oH = jnp.einsum('whp,wpc->whc', attH, vh,
                    preferred_element_type=jnp.float32)                  # (W, H, C)
    oW = jnp.einsum('hwp,hpc->hwc', attW, vw,
                    preferred_element_type=jnp.float32)                  # (H, W, C)
    return gamma * (_swap01(oH) + oW) + x


def _cca_kernel(x_ref, wqkv_ref, bqkv_ref, o_ref, *, gamma, c8, recurrence):
    # Both CrissCross recurrence iterations fused; the intermediate never leaves VMEM.
    x = x_ref[0].astype(jnp.float32)                                     # (H, W, C)
    wqkv = wqkv_ref[...]                                                 # (C, 2*C8+C) bf16
    bqkv = bqkv_ref[...]                                                 # (1, 2*C8+C) f32
    for _ in range(recurrence):
        x = _cca_step(x, wqkv, bqkv, gamma, c8)
    o_ref[0] = x.astype(o_ref.dtype)


# ----------------------------------------------------------------------------- wrappers

def conv3x3(x, w, relu=True):
    """3x3 conv, padding=1, no bias, optional ReLU.

    x: (BB, Cin, H, W) f32, w: (Cout, Cin, 3, 3) f32.  Returns (Cout, BB, H, W) f32.
    Batch is folded into the lane dim: a single grid step computing
    (Cout, Cin*9) @ (Cin*9, BB*H*W) with bf16 operands.
    """
    BB, Cin, H, W = x.shape
    Cout = w.shape[0]
    L = BB * H * W
    xp = jnp.pad(x, ((0, 0), (0, 0), (1, 1), (1, 1)))
    cols = [xp[:, :, dy:dy + H, dx:dx + W] for dy in range(3) for dx in range(3)]
    col = jnp.stack(cols, axis=2)                                        # (BB, Cin, 9, H, W)
    col = col.transpose(1, 2, 0, 3, 4).reshape(Cin * 9, L).astype(jnp.bfloat16)
    wmat = w.reshape(Cout, Cin * 9).astype(jnp.bfloat16)
    out = pl.pallas_call(
        functools.partial(_mm_relu_kernel, relu=relu),
        grid=(1,),
        in_specs=[pl.BlockSpec((Cout, Cin * 9), lambda i: (0, 0)),
                  pl.BlockSpec((Cin * 9, L), lambda i: (0, 0))],
        out_specs=pl.BlockSpec((Cout, L), lambda i: (0, 0)),
        out_shape=jax.ShapeDtypeStruct((Cout, L), jnp.float32),
        compiler_params=_SEQ,
    )(wmat, col)
    return out.reshape(Cout, BB, H, W)


def cam(x_bcl, gamma):
    """CAM_Module / TAM_Module over the whole batch in one invocation.  x: (BB, C, L)."""
    BB, C, L = x_bcl.shape
    return pl.pallas_call(
        functools.partial(_cam_kernel, gamma=float(gamma)),
        grid=(1,),
        in_specs=[pl.BlockSpec((BB, C, L), lambda i: (0, 0, 0))],
        out_specs=pl.BlockSpec((BB, C, L), lambda i: (0, 0, 0)),
        out_shape=jax.ShapeDtypeStruct((BB, C, L), jnp.float32),
        compiler_params=_SEQ,
    )(x_bcl)


def criss_cross(x_hwc, p, recurrence=2):
    """CrissCrossAttention applied `recurrence` times.  x_hwc: (BB, H, W, C) f32."""
    BB, H, W, C = x_hwc.shape
    c8 = p["wq"].shape[0]
    K = 2 * c8 + C
    wqkv = jnp.concatenate([p["wq"].T, p["wk"].T, p["wv"].T], axis=1).astype(jnp.bfloat16)
    bqkv = jnp.concatenate([p["bq"], p["bk"], p["bv"]])[None, :]         # (1, K) f32
    return pl.pallas_call(
        functools.partial(_cca_kernel, gamma=float(p["gamma"]), c8=c8,
                          recurrence=recurrence),
        grid=(BB,),
        in_specs=[pl.BlockSpec((1, H, W, C), lambda b: (b, 0, 0, 0)),
                  pl.BlockSpec((C, K), lambda b: (0, 0)),
                  pl.BlockSpec((1, K), lambda b: (0, 0))],
        out_specs=pl.BlockSpec((1, H, W, C), lambda b: (b, 0, 0, 0)),
        out_shape=jax.ShapeDtypeStruct((BB, H, W, C), jnp.float32),
        compiler_params=_PAR,   # independent batch steps -> v7x can shard over both TCs
    )(x_hwc, wqkv, bqkv)


def final_conv_residual(cca, ca, ta, res, w, b):
    """Fused feat_sum + 1x1 conv (bias) + residual add.  Feature maps: (C, L) f32."""
    C, L = cca.shape
    spec_cl = pl.BlockSpec((C, L), lambda i: (0, 0))
    return pl.pallas_call(
        _final_kernel,
        grid=(1,),
        in_specs=[spec_cl, spec_cl, spec_cl, spec_cl,
                  pl.BlockSpec((C, C), lambda i: (0, 0)),
                  pl.BlockSpec((C, 1), lambda i: (0, 0))],
        out_specs=spec_cl,
        out_shape=jax.ShapeDtypeStruct((C, L), jnp.float32),
        compiler_params=_SEQ,
    )(cca, ca, ta, res, w.astype(jnp.bfloat16), b.reshape(C, 1))


def non_local_attention_forward(aligned_fea, params):
    B, N, C, H, W = aligned_fea.shape
    BB, L = B * N, B * N * H * W
    x = aligned_fea.reshape(BB, C, H, W)

    # Criss-cross attention branch (recurrence = 2, fused into one kernel).
    y = conv3x3(x, params["w_before_cca"], relu=True)                    # (C, BB, H, W)
    y = criss_cross(y.transpose(1, 2, 3, 0), params["cca"], recurrence=2)   # (BB, H, W, C)
    cca_out = conv3x3(y.transpose(0, 3, 1, 2), params["w_after_cca"], relu=True)

    # Channel attention branch.
    y = conv3x3(x, params["w_before_ca"], relu=True)                     # (C, BB, H, W)
    y = cam(y.transpose(1, 0, 2, 3).reshape(BB, C, H * W), params["ca_gamma"])
    ca_out = conv3x3(y.reshape(BB, C, H, W), params["w_after_ca"], relu=True)

    # Temporal attention branch (attention over the N frames).
    xt = aligned_fea.transpose(0, 2, 1, 3, 4).reshape(B * C, N, H, W)
    y = conv3x3(xt, params["w_before_ta"], relu=True)                    # (N, B*C, H, W)
    y = cam(y.transpose(1, 0, 2, 3).reshape(B * C, N, H * W), params["ta_gamma"])
    ta = conv3x3(y.reshape(B * C, N, H, W), params["w_after_ta"], relu=True)  # (N, B*C, H, W)
    ta_out = ta.reshape(N, B, C, H, W).transpose(2, 1, 0, 3, 4).reshape(C, BB, H, W)

    # Final 1x1 conv fused with the 3-branch sum, bias, and residual (lane-dense C x L).
    res = aligned_fea.transpose(2, 0, 1, 3, 4).reshape(C, L)
    out = final_conv_residual(cca_out.reshape(C, L), ca_out.reshape(C, L),
                              ta_out.reshape(C, L), res,
                              params["w_final"], params["b_final"])
    return out.reshape(C, B, N, H, W).transpose(1, 2, 0, 3, 4)


# ----------------------------------------------------------------------------- params

def init_params(key, nf=16, nframes=3):
    ks = jax.random.split(key, 14)

    def conv_w(k, cout, cin):
        return 0.1 * jax.random.normal(k, (cout, cin, 3, 3), jnp.float32)

    return dict(
        w_before_cca=conv_w(ks[0], nf, nf),
        w_after_cca=conv_w(ks[1], nf, nf),
        w_before_ca=conv_w(ks[2], nf, nf),
        w_after_ca=conv_w(ks[3], nf, nf),
        w_before_ta=conv_w(ks[4], nframes, nframes),
        w_after_ta=conv_w(ks[5], nframes, nframes),
        w_final=0.1 * jax.random.normal(ks[6], (nf, nf), jnp.float32),
        b_final=0.05 * jax.random.normal(ks[7], (nf,), jnp.float32),
        cca=dict(
            wq=0.1 * jax.random.normal(ks[8], (nf // 8, nf), jnp.float32),
            bq=0.05 * jax.random.normal(ks[9], (nf // 8,), jnp.float32),
            wk=0.1 * jax.random.normal(ks[10], (nf // 8, nf), jnp.float32),
            bk=0.05 * jax.random.normal(ks[11], (nf // 8,), jnp.float32),
            wv=0.1 * jax.random.normal(ks[12], (nf, nf), jnp.float32),
            bv=0.05 * jax.random.normal(ks[13], (nf,), jnp.float32),
            gamma=0.5,   # nn.Parameter init 0 in PyTorch; nonzero here so the path is exercised
        ),
        ca_gamma=0.5,
        ta_gamma=0.5,
    )


if __name__ == "__main__":
    key = jax.random.PRNGKey(0)
    pkey, xkey = jax.random.split(key)
    B, N, C, H, W = 2, 3, 16, 8, 8        # nf=16, nframes=3
    params = init_params(pkey, nf=C, nframes=N)
    aligned_fea = jax.random.normal(xkey, (B, N, C, H, W), jnp.float32)

    fwd = jax.jit(lambda fea: non_local_attention_forward(fea, params))
    out = jax.block_until_ready(fwd(aligned_fea))

    assert out.shape == (B, N, C, H, W)
    assert bool(jnp.all(jnp.isfinite(out)))
    print("KERNEL_OK")
</pallas_src>

<mosaic_0001>
module attributes {stable_mosaic.version = 11 : i64} {
  func.func @_mm_relu_kernel(%arg0: i32, %arg1: memref<3x27xbf16, #tpu.memory_space<vmem>>, %arg2: memref<27x2048xbf16, #tpu.memory_space<vmem>>, %arg3: memref<3x2048xf32, #tpu.memory_space<vmem>>) attributes {dimension_semantics = [#tpu.dimension_semantics<arbitrary>], iteration_bounds = array<i64: 1>, scalar_prefetch = 0 : i64, scratch_operands = 0 : i64, tpu.core_type = #tpu.core_type<tc>, window_params = [{pipeline_mode = #tpu.pipeline_mode<synchronous>, transform_indices = @transform_0, window_bounds = array<i64: 3, 27>}, {pipeline_mode = #tpu.pipeline_mode<synchronous>, transform_indices = @transform_1, window_bounds = array<i64: 27, 2048>}, {pipeline_mode = #tpu.pipeline_mode<synchronous>, transform_indices = @transform_2, window_bounds = array<i64: 3, 2048>}]} {
    %c0 = arith.constant 0 : index
    %c0_0 = arith.constant 0 : index
    %0 = vector.load %arg1[%c0, %c0_0] : memref<3x27xbf16, #tpu.memory_space<vmem>>, vector<3x27xbf16>
    %c0_1 = arith.constant 0 : index
    %c0_2 = arith.constant 0 : index
    %1 = vector.load %arg2[%c0_1, %c0_2] : memref<27x2048xbf16, #tpu.memory_space<vmem>>, vector<27x2048xbf16>
    %cst = arith.constant dense<0.000000e+00> : vector<3x2048xf32>
    %2 = tpu.matmul %0, %1, %cst {dimension_numbers = #tpu.dot_dimension_numbers<[1], [0], [0], [1], [0, 0, 1, 1], [], []>} : vector<3x27xbf16>, vector<27x2048xbf16>, vector<3x2048xf32> -> vector<3x2048xf32>
    %cst_3 = arith.constant 0.000000e+00 : f32
    %3 = vector.broadcast %cst_3 : f32 to vector<3x2048xf32>
    %4 = arith.maximumf %2, %3 : vector<3x2048xf32>
    %c0_4 = arith.constant 0 : index
    %c0_5 = arith.constant 0 : index
    %5 = vector.load %arg3[%c0_4, %c0_5] : memref<3x2048xf32, #tpu.memory_space<vmem>>, vector<3x2048xf32>
    tpu.vector_store %arg3[%c0_4, %c0_5], %4 {strides = array<i32>} : memref<3x2048xf32, #tpu.memory_space<vmem>>, vector<3x2048xf32>,
    return
  }
  func.func @transform_0(%arg0: i32) -> (i32, i32) {
    %c0_i32 = arith.constant 0 : i32
    %c0_i32_0 = arith.constant 0 : i32
    %c0_i32_1 = arith.constant 0 : i32
    return %c0_i32, %c0_i32_0 : i32, i32
  }
  func.func @transform_1(%arg0: i32) -> (i32, i32) {
    %c0_i32 = arith.constant 0 : i32
    %c0_i32_0 = arith.constant 0 : i32
    %c0_i32_1 = arith.constant 0 : i32
    return %c0_i32, %c0_i32_0 : i32, i32
  }
  func.func @transform_2(%arg0: i32) -> (i32, i32) {
    %c0_i32 = arith.constant 0 : i32
    %c0_i32_0 = arith.constant 0 : i32
    %c0_i32_1 = arith.constant 0 : i32
    return %c0_i32, %c0_i32_0 : i32, i32
  }
}

module attributes {stable_mosaic.version = 11 : i64} {
  func.func @_cam_kernel(%arg0: i32, %arg1: memref<32x3x64xf32, #tpu.memory_space<vmem>>, %arg2: memref<32x3x64xf32, #tpu.memory_space<vmem>>) attributes {dimension_semantics = [#tpu.dimension_semantics<arbitrary>], iteration_bounds = array<i64: 1>, scalar_prefetch = 0 : i64, scratch_operands = 0 : i64, tpu.core_type = #tpu.core_type<tc>, window_params = [{pipeline_mode = #tpu.pipeline_mode<synchronous>, transform_indices = @transform_0, window_bounds = array<i64: 32, 3, 64>}, {pipeline_mode = #tpu.pipeline_mode<synchronous>, transform_indices = @transform_1, window_bounds = array<i64: 32, 3, 64>}]} {
    %c0 = arith.constant 0 : index
    %c0_0 = arith.constant 0 : index
    %c0_1 = arith.constant 0 : index
    %0 = vector.load %arg1[%c0, %c0_0, %c0_1] : memref<32x3x64xf32, #tpu.memory_space<vmem>>, vector<32x3x64xf32>
    "tpu.trace_start"() <{level = 10 : i32, message = "bcl,bdl->bcd"}> : () -> ()
    %cst = arith.constant dense<0.000000e+00> : vector<32x3x3xf32>
    %1 = tpu.matmul %0, %0, %cst {dimension_numbers = #tpu.dot_dimension_numbers<[2], [2], [1], [1], [0, 0, 0, 1, 1, 1], [0], [0]>} : vector<32x3x64xf32>, vector<32x3x64xf32>, vector<32x3x3xf32> -> vector<32x3x3xf32>
    "tpu.trace_stop"() : () -> ()
    %cst_2 = arith.constant dense<0x7F800000> : vector<32x3xf32>
    %2 = vector.multi_reduction <minimumf>, %1, %cst_2 [2] : vector<32x3x3xf32> to vector<32x3xf32>
    %3 = vector.shape_cast %2 : vector<32x3xf32> to vector<32x3x1xf32>
    %4 = vector.broadcast %3 : vector<32x3x1xf32> to vector<32x3x3xf32>
    %5 = arith.subf %4, %1 : vector<32x3x3xf32>
    %6 = math.exp %5 : vector<32x3x3xf32>
    %cst_3 = arith.constant dense<0.000000e+00> : vector<32x3xf32>
    %7 = vector.multi_reduction <add>, %6, %cst_3 [2] : vector<32x3x3xf32> to vector<32x3xf32>
    %8 = vector.shape_cast %7 : vector<32x3xf32> to vector<32x3x1xf32>
    %9 = tpu.reciprocal %8 {approx = true} : vector<32x3x1xf32> -> vector<32x3x1xf32>
    %10 = vector.broadcast %9 : vector<32x3x1xf32> to vector<32x3x3xf32>
    %11 = arith.mulf %6, %10 : vector<32x3x3xf32>
    "tpu.trace_start"() <{level = 10 : i32, message = "bcd,bdl->bcl"}> : () -> ()
    %cst_4 = arith.constant dense<0.000000e+00> : vector<32x3x64xf32>
    %12 = tpu.matmul %11, %0, %cst_4 {dimension_numbers = #tpu.dot_dimension_numbers<[2], [1], [1], [2], [0, 0, 0, 1, 1, 2], [0], [0]>} : vector<32x3x3xf32>, vector<32x3x64xf32>, vector<32x3x64xf32> -> vector<32x3x64xf32>
    "tpu.trace_stop"() : () -> ()
    %cst_5 = arith.constant 5.000000e-01 : f32
    %13 = vector.broadcast %cst_5 : f32 to vector<32x3x64xf32>
    %14 = arith.mulf %13, %12 : vector<32x3x64xf32>
    %15 = arith.addf %14, %0 : vector<32x3x64xf32>
    %c0_6 = arith.constant 0 : index
    %c0_7 = arith.constant 0 : index
    %c0_8 = arith.constant 0 : index
    %16 = vector.load %arg2[%c0_6, %c0_7, %c0_8] : memref<32x3x64xf32, #tpu.memory_space<vmem>>, vector<32x3x64xf32>
    tpu.vector_store %arg2[%c0_6, %c0_7, %c0_8], %15 {strides = array<i32>} : memref<32x3x64xf32, #tpu.memory_space<vmem>>, vector<32x3x64xf32>,
    return
  }
  func.func @transform_0(%arg0: i32) -> (i32, i32, i32) {
    %c0_i32 = arith.constant 0 : i32
    %c0_i32_0 = arith.constant 0 : i32
    %c0_i32_1 = arith.constant 0 : i32
    %c0_i32_2 = arith.constant 0 : i32
    return %c0_i32, %c0_i32_0, %c0_i32_1 : i32, i32, i32
  }
  func.func @transform_1(%arg0: i32) -> (i32, i32, i32) {
    %c0_i32 = arith.constant 0 : i32
    %c0_i32_0 = arith.constant 0 : i32
    %c0_i32_1 = arith.constant 0 : i32
    %c0_i32_2 = arith.constant 0 : i32
    return %c0_i32, %c0_i32_0, %c0_i32_1 : i32, i32, i32
  }
}

module attributes {stable_mosaic.version = 11 : i64} {
  func.func @_mm_relu_kernel(%arg0: i32, %arg1: memref<16x144xbf16, #tpu.memory_space<vmem>>, %arg2: memref<144x384xbf16, #tpu.memory_space<vmem>>, %arg3: memref<16x384xf32, #tpu.memory_space<vmem>>) attributes {dimension_semantics = [#tpu.dimension_semantics<arbitrary>], iteration_bounds = array<i64: 1>, scalar_prefetch = 0 : i64, scratch_operands = 0 : i64, tpu.core_type = #tpu.core_type<tc>, window_params = [{pipeline_mode = #tpu.pipeline_mode<synchronous>, transform_indices = @transform_0, window_bounds = array<i64: 16, 144>}, {pipeline_mode = #tpu.pipeline_mode<synchronous>, transform_indices = @transform_1, window_bounds = array<i64: 144, 384>}, {pipeline_mode = #tpu.pipeline_mode<synchronous>, transform_indices = @transform_2, window_bounds = array<i64: 16, 384>}]} {
    %c0 = arith.constant 0 : index
    %c0_0 = arith.constant 0 : index
    %0 = vector.load %arg1[%c0, %c0_0] : memref<16x144xbf16, #tpu.memory_space<vmem>>, vector<16x144xbf16>
    %c0_1 = arith.constant 0 : index
    %c0_2 = arith.constant 0 : index
    %1 = vector.load %arg2[%c0_1, %c0_2] : memref<144x384xbf16, #tpu.memory_space<vmem>>, vector<144x384xbf16>
    %cst = arith.constant dense<0.000000e+00> : vector<16x384xf32>
    %2 = tpu.matmul %0, %1, %cst {dimension_numbers = #tpu.dot_dimension_numbers<[1], [0], [0], [1], [0, 0, 1, 1], [], []>} : vector<16x144xbf16>, vector<144x384xbf16>, vector<16x384xf32> -> vector<16x384xf32>
    %cst_3 = arith.constant 0.000000e+00 : f32
    %3 = vector.broadcast %cst_3 : f32 to vector<16x384xf32>
    %4 = arith.maximumf %2, %3 : vector<16x384xf32>
    %c0_4 = arith.constant 0 : index
    %c0_5 = arith.constant 0 : index
    %5 = vector.load %arg3[%c0_4, %c0_5] : memref<16x384xf32, #tpu.memory_space<vmem>>, vector<16x384xf32>
    tpu.vector_store %arg3[%c0_4, %c0_5], %4 {strides = array<i32>} : memref<16x384xf32, #tpu.memory_space<vmem>>, vector<16x384xf32>,
    return
  }
  func.func @transform_0(%arg0: i32) -> (i32, i32) {
    %c0_i32 = arith.constant 0 : i32
    %c0_i32_0 = arith.constant 0 : i32
    %c0_i32_1 = arith.constant 0 : i32
    return %c0_i32, %c0_i32_0 : i32, i32
  }
  func.func @transform_1(%arg0: i32) -> (i32, i32) {
    %c0_i32 = arith.constant 0 : i32
    %c0_i32_0 = arith.constant 0 : i32
    %c0_i32_1 = arith.constant 0 : i32
    return %c0_i32, %c0_i32_0 : i32, i32
  }
  func.func @transform_2(%arg0: i32) -> (i32, i32) {
    %c0_i32 = arith.constant 0 : i32
    %c0_i32_0 = arith.constant 0 : i32
    %c0_i32_1 = arith.constant 0 : i32
    return %c0_i32, %c0_i32_0 : i32, i32
  }
}

module attributes {stable_mosaic.version = 11 : i64} {
  func.func @_cam_kernel(%arg0: i32, %arg1: memref<6x16x64xf32, #tpu.memory_space<vmem>>, %arg2: memref<6x16x64xf32, #tpu.memory_space<vmem>>) attributes {dimension_semantics = [#tpu.dimension_semantics<arbitrary>], iteration_bounds = array<i64: 1>, scalar_prefetch = 0 : i64, scratch_operands = 0 : i64, tpu.core_type = #tpu.core_type<tc>, window_params = [{pipeline_mode = #tpu.pipeline_mode<synchronous>, transform_indices = @transform_0, window_bounds = array<i64: 6, 16, 64>}, {pipeline_mode = #tpu.pipeline_mode<synchronous>, transform_indices = @transform_1, window_bounds = array<i64: 6, 16, 64>}]} {
    %c0 = arith.constant 0 : index
    %c0_0 = arith.constant 0 : index
    %c0_1 = arith.constant 0 : index
    %0 = vector.load %arg1[%c0, %c0_0, %c0_1] : memref<6x16x64xf32, #tpu.memory_space<vmem>>, vector<6x16x64xf32>
    "tpu.trace_start"() <{level = 10 : i32, message = "bcl,bdl->bcd"}> : () -> ()
    %cst = arith.constant dense<0.000000e+00> : vector<6x16x16xf32>
    %1 = tpu.matmul %0, %0, %cst {dimension_numbers = #tpu.dot_dimension_numbers<[2], [2], [1], [1], [0, 0, 0, 1, 1, 1], [0], [0]>} : vector<6x16x64xf32>, vector<6x16x64xf32>, vector<6x16x16xf32> -> vector<6x16x16xf32>
    "tpu.trace_stop"() : () -> ()
    %cst_2 = arith.constant dense<0x7F800000> : vector<6x16xf32>
    %2 = vector.multi_reduction <minimumf>, %1, %cst_2 [2] : vector<6x16x16xf32> to vector<6x16xf32>
    %3 = vector.shape_cast %2 : vector<6x16xf32> to vector<6x16x1xf32>
    %4 = vector.broadcast %3 : vector<6x16x1xf32> to vector<6x16x16xf32>
    %5 = arith.subf %4, %1 : vector<6x16x16xf32>
    %6 = math.exp %5 : vector<6x16x16xf32>
    %cst_3 = arith.constant dense<0.000000e+00> : vector<6x16xf32>
    %7 = vector.multi_reduction <add>, %6, %cst_3 [2] : vector<6x16x16xf32> to vector<6x16xf32>
    %8 = vector.shape_cast %7 : vector<6x16xf32> to vector<6x16x1xf32>
    %9 = tpu.reciprocal %8 {approx = true} : vector<6x16x1xf32> -> vector<6x16x1xf32>
    %10 = vector.broadcast %9 : vector<6x16x1xf32> to vector<6x16x16xf32>
    %11 = arith.mulf %6, %10 : vector<6x16x16xf32>
    "tpu.trace_start"() <{level = 10 : i32, message = "bcd,bdl->bcl"}> : () -> ()
    %cst_4 = arith.constant dense<0.000000e+00> : vector<6x16x64xf32>
    %12 = tpu.matmul %11, %0, %cst_4 {dimension_numbers = #tpu.dot_dimension_numbers<[2], [1], [1], [2], [0, 0, 0, 1, 1, 2], [0], [0]>} : vector<6x16x16xf32>, vector<6x16x64xf32>, vector<6x16x64xf32> -> vector<6x16x64xf32>
    "tpu.trace_stop"() : () -> ()
    %cst_5 = arith.constant 5.000000e-01 : f32
    %13 = vector.broadcast %cst_5 : f32 to vector<6x16x64xf32>
    %14 = arith.mulf %13, %12 : vector<6x16x64xf32>
    %15 = arith.addf %14, %0 : vector<6x16x64xf32>
    %c0_6 = arith.constant 0 : index
    %c0_7 = arith.constant 0 : index
    %c0_8 = arith.constant 0 : index
    %16 = vector.load %arg2[%c0_6, %c0_7, %c0_8] : memref<6x16x64xf32, #tpu.memory_space<vmem>>, vector<6x16x64xf32>
    tpu.vector_store %arg2[%c0_6, %c0_7, %c0_8], %15 {strides = array<i32>} : memref<6x16x64xf32, #tpu.memory_space<vmem>>, vector<6x16x64xf32>,
    return
  }
  func.func @transform_0(%arg0: i32) -> (i32, i32, i32) {
    %c0_i32 = arith.constant 0 : i32
    %c0_i32_0 = arith.constant 0 : i32
    %c0_i32_1 = arith.constant 0 : i32
    %c0_i32_2 = arith.constant 0 : i32
    return %c0_i32, %c0_i32_0, %c0_i32_1 : i32, i32, i32
  }
  func.func @transform_1(%arg0: i32) -> (i32, i32, i32) {
    %c0_i32 = arith.constant 0 : i32
    %c0_i32_0 = arith.constant 0 : i32
    %c0_i32_1 = arith.constant 0 : i32
    %c0_i32_2 = arith.constant 0 : i32
    return %c0_i32, %c0_i32_0, %c0_i32_1 : i32, i32, i32
  }
}

module attributes {stable_mosaic.version = 11 : i64} {
  func.func @_cca_kernel(%arg0: i32, %arg1: memref<1x8x8x16xf32, #tpu.memory_space<vmem>>, %arg2: memref<16x20xbf16, #tpu.memory_space<vmem>>, %arg3: memref<1x20xf32, #tpu.memory_space<vmem>>, %arg4: memref<1x8x8x16xf32, #tpu.memory_space<vmem>>) attributes {dimension_semantics = [#tpu.dimension_semantics<parallel>], iteration_bounds = array<i64: 6>, scalar_prefetch = 0 : i64, scratch_operands = 0 : i64, tpu.core_type = #tpu.core_type<tc>, window_params = [{transform_indices = @transform_0, window_bounds = array<i64: 1, 8, 8, 16>}, {pipeline_mode = #tpu.pipeline_mode<synchronous>, transform_indices = @transform_1, window_bounds = array<i64: 16, 20>}, {pipeline_mode = #tpu.pipeline_mode<synchronous>, transform_indices = @transform_2, window_bounds = array<i64: 1, 20>}, {transform_indices = @transform_3, window_bounds = array<i64: 1, 8, 8, 16>}]} {
    %c0 = arith.constant 0 : index
    %c0_0 = arith.constant 0 : index
    %c0_1 = arith.constant 0 : index
    %c0_2 = arith.constant 0 : index
    %0 = vector.load %arg1[%c0, %c0_0, %c0_1, %c0_2] : memref<1x8x8x16xf32, #tpu.memory_space<vmem>>, vector<1x8x8x16xf32>
    %1 = vector.shape_cast %0 : vector<1x8x8x16xf32> to vector<8x8x16xf32>
    %c0_3 = arith.constant 0 : index
    %c0_4 = arith.constant 0 : index
    %2 = vector.load %arg2[%c0_3, %c0_4] : memref<16x20xbf16, #tpu.memory_space<vmem>>, vector<16x20xbf16>
    %c0_5 = arith.constant 0 : index
    %c0_6 = arith.constant 0 : index
    %3 = vector.load %arg3[%c0_5, %c0_6] : memref<1x20xf32, #tpu.memory_space<vmem>>, vector<1x20xf32>
    %4 = vector.shape_cast %1 : vector<8x8x16xf32> to vector<64x16xf32>
    %5 = arith.truncf %4 : vector<64x16xf32> to vector<64x16xbf16>
    %cst = arith.constant dense<0.000000e+00> : vector<64x20xf32>
    %6 = tpu.matmul %5, %2, %cst {dimension_numbers = #tpu.dot_dimension_numbers<[1], [0], [0], [1], [0, 0, 1, 1], [], []>} : vector<64x16xbf16>, vector<16x20xbf16>, vector<64x20xf32> -> vector<64x20xf32>
    %7 = vector.broadcast %3 : vector<1x20xf32> to vector<64x20xf32>
    %8 = arith.addf %6, %7 : vector<64x20xf32>
    %9 = vector.shape_cast %8 : vector<64x20xf32> to vector<8x8x20xf32>
    %10 = vector.extract_strided_slice %9 {offsets = [0, 0, 0], sizes = [8, 1, 20], strides = [1, 1, 1]} : vector<8x8x20xf32> to vector<8x1x20xf32>
    %11 = vector.shape_cast %10 : vector<8x1x20xf32> to vector<8x20xf32>
    %12 = vector.extract_strided_slice %9 {offsets = [0, 1, 0], sizes = [8, 1, 20], strides = [1, 1, 1]} : vector<8x8x20xf32> to vector<8x1x20xf32>
    %13 = vector.shape_cast %12 : vector<8x1x20xf32> to vector<8x20xf32>
    %14 = vector.extract_strided_slice %9 {offsets = [0, 2, 0], sizes = [8, 1, 20], strides = [1, 1, 1]} : vector<8x8x20xf32> to vector<8x1x20xf32>
    %15 = vector.shape_cast %14 : vector<8x1x20xf32> to vector<8x20xf32>
    %16 = vector.extract_strided_slice %9 {offsets = [0, 3, 0], sizes = [8, 1, 20], strides = [1, 1, 1]} : vector<8x8x20xf32> to vector<8x1x20xf32>
    %17 = vector.shape_cast %16 : vector<8x1x20xf32> to vector<8x20xf32>
    %18 = vector.extract_strided_slice %9 {offsets = [0, 4, 0], sizes = [8, 1, 20], strides = [1, 1, 1]} : vector<8x8x20xf32> to vector<8x1x20xf32>
    %19 = vector.shape_cast %18 : vector<8x1x20xf32> to vector<8x20xf32>
    %20 = vector.extract_strided_slice %9 {offsets = [0, 5, 0], sizes = [8, 1, 20], strides = [1, 1, 1]} : vector<8x8x20xf32> to vector<8x1x20xf32>
    %21 = vector.shape_cast %20 : vector<8x1x20xf32> to vector<8x20xf32>
    %22 = vector.extract_strided_slice %9 {offsets = [0, 6, 0], sizes = [8, 1, 20], strides = [1, 1, 1]} : vector<8x8x20xf32> to vector<8x1x20xf32>
    %23 = vector.shape_cast %22 : vector<8x1x20xf32> to vector<8x20xf32>
    %24 = vector.extract_strided_slice %9 {offsets = [0, 7, 0], sizes = [8, 1, 20], strides = [1, 1, 1]} : vector<8x8x20xf32> to vector<8x1x20xf32>
    %25 = vector.shape_cast %24 : vector<8x1x20xf32> to vector<8x20xf32>
    %26 = vector.shape_cast %11 : vector<8x20xf32> to vector<1x8x20xf32>
    %27 = vector.shape_cast %13 : vector<8x20xf32> to vector<1x8x20xf32>
    %28 = vector.shape_cast %15 : vector<8x20xf32> to vector<1x8x20xf32>
    %29 = vector.shape_cast %17 : vector<8x20xf32> to vector<1x8x20xf32>
    %30 = vector.shape_cast %19 : vector<8x20xf32> to vector<1x8x20xf32>
    %31 = vector.shape_cast %21 : vector<8x20xf32> to vector<1x8x20xf32>
    %32 = vector.shape_cast %23 : vector<8x20xf32> to vector<1x8x20xf32>
    %33 = vector.shape_cast %25 : vector<8x20xf32> to vector<1x8x20xf32>
    %34 = tpu.concatenate %26, %27, %28, %29, %30, %31, %32, %33 in 0 : vector<1x8x20xf32>, vector<1x8x20xf32>, vector<1x8x20xf32>, vector<1x8x20xf32>, vector<1x8x20xf32>, vector<1x8x20xf32>, vector<1x8x20xf32>, vector<1x8x20xf32> -> vector<8x8x20xf32>
    %35 = vector.extract_strided_slice %9 {offsets = [0, 0, 0], sizes = [8, 8, 2], strides = [1, 1, 1]} : vector<8x8x20xf32> to vector<8x8x2xf32>
    %36 = vector.extract_strided_slice %9 {offsets = [0, 0, 2], sizes = [8, 8, 2], strides = [1, 1, 1]} : vector<8x8x20xf32> to vector<8x8x2xf32>
    %37 = vector.extract_strided_slice %9 {offsets = [0, 0, 4], sizes = [8, 8, 16], strides = [1, 1, 1]} : vector<8x8x20xf32> to vector<8x8x16xf32>
    %38 = vector.extract_strided_slice %34 {offsets = [0, 0, 0], sizes = [8, 8, 2], strides = [1, 1, 1]} : vector<8x8x20xf32> to vector<8x8x2xf32>
    %39 = vector.extract_strided_slice %34 {offsets = [0, 0, 2], sizes = [8, 8, 2], strides = [1, 1, 1]} : vector<8x8x20xf32> to vector<8x8x2xf32>
    %40 = vector.extract_strided_slice %34 {offsets = [0, 0, 4], sizes = [8, 8, 16], strides = [1, 1, 1]} : vector<8x8x20xf32> to vector<8x8x16xf32>
    "tpu.trace_start"() <{level = 10 : i32, message = "whq,wpq->whp"}> : () -> ()
    %cst_7 = arith.constant dense<0.000000e+00> : vector<8x8x8xf32>
    %41 = tpu.matmul %38, %39, %cst_7 {dimension_numbers = #tpu.dot_dimension_numbers<[2], [2], [1], [1], [0, 0, 0, 1, 1, 1], [0], [0]>} : vector<8x8x2xf32>, vector<8x8x2xf32>, vector<8x8x8xf32> -> vector<8x8x8xf32>
    "tpu.trace_stop"() : () -> ()
    "tpu.trace_start"() <{level = 10 : i32, message = "hwq,hpq->hwp"}> : () -> ()
    %cst_8 = arith.constant dense<0.000000e+00> : vector<8x8x8xf32>
    %42 = tpu.matmul %35, %36, %cst_8 {dimension_numbers = #tpu.dot_dimension_numbers<[2], [2], [1], [1], [0, 0, 0, 1, 1, 1], [0], [0]>} : vector<8x8x2xf32>, vector<8x8x2xf32>, vector<8x8x8xf32> -> vector<8x8x8xf32>
    "tpu.trace_stop"() : () -> ()
    %43 = tpu.iota {dimensions = array<i32: 0>} : vector<8x8xi32>
    %44 = tpu.iota {dimensions = array<i32: 1>} : vector<8x8xi32>
    %45 = arith.cmpi eq, %43, %44 : vector<8x8xi32>
    %cst_9 = arith.constant -1.000000e+30 : f32
    %cst_10 = arith.constant 0.000000e+00 : f32
    %46 = vector.broadcast %cst_9 : f32 to vector<8x8xf32>
    %47 = vector.broadcast %cst_10 : f32 to vector<8x8xf32>
    %48 = arith.select %45, %46, %47 : vector<8x8xi1>, vector<8x8xf32>
    %49 = vector.shape_cast %48 : vector<8x8xf32> to vector<1x8x8xf32>
    %50 = vector.broadcast %49 : vector<1x8x8xf32> to vector<8x8x8xf32>
    %51 = arith.addf %41, %50 : vector<8x8x8xf32>
    %cst_11 = arith.constant dense<0xFF800000> : vector<8x8xf32>
    %52 = vector.multi_reduction <maximumf>, %51, %cst_11 [2] : vector<8x8x8xf32> to vector<8x8xf32>
    %cst_12 = arith.constant dense<0xFF800000> : vector<8x8xf32>
    %53 = vector.multi_reduction <maximumf>, %42, %cst_12 [2] : vector<8x8x8xf32> to vector<8x8xf32>
    %54 = tpu.transpose %52, [1, 0] : vector<8x8xf32> -> vector<8x8xf32>
    %55 = arith.maximumf %54, %53 : vector<8x8xf32>
    %56 = tpu.transpose %55, [1, 0] : vector<8x8xf32> -> vector<8x8xf32>
    %57 = vector.shape_cast %56 : vector<8x8xf32> to vector<8x8x1xf32>
    %58 = vector.broadcast %57 : vector<8x8x1xf32> to vector<8x8x8xf32>
    %59 = arith.subf %51, %58 : vector<8x8x8xf32>
    %60 = math.exp %59 : vector<8x8x8xf32>
    %61 = vector.shape_cast %55 : vector<8x8xf32> to vector<8x8x1xf32>
    %62 = vector.broadcast %61 : vector<8x8x1xf32> to vector<8x8x8xf32>
    %63 = arith.subf %42, %62 : vector<8x8x8xf32>
    %64 = math.exp %63 : vector<8x8x8xf32>
    %cst_13 = arith.constant dense<0.000000e+00> : vector<8x8xf32>
    %65 = vector.multi_reduction <add>, %60, %cst_13 [2] : vector<8x8x8xf32> to vector<8x8xf32>
    %66 = tpu.transpose %65, [1, 0] : vector<8x8xf32> -> vector<8x8xf32>
    %cst_14 = arith.constant dense<0.000000e+00> : vector<8x8xf32>
    %67 = vector.multi_reduction <add>, %64, %cst_14 [2] : vector<8x8x8xf32> to vector<8x8xf32>
    %68 = arith.addf %66, %67 : vector<8x8xf32>
    %69 = tpu.reciprocal %68 {approx = true} : vector<8x8xf32> -> vector<8x8xf32>
    %70 = tpu.transpose %69, [1, 0] : vector<8x8xf32> -> vector<8x8xf32>
    %71 = vector.shape_cast %70 : vector<8x8xf32> to vector<8x8x1xf32>
    %72 = vector.broadcast %71 : vector<8x8x1xf32> to vector<8x8x8xf32>
    %73 = arith.mulf %60, %72 : vector<8x8x8xf32>
    %74 = vector.shape_cast %69 : vector<8x8xf32> to vector<8x8x1xf32>
    %75 = vector.broadcast %74 : vector<8x8x1xf32> to vector<8x8x8xf32>
    %76 = arith.mulf %64, %75 : vector<8x8x8xf32>
    "tpu.trace_start"() <{level = 10 : i32, message = "whp,wpc->whc"}> : () -> ()
    %cst_15 = arith.constant dense<0.000000e+00> : vector<8x8x16xf32>
    %77 = tpu.matmul %73, %40, %cst_15 {dimension_numbers = #tpu.dot_dimension_numbers<[2], [1], [1], [2], [0, 0, 0, 1, 1, 2], [0], [0]>} : vector<8x8x8xf32>, vector<8x8x16xf32>, vector<8x8x16xf32> -> vector<8x8x16xf32>
    "tpu.trace_stop"() : () -> ()
    "tpu.trace_start"() <{level = 10 : i32, message = "hwp,hpc->hwc"}> : () -> ()
    %cst_16 = arith.constant dense<0.000000e+00> : vector<8x8x16xf32>
    %78 = tpu.matmul %76, %37, %cst_16 {dimension_numbers = #tpu.dot_dimension_numbers<[2], [1], [1], [2], [0, 0, 0, 1, 1, 2], [0], [0]>} : vector<8x8x8xf32>, vector<8x8x16xf32>, vector<8x8x16xf32> -> vector<8x8x16xf32>
    "tpu.trace_stop"() : () -> ()
    %79 = vector.extract_strided_slice %77 {offsets = [0, 0, 0], sizes = [8, 1, 16], strides = [1, 1, 1]} : vector<8x8x16xf32> to vector<8x1x16xf32>
    %80 = vector.shape_cast %79 : vector<8x1x16xf32> to vector<8x16xf32>
    %81 = vector.extract_strided_slice %77 {offsets = [0, 1, 0], sizes = [8, 1, 16], strides = [1, 1, 1]} : vector<8x8x16xf32> to vector<8x1x16xf32>
    %82 = vector.shape_cast %81 : vector<8x1x16xf32> to vector<8x16xf32>
    %83 = vector.extract_strided_slice %77 {offsets = [0, 2, 0], sizes = [8, 1, 16], strides = [1, 1, 1]} : vector<8x8x16xf32> to vector<8x1x16xf32>
    %84 = vector.shape_cast %83 : vector<8x1x16xf32> to vector<8x16xf32>
    %85 = vector.extract_strided_slice %77 {offsets = [0, 3, 0], sizes = [8, 1, 16], strides = [1, 1, 1]} : vector<8x8x16xf32> to vector<8x1x16xf32>
    %86 = vector.shape_cast %85 : vector<8x1x16xf32> to vector<8x16xf32>
    %87 = vector.extract_strided_slice %77 {offsets = [0, 4, 0], sizes = [8, 1, 16], strides = [1, 1, 1]} : vector<8x8x16xf32> to vector<8x1x16xf32>
    %88 = vector.shape_cast %87 : vector<8x1x16xf32> to vector<8x16xf32>
    %89 = vector.extract_strided_slice %77 {offsets = [0, 5, 0], sizes = [8, 1, 16], strides = [1, 1, 1]} : vector<8x8x16xf32> to vector<8x1x16xf32>
    %90 = vector.shape_cast %89 : vector<8x1x16xf32> to vector<8x16xf32>
    %91 = vector.extract_strided_slice %77 {offsets = [0, 6, 0], sizes = [8, 1, 16], strides = [1, 1, 1]} : vector<8x8x16xf32> to vector<8x1x16xf32>
    %92 = vector.shape_cast %91 : vector<8x1x16xf32> to vector<8x16xf32>
    %93 = vector.extract_strided_slice %77 {offsets = [0, 7, 0], sizes = [8, 1, 16], strides = [1, 1, 1]} : vector<8x8x16xf32> to vector<8x1x16xf32>
    %94 = vector.shape_cast %93 : vector<8x1x16xf32> to vector<8x16xf32>
    %95 = vector.shape_cast %80 : vector<8x16xf32> to vector<1x8x16xf32>
    %96 = vector.shape_cast %82 : vector<8x16xf32> to vector<1x8x16xf32>
    %97 = vector.shape_cast %84 : vector<8x16xf32> to vector<1x8x16xf32>
    %98 = vector.shape_cast %86 : vector<8x16xf32> to vector<1x8x16xf32>
    %99 = vector.shape_cast %88 : vector<8x16xf32> to vector<1x8x16xf32>
    %100 = vector.shape_cast %90 : vector<8x16xf32> to vector<1x8x16xf32>
    %101 = vector.shape_cast %92 : vector<8x16xf32> to vector<1x8x16xf32>
    %102 = vector.shape_cast %94 : vector<8x16xf32> to vector<1x8x16xf32>
    %103 = tpu.concatenate %95, %96, %97, %98, %99, %100, %101, %102 in 0 : vector<1x8x16xf32>, vector<1x8x16xf32>, vector<1x8x16xf32>, vector<1x8x16xf32>, vector<1x8x16xf32>, vector<1x8x16xf32>, vector<1x8x16xf32>, vector<1x8x16xf32> -> vector<8x8x16xf32>
    %104 = arith.addf %103, %78 : vector<8x8x16xf32>
    %cst_17 = arith.constant 5.000000e-01 : f32
    %105 = vector.broadcast %cst_17 : f32 to vector<8x8x16xf32>
    %106 = arith.mulf %105, %104 : vector<8x8x16xf32>
    %107 = arith.addf %106, %1 : vector<8x8x16xf32>
    %108 = vector.shape_cast %107 : vector<8x8x16xf32> to vector<64x16xf32>
    %109 = arith.truncf %108 : vector<64x16xf32> to vector<64x16xbf16>
    %cst_18 = arith.constant dense<0.000000e+00> : vector<64x20xf32>
    %110 = tpu.matmul %109, %2, %cst_18 {dimension_numbers = #tpu.dot_dimension_numbers<[1], [0], [0], [1], [0, 0, 1, 1], [], []>} : vector<64x16xbf16>, vector<16x20xbf16>, vector<64x20xf32> -> vector<64x20xf32>
    %111 = vector.broadcast %3 : vector<1x20xf32> to vector<64x20xf32>
    %112 = arith.addf %110, %111 : vector<64x20xf32>
    %113 = vector.shape_cast %112 : vector<64x20xf32> to vector<8x8x20xf32>
    %114 = vector.extract_strided_slice %113 {offsets = [0, 0, 0], sizes = [8, 1, 20], strides = [1, 1, 1]} : vector<8x8x20xf32> to vector<8x1x20xf32>
    %115 = vector.shape_cast %114 : vector<8x1x20xf32> to vector<8x20xf32>
    %116 = vector.extract_strided_slice %113 {offsets = [0, 1, 0], sizes = [8, 1, 20], strides = [1, 1, 1]} : vector<8x8x20xf32> to vector<8x1x20xf32>
    %117 = vector.shape_cast %116 : vector<8x1x20xf32> to vector<8x20xf32>
    %118 = vector.extract_strided_slice %113 {offsets = [0, 2, 0], sizes = [8, 1, 20], strides = [1, 1, 1]} : vector<8x8x20xf32> to vector<8x1x20xf32>
    %119 = vector.shape_cast %118 : vector<8x1x20xf32> to vector<8x20xf32>
    %120 = vector.extract_strided_slice %113 {offsets = [0, 3, 0], sizes = [8, 1, 20], strides = [1, 1, 1]} : vector<8x8x20xf32> to vector<8x1x20xf32>
    %121 = vector.shape_cast %120 : vector<8x1x20xf32> to vector<8x20xf32>
    %122 = vector.extract_strided_slice %113 {offsets = [0, 4, 0], sizes = [8, 1, 20], strides = [1, 1, 1]} : vector<8x8x20xf32> to vector<8x1x20xf32>
    %123 = vector.shape_cast %122 : vector<8x1x20xf32> to vector<8x20xf32>
    %124 = vector.extract_strided_slice %113 {offsets = [0, 5, 0], sizes = [8, 1, 20], strides = [1, 1, 1]} : vector<8x8x20xf32> to vector<8x1x20xf32>
    %125 = vector.shape_cast %124 : vector<8x1x20xf32> to vector<8x20xf32>
    %126 = vector.extract_strided_slice %113 {offsets = [0, 6, 0], sizes = [8, 1, 20], strides = [1, 1, 1]} : vector<8x8x20xf32> to vector<8x1x20xf32>
    %127 = vector.shape_cast %126 : vector<8x1x20xf32> to vector<8x20xf32>
    %128 = vector.extract_strided_slice %113 {offsets = [0, 7, 0], sizes = [8, 1, 20], strides = [1, 1, 1]} : vector<8x8x20xf32> to vector<8x1x20xf32>
    %129 = vector.shape_cast %128 : vector<8x1x20xf32> to vector<8x20xf32>
    %130 = vector.shape_cast %115 : vector<8x20xf32> to vector<1x8x20xf32>
    %131 = vector.shape_cast %117 : vector<8x20xf32> to vector<1x8x20xf32>
    %132 = vector.shape_cast %119 : vector<8x20xf32> to vector<1x8x20xf32>
    %133 = vector.shape_cast %121 : vector<8x20xf32> to vector<1x8x20xf32>
    %134 = vector.shape_cast %123 : vector<8x20xf32> to vector<1x8x20xf32>
    %135 = vector.shape_cast %125 : vector<8x20xf32> to vector<1x8x20xf32>
    %136 = vector.shape_cast %127 : vector<8x20xf32> to vector<1x8x20xf32>
    %137 = vector.shape_cast %129 : vector<8x20xf32> to vector<1x8x20xf32>
    %138 = tpu.concatenate %130, %131, %132, %133, %134, %135, %136, %137 in 0 : vector<1x8x20xf32>, vector<1x8x20xf32>, vector<1x8x20xf32>, vector<1x8x20xf32>, vector<1x8x20xf32>, vector<1x8x20xf32>, vector<1x8x20xf32>, vector<1x8x20xf32> -> vector<8x8x20xf32>
    %139 = vector.extract_strided_slice %113 {offsets = [0, 0, 0], sizes = [8, 8, 2], strides = [1, 1, 1]} : vector<8x8x20xf32> to vector<8x8x2xf32>
    %140 = vector.extract_strided_slice %113 {offsets = [0, 0, 2], sizes = [8, 8, 2], strides = [1, 1, 1]} : vector<8x8x20xf32> to vector<8x8x2xf32>
    %141 = vector.extract_strided_slice %113 {offsets = [0, 0, 4], sizes = [8, 8, 16], strides = [1, 1, 1]} : vector<8x8x20xf32> to vector<8x8x16xf32>
    %142 = vector.extract_strided_slice %138 {offsets = [0, 0, 0], sizes = [8, 8, 2], strides = [1, 1, 1]} : vector<8x8x20xf32> to vector<8x8x2xf32>
    %143 = vector.extract_strided_slice %138 {offsets = [0, 0, 2], sizes = [8, 8, 2], strides = [1, 1, 1]} : vector<8x8x20xf32> to vector<8x8x2xf32>
    %144 = vector.extract_strided_slice %138 {offsets = [0, 0, 4], sizes = [8, 8, 16], strides = [1, 1, 1]} : vector<8x8x20xf32> to vector<8x8x16xf32>
    "tpu.trace_start"() <{level = 10 : i32, message = "whq,wpq->whp"}> : () -> ()
    %cst_19 = arith.constant dense<0.000000e+00> : vector<8x8x8xf32>
    %145 = tpu.matmul %142, %143, %cst_19 {dimension_numbers = #tpu.dot_dimension_numbers<[2], [2], [1], [1], [0, 0, 0, 1, 1, 1], [0], [0]>} : vector<8x8x2xf32>, vector<8x8x2xf32>, vector<8x8x8xf32> -> vector<8x8x8xf32>
    "tpu.trace_stop"() : () -> ()
    "tpu.trace_start"() <{level = 10 : i32, message = "hwq,hpq->hwp"}> : () -> ()
    %cst_20 = arith.constant dense<0.000000e+00> : vector<8x8x8xf32>
    %146 = tpu.matmul %139, %140, %cst_20 {dimension_numbers = #tpu.dot_dimension_numbers<[2], [2], [1], [1], [0, 0, 0, 1, 1, 1], [0], [0]>} : vector<8x8x2xf32>, vector<8x8x2xf32>, vector<8x8x8xf32> -> vector<8x8x8xf32>
    "tpu.trace_stop"() : () -> ()
    %147 = tpu.iota {dimensions = array<i32: 0>} : vector<8x8xi32>
    %148 = tpu.iota {dimensions = array<i32: 1>} : vector<8x8xi32>
    %149 = arith.cmpi eq, %147, %148 : vector<8x8xi32>
    %cst_21 = arith.constant -1.000000e+30 : f32
    %cst_22 = arith.constant 0.000000e+00 : f32
    %150 = vector.broadcast %cst_21 : f32 to vector<8x8xf32>
    %151 = vector.broadcast %cst_22 : f32 to vector<8x8xf32>
    %152 = arith.select %149, %150, %151 : vector<8x8xi1>, vector<8x8xf32>
    %153 = vector.shape_cast %152 : vector<8x8xf32> to vector<1x8x8xf32>
    %154 = vector.broadcast %153 : vector<1x8x8xf32> to vector<8x8x8xf32>
    %155 = arith.addf %145, %154 : vector<8x8x8xf32>
    %cst_23 = arith.constant dense<0xFF800000> : vector<8x8xf32>
    %156 = vector.multi_reduction <maximumf>, %155, %cst_23 [2] : vector<8x8x8xf32> to vector<8x8xf32>
    %cst_24 = arith.constant dense<0xFF800000> : vector<8x8xf32>
    %157 = vector.multi_reduction <maximumf>, %146, %cst_24 [2] : vector<8x8x8xf32> to vector<8x8xf32>
    %158 = tpu.transpose %156, [1, 0] : vector<8x8xf32> -> vector<8x8xf32>
    %159 = arith.maximumf %158, %157 : vector<8x8xf32>
    %160 = tpu.transpose %159, [1, 0] : vector<8x8xf32> -> vector<8x8xf32>
    %161 = vector.shape_cast %160 : vector<8x8xf32> to vector<8x8x1xf32>
    %162 = vector.broadcast %161 : vector<8x8x1xf32> to vector<8x8x8xf32>
    %163 = arith.subf %155, %162 : vector<8x8x8xf32>
    %164 = math.exp %163 : vector<8x8x8xf32>
    %165 = vector.shape_cast %159 : vector<8x8xf32> to vector<8x8x1xf32>
    %166 = vector.broadcast %165 : vector<8x8x1xf32> to vector<8x8x8xf32>
    %167 = arith.subf %146, %166 : vector<8x8x8xf32>
    %168 = math.exp %167 : vector<8x8x8xf32>
    %cst_25 = arith.constant dense<0.000000e+00> : vector<8x8xf32>
    %169 = vector.multi_reduction <add>, %164, %cst_25 [2] : vector<8x8x8xf32> to vector<8x8xf32>
    %170 = tpu.transpose %169, [1, 0] : vector<8x8xf32> -> vector<8x8xf32>
    %cst_26 = arith.constant dense<0.000000e+00> : vector<8x8xf32>
    %171 = vector.multi_reduction <add>, %168, %cst_26 [2] : vector<8x8x8xf32> to vector<8x8xf32>
    %172 = arith.addf %170, %171 : vector<8x8xf32>
    %173 = tpu.reciprocal %172 {approx = true} : vector<8x8xf32> -> vector<8x8xf32>
    %174 = tpu.transpose %173, [1, 0] : vector<8x8xf32> -> vector<8x8xf32>
    %175 = vector.shape_cast %174 : vector<8x8xf32> to vector<8x8x1xf32>
    %176 = vector.broadcast %175 : vector<8x8x1xf32> to vector<8x8x8xf32>
    %177 = arith.mulf %164, %176 : vector<8x8x8xf32>
    %178 = vector.shape_cast %173 : vector<8x8xf32> to vector<8x8x1xf32>
    %179 = vector.broadcast %178 : vector<8x8x1xf32> to vector<8x8x8xf32>
    %180 = arith.mulf %168, %179 : vector<8x8x8xf32>
    "tpu.trace_start"() <{level = 10 : i32, message = "whp,wpc->whc"}> : () -> ()
    %cst_27 = arith.constant dense<0.000000e+00> : vector<8x8x16xf32>
    %181 = tpu.matmul %177, %144, %cst_27 {dimension_numbers = #tpu.dot_dimension_numbers<[2], [1], [1], [2], [0, 0, 0, 1, 1, 2], [0], [0]>} : vector<8x8x8xf32>, vector<8x8x16xf32>, vector<8x8x16xf32> -> vector<8x8x16xf32>
    "tpu.trace_stop"() : () -> ()
    "tpu.trace_start"() <{level = 10 : i32, message = "hwp,hpc->hwc"}> : () -> ()
    %cst_28 = arith.constant dense<0.000000e+00> : vector<8x8x16xf32>
    %182 = tpu.matmul %180, %141, %cst_28 {dimension_numbers = #tpu.dot_dimension_numbers<[2], [1], [1], [2], [0, 0, 0, 1, 1, 2], [0], [0]>} : vector<8x8x8xf32>, vector<8x8x16xf32>, vector<8x8x16xf32> -> vector<8x8x16xf32>
    "tpu.trace_stop"() : () -> ()
    %183 = vector.extract_strided_slice %181 {offsets = [0, 0, 0], sizes = [8, 1, 16], strides = [1, 1, 1]} : vector<8x8x16xf32> to vector<8x1x16xf32>
    %184 = vector.shape_cast %183 : vector<8x1x16xf32> to vector<8x16xf32>
    %185 = vector.extract_strided_slice %181 {offsets = [0, 1, 0], sizes = [8, 1, 16], strides = [1, 1, 1]} : vector<8x8x16xf32> to vector<8x1x16xf32>
    %186 = vector.shape_cast %185 : vector<8x1x16xf32> to vector<8x16xf32>
    %187 = vector.extract_strided_slice %181 {offsets = [0, 2, 0], sizes = [8, 1, 16], strides = [1, 1, 1]} : vector<8x8x16xf32> to vector<8x1x16xf32>
    %188 = vector.shape_cast %187 : vector<8x1x16xf32> to vector<8x16xf32>
    %189 = vector.extract_strided_slice %181 {offsets = [0, 3, 0], sizes = [8, 1, 16], strides = [1, 1, 1]} : vector<8x8x16xf32> to vector<8x1x16xf32>
    %190 = vector.shape_cast %189 : vector<8x1x16xf32> to vector<8x16xf32>
    %191 = vector.extract_strided_slice %181 {offsets = [0, 4, 0], sizes = [8, 1, 16], strides = [1, 1, 1]} : vector<8x8x16xf32> to vector<8x1x16xf32>
    %192 = vector.shape_cast %191 : vector<8x1x16xf32> to vector<8x16xf32>
    %193 = vector.extract_strided_slice %181 {offsets = [0, 5, 0], sizes = [8, 1, 16], strides = [1, 1, 1]} : vector<8x8x16xf32> to vector<8x1x16xf32>
    %194 = vector.shape_cast %193 : vector<8x1x16xf32> to vector<8x16xf32>
    %195 = vector.extract_strided_slice %181 {offsets = [0, 6, 0], sizes = [8, 1, 16], strides = [1, 1, 1]} : vector<8x8x16xf32> to vector<8x1x16xf32>
    %196 = vector.shape_cast %195 : vector<8x1x16xf32> to vector<8x16xf32>
    %197 = vector.extract_strided_slice %181 {offsets = [0, 7, 0], sizes = [8, 1, 16], strides = [1, 1, 1]} : vector<8x8x16xf32> to vector<8x1x16xf32>
    %198 = vector.shape_cast %197 : vector<8x1x16xf32> to vector<8x16xf32>
    %199 = vector.shape_cast %184 : vector<8x16xf32> to vector<1x8x16xf32>
    %200 = vector.shape_cast %186 : vector<8x16xf32> to vector<1x8x16xf32>
    %201 = vector.shape_cast %188 : vector<8x16xf32> to vector<1x8x16xf32>
    %202 = vector.shape_cast %190 : vector<8x16xf32> to vector<1x8x16xf32>
    %203 = vector.shape_cast %192 : vector<8x16xf32> to vector<1x8x16xf32>
    %204 = vector.shape_cast %194 : vector<8x16xf32> to vector<1x8x16xf32>
    %205 = vector.shape_cast %196 : vector<8x16xf32> to vector<1x8x16xf32>
    %206 = vector.shape_cast %198 : vector<8x16xf32> to vector<1x8x16xf32>
    %207 = tpu.concatenate %199, %200, %201, %202, %203, %204, %205, %206 in 0 : vector<1x8x16xf32>, vector<1x8x16xf32>, vector<1x8x16xf32>, vector<1x8x16xf32>, vector<1x8x16xf32>, vector<1x8x16xf32>, vector<1x8x16xf32>, vector<1x8x16xf32> -> vector<8x8x16xf32>
    %208 = arith.addf %207, %182 : vector<8x8x16xf32>
    %cst_29 = arith.constant 5.000000e-01 : f32
    %209 = vector.broadcast %cst_29 : f32 to vector<8x8x16xf32>
    %210 = arith.mulf %209, %208 : vector<8x8x16xf32>
    %211 = arith.addf %210, %107 : vector<8x8x16xf32>
    %c0_30 = arith.constant 0 : index
    %c0_31 = arith.constant 0 : index
    %c0_32 = arith.constant 0 : index
    %c0_33 = arith.constant 0 : index
    %212 = vector.load %arg4[%c0_30, %c0_31, %c0_32, %c0_33] : memref<1x8x8x16xf32, #tpu.memory_space<vmem>>, vector<1x8x8x16xf32>
    %213 = vector.shape_cast %212 : vector<1x8x8x16xf32> to vector<8x8x16xf32>
    %214 = vector.shape_cast %211 : vector<8x8x16xf32> to vector<1x8x8x16xf32>
    tpu.vector_store %arg4[%c0_30, %c0_31, %c0_32, %c0_33], %214 {strides = array<i32>} : memref<1x8x8x16xf32, #tpu.memory_space<vmem>>, vector<1x8x8x16xf32>,
    return
  }
  func.func @transform_0(%arg0: i32) -> (i32, i32, i32, i32) {
    %c0_i32 = arith.constant 0 : i32
    %c0_i32_0 = arith.constant 0 : i32
    %c0_i32_1 = arith.constant 0 : i32
    %c0_i32_2 = arith.constant 0 : i32
    return %arg0, %c0_i32, %c0_i32_0, %c0_i32_1 : i32, i32, i32, i32
  }
  func.func @transform_1(%arg0: i32) -> (i32, i32) {
    %c0_i32 = arith.constant 0 : i32
    %c0_i32_0 = arith.constant 0 : i32
    %c0_i32_1 = arith.constant 0 : i32
    return %c0_i32, %c0_i32_0 : i32, i32
  }
  func.func @transform_2(%arg0: i32) -> (i32, i32) {
    %c0_i32 = arith.constant 0 : i32
    %c0_i32_0 = arith.constant 0 : i32
    %c0_i32_1 = arith.constant 0 : i32
    return %c0_i32, %c0_i32_0 : i32, i32
  }
  func.func @transform_3(%arg0: i32) -> (i32, i32, i32, i32) {
    %c0_i32 = arith.constant 0 : i32
    %c0_i32_0 = arith.constant 0 : i32
    %c0_i32_1 = arith.constant 0 : i32
    %c0_i32_2 = arith.constant 0 : i32
    return %arg0, %c0_i32, %c0_i32_0, %c0_i32_1 : i32, i32, i32, i32
  }
}

module attributes {stable_mosaic.version = 11 : i64} {
  func.func @_final_kernel(%arg0: i32, %arg1: memref<16x384xf32, #tpu.memory_space<vmem>>, %arg2: memref<16x384xf32, #tpu.memory_space<vmem>>, %arg3: memref<16x384xf32, #tpu.memory_space<vmem>>, %arg4: memref<16x384xf32, #tpu.memory_space<vmem>>, %arg5: memref<16x16xbf16, #tpu.memory_space<vmem>>, %arg6: memref<16x1xf32, #tpu.memory_space<vmem>>, %arg7: memref<16x384xf32, #tpu.memory_space<vmem>>) attributes {dimension_semantics = [#tpu.dimension_semantics<arbitrary>], iteration_bounds = array<i64: 1>, scalar_prefetch = 0 : i64, scratch_operands = 0 : i64, tpu.core_type = #tpu.core_type<tc>, window_params = [{pipeline_mode = #tpu.pipeline_mode<synchronous>, transform_indices = @transform_0, window_bounds = array<i64: 16, 384>}, {pipeline_mode = #tpu.pipeline_mode<synchronous>, transform_indices = @transform_1, window_bounds = array<i64: 16, 384>}, {pipeline_mode = #tpu.pipeline_mode<synchronous>, transform_indices = @transform_2, window_bounds = array<i64: 16, 384>}, {pipeline_mode = #tpu.pipeline_mode<synchronous>, transform_indices = @transform_3, window_bounds = array<i64: 16, 384>}, {pipeline_mode = #tpu.pipeline_mode<synchronous>, transform_indices = @transform_4, window_bounds = array<i64: 16, 16>}, {pipeline_mode = #tpu.pipeline_mode<synchronous>, transform_indices = @transform_5, window_bounds = array<i64: 16, 1>}, {pipeline_mode = #tpu.pipeline_mode<synchronous>, transform_indices = @transform_6, window_bounds = array<i64: 16, 384>}]} {
    %c0 = arith.constant 0 : index
    %c0_0 = arith.constant 0 : index
    %0 = vector.load %arg1[%c0, %c0_0] : memref<16x384xf32, #tpu.memory_space<vmem>>, vector<16x384xf32>
    %c0_1 = arith.constant 0 : index
    %c0_2 = arith.constant 0 : index
    %1 = vector.load %arg2[%c0_1, %c0_2] : memref<16x384xf32, #tpu.memory_space<vmem>>, vector<16x384xf32>
    %2 = arith.addf %0, %1 : vector<16x384xf32>
    %c0_3 = arith.constant 0 : index
    %c0_4 = arith.constant 0 : index
    %3 = vector.load %arg3[%c0_3, %c0_4] : memref<16x384xf32, #tpu.memory_space<vmem>>, vector<16x384xf32>
    %4 = arith.addf %2, %3 : vector<16x384xf32>
    %c0_5 = arith.constant 0 : index
    %c0_6 = arith.constant 0 : index
    %5 = vector.load %arg5[%c0_5, %c0_6] : memref<16x16xbf16, #tpu.memory_space<vmem>>, vector<16x16xbf16>
    %6 = arith.truncf %4 : vector<16x384xf32> to vector<16x384xbf16>
    %cst = arith.constant dense<0.000000e+00> : vector<16x384xf32>
    %7 = tpu.matmul %5, %6, %cst {dimension_numbers = #tpu.dot_dimension_numbers<[1], [0], [0], [1], [0, 0, 1, 1], [], []>} : vector<16x16xbf16>, vector<16x384xbf16>, vector<16x384xf32> -> vector<16x384xf32>
    %c0_7 = arith.constant 0 : index
    %c0_8 = arith.constant 0 : index
    %8 = vector.load %arg6[%c0_7, %c0_8] : memref<16x1xf32, #tpu.memory_space<vmem>>, vector<16x1xf32>
    %9 = vector.broadcast %8 : vector<16x1xf32> to vector<16x384xf32>
    %10 = arith.addf %7, %9 : vector<16x384xf32>
    %c0_9 = arith.constant 0 : index
    %c0_10 = arith.constant 0 : index
    %11 = vector.load %arg4[%c0_9, %c0_10] : memref<16x384xf32, #tpu.memory_space<vmem>>, vector<16x384xf32>
    %12 = arith.addf %10, %11 : vector<16x384xf32>
    %c0_11 = arith.constant 0 : index
    %c0_12 = arith.constant 0 : index
    %13 = vector.load %arg7[%c0_11, %c0_12] : memref<16x384xf32, #tpu.memory_space<vmem>>, vector<16x384xf32>
    tpu.vector_store %arg7[%c0_11, %c0_12], %12 {strides = array<i32>} : memref<16x384xf32, #tpu.memory_space<vmem>>, vector<16x384xf32>,
    return
  }
  func.func @transform_0(%arg0: i32) -> (i32, i32) {
    %c0_i32 = arith.constant 0 : i32
    %c0_i32_0 = arith.constant 0 : i32
    %c0_i32_1 = arith.constant 0 : i32
    return %c0_i32, %c0_i32_0 : i32, i32
  }
  func.func @transform_1(%arg0: i32) -> (i32, i32) {
    %c0_i32 = arith.constant 0 : i32
    %c0_i32_0 = arith.constant 0 : i32
    %c0_i32_1 = arith.constant 0 : i32
    return %c0_i32, %c0_i32_0 : i32, i32
  }
  func.func @transform_2(%arg0: i32) -> (i32, i32) {
    %c0_i32 = arith.constant 0 : i32
    %c0_i32_0 = arith.constant 0 : i32
    %c0_i32_1 = arith.constant 0 : i32
    return %c0_i32, %c0_i32_0 : i32, i32
  }
  func.func @transform_3(%arg0: i32) -> (i32, i32) {
    %c0_i32 = arith.constant 0 : i32
    %c0_i32_0 = arith.constant 0 : i32
    %c0_i32_1 = arith.constant 0 : i32
    return %c0_i32, %c0_i32_0 : i32, i32
  }
  func.func @transform_4(%arg0: i32) -> (i32, i32) {
    %c0_i32 = arith.constant 0 : i32
    %c0_i32_0 = arith.constant 0 : i32
    %c0_i32_1 = arith.constant 0 : i32
    return %c0_i32, %c0_i32_0 : i32, i32
  }
  func.func @transform_5(%arg0: i32) -> (i32, i32) {
    %c0_i32 = arith.constant 0 : i32
    %c0_i32_0 = arith.constant 0 : i32
    %c0_i32_1 = arith.constant 0 : i32
    return %c0_i32, %c0_i32_0 : i32, i32
  }
  func.func @transform_6(%arg0: i32) -> (i32, i32) {
    %c0_i32 = arith.constant 0 : i32
    %c0_i32_0 = arith.constant 0 : i32
    %c0_i32_1 = arith.constant 0 : i32
    return %c0_i32, %c0_i32_0 : i32, i32
  }
}

</mosaic_0001>

<llo_original>
// kernel: _lambda_.16
$region0: #{_lambda_.16}
  #allocation0 [shape = 'u32[]', space=smem, size = 0x4, offset = 0x4, fixed_abs, tag = 'smem constant byte address 0x4 - core index']
  #allocation1 [shape = 'u32[72,128]{1,0:T(1,128)}', space=vmem, size = 0x9000, scoped, tag = 'internal scratch']
  %s0 = inlined_call_operand.vmem [shape: bf16[3,27], index: 0, kind: input, shape index: {}]
  %s1 = inlined_call_operand.vmem [shape: bf16[27,2048], index: 1, kind: input, shape index: {}]
  %s2 = inlined_call_operand.vmem [shape: f32[3,2048], index: 2, kind: output, shape index: {}]
  %s3 = sld [smem:[#allocation0]]
  $region18: #{_lambda_.16} parent=0
    _
  %s5 = ssub.s32 1, %s3
  %s6 = scalar_select 0, %s5, %s3
  // Predicated region
  $region2: #{_lambda_.16} parent=0 // pred_check
    _
  $region3: #{_lambda_.16} parent=0 // pred_check_branch
    %8 = sbr.rel (0) target = $region5
  $region4: #{_lambda_.16} parent=0 // pred_region
    _
  $region5: #{_lambda_.16} parent=0 // pred_fallthru
    _
  // Predicated region
  $region6: #{_lambda_.16} parent=0 // pred_check
    _
  $region7: #{_lambda_.16} parent=0 // pred_check_branch
    %10 = sbr.rel (0) target = $region9
  $region8: #{_lambda_.16} parent=0 // pred_region
    _
  $region9: #{_lambda_.16} parent=0 // pred_fallthru
    _
  %v12 = vld [vmem:[%s0] sm:$0x3]
  %v13 = vld [vmem:[%s1] sm:$0xff]
  %v14 = vld [vmem:[%s1 + $0x8] sm:$0xff]
  %v15 = vld [vmem:[%s1 + $0x10] sm:$0xff]
  %v16 = vld [vmem:[%s1 + $0x18] sm:$0xff]
  %v17 = vld [vmem:[%s1 + $0x20] sm:$0xff]
  %v18 = vld [vmem:[%s1 + $0x28] sm:$0xff]
  %v19 = vld [vmem:[%s1 + $0x30] sm:$0xff]
  %v20 = vld [vmem:[%s1 + $0x38] sm:$0xff]
  %v21 = vld [vmem:[%s1 + $0x40] sm:$0xff]
  %v22 = vld [vmem:[%s1 + $0x48] sm:$0xff]
  %v23 = vld [vmem:[%s1 + $0x50] sm:$0xff]
  %v24 = vld [vmem:[%s1 + $0x58] sm:$0xff]
  %v25 = vld [vmem:[%s1 + $0x60] sm:$0xff]
  %v26 = vld [vmem:[%s1 + $0x68] sm:$0xff]
  %v27 = vld [vmem:[%s1 + $0x70] sm:$0xff]
  %v28 = vld [vmem:[%s1 + $0x78] sm:$0xff]
  %v29 = vld [vmem:[%s1 + $0x80] sm:$0xff]
  %v30 = vld [vmem:[%s1 + $0x88] sm:$0xff]
  %v31 = vld [vmem:[%s1 + $0x90] sm:$0xff]
  %v32 = vld [vmem:[%s1 + $0x98] sm:$0xff]
  %v33 = vld [vmem:[%s1 + $0xa0] sm:$0xff]
  %v34 = vld [vmem:[%s1 + $0xa8] sm:$0xff]
  %v35 = vld [vmem:[%s1 + $0xb0] sm:$0xff]
  %v36 = vld [vmem:[%s1 + $0xb8] sm:$0xff]
  %v37 = vld [vmem:[%s1 + $0xc0] sm:$0x33]
  %v38 = vld [vmem:[%s1 + $0xc8] sm:$0x33]
  %v39 = vld [vmem:[%s1 + $0xd0] sm:$0x33]
  %v40 = vld [vmem:[%s1 + $0xd8] sm:$0x33]
  %v41 = vld [vmem:[%s1 + $0xe0] sm:$0x33]
  %v42 = vld [vmem:[%s1 + $0xe8] sm:$0x33]
  %v43 = vld [vmem:[%s1 + $0xf0] sm:$0x33]
  %v44 = vld [vmem:[%s1 + $0xf8] sm:$0x33]
  %v77 = vunpack.c.l.b16 %v13
  %v78 = vunpack.c.h.b16 %v13
  %v79 = vunpack.c.l.b16 %v14
  %v80 = vunpack.c.h.b16 %v14
  %v81 = vunpack.c.l.b16 %v15
  %v82 = vunpack.c.h.b16 %v15
  %v83 = vunpack.c.l.b16 %v16
  %v84 = vunpack.c.h.b16 %v16
  %v85 = vunpack.c.l.b16 %v17
  %v86 = vunpack.c.h.b16 %v17
  %v87 = vunpack.c.l.b16 %v18
  %v88 = vunpack.c.h.b16 %v18
  %v89 = vunpack.c.l.b16 %v19
  %v90 = vunpack.c.h.b16 %v19
  %v91 = vunpack.c.l.b16 %v20
  %v92 = vunpack.c.h.b16 %v20
  %v93 = vunpack.c.l.b16 %v21
  %v94 = vunpack.c.h.b16 %v21
  %v95 = vunpack.c.l.b16 %v22
  %v96 = vunpack.c.h.b16 %v22
  %v97 = vunpack.c.l.b16 %v23
  %v98 = vunpack.c.h.b16 %v23
  %v99 = vunpack.c.l.b16 %v24
  %v100 = vunpack.c.h.b16 %v24
  %v101 = vunpack.c.l.b16 %v25
  %v102 = vunpack.c.h.b16 %v25
  %v103 = vunpack.c.l.b16 %v26
  %v104 = vunpack.c.h.b16 %v26
  %v105 = vunpack.c.l.b16 %v27
  %v106 = vunpack.c.h.b16 %v27
  %v107 = vunpack.c.l.b16 %v28
  %v108 = vunpack.c.h.b16 %v28
  %v109 = vunpack.c.l.b16 %v29
  %v110 = vunpack.c.h.b16 %v29
  %v111 = vunpack.c.l.b16 %v30
  %v112 = vunpack.c.h.b16 %v30
  %v113 = vunpack.c.l.b16 %v31
  %v114 = vunpack.c.h.b16 %v31
  %v115 = vunpack.c.l.b16 %v32
  %v116 = vunpack.c.h.b16 %v32
  %v117 = vunpack.c.l.b16 %v33
  %v118 = vunpack.c.h.b16 %v33
  %v119 = vunpack.c.l.b16 %v34
  %v120 = vunpack.c.h.b16 %v34
  %v121 = vunpack.c.l.b16 %v35
  %v122 = vunpack.c.h.b16 %v35
  %v123 = vunpack.c.l.b16 %v36
  %v124 = vunpack.c.h.b16 %v36
  %v125 = vunpack.c.l.b16 %v37
  %v126 = vunpack.c.h.b16 %v37
  %v127 = vunpack.c.l.b16 %v38
  %v128 = vunpack.c.h.b16 %v38
  %v129 = vunpack.c.l.b16 %v39
  %v130 = vunpack.c.h.b16 %v39
  %v131 = vunpack.c.l.b16 %v40
  %v132 = vunpack.c.h.b16 %v40
  %v133 = vunpack.c.l.b16 %v41
  %v134 = vunpack.c.h.b16 %v41
  %v135 = vunpack.c.l.b16 %v42
  %v136 = vunpack.c.h.b16 %v42
  %v137 = vunpack.c.l.b16 %v43
  %v138 = vunpack.c.h.b16 %v43
  %v139 = vunpack.c.l.b16 %v44
  %v140 = vunpack.c.h.b16 %v44
  %v141 = vpack.c.b16 %v93, %v77
  %v142 = vpack.c.b16 %v94, %v78
  %v143 = vpack.c.b16 %v95, %v79
  %v144 = vpack.c.b16 %v96, %v80
  %v145 = vpack.c.b16 %v97, %v81
  %v146 = vpack.c.b16 %v98, %v82
  %v147 = vpack.c.b16 %v99, %v83
  %v148 = vpack.c.b16 %v100, %v84
  %v149 = vpack.c.b16 %v101, %v85
  %v150 = vpack.c.b16 %v102, %v86
  %v151 = vpack.c.b16 %v103, %v87
  %v152 = vpack.c.b16 %v104, %v88
  %v153 = vpack.c.b16 %v105, %v89
  %v154 = vpack.c.b16 %v106, %v90
  %v155 = vpack.c.b16 %v107, %v91
  %v156 = vpack.c.b16 %v108, %v92
  %v157 = vpack.c.b16 %v125, %v109
  %v158 = vpack.c.b16 %v126, %v110
  %v159 = vpack.c.b16 %v127, %v111
  %v160 = vpack.c.b16 %v128, %v112
  %v161 = vpack.c.b16 %v129, %v113
  %v162 = vpack.c.b16 %v130, %v114
  %v163 = vpack.c.b16 %v131, %v115
  %v164 = vpack.c.b16 %v132, %v116
  %v165 = vpack.c.b16 %v133, %v117
  %v166 = vpack.c.b16 %v134, %v118
  %v167 = vpack.c.b16 %v135, %v119
  %v168 = vpack.c.b16 %v136, %v120
  %v169 = vpack.c.b16 %v137, %v121
  %v170 = vpack.c.b16 %v138, %v122
  %v171 = vpack.c.b16 %v139, %v123
  %v172 = vpack.c.b16 %v140, %v124
  %vm189 = vcmask 220160
  %v191 = vsel %vm189, %v12, 0
  %vm193 = vcmask 1044480
  %vm194 = vcmask 1045504
  %v195 = vsel %vm193, 4294967295, 65535
  %v196 = vsel %vm194, %v195, 0
  %v198 = vand.u32 %v157, %v196
  %v201 = vand.u32 %v158, %v196
  %v204 = vand.u32 %v159, %v196
  %v207 = vand.u32 %v160, %v196
  %v210 = vand.u32 %v161, %v196
  %v213 = vand.u32 %v162, %v196
  %v216 = vand.u32 %v163, %v196
  %v219 = vand.u32 %v164, %v196
  %v222 = vand.u32 %v165, %v196
  %v225 = vand.u32 %v166, %v196
  %v228 = vand.u32 %v167, %v196
  %v231 = vand.u32 %v168, %v196
  %v234 = vand.u32 %v169, %v196
  %v237 = vand.u32 %v170, %v196
  %v240 = vand.u32 %v171, %v196
  %v243 = vand.u32 %v172, %v196
  %245 = vmatpush.bf16.msra.mxu0 0
  %246 = vmatpush.bf16.msra.mxu0 0
  %247 = vmatpush.bf16.msra.mxu0 0
  %248 = vmatpush.bf16.msra.mxu0 0
  %249 = vmatpush.bf16.msra.mxu0 0
  %250 = vmatpush.bf16.msra.mxu0 0
  %251 = vmatpush.bf16.msra.mxu0 %v198
  %252 = vmatpush.bf16.msra.mxu0 %v141
  %253 = vmatmul.bf16.gmra.mxu0 %v191
  %v254 = vpop.f32.mrf.mxu0
  %v255 = vadd.f32 0.0, %v254
  %v256 = vpop.f32.mrf.mxu0
  %257 = vdwg.mxu0
  %258 = vmatpush.bf16.msra.mxu0 0
  %259 = vmatpush.bf16.msra.mxu0 0
  %260 = vmatpush.bf16.msra.mxu0 0
  %261 = vmatpush.bf16.msra.mxu0 0
  %262 = vmatpush.bf16.msra.mxu0 0
  %263 = vmatpush.bf16.msra.mxu0 0
  %264 = vmatpush.bf16.msra.mxu0 %v201
  %265 = vmatpush.bf16.msra.mxu0 %v142
  %266 = vmatmul.bf16.gmra.mxu0 %v191
  %v267 = vpop.f32.mrf.mxu0
  %v268 = vadd.f32 0.0, %v267
  %v269 = vpop.f32.mrf.mxu0
  %270 = vdwg.mxu0
  %271 = vmatpush.bf16.msra.mxu0 0
  %272 = vmatpush.bf16.msra.mxu0 0
  %273 = vmatpush.bf16.msra.mxu0 0
  %274 = vmatpush.bf16.msra.mxu0 0
  %275 = vmatpush.bf16.msra.mxu0 0
  %276 = vmatpush.bf16.msra.mxu0 0
  %277 = vmatpush.bf16.msra.mxu0 %v204
  %278 = vmatpush.bf16.msra.mxu0 %v143
  %279 = vmatmul.bf16.gmra.mxu0 %v191
  %v280 = vpop.f32.mrf.mxu0
  %v281 = vadd.f32 0.0, %v280
  %v282 = vpop.f32.mrf.mxu0
  %283 = vdwg.mxu0
  %284 = vmatpush.bf16.msra.mxu0 0
  %285 = vmatpush.bf16.msra.mxu0 0
  %286 = vmatpush.bf16.msra.mxu0 0
  %287 = vmatpush.bf16.msra.mxu0 0
  %288 = vmatpush.bf16.msra.mxu0 0
  %289 = vmatpush.bf16.msra.mxu0 0
  %290 = vmatpush.bf16.msra.mxu0 %v207
  %291 = vmatpush.bf16.msra.mxu0 %v144
  %292 = vmatmul.bf16.gmra.mxu0 %v191
  %v293 = vpop.f32.mrf.mxu0
  %v294 = vadd.f32 0.0, %v293
  %v295 = vpop.f32.mrf.mxu0
  %296 = vdwg.mxu0
  %297 = vmatpush.bf16.msra.mxu0 0
  %298 = vmatpush.bf16.msra.mxu0 0
  %299 = vmatpush.bf16.msra.mxu0 0
  %300 = vmatpush.bf16.msra.mxu0 0
  %301 = vmatpush.bf16.msra.mxu0 0
  %302 = vmatpush.bf16.msra.mxu0 0
  %303 = vmatpush.bf16.msra.mxu0 %v210
  %304 = vmatpush.bf16.msra.mxu0 %v145
  %305 = vmatmul.bf16.gmra.mxu0 %v191
  %v306 = vpop.f32.mrf.mxu0
  %v307 = vadd.f32 0.0, %v306
  %v308 = vpop.f32.mrf.mxu0
  %309 = vdwg.mxu0
  %310 = vmatpush.bf16.msra.mxu0 0
  %311 = vmatpush.bf16.msra.mxu0 0
  %312 = vmatpush.bf16.msra.mxu0 0
  %313 = vmatpush.bf16.msra.mxu0 0
  %314 = vmatpush.bf16.msra.mxu0 0
  %315 = vmatpush.bf16.msra.mxu0 0
  %316 = vmatpush.bf16.msra.mxu0 %v213
  %317 = vmatpush.bf16.msra.mxu0 %v146
  %318 = vmatmul.bf16.gmra.mxu0 %v191
  %v319 = vpop.f32.mrf.mxu0
  %v320 = vadd.f32 0.0, %v319
  %v321 = vpop.f32.mrf.mxu0
  %322 = vdwg.mxu0
  %323 = vmatpush.bf16.msra.mxu0 0
  %324 = vmatpush.bf16.msra.mxu0 0
  %325 = vmatpush.bf16.msra.mxu0 0
  %326 = vmatpush.bf16.msra.mxu0 0
  %327 = vmatpush.bf16.msra.mxu0 0
  %328 = vmatpush.bf16.msra.mxu0 0
  %329 = vmatpush.bf16.msra.mxu0 %v216
  %330 = vmatpush.bf16.msra.mxu0 %v147
  %331 = vmatmul.bf16.gmra.mxu0 %v191
  %v332 = vpop.f32.mrf.mxu0
  %v333 = vadd.f32 0.0, %v332
  %v334 = vpop.f32.mrf.mxu0
  %335 = vdwg.mxu0
  %336 = vmatpush.bf16.msra.mxu0 0
  %337 = vmatpush.bf16.msra.mxu0 0
  %338 = vmatpush.bf16.msra.mxu0 0
  %339 = vmatpush.bf16.msra.mxu0 0
  %340 = vmatpush.bf16.msra.mxu0 0
  %341 = vmatpush.bf16.msra.mxu0 0
  %342 = vmatpush.bf16.msra.mxu0 %v219
  %343 = vmatpush.bf16.msra.mxu0 %v148
  %344 = vmatmul.bf16.gmra.mxu0 %v191
  %v345 = vpop.f32.mrf.mxu0
  %v346 = vadd.f32 0.0, %v345
  %v347 = vpop.f32.mrf.mxu0
  %348 = vdwg.mxu0
  %349 = vmatpush.bf16.msra.mxu0 0
  %350 = vmatpush.bf16.msra.mxu0 0
  %351 = vmatpush.bf16.msra.mxu0 0
  %352 = vmatpush.bf16.msra.mxu0 0
  %353 = vmatpush.bf16.msra.mxu0 0
  %354 = vmatpush.bf16.msra.mxu0 0
  %355 = vmatpush.bf16.msra.mxu0 %v222
  %356 = vmatpush.bf16.msra.mxu0 %v149
  %357 = vmatmul.bf16.gmra.mxu0 %v191
  %v358 = vpop.f32.mrf.mxu0
  %v359 = vadd.f32 0.0, %v358
  %v360 = vpop.f32.mrf.mxu0
  %361 = vdwg.mxu0
  %362 = vmatpush.bf16.msra.mxu0 0
  %363 = vmatpush.bf16.msra.mxu0 0
  %364 = vmatpush.bf16.msra.mxu0 0
  %365 = vmatpush.bf16.msra.mxu0 0
  %366 = vmatpush.bf16.msra.mxu0 0
  %367 = vmatpush.bf16.msra.mxu0 0
  %368 = vmatpush.bf16.msra.mxu0 %v225
  %369 = vmatpush.bf16.msra.mxu0 %v150
  %370 = vmatmul.bf16.gmra.mxu0 %v191
  %v371 = vpop.f32.mrf.mxu0
  %v372 = vadd.f32 0.0, %v371
  %v373 = vpop.f32.mrf.mxu0
  %374 = vdwg.mxu0
  %375 = vmatpush.bf16.msra.mxu0 0
  %376 = vmatpush.bf16.msra.mxu0 0
  %377 = vmatpush.bf16.msra.mxu0 0
  %378 = vmatpush.bf16.msra.mxu0 0
  %379 = vmatpush.bf16.msra.mxu0 0
  %380 = vmatpush.bf16.msra.mxu0 0
  %381 = vmatpush.bf16.msra.mxu0 %v228
  %382 = vmatpush.bf16.msra.mxu0 %v151
  %383 = vmatmul.bf16.gmra.mxu0 %v191
  %v384 = vpop.f32.mrf.mxu0
  %v385 = vadd.f32 0.0, %v384
  %v386 = vpop.f32.mrf.mxu0
  %387 = vdwg.mxu0
  %388 = vmatpush.bf16.msra.mxu0 0
  %389 = vmatpush.bf16.msra.mxu0 0
  %390 = vmatpush.bf16.msra.mxu0 0
  %391 = vmatpush.bf16.msra.mxu0 0
  %392 = vmatpush.bf16.msra.mxu0 0
  %393 = vmatpush.bf16.msra.mxu0 0
  %394 = vmatpush.bf16.msra.mxu0 %v231
  %395 = vmatpush.bf16.msra.mxu0 %v152
  %396 = vmatmul.bf16.gmra.mxu0 %v191
  %v397 = vpop.f32.mrf.mxu0
  %v398 = vadd.f32 0.0, %v397
  %v399 = vpop.f32.mrf.mxu0
  %400 = vdwg.mxu0
  %401 = vmatpush.bf16.msra.mxu0 0
  %402 = vmatpush.bf16.msra.mxu0 0
  %403 = vmatpush.bf16.msra.mxu0 0
  %404 = vmatpush.bf16.msra.mxu0 0
  %405 = vmatpush.bf16.msra.mxu0 0
  %406 = vmatpush.bf16.msra.mxu0 0
  %407 = vmatpush.bf16.msra.mxu0 %v234
  %408 = vmatpush.bf16.msra.mxu0 %v153
  %409 = vmatmul.bf16.gmra.mxu0 %v191
  %v410 = vpop.f32.mrf.mxu0
  %v411 = vadd.f32 0.0, %v410
  %v412 = vpop.f32.mrf.mxu0
  %413 = vdwg.mxu0
  %414 = vmatpush.bf16.msra.mxu0 0
  %415 = vmatpush.bf16.msra.mxu0 0
  %416 = vmatpush.bf16.msra.mxu0 0
  %417 = vmatpush.bf16.msra.mxu0 0
  %418 = vmatpush.bf16.msra.mxu0 0
  %419 = vmatpush.bf16.msra.mxu0 0
  %420 = vmatpush.bf16.msra.mxu0 %v237
  %421 = vmatpush.bf16.msra.mxu0 %v154
  %422 = vmatmul.bf16.gmra.mxu0 %v191
  %v423 = vpop.f32.mrf.mxu0
  %v424 = vadd.f32 0.0, %v423
  %v425 = vpop.f32.mrf.mxu0
  %426 = vdwg.mxu0
  %427 = vmatpush.bf16.msra.mxu0 0
  %428 = vmatpush.bf16.msra.mxu0 0
  %429 = vmatpush.bf16.msra.mxu0 0
  %430 = vmatpush.bf16.msra.mxu0 0
  %431 = vmatpush.bf16.msra.mxu0 0
  %432 = vmatpush.bf16.msra.mxu0 0
  %433 = vmatpush.bf16.msra.mxu0 %v240
  %434 = vmatpush.bf16.msra.mxu0 %v155
  %435 = vmatmul.bf16.gmra.mxu0 %v191
  %v436 = vpop.f32.mrf.mxu0
  %v437 = vadd.f32 0.0, %v436
  %v438 = vpop.f32.mrf.mxu0
  %439 = vdwg.mxu0
  %440 = vmatpush.bf16.msra.mxu0 0
  %441 = vmatpush.bf16.msra.mxu0 0
  %442 = vmatpush.bf16.msra.mxu0 0
  %443 = vmatpush.bf16.msra.mxu0 0
  %444 = vmatpush.bf16.msra.mxu0 0
  %445 = vmatpush.bf16.msra.mxu0 0
  %446 = vmatpush.bf16.msra.mxu0 %v243
  %447 = vmatpush.bf16.msra.mxu0 %v156
  %448 = vmatmul.bf16.gmra.mxu0 %v191
  %v449 = vpop.f32.mrf.mxu0
  %v450 = vadd.f32 0.0, %v449
  %v451 = vpop.f32.mrf.mxu0
  %452 = vdwg.mxu0
  %v453 = vmax.f32 %v255, 0.0
  %v454 = vmax.f32 %v268, 0.0
  %v455 = vmax.f32 %v281, 0.0
  %v456 = vmax.f32 %v294, 0.0
  %v457 = vmax.f32 %v307, 0.0
  %v458 = vmax.f32 %v320, 0.0
  %v459 = vmax.f32 %v333, 0.0
  %v460 = vmax.f32 %v346, 0.0
  %v461 = vmax.f32 %v359, 0.0
  %v462 = vmax.f32 %v372, 0.0
  %v463 = vmax.f32 %v385, 0.0
  %v464 = vmax.f32 %v398, 0.0
  %v465 = vmax.f32 %v411, 0.0
  %v466 = vmax.f32 %v424, 0.0
  %v467 = vmax.f32 %v437, 0.0
  %v468 = vmax.f32 %v450, 0.0
  %v485 = vrot.slane %v454, 4
  %v486 = vrot.slane %v456, 4
  %v487 = vrot.slane %v458, 4
  %v488 = vrot.slane %v460, 4
  %v489 = vrot.slane %v462, 4
  %v490 = vrot.slane %v464, 4
  %v491 = vrot.slane %v466, 4
  %v492 = vrot.slane %v468, 4
  %vm493 = vcmask 1043456
  %v494 = vsel %vm493, %v453, %v485
  %v495 = vsel %vm493, %v455, %v486
  %v496 = vsel %vm493, %v457, %v487
  %v497 = vsel %vm493, %v459, %v488
  %v498 = vsel %vm493, %v461, %v489
  %v499 = vsel %vm493, %v463, %v490
  %v500 = vsel %vm493, %v465, %v491
  %v501 = vsel %vm493, %v467, %v492
  %510 = vst [vmem:[%s2] sm:$0x77] %v494
  %511 = vst [vmem:[%s2 + $0x8] sm:$0x77] %v495
  %512 = vst [vmem:[%s2 + $0x10] sm:$0x77] %v496
  %513 = vst [vmem:[%s2 + $0x18] sm:$0x77] %v497
  %514 = vst [vmem:[%s2 + $0x20] sm:$0x77] %v498
  %515 = vst [vmem:[%s2 + $0x28] sm:$0x77] %v499
  %516 = vst [vmem:[%s2 + $0x30] sm:$0x77] %v500
  %517 = vst [vmem:[%s2 + $0x38] sm:$0x77] %v501
  // Predicated region
  $region10: #{_lambda_.16} parent=0 // pred_check
    _
  $region11: #{_lambda_.16} parent=0 // pred_check_branch
    %519 = sbr.rel (0) target = $region13
  $region12: #{_lambda_.16} parent=0 // pred_region
    _
  $region13: #{_lambda_.16} parent=0 // pred_fallthru
    _
  // Predicated region
  $region14: #{_lambda_.16} parent=0 // pred_check
    _
  $region15: #{_lambda_.16} parent=0 // pred_check_branch
    %521 = sbr.rel (0) target = $region17
  $region16: #{_lambda_.16} parent=0 // pred_region
    _
  $region17: #{_lambda_.16} parent=0 // pred_fallthru
    _

// kernel: _lambda_.17
$region0: #{_lambda_.17}
  #allocation0 [shape = 'u32[]', space=smem, size = 0x4, offset = 0x4, fixed_abs, tag = 'smem constant byte address 0x4 - core index']
  #allocation1 [shape = 'u32[72,128]{1,0:T(1,128)}', space=vmem, size = 0x9000, scoped, tag = 'internal scratch']
  %s0 = inlined_call_operand.vmem [shape: f32[32,3,64], index: 0, kind: input, shape index: {}]
  %s1 = inlined_call_operand.vmem [shape: f32[32,3,64], index: 1, kind: output, shape index: {}]
  %s2 = sld [smem:[#allocation0]]
  $region14: #{_lambda_.17} parent=0
    _
  %s4 = ssub.s32 1, %s2
  %s5 = scalar_select 0, %s4, %s2
  // Predicated region
  $region2: #{_lambda_.17} parent=0 // pred_check
    _
  $region3: #{_lambda_.17} parent=0 // pred_check_branch
    %7 = sbr.rel (0) target = $region5
  $region4: #{_lambda_.17} parent=0 // pred_region
    _
  $region5: #{_lambda_.17} parent=0 // pred_fallthru
    _
  %v8 = vld [vmem:[%s0] sm:$0x7]
  %v9 = vld [vmem:[%s0 + $0x4] sm:$0x7]
  %v10 = vld [vmem:[%s0 + $0x8] sm:$0x7]
  %v11 = vld [vmem:[%s0 + $0xc] sm:$0x7]
  %v12 = vld [vmem:[%s0 + $0x10] sm:$0x7]
  %v13 = vld [vmem:[%s0 + $0x14] sm:$0x7]
  %v14 = vld [vmem:[%s0 + $0x18] sm:$0x7]
  %v15 = vld [vmem:[%s0 + $0x1c] sm:$0x7]
  %v16 = vld [vmem:[%s0 + $0x20] sm:$0x7]
  %v17 = vld [vmem:[%s0 + $0x24] sm:$0x7]
  %v18 = vld [vmem:[%s0 + $0x28] sm:$0x7]
  %v19 = vld [vmem:[%s0 + $0x2c] sm:$0x7]
  %v20 = vld [vmem:[%s0 + $0x30] sm:$0x7]
  %v21 = vld [vmem:[%s0 + $0x34] sm:$0x7]
  %v22 = vld [vmem:[%s0 + $0x38] sm:$0x7]
  %v23 = vld [vmem:[%s0 + $0x3c] sm:$0x7]
  %v24 = vld [vmem:[%s0 + $0x40] sm:$0x7]
  %v25 = vld [vmem:[%s0 + $0x44] sm:$0x7]
  %v26 = vld [vmem:[%s0 + $0x48] sm:$0x7]
  %v27 = vld [vmem:[%s0 + $0x4c] sm:$0x7]
  %v28 = vld [vmem:[%s0 + $0x50] sm:$0x7]
  %v29 = vld [vmem:[%s0 + $0x54] sm:$0x7]
  %v30 = vld [vmem:[%s0 + $0x58] sm:$0x7]
  %v31 = vld [vmem:[%s0 + $0x5c] sm:$0x7]
  %v32 = vld [vmem:[%s0 + $0x60] sm:$0x7]
  %v33 = vld [vmem:[%s0 + $0x64] sm:$0x7]
  %v34 = vld [vmem:[%s0 + $0x68] sm:$0x7]
  %v35 = vld [vmem:[%s0 + $0x6c] sm:$0x7]
  %v36 = vld [vmem:[%s0 + $0x70] sm:$0x7]
  %v37 = vld [vmem:[%s0 + $0x74] sm:$0x7]
  %v38 = vld [vmem:[%s0 + $0x78] sm:$0x7]
  %v39 = vld [vmem:[%s0 + $0x7c] sm:$0x7]
  %vm40 = vcmask 523264
  %v42 = vsel %vm40, %v8, 0
  %44 = vmatpush.xpose.msra.mxu0 0.0
  %45 = vmatpush.xpose.msra.mxu0 0.0
  %46 = vmatpush.xpose.msra.mxu0 0.0
  %47 = vmatpush.xpose.msra.mxu0 0.0
  %48 = vmatpush.xpose.msra.mxu0 0.0
  %49 = vmatpush.xpose.msra.mxu0 0.0
  %50 = vmatpush.xpose.msra.mxu0 0.0
  %51 = vmatpush.xpose.msra.mxu0 0.0
  %52 = vmatpush.xpose.msra.mxu0 0.0
  %53 = vmatpush.xpose.msra.mxu0 0.0
  %54 = vmatpush.xpose.msra.mxu0 0.0
  %55 = vmatpush.xpose.msra.mxu0 0.0
  %56 = vmatpush.xpose.msra.mxu0 0.0
  %57 = vmatpush.xpose.msra.mxu0 0.0
  %58 = vmatpush.xpose.msra.mxu0 0.0
  %59 = vmatpush.xpose.msra.mxu0 %v42
  %60 = vmatmul.f32.gmra.mxu0 %v42
  %v61 = vpop.f32.mrf.mxu0
  %v62 = vadd.f32 0.0, %v61
  %63 = vdwg.mxu0
  %v65 = vsel %vm40, %v9, 0
  %67 = vmatpush.xpose.msra.mxu0 0.0
  %68 = vmatpush.xpose.msra.mxu0 0.0
  %69 = vmatpush.xpose.msra.mxu0 0.0
  %70 = vmatpush.xpose.msra.mxu0 0.0
  %71 = vmatpush.xpose.msra.mxu0 0.0
  %72 = vmatpush.xpose.msra.mxu0 0.0
  %73 = vmatpush.xpose.msra.mxu0 0.0
  %74 = vmatpush.xpose.msra.mxu0 0.0
  %75 = vmatpush.xpose.msra.mxu0 0.0
  %76 = vmatpush.xpose.msra.mxu0 0.0
  %77 = vmatpush.xpose.msra.mxu0 0.0
  %78 = vmatpush.xpose.msra.mxu0 0.0
  %79 = vmatpush.xpose.msra.mxu0 0.0
  %80 = vmatpush.xpose.msra.mxu0 0.0
  %81 = vmatpush.xpose.msra.mxu0 0.0
  %82 = vmatpush.xpose.msra.mxu0 %v65
  %83 = vmatmul.f32.gmra.mxu0 %v65
  %v84 = vpop.f32.mrf.mxu0
  %v85 = vadd.f32 0.0, %v84
  %86 = vdwg.mxu0
  %v88 = vsel %vm40, %v10, 0
  %90 = vmatpush.xpose.msra.mxu0 0.0
  %91 = vmatpush.xpose.msra.mxu0 0.0
  %92 = vmatpush.xpose.msra.mxu0 0.0
  %93 = vmatpush.xpose.msra.mxu0 0.0
  %94 = vmatpush.xpose.msra.mxu0 0.0
  %95 = vmatpush.xpose.msra.mxu0 0.0
  %96 = vmatpush.xpose.msra.mxu0 0.0
  %97 = vmatpush.xpose.msra.mxu0 0.0
  %98 = vmatpush.xpose.msra.mxu0 0.0
  %99 = vmatpush.xpose.msra.mxu0 0.0
  %100 = vmatpush.xpose.msra.mxu0 0.0
  %101 = vmatpush.xpose.msra.mxu0 0.0
  %102 = vmatpush.xpose.msra.mxu0 0.0
  %103 = vmatpush.xpose.msra.mxu0 0.0
  %104 = vmatpush.xpose.msra.mxu0 0.0
  %105 = vmatpush.xpose.msra.mxu0 %v88
  %106 = vmatmul.f32.gmra.mxu0 %v88
  %v107 = vpop.f32.mrf.mxu0
  %v108 = vadd.f32 0.0, %v107
  %109 = vdwg.mxu0
  %v111 = vsel %vm40, %v11, 0
  %113 = vmatpush.xpose.msra.mxu0 0.0
  %114 = vmatpush.xpose.msra.mxu0 0.0
  %115 = vmatpush.xpose.msra.mxu0 0.0
  %116 = vmatpush.xpose.msra.mxu0 0.0
  %117 = vmatpush.xpose.msra.mxu0 0.0
  %118 = vmatpush.xpose.msra.mxu0 0.0
  %119 = vmatpush.xpose.msra.mxu0 0.0
  %120 = vmatpush.xpose.msra.mxu0 0.0
  %121 = vmatpush.xpose.msra.mxu0 0.0
  %122 = vmatpush.xpose.msra.mxu0 0.0
  %123 = vmatpush.xpose.msra.mxu0 0.0
  %124 = vmatpush.xpose.msra.mxu0 0.0
  %125 = vmatpush.xpose.msra.mxu0 0.0
  %126 = vmatpush.xpose.msra.mxu0 0.0
  %127 = vmatpush.xpose.msra.mxu0 0.0
  %128 = vmatpush.xpose.msra.mxu0 %v111
  %129 = vmatmul.f32.gmra.mxu0 %v111
  %v130 = vpop.f32.mrf.mxu0
  %v131 = vadd.f32 0.0, %v130
  %132 = vdwg.mxu0
  %v134 = vsel %vm40, %v12, 0
  %136 = vmatpush.xpose.msra.mxu0 0.0
  %137 = vmatpush.xpose.msra.mxu0 0.0
  %138 = vmatpush.xpose.msra.mxu0 0.0
  %139 = vmatpush.xpose.msra.mxu0 0.0
  %140 = vmatpush.xpose.msra.mxu0 0.0
  %141 = vmatpush.xpose.msra.mxu0 0.0
  %142 = vmatpush.xpose.msra.mxu0 0.0
  %143 = vmatpush.xpose.msra.mxu0 0.0
  %144 = vmatpush.xpose.msra.mxu0 0.0
  %145 = vmatpush.xpose.msra.mxu0 0.0
  %146 = vmatpush.xpose.msra.mxu0 0.0
  %147 = vmatpush.xpose.msra.mxu0 0.0
  %148 = vmatpush.xpose.msra.mxu0 0.0
  %149 = vmatpush.xpose.msra.mxu0 0.0
  %150 = vmatpush.xpose.msra.mxu0 0.0
  %151 = vmatpush.xpose.msra.mxu0 %v134
  %152 = vmatmul.f32.gmra.mxu0 %v134
  %v153 = vpop.f32.mrf.mxu0
  %v154 = vadd.f32 0.0, %v153
  %155 = vdwg.mxu0
  %v157 = vsel %vm40, %v13, 0
  %159 = vmatpush.xpose.msra.mxu0 0.0
  %160 = vmatpush.xpose.msra.mxu0 0.0
  %161 = vmatpush.xpose.msra.mxu0 0.0
  %162 = vmatpush.xpose.msra.mxu0 0.0
  %163 = vmatpush.xpose.msra.mxu0 0.0
  %164 = vmatpush.xpose.msra.mxu0 0.0
  %165 = vmatpush.xpose.msra.mxu0 0.0
  %166 = vmatpush.xpose.msra.mxu0 0.0
  %167 = vmatpush.xpose.msra.mxu0 0.0
  %168 = vmatpush.xpose.msra.mxu0 0.0
  %169 = vmatpush.xpose.msra.mxu0 0.0
  %170 = vmatpush.xpose.msra.mxu0 0.0
  %171 = vmatpush.xpose.msra.mxu0 0.0
  %172 = vmatpush.xpose.msra.mxu0 0.0
  %173 = vmatpush.xpose.msra.mxu0 0.0
  %174 = vmatpush.xpose.msra.mxu0 %v157
  %175 = vmatmul.f32.gmra.mxu0 %v157
  %v176 = vpop.f32.mrf.mxu0
  %v177 = vadd.f32 0.0, %v176
  %178 = vdwg.mxu0
  %v180 = vsel %vm40, %v14, 0
  %182 = vmatpush.xpose.msra.mxu0 0.0
  %183 = vmatpush.xpose.msra.mxu0 0.0
  %184 = vmatpush.xpose.msra.mxu0 0.0
  %185 = vmatpush.xpose.msra.mxu0 0.0
  %186 = vmatpush.xpose.msra.mxu0 0.0
  %187 = vmatpush.xpose.msra.mxu0 0.0
  %188 = vmatpush.xpose.msra.mxu0 0.0
  %189 = vmatpush.xpose.msra.mxu0 0.0
  %190 = vmatpush.xpose.msra.mxu0 0.0
  %191 = vmatpush.xpose.msra.mxu0 0.0
  %192 = vmatpush.xpose.msra.mxu0 0.0
  %193 = vmatpush.xpose.msra.mxu0 0.0
  %194 = vmatpush.xpose.msra.mxu0 0.0
  %195 = vmatpush.xpose.msra.mxu0 0.0
  %196 = vmatpush.xpose.msra.mxu0 0.0
  %197 = vmatpush.xpose.msra.mxu0 %v180
  %198 = vmatmul.f32.gmra.mxu0 %v180
  %v199 = vpop.f32.mrf.mxu0
  %v200 = vadd.f32 0.0, %v199
  %201 = vdwg.mxu0
  %v203 = vsel %vm40, %v15, 0
  %205 = vmatpush.xpose.msra.mxu0 0.0
  %206 = vmatpush.xpose.msra.mxu0 0.0
  %207 = vmatpush.xpose.msra.mxu0 0.0
  %208 = vmatpush.xpose.msra.mxu0 0.0
  %209 = vmatpush.xpose.msra.mxu0 0.0
  %210 = vmatpush.xpose.msra.mxu0 0.0
  %211 = vmatpush.xpose.msra.mxu0 0.0
  %212 = vmatpush.xpose.msra.mxu0 0.0
  %213 = vmatpush.xpose.msra.mxu0 0.0
  %214 = vmatpush.xpose.msra.mxu0 0.0
  %215 = vmatpush.xpose.msra.mxu0 0.0
  %216 = vmatpush.xpose.msra.mxu0 0.0
  %217 = vmatpush.xpose.msra.mxu0 0.0
  %218 = vmatpush.xpose.msra.mxu0 0.0
  %219 = vmatpush.xpose.msra.mxu0 0.0
  %220 = vmatpush.xpose.msra.mxu0 %v203
  %221 = vmatmul.f32.gmra.mxu0 %v203
  %v222 = vpop.f32.mrf.mxu0
  %v223 = vadd.f32 0.0, %v222
  %224 = vdwg.mxu0
  %v226 = vsel %vm40, %v16, 0
  %228 = vmatpush.xpose.msra.mxu0 0.0
  %229 = vmatpush.xpose.msra.mxu0 0.0
  %230 = vmatpush.xpose.msra.mxu0 0.0
  %231 = vmatpush.xpose.msra.mxu0 0.0
  %232 = vmatpush.xpose.msra.mxu0 0.0
  %233 = vmatpush.xpose.msra.mxu0 0.0
  %234 = vmatpush.xpose.msra.mxu0 0.0
  %235 = vmatpush.xpose.msra.mxu0 0.0
  %236 = vmatpush.xpose.msra.mxu0 0.0
  %237 = vmatpush.xpose.msra.mxu0 0.0
  %238 = vmatpush.xpose.msra.mxu0 0.0
  %239 = vmatpush.xpose.msra.mxu0 0.0
  %240 = vmatpush.xpose.msra.mxu0 0.0
  %241 = vmatpush.xpose.msra.mxu0 0.0
  %242 = vmatpush.xpose.msra.mxu0 0.0
  %243 = vmatpush.xpose.msra.mxu0 %v226
  %244 = vmatmul.f32.gmra.mxu0 %v226
  %v245 = vpop.f32.mrf.mxu0
  %v246 = vadd.f32 0.0, %v245
  %247 = vdwg.mxu0
  %v249 = vsel %vm40, %v17, 0
  %251 = vmatpush.xpose.msra.mxu0 0.0
  %252 = vmatpush.xpose.msra.mxu0 0.0
  %253 = vmatpush.xpose.msra.mxu0 0.0
  %254 = vmatpush.xpose.msra.mxu0 0.0
  %255 = vmatpush.xpose.msra.mxu0 0.0
  %256 = vmatpush.xpose.msra.mxu0 0.0
  %257 = vmatpush.xpose.msra.mxu0 0.0
  %258 = vmatpush.xpose.msra.mxu0 0.0
  %259 = vmatpush.xpose.msra.mxu0 0.0
  %260 = vmatpush.xpose.msra.mxu0 0.0
  %261 = vmatpush.xpose.msra.mxu0 0.0
  %262 = vmatpush.xpose.msra.mxu0 0.0
  %263 = vmatpush.xpose.msra.mxu0 0.0
  %264 = vmatpush.xpose.msra.mxu0 0.0
  %265 = vmatpush.xpose.msra.mxu0 0.0
  %266 = vmatpush.xpose.msra.mxu0 %v249
  %267 = vmatmul.f32.gmra.mxu0 %v249
  %v268 = vpop.f32.mrf.mxu0
  %v269 = vadd.f32 0.0, %v268
  %270 = vdwg.mxu0
  %v272 = vsel %vm40, %v18, 0
  %274 = vmatpush.xpose.msra.mxu0 0.0
  %275 = vmatpush.xpose.msra.mxu0 0.0
  %276 = vmatpush.xpose.msra.mxu0 0.0
  %277 = vmatpush.xpose.msra.mxu0 0.0
  %278 = vmatpush.xpose.msra.mxu0 0.0
  %279 = vmatpush.xpose.msra.mxu0 0.0
  %280 = vmatpush.xpose.msra.mxu0 0.0
  %281 = vmatpush.xpose.msra.mxu0 0.0
  %282 = vmatpush.xpose.msra.mxu0 0.0
  %283 = vmatpush.xpose.msra.mxu0 0.0
  %284 = vmatpush.xpose.msra.mxu0 0.0
  %285 = vmatpush.xpose.msra.mxu0 0.0
  %286 = vmatpush.xpose.msra.mxu0 0.0
  %287 = vmatpush.xpose.msra.mxu0 0.0
  %288 = vmatpush.xpose.msra.mxu0 0.0
  %289 = vmatpush.xpose.msra.mxu0 %v272
  %290 = vmatmul.f32.gmra.mxu0 %v272
  %v291 = vpop.f32.mrf.mxu0
  %v292 = vadd.f32 0.0, %v291
  %293 = vdwg.mxu0
  %v295 = vsel %vm40, %v19, 0
  %297 = vmatpush.xpose.msra.mxu0 0.0
  %298 = vmatpush.xpose.msra.mxu0 0.0
  %299 = vmatpush.xpose.msra.mxu0 0.0
  %300 = vmatpush.xpose.msra.mxu0 0.0
  %301 = vmatpush.xpose.msra.mxu0 0.0
  %302 = vmatpush.xpose.msra.mxu0 0.0
  %303 = vmatpush.xpose.msra.mxu0 0.0
  %304 = vmatpush.xpose.msra.mxu0 0.0
  %305 = vmatpush.xpose.msra.mxu0 0.0
  %306 = vmatpush.xpose.msra.mxu0 0.0
  %307 = vmatpush.xpose.msra.mxu0 0.0
  %308 = vmatpush.xpose.msra.mxu0 0.0
  %309 = vmatpush.xpose.msra.mxu0 0.0
  %310 = vmatpush.xpose.msra.mxu0 0.0
  %311 = vmatpush.xpose.msra.mxu0 0.0
  %312 = vmatpush.xpose.msra.mxu0 %v295
  %313 = vmatmul.f32.gmra.mxu0 %v295
  %v314 = vpop.f32.mrf.mxu0
  %v315 = vadd.f32 0.0, %v314
  %316 = vdwg.mxu0
  %v318 = vsel %vm40, %v20, 0
  %320 = vmatpush.xpose.msra.mxu0 0.0
  %321 = vmatpush.xpose.msra.mxu0 0.0
  %322 = vmatpush.xpose.msra.mxu0 0.0
  %323 = vmatpush.xpose.msra.mxu0 0.0
  %324 = vmatpush.xpose.msra.mxu0 0.0
  %325 = vmatpush.xpose.msra.mxu0 0.0
  %326 = vmatpush.xpose.msra.mxu0 0.0
  %327 = vmatpush.xpose.msra.mxu0 0.0
  %328 = vmatpush.xpose.msra.mxu0 0.0
  %329 = vmatpush.xpose.msra.mxu0 0.0
  %330 = vmatpush.xpose.msra.mxu0 0.0
  %331 = vmatpush.xpose.msra.mxu0 0.0
  %332 = vmatpush.xpose.msra.mxu0 0.0
  %333 = vmatpush.xpose.msra.mxu0 0.0
  %334 = vmatpush.xpose.msra.mxu0 0.0
  %335 = vmatpush.xpose.msra.mxu0 %v318
  %336 = vmatmul.f32.gmra.mxu0 %v318
  %v337 = vpop.f32.mrf.mxu0
  %v338 = vadd.f32 0.0, %v337
  %339 = vdwg.mxu0
  %v341 = vsel %vm40, %v21, 0
  %343 = vmatpush.xpose.msra.mxu0 0.0
  %344 = vmatpush.xpose.msra.mxu0 0.0
  %345 = vmatpush.xpose.msra.mxu0 0.0
  %346 = vmatpush.xpose.msra.mxu0 0.0
  %347 = vmatpush.xpose.msra.mxu0 0.0
  %348 = vmatpush.xpose.msra.mxu0 0.0
  %349 = vmatpush.xpose.msra.mxu0 0.0
  %350 = vmatpush.xpose.msra.mxu0 0.0
  %351 = vmatpush.xpose.msra.mxu0 0.0
  %352 = vmatpush.xpose.msra.mxu0 0.0
  %353 = vmatpush.xpose.msra.mxu0 0.0
  %354 = vmatpush.xpose.msra.mxu0 0.0
  %355 = vmatpush.xpose.msra.mxu0 0.0
  %356 = vmatpush.xpose.msra.mxu0 0.0
  %357 = vmatpush.xpose.msra.mxu0 0.0
  %358 = vmatpush.xpose.msra.mxu0 %v341
  %359 = vmatmul.f32.gmra.mxu0 %v341
  %v360 = vpop.f32.mrf.mxu0
  %v361 = vadd.f32 0.0, %v360
  %362 = vdwg.mxu0
  %v364 = vsel %vm40, %v22, 0
  %366 = vmatpush.xpose.msra.mxu0 0.0
  %367 = vmatpush.xpose.msra.mxu0 0.0
  %368 = vmatpush.xpose.msra.mxu0 0.0
  %369 = vmatpush.xpose.msra.mxu0 0.0
  %370 = vmatpush.xpose.msra.mxu0 0.0
  %371 = vmatpush.xpose.msra.mxu0 0.0
  %372 = vmatpush.xpose.msra.mxu0 0.0
  %373 = vmatpush.xpose.msra.mxu0 0.0
  %374 = vmatpush.xpose.msra.mxu0 0.0
  %375 = vmatpush.xpose.msra.mxu0 0.0
  %376 = vmatpush.xpose.msra.mxu0 0.0
  %377 = vmatpush.xpose.msra.mxu0 0.0
  %378 = vmatpush.xpose.msra.mxu0 0.0
  %379 = vmatpush.xpose.msra.mxu0 0.0
  %380 = vmatpush.xpose.msra.mxu0 0.0
  %381 = vmatpush.xpose.msra.mxu0 %v364
  %382 = vmatmul.f32.gmra.mxu0 %v364
  %v383 = vpop.f32.mrf.mxu0
  %v384 = vadd.f32 0.0, %v383
  %385 = vdwg.mxu0
  %v387 = vsel %vm40, %v23, 0
  %389 = vmatpush.xpose.msra.mxu0 0.0
  %390 = vmatpush.xpose.msra.mxu0 0.0
  %391 = vmatpush.xpose.msra.mxu0 0.0
  %392 = vmatpush.xpose.msra.mxu0 0.0
  %393 = vmatpush.xpose.msra.mxu0 0.0
  %394 = vmatpush.xpose.msra.mxu0 0.0
  %395 = vmatpush.xpose.msra.mxu0 0.0
  %396 = vmatpush.xpose.msra.mxu0 0.0
  %397 = vmatpush.xpose.msra.mxu0 0.0
  %398 = vmatpush.xpose.msra.mxu0 0.0
  %399 = vmatpush.xpose.msra.mxu0 0.0
  %400 = vmatpush.xpose.msra.mxu0 0.0
  %401 = vmatpush.xpose.msra.mxu0 0.0
  %402 = vmatpush.xpose.msra.mxu0 0.0
  %403 = vmatpush.xpose.msra.mxu0 0.0
  %404 = vmatpush.xpose.msra.mxu0 %v387
  %405 = vmatmul.f32.gmra.mxu0 %v387
  %v406 = vpop.f32.mrf.mxu0
  %v407 = vadd.f32 0.0, %v406
  %408 = vdwg.mxu0
  %v410 = vsel %vm40, %v24, 0
  %412 = vmatpush.xpose.msra.mxu0 0.0
  %413 = vmatpush.xpose.msra.mxu0 0.0
  %414 = vmatpush.xpose.msra.mxu0 0.0
  %415 = vmatpush.xpose.msra.mxu0 0.0
  %416 = vmatpush.xpose.msra.mxu0 0.0
  %417 = vmatpush.xpose.msra.mxu0 0.0
  %418 = vmatpush.xpose.msra.mxu0 0.0
  %419 = vmatpush.xpose.msra.mxu0 0.0
  %420 = vmatpush.xpose.msra.mxu0 0.0
  %421 = vmatpush.xpose.msra.mxu0 0.0
  %422 = vmatpush.xpose.msra.mxu0 0.0
  %423 = vmatpush.xpose.msra.mxu0 0.0
  %424 = vmatpush.xpose.msra.mxu0 0.0
  %425 = vmatpush.xpose.msra.mxu0 0.0
  %426 = vmatpush.xpose.msra.mxu0 0.0
  %427 = vmatpush.xpose.msra.mxu0 %v410
  %428 = vmatmul.f32.gmra.mxu0 %v410
  %v429 = vpop.f32.mrf.mxu0
  %v430 = vadd.f32 0.0, %v429
  %431 = vdwg.mxu0
  %v433 = vsel %vm40, %v25, 0
  %435 = vmatpush.xpose.msra.mxu0 0.0
  %436 = vmatpush.xpose.msra.mxu0 0.0
  %437 = vmatpush.xpose.msra.mxu0 0.0
  %438 = vmatpush.xpose.msra.mxu0 0.0
  %439 = vmatpush.xpose.msra.mxu0 0.0
  %440 = vmatpush.xpose.msra.mxu0 0.0
  %441 = vmatpush.xpose.msra.mxu0 0.0
  %442 = vmatpush.xpose.msra.mxu0 0.0
  %443 = vmatpush.xpose.msra.mxu0 0.0
  %444 = vmatpush.xpose.msra.mxu0 0.0
  %445 = vmatpush.xpose.msra.mxu0 0.0
  %446 = vmatpush.xpose.msra.mxu0 0.0
  %447 = vmatpush.xpose.msra.mxu0 0.0
  %448 = vmatpush.xpose.msra.mxu0 0.0
  %449 = vmatpush.xpose.msra.mxu0 0.0
  %450 = vmatpush.xpose.msra.mxu0 %v433
  %451 = vmatmul.f32.gmra.mxu0 %v433
  %v452 = vpop.f32.mrf.mxu0
  %v453 = vadd.f32 0.0, %v452
  %454 = vdwg.mxu0
  %v456 = vsel %vm40, %v26, 0
  %458 = vmatpush.xpose.msra.mxu0 0.0
  %459 = vmatpush.xpose.msra.mxu0 0.0
  %460 = vmatpush.xpose.msra.mxu0 0.0
  %461 = vmatpush.xpose.msra.mxu0 0.0
  %462 = vmatpush.xpose.msra.mxu0 0.0
  %463 = vmatpush.xpose.msra.mxu0 0.0
  %464 = vmatpush.xpose.msra.mxu0 0.0
  %465 = vmatpush.xpose.msra.mxu0 0.0
  %466 = vmatpush.xpose.msra.mxu0 0.0
  %467 = vmatpush.xpose.msra.mxu0 0.0
  %468 = vmatpush.xpose.msra.mxu0 0.0
  %469 = vmatpush.xpose.msra.mxu0 0.0
  %470 = vmatpush.xpose.msra.mxu0 0.0
  %471 = vmatpush.xpose.msra.mxu0 0.0
  %472 = vmatpush.xpose.msra.mxu0 0.0
  %473 = vmatpush.xpose.msra.mxu0 %v456
  %474 = vmatmul.f32.gmra.mxu0 %v456
  %v475 = vpop.f32.mrf.mxu0
  %v476 = vadd.f32 0.0, %v475
  %477 = vdwg.mxu0
  %v479 = vsel %vm40, %v27, 0
  %481 = vmatpush.xpose.msra.mxu0 0.0
  %482 = vmatpush.xpose.msra.mxu0 0.0
  %483 = vmatpush.xpose.msra.mxu0 0.0
  %484 = vmatpush.xpose.msra.mxu0 0.0
  %485 = vmatpush.xpose.msra.mxu0 0.0
  %486 = vmatpush.xpose.msra.mxu0 0.0
  %487 = vmatpush.xpose.msra.mxu0 0.0
  %488 = vmatpush.xpose.msra.mxu0 0.0
  %489 = vmatpush.xpose.msra.mxu0 0.0
  %490 = vmatpush.xpose.msra.mxu0 0.0
  %491 = vmatpush.xpose.msra.mxu0 0.0
  %492 = vmatpush.xpose.msra.mxu0 0.0
  %493 = vmatpush.xpose.msra.mxu0 0.0
  %494 = vmatpush.xpose.msra.mxu0 0.0
  %495 = vmatpush.xpose.msra.mxu0 0.0
  %496 = vmatpush.xpose.msra.mxu0 %v479
  %497 = vmatmul.f32.gmra.mxu0 %v479
  %v498 = vpop.f32.mrf.mxu0
  %v499 = vadd.f32 0.0, %v498
  %500 = vdwg.mxu0
  %v502 = vsel %vm40, %v28, 0
  %504 = vmatpush.xpose.msra.mxu0 0.0
  %505 = vmatpush.xpose.msra.mxu0 0.0
  %506 = vmatpush.xpose.msra.mxu0 0.0
  %507 = vmatpush.xpose.msra.mxu0 0.0
  %508 = vmatpush.xpose.msra.mxu0 0.0
  %509 = vmatpush.xpose.msra.mxu0 0.0
  %510 = vmatpush.xpose.msra.mxu0 0.0
  %511 = vmatpush.xpose.msra.mxu0 0.0
  %512 = vmatpush.xpose.msra.mxu0 0.0
  %513 = vmatpush.xpose.msra.mxu0 0.0
  %514 = vmatpush.xpose.msra.mxu0 0.0
  %515 = vmatpush.xpose.msra.mxu0 0.0
  %516 = vmatpush.xpose.msra.mxu0 0.0
  %517 = vmatpush.xpose.msra.mxu0 0.0
  %518 = vmatpush.xpose.msra.mxu0 0.0
  %519 = vmatpush.xpose.msra.mxu0 %v502
  %520 = vmatmul.f32.gmra.mxu0 %v502
  %v521 = vpop.f32.mrf.mxu0
  %v522 = vadd.f32 0.0, %v521
  %523 = vdwg.mxu0
  %v525 = vsel %vm40, %v29, 0
  %527 = vmatpush.xpose.msra.mxu0 0.0
  %528 = vmatpush.xpose.msra.mxu0 0.0
  %529 = vmatpush.xpose.msra.mxu0 0.0
  %530 = vmatpush.xpose.msra.mxu0 0.0
  %531 = vmatpush.xpose.msra.mxu0 0.0
  %532 = vmatpush.xpose.msra.mxu0 0.0
  %533 = vmatpush.xpose.msra.mxu0 0.0
  %534 = vmatpush.xpose.msra.mxu0 0.0
  %535 = vmatpush.xpose.msra.mxu0 0.0
  %536 = vmatpush.xpose.msra.mxu0 0.0
  %537 = vmatpush.xpose.msra.mxu0 0.0
  %538 = vmatpush.xpose.msra.mxu0 0.0
  %539 = vmatpush.xpose.msra.mxu0 0.0
  %540 = vmatpush.xpose.msra.mxu0 0.0
  %541 = vmatpush.xpose.msra.mxu0 0.0
  %542 = vmatpush.xpose.msra.mxu0 %v525
  %543 = vmatmul.f32.gmra.mxu0 %v525
  %v544 = vpop.f32.mrf.mxu0
  %v545 = vadd.f32 0.0, %v544
  %546 = vdwg.mxu0
  %v548 = vsel %vm40, %v30, 0
  %550 = vmatpush.xpose.msra.mxu0 0.0
  %551 = vmatpush.xpose.msra.mxu0 0.0
  %552 = vmatpush.xpose.msra.mxu0 0.0
  %553 = vmatpush.xpose.msra.mxu0 0.0
  %554 = vmatpush.xpose.msra.mxu0 0.0
  %555 = vmatpush.xpose.msra.mxu0 0.0
  %556 = vmatpush.xpose.msra.mxu0 0.0
  %557 = vmatpush.xpose.msra.mxu0 0.0
  %558 = vmatpush.xpose.msra.mxu0 0.0
  %559 = vmatpush.xpose.msra.mxu0 0.0
  %560 = vmatpush.xpose.msra.mxu0 0.0
  %561 = vmatpush.xpose.msra.mxu0 0.0
  %562 = vmatpush.xpose.msra.mxu0 0.0
  %563 = vmatpush.xpose.msra.mxu0 0.0
  %564 = vmatpush.xpose.msra.mxu0 0.0
  %565 = vmatpush.xpose.msra.mxu0 %v548
  %566 = vmatmul.f32.gmra.mxu0 %v548
  %v567 = vpop.f32.mrf.mxu0
  %v568 = vadd.f32 0.0, %v567
  %569 = vdwg.mxu0
  %v571 = vsel %vm40, %v31, 0
  %573 = vmatpush.xpose.msra.mxu0 0.0
  %574 = vmatpush.xpose.msra.mxu0 0.0
  %575 = vmatpush.xpose.msra.mxu0 0.0
  %576 = vmatpush.xpose.msra.mxu0 0.0
  %577 = vmatpush.xpose.msra.mxu0 0.0
  %578 = vmatpush.xpose.msra.mxu0 0.0
  %579 = vmatpush.xpose.msra.mxu0 0.0
  %580 = vmatpush.xpose.msra.mxu0 0.0
  %581 = vmatpush.xpose.msra.mxu0 0.0
  %582 = vmatpush.xpose.msra.mxu0 0.0
  %583 = vmatpush.xpose.msra.mxu0 0.0
  %584 = vmatpush.xpose.msra.mxu0 0.0
  %585 = vmatpush.xpose.msra.mxu0 0.0
  %586 = vmatpush.xpose.msra.mxu0 0.0
  %587 = vmatpush.xpose.msra.mxu0 0.0
  %588 = vmatpush.xpose.msra.mxu0 %v571
  %589 = vmatmul.f32.gmra.mxu0 %v571
  %v590 = vpop.f32.mrf.mxu0
  %v591 = vadd.f32 0.0, %v590
  %592 = vdwg.mxu0
  %v594 = vsel %vm40, %v32, 0
  %596 = vmatpush.xpose.msra.mxu0 0.0
  %597 = vmatpush.xpose.msra.mxu0 0.0
  %598 = vmatpush.xpose.msra.mxu0 0.0
  %599 = vmatpush.xpose.msra.mxu0 0.0
  %600 = vmatpush.xpose.msra.mxu0 0.0
  %601 = vmatpush.xpose.msra.mxu0 0.0
  %602 = vmatpush.xpose.msra.mxu0 0.0
  %603 = vmatpush.xpose.msra.mxu0 0.0
  %604 = vmatpush.xpose.msra.mxu0 0.0
  %605 = vmatpush.xpose.msra.mxu0 0.0
  %606 = vmatpush.xpose.msra.mxu0 0.0
  %607 = vmatpush.xpose.msra.mxu0 0.0
  %608 = vmatpush.xpose.msra.mxu0 0.0
  %609 = vmatpush.xpose.msra.mxu0 0.0
  %610 = vmatpush.xpose.msra.mxu0 0.0
  %611 = vmatpush.xpose.msra.mxu0 %v594
  %612 = vmatmul.f32.gmra.mxu0 %v594
  %v613 = vpop.f32.mrf.mxu0
  %v614 = vadd.f32 0.0, %v613
  %615 = vdwg.mxu0
  %v617 = vsel %vm40, %v33, 0
  %619 = vmatpush.xpose.msra.mxu0 0.0
  %620 = vmatpush.xpose.msra.mxu0 0.0
  %621 = vmatpush.xpose.msra.mxu0 0.0
  %622 = vmatpush.xpose.msra.mxu0 0.0
  %623 = vmatpush.xpose.msra.mxu0 0.0
  %624 = vmatpush.xpose.msra.mxu0 0.0
  %625 = vmatpush.xpose.msra.mxu0 0.0
  %626 = vmatpush.xpose.msra.mxu0 0.0
  %627 = vmatpush.xpose.msra.mxu0 0.0
  %628 = vmatpush.xpose.msra.mxu0 0.0
  %629 = vmatpush.xpose.msra.mxu0 0.0
  %630 = vmatpush.xpose.msra.mxu0 0.0
  %631 = vmatpush.xpose.msra.mxu0 0.0
  %632 = vmatpush.xpose.msra.mxu0 0.0
  %633 = vmatpush.xpose.msra.mxu0 0.0
  %634 = vmatpush.xpose.msra.mxu0 %v617
  %635 = vmatmul.f32.gmra.mxu0 %v617
  %v636 = vpop.f32.mrf.mxu0
  %v637 = vadd.f32 0.0, %v636
  %638 = vdwg.mxu0
  %v640 = vsel %vm40, %v34, 0
  %642 = vmatpush.xpose.msra.mxu0 0.0
  %643 = vmatpush.xpose.msra.mxu0 0.0
  %644 = vmatpush.xpose.msra.mxu0 0.0
  %645 = vmatpush.xpose.msra.mxu0 0.0
  %646 = vmatpush.xpose.msra.mxu0 0.0
  %647 = vmatpush.xpose.msra.mxu0 0.0
  %648 = vmatpush.xpose.msra.mxu0 0.0
  %649 = vmatpush.xpose.msra.mxu0 0.0
  %650 = vmatpush.xpose.msra.mxu0 0.0
  %651 = vmatpush.xpose.msra.mxu0 0.0
  %652 = vmatpush.xpose.msra.mxu0 0.0
  %653 = vmatpush.xpose.msra.mxu0 0.0
  %654 = vmatpush.xpose.msra.mxu0 0.0
  %655 = vmatpush.xpose.msra.mxu0 0.0
  %656 = vmatpush.xpose.msra.mxu0 0.0
  %657 = vmatpush.xpose.msra.mxu0 %v640
  %658 = vmatmul.f32.gmra.mxu0 %v640
  %v659 = vpop.f32.mrf.mxu0
  %v660 = vadd.f32 0.0, %v659
  %661 = vdwg.mxu0
  %v663 = vsel %vm40, %v35, 0
  %665 = vmatpush.xpose.msra.mxu0 0.0
  %666 = vmatpush.xpose.msra.mxu0 0.0
  %667 = vmatpush.xpose.msra.mxu0 0.0
  %668 = vmatpush.xpose.msra.mxu0 0.0
  %669 = vmatpush.xpose.msra.mxu0 0.0
  %670 = vmatpush.xpose.msra.mxu0 0.0
  %671 = vmatpush.xpose.msra.mxu0 0.0
  %672 = vmatpush.xpose.msra.mxu0 0.0
  %673 = vmatpush.xpose.msra.mxu0 0.0
  %674 = vmatpush.xpose.msra.mxu0 0.0
  %675 = vmatpush.xpose.msra.mxu0 0.0
  %676 = vmatpush.xpose.msra.mxu0 0.0
  %677 = vmatpush.xpose.msra.mxu0 0.0
  %678 = vmatpush.xpose.msra.mxu0 0.0
  %679 = vmatpush.xpose.msra.mxu0 0.0
  %680 = vmatpush.xpose.msra.mxu0 %v663
  %681 = vmatmul.f32.gmra.mxu0 %v663
  %v682 = vpop.f32.mrf.mxu0
  %v683 = vadd.f32 0.0, %v682
  %684 = vdwg.mxu0
  %v686 = vsel %vm40, %v36, 0
  %688 = vmatpush.xpose.msra.mxu0 0.0
  %689 = vmatpush.xpose.msra.mxu0 0.0
  %690 = vmatpush.xpose.msra.mxu0 0.0
  %691 = vmatpush.xpose.msra.mxu0 0.0
  %692 = vmatpush.xpose.msra.mxu0 0.0
  %693 = vmatpush.xpose.msra.mxu0 0.0
  %694 = vmatpush.xpose.msra.mxu0 0.0
  %695 = vmatpush.xpose.msra.mxu0 0.0
  %696 = vmatpush.xpose.msra.mxu0 0.0
  %697 = vmatpush.xpose.msra.mxu0 0.0
  %698 = vmatpush.xpose.msra.mxu0 0.0
  %699 = vmatpush.xpose.msra.mxu0 0.0
  %700 = vmatpush.xpose.msra.mxu0 0.0
  %701 = vmatpush.xpose.msra.mxu0 0.0
  %702 = vmatpush.xpose.msra.mxu0 0.0
  %703 = vmatpush.xpose.msra.mxu0 %v686
  %704 = vmatmul.f32.gmra.mxu0 %v686
  %v705 = vpop.f32.mrf.mxu0
  %v706 = vadd.f32 0.0, %v705
  %707 = vdwg.mxu0
  %v709 = vsel %vm40, %v37, 0
  %711 = vmatpush.xpose.msra.mxu0 0.0
  %712 = vmatpush.xpose.msra.mxu0 0.0
  %713 = vmatpush.xpose.msra.mxu0 0.0
  %714 = vmatpush.xpose.msra.mxu0 0.0
  %715 = vmatpush.xpose.msra.mxu0 0.0
  %716 = vmatpush.xpose.msra.mxu0 0.0
  %717 = vmatpush.xpose.msra.mxu0 0.0
  %718 = vmatpush.xpose.msra.mxu0 0.0
  %719 = vmatpush.xpose.msra.mxu0 0.0
  %720 = vmatpush.xpose.msra.mxu0 0.0
  %721 = vmatpush.xpose.msra.mxu0 0.0
  %722 = vmatpush.xpose.msra.mxu0 0.0
  %723 = vmatpush.xpose.msra.mxu0 0.0
  %724 = vmatpush.xpose.msra.mxu0 0.0
  %725 = vmatpush.xpose.msra.mxu0 0.0
  %726 = vmatpush.xpose.msra.mxu0 %v709
  %727 = vmatmul.f32.gmra.mxu0 %v709
  %v728 = vpop.f32.mrf.mxu0
  %v729 = vadd.f32 0.0, %v728
  %730 = vdwg.mxu0
  %v732 = vsel %vm40, %v38, 0
  %734 = vmatpush.xpose.msra.mxu0 0.0
  %735 = vmatpush.xpose.msra.mxu0 0.0
  %736 = vmatpush.xpose.msra.mxu0 0.0
  %737 = vmatpush.xpose.msra.mxu0 0.0
  %738 = vmatpush.xpose.msra.mxu0 0.0
  %739 = vmatpush.xpose.msra.mxu0 0.0
  %740 = vmatpush.xpose.msra.mxu0 0.0
  %741 = vmatpush.xpose.msra.mxu0 0.0
  %742 = vmatpush.xpose.msra.mxu0 0.0
  %743 = vmatpush.xpose.msra.mxu0 0.0
  %744 = vmatpush.xpose.msra.mxu0 0.0
  %745 = vmatpush.xpose.msra.mxu0 0.0
  %746 = vmatpush.xpose.msra.mxu0 0.0
  %747 = vmatpush.xpose.msra.mxu0 0.0
  %748 = vmatpush.xpose.msra.mxu0 0.0
  %749 = vmatpush.xpose.msra.mxu0 %v732
  %750 = vmatmul.f32.gmra.mxu0 %v732
  %v751 = vpop.f32.mrf.mxu0
  %v752 = vadd.f32 0.0, %v751
  %753 = vdwg.mxu0
  %v755 = vsel %vm40, %v39, 0
  %757 = vmatpush.xpose.msra.mxu0 0.0
  %758 = vmatpush.xpose.msra.mxu0 0.0
  %759 = vmatpush.xpose.msra.mxu0 0.0
  %760 = vmatpush.xpose.msra.mxu0 0.0
  %761 = vmatpush.xpose.msra.mxu0 0.0
  %762 = vmatpush.xpose.msra.mxu0 0.0
  %763 = vmatpush.xpose.msra.mxu0 0.0
  %764 = vmatpush.xpose.msra.mxu0 0.0
  %765 = vmatpush.xpose.msra.mxu0 0.0
  %766 = vmatpush.xpose.msra.mxu0 0.0
  %767 = vmatpush.xpose.msra.mxu0 0.0
  %768 = vmatpush.xpose.msra.mxu0 0.0
  %769 = vmatpush.xpose.msra.mxu0 0.0
  %770 = vmatpush.xpose.msra.mxu0 0.0
  %771 = vmatpush.xpose.msra.mxu0 0.0
  %772 = vmatpush.xpose.msra.mxu0 %v755
  %773 = vmatmul.f32.gmra.mxu0 %v755
  %v774 = vpop.f32.mrf.mxu0
  %v775 = vadd.f32 0.0, %v774
  %776 = vdwg.mxu0
  %vm777 = vcmask 18432
  %v778 = vsel %vm777, %v62, inf
  %779 = vmin.xlane.f32.xlu0 %v778
  %v780 = vpop.xlane.xlu0 %779
  %v781 = vsel %vm777, %v85, inf
  %782 = vmin.xlane.f32.xlu0 %v781
  %v783 = vpop.xlane.xlu0 %782
  %v784 = vsel %vm777, %v108, inf
  %785 = vmin.xlane.f32.xlu0 %v784
  %v786 = vpop.xlane.xlu0 %785
  %v787 = vsel %vm777, %v131, inf
  %788 = vmin.xlane.f32.xlu0 %v787
  %v789 = vpop.xlane.xlu0 %788
  %v790 = vsel %vm777, %v154, inf
  %791 = vmin.xlane.f32.xlu0 %v790
  %v792 = vpop.xlane.xlu0 %791
  %v793 = vsel %vm777, %v177, inf
  %794 = vmin.xlane.f32.xlu0 %v793
  %v795 = vpop.xlane.xlu0 %794
  %v796 = vsel %vm777, %v200, inf
  %797 = vmin.xlane.f32.xlu0 %v796
  %v798 = vpop.xlane.xlu0 %797
  %v799 = vsel %vm777, %v223, inf
  %800 = vmin.xlane.f32.xlu0 %v799
  %v801 = vpop.xlane.xlu0 %800
  %v802 = vsel %vm777, %v246, inf
  %803 = vmin.xlane.f32.xlu0 %v802
  %v804 = vpop.xlane.xlu0 %803
  %v805 = vsel %vm777, %v269, inf
  %806 = vmin.xlane.f32.xlu0 %v805
  %v807 = vpop.xlane.xlu0 %806
  %v808 = vsel %vm777, %v292, inf
  %809 = vmin.xlane.f32.xlu0 %v808
  %v810 = vpop.xlane.xlu0 %809
  %v811 = vsel %vm777, %v315, inf
  %812 = vmin.xlane.f32.xlu0 %v811
  %v813 = vpop.xlane.xlu0 %812
  %v814 = vsel %vm777, %v338, inf
  %815 = vmin.xlane.f32.xlu0 %v814
  %v816 = vpop.xlane.xlu0 %815
  %v817 = vsel %vm777, %v361, inf
  %818 = vmin.xlane.f32.xlu0 %v817
  %v819 = vpop.xlane.xlu0 %818
  %v820 = vsel %vm777, %v384, inf
  %821 = vmin.xlane.f32.xlu0 %v820
  %v822 = vpop.xlane.xlu0 %821
  %v823 = vsel %vm777, %v407, inf
  %824 = vmin.xlane.f32.xlu0 %v823
  %v825 = vpop.xlane.xlu0 %824
  %v826 = vsel %vm777, %v430, inf
  %827 = vmin.xlane.f32.xlu0 %v826
  %v828 = vpop.xlane.xlu0 %827
  %v829 = vsel %vm777, %v453, inf
  %830 = vmin.xlane.f32.xlu0 %v829
  %v831 = vpop.xlane.xlu0 %830
  %v832 = vsel %vm777, %v476, inf
  %833 = vmin.xlane.f32.xlu0 %v832
  %v834 = vpop.xlane.xlu0 %833
  %v835 = vsel %vm777, %v499, inf
  %836 = vmin.xlane.f32.xlu0 %v835
  %v837 = vpop.xlane.xlu0 %836
  %v838 = vsel %vm777, %v522, inf
  %839 = vmin.xlane.f32.xlu0 %v838
  %v840 = vpop.xlane.xlu0 %839
  %v841 = vsel %vm777, %v545, inf
  %842 = vmin.xlane.f32.xlu0 %v841
  %v843 = vpop.xlane.xlu0 %842
  %v844 = vsel %vm777, %v568, inf
  %845 = vmin.xlane.f32.xlu0 %v844
  %v846 = vpop.xlane.xlu0 %845
  %v847 = vsel %vm777, %v591, inf
  %848 = vmin.xlane.f32.xlu0 %v847
  %v849 = vpop.xlane.xlu0 %848
  %v850 = vsel %vm777, %v614, inf
  %851 = vmin.xlane.f32.xlu0 %v850
  %v852 = vpop.xlane.xlu0 %851
  %v853 = vsel %vm777, %v637, inf
  %854 = vmin.xlane.f32.xlu0 %v853
  %v855 = vpop.xlane.xlu0 %854
  %v856 = vsel %vm777, %v660, inf
  %857 = vmin.xlane.f32.xlu0 %v856
  %v858 = vpop.xlane.xlu0 %857
  %v859 = vsel %vm777, %v683, inf
  %860 = vmin.xlane.f32.xlu0 %v859
  %v861 = vpop.xlane.xlu0 %860
  %v862 = vsel %vm777, %v706, inf
  %863 = vmin.xlane.f32.xlu0 %v862
  %v864 = vpop.xlane.xlu0 %863
  %v865 = vsel %vm777, %v729, inf
  %866 = vmin.xlane.f32.xlu0 %v865
  %v867 = vpop.xlane.xlu0 %866
  %v868 = vsel %vm777, %v752, inf
  %869 = vmin.xlane.f32.xlu0 %v868
  %v870 = vpop.xlane.xlu0 %869
  %v871 = vsel %vm777, %v775, inf
  %872 = vmin.xlane.f32.xlu0 %v871
  %v873 = vpop.xlane.xlu0 %872
  %v874 = vsub.f32 %v780, %v62
  %v875 = vsub.f32 %v783, %v85
  %v876 = vsub.f32 %v786, %v108
  %v877 = vsub.f32 %v789, %v131
  %v878 = vsub.f32 %v792, %v154
  %v879 = vsub.f32 %v795, %v177
  %v880 = vsub.f32 %v798, %v200
  %v881 = vsub.f32 %v801, %v223
  %v882 = vsub.f32 %v804, %v246
  %v883 = vsub.f32 %v807, %v269
  %v884 = vsub.f32 %v810, %v292
  %v885 = vsub.f32 %v813, %v315
  %v886 = vsub.f32 %v816, %v338
  %v887 = vsub.f32 %v819, %v361
  %v888 = vsub.f32 %v822, %v384
  %v889 = vsub.f32 %v825, %v407
  %v890 = vsub.f32 %v828, %v430
  %v891 = vsub.f32 %v831, %v453
  %v892 = vsub.f32 %v834, %v476
  %v893 = vsub.f32 %v837, %v499
  %v894 = vsub.f32 %v840, %v522
  %v895 = vsub.f32 %v843, %v545
  %v896 = vsub.f32 %v846, %v568
  %v897 = vsub.f32 %v849, %v591
  %v898 = vsub.f32 %v852, %v614
  %v899 = vsub.f32 %v855, %v637
  %v900 = vsub.f32 %v858, %v660
  %v901 = vsub.f32 %v861, %v683
  %v902 = vsub.f32 %v864, %v706
  %v903 = vsub.f32 %v867, %v729
  %v904 = vsub.f32 %v870, %v752
  %v905 = vsub.f32 %v873, %v775
  %v906 = vmul.f32 %v874, 1.442695
  %v907 = vpow.pop %v906
  %v908 = vmul.f32 %v875, 1.442695
  %v909 = vpow.pop %v908
  %v910 = vmul.f32 %v876, 1.442695
  %v911 = vpow.pop %v910
  %v912 = vmul.f32 %v877, 1.442695
  %v913 = vpow.pop %v912
  %v914 = vmul.f32 %v878, 1.442695
  %v915 = vpow.pop %v914
  %v916 = vmul.f32 %v879, 1.442695
  %v917 = vpow.pop %v916
  %v918 = vmul.f32 %v880, 1.442695
  %v919 = vpow.pop %v918
  %v920 = vmul.f32 %v881, 1.442695
  %v921 = vpow.pop %v920
  %v922 = vmul.f32 %v882, 1.442695
  %v923 = vpow.pop %v922
  %v924 = vmul.f32 %v883, 1.442695
  %v925 = vpow.pop %v924
  %v926 = vmul.f32 %v884, 1.442695
  %v927 = vpow.pop %v926
  %v928 = vmul.f32 %v885, 1.442695
  %v929 = vpow.pop %v928
  %v930 = vmul.f32 %v886, 1.442695
  %v931 = vpow.pop %v930
  %v932 = vmul.f32 %v887, 1.442695
  %v933 = vpow.pop %v932
  %v934 = vmul.f32 %v888, 1.442695
  %v935 = vpow.pop %v934
  %v936 = vmul.f32 %v889, 1.442695
  %v937 = vpow.pop %v936
  %v938 = vmul.f32 %v890, 1.442695
  %v939 = vpow.pop %v938
  %v940 = vmul.f32 %v891, 1.442695
  %v941 = vpow.pop %v940
  %v942 = vmul.f32 %v892, 1.442695
  %v943 = vpow.pop %v942
  %v944 = vmul.f32 %v893, 1.442695
  %v945 = vpow.pop %v944
  %v946 = vmul.f32 %v894, 1.442695
  %v947 = vpow.pop %v946
  %v948 = vmul.f32 %v895, 1.442695
  %v949 = vpow.pop %v948
  %v950 = vmul.f32 %v896, 1.442695
  %v951 = vpow.pop %v950
  %v952 = vmul.f32 %v897, 1.442695
  %v953 = vpow.pop %v952
  %v954 = vmul.f32 %v898, 1.442695
  %v955 = vpow.pop %v954
  %v956 = vmul.f32 %v899, 1.442695
  %v957 = vpow.pop %v956
  %v958 = vmul.f32 %v900, 1.442695
  %v959 = vpow.pop %v958
  %v960 = vmul.f32 %v901, 1.442695
  %v961 = vpow.pop %v960
  %v962 = vmul.f32 %v902, 1.442695
  %v963 = vpow.pop %v962
  %v964 = vmul.f32 %v903, 1.442695
  %v965 = vpow.pop %v964
  %v966 = vmul.f32 %v904, 1.442695
  %v967 = vpow.pop %v966
  %v968 = vmul.f32 %v905, 1.442695
  %v969 = vpow.pop %v968
  %v970 = vsel %vm777, %v907, 0.0
  %971 = vadd.xlane.f32.xlu0 %v970
  %v972 = vpop.xlane.xlu0 %971
  %v973 = vsel %vm777, %v909, 0.0
  %974 = vadd.xlane.f32.xlu0 %v973
  %v975 = vpop.xlane.xlu0 %974
  %v976 = vsel %vm777, %v911, 0.0
  %977 = vadd.xlane.f32.xlu0 %v976
  %v978 = vpop.xlane.xlu0 %977
  %v979 = vsel %vm777, %v913, 0.0
  %980 = vadd.xlane.f32.xlu0 %v979
  %v981 = vpop.xlane.xlu0 %980
  %v982 = vsel %vm777, %v915, 0.0
  %983 = vadd.xlane.f32.xlu0 %v982
  %v984 = vpop.xlane.xlu0 %983
  %v985 = vsel %vm777, %v917, 0.0
  %986 = vadd.xlane.f32.xlu0 %v985
  %v987 = vpop.xlane.xlu0 %986
  %v988 = vsel %vm777, %v919, 0.0
  %989 = vadd.xlane.f32.xlu0 %v988
  %v990 = vpop.xlane.xlu0 %989
  %v991 = vsel %vm777, %v921, 0.0
  %992 = vadd.xlane.f32.xlu0 %v991
  %v993 = vpop.xlane.xlu0 %992
  %v994 = vsel %vm777, %v923, 0.0
  %995 = vadd.xlane.f32.xlu0 %v994
  %v996 = vpop.xlane.xlu0 %995
  %v997 = vsel %vm777, %v925, 0.0
  %998 = vadd.xlane.f32.xlu0 %v997
  %v999 = vpop.xlane.xlu0 %998
  %v1000 = vsel %vm777, %v927, 0.0
  %1001 = vadd.xlane.f32.xlu0 %v1000
  %v1002 = vpop.xlane.xlu0 %1001
  %v1003 = vsel %vm777, %v929, 0.0
  %1004 = vadd.xlane.f32.xlu0 %v1003
  %v1005 = vpop.xlane.xlu0 %1004
  %v1006 = vsel %vm777, %v931, 0.0
  %1007 = vadd.xlane.f32.xlu0 %v1006
  %v1008 = vpop.xlane.xlu0 %1007
  %v1009 = vsel %vm777, %v933, 0.0
  %1010 = vadd.xlane.f32.xlu0 %v1009
  %v1011 = vpop.xlane.xlu0 %1010
  %v1012 = vsel %vm777, %v935, 0.0
  %1013 = vadd.xlane.f32.xlu0 %v1012
  %v1014 = vpop.xlane.xlu0 %1013
  %v1015 = vsel %vm777, %v937, 0.0
  %1016 = vadd.xlane.f32.xlu0 %v1015
  %v1017 = vpop.xlane.xlu0 %1016
  %v1018 = vsel %vm777, %v939, 0.0
  %1019 = vadd.xlane.f32.xlu0 %v1018
  %v1020 = vpop.xlane.xlu0 %1019
  %v1021 = vsel %vm777, %v941, 0.0
  %1022 = vadd.xlane.f32.xlu0 %v1021
  %v1023 = vpop.xlane.xlu0 %1022
  %v1024 = vsel %vm777, %v943, 0.0
  %1025 = vadd.xlane.f32.xlu0 %v1024
  %v1026 = vpop.xlane.xlu0 %1025
  %v1027 = vsel %vm777, %v945, 0.0
  %1028 = vadd.xlane.f32.xlu0 %v1027
  %v1029 = vpop.xlane.xlu0 %1028
  %v1030 = vsel %vm777, %v947, 0.0
  %1031 = vadd.xlane.f32.xlu0 %v1030
  %v1032 = vpop.xlane.xlu0 %1031
  %v1033 = vsel %vm777, %v949, 0.0
  %1034 = vadd.xlane.f32.xlu0 %v1033
  %v1035 = vpop.xlane.xlu0 %1034
  %v1036 = vsel %vm777, %v951, 0.0
  %1037 = vadd.xlane.f32.xlu0 %v1036
  %v1038 = vpop.xlane.xlu0 %1037
  %v1039 = vsel %vm777, %v953, 0.0
  %1040 = vadd.xlane.f32.xlu0 %v1039
  %v1041 = vpop.xlane.xlu0 %1040
  %v1042 = vsel %vm777, %v955, 0.0
  %1043 = vadd.xlane.f32.xlu0 %v1042
  %v1044 = vpop.xlane.xlu0 %1043
  %v1045 = vsel %vm777, %v957, 0.0
  %1046 = vadd.xlane.f32.xlu0 %v1045
  %v1047 = vpop.xlane.xlu0 %1046
  %v1048 = vsel %vm777, %v959, 0.0
  %1049 = vadd.xlane.f32.xlu0 %v1048
  %v1050 = vpop.xlane.xlu0 %1049
  %v1051 = vsel %vm777, %v961, 0.0
  %1052 = vadd.xlane.f32.xlu0 %v1051
  %v1053 = vpop.xlane.xlu0 %1052
  %v1054 = vsel %vm777, %v963, 0.0
  %1055 = vadd.xlane.f32.xlu0 %v1054
  %v1056 = vpop.xlane.xlu0 %1055
  %v1057 = vsel %vm777, %v965, 0.0
  %1058 = vadd.xlane.f32.xlu0 %v1057
  %v1059 = vpop.xlane.xlu0 %1058
  %v1060 = vsel %vm777, %v967, 0.0
  %1061 = vadd.xlane.f32.xlu0 %v1060
  %v1062 = vpop.xlane.xlu0 %1061
  %v1063 = vsel %vm777, %v969, 0.0
  %1064 = vadd.xlane.f32.xlu0 %v1063
  %v1065 = vpop.xlane.xlu0 %1064
  %v1066 = vrcp.pop %v972
  %v1067 = vrcp.pop %v975
  %v1068 = vrcp.pop %v978
  %v1069 = vrcp.pop %v981
  %v1070 = vrcp.pop %v984
  %v1071 = vrcp.pop %v987
  %v1072 = vrcp.pop %v990
  %v1073 = vrcp.pop %v993
  %v1074 = vrcp.pop %v996
  %v1075 = vrcp.pop %v999
  %v1076 = vrcp.pop %v1002
  %v1077 = vrcp.pop %v1005
  %v1078 = vrcp.pop %v1008
  %v1079 = vrcp.pop %v1011
  %v1080 = vrcp.pop %v1014
  %v1081 = vrcp.pop %v1017
  %v1082 = vrcp.pop %v1020
  %v1083 = vrcp.pop %v1023
  %v1084 = vrcp.pop %v1026
  %v1085 = vrcp.pop %v1029
  %v1086 = vrcp.pop %v1032
  %v1087 = vrcp.pop %v1035
  %v1088 = vrcp.pop %v1038
  %v1089 = vrcp.pop %v1041
  %v1090 = vrcp.pop %v1044
  %v1091 = vrcp.pop %v1047
  %v1092 = vrcp.pop %v1050
  %v1093 = vrcp.pop %v1053
  %v1094 = vrcp.pop %v1056
  %v1095 = vrcp.pop %v1059
  %v1096 = vrcp.pop %v1062
  %v1097 = vrcp.pop %v1065
  %v1098 = vmul.f32 %v907, %v1066
  %v1099 = vmul.f32 %v909, %v1067
  %v1100 = vmul.f32 %v911, %v1068
  %v1101 = vmul.f32 %v913, %v1069
  %v1102 = vmul.f32 %v915, %v1070
  %v1103 = vmul.f32 %v917, %v1071
  %v1104 = vmul.f32 %v919, %v1072
  %v1105 = vmul.f32 %v921, %v1073
  %v1106 = vmul.f32 %v923, %v1074
  %v1107 = vmul.f32 %v925, %v1075
  %v1108 = vmul.f32 %v927, %v1076
  %v1109 = vmul.f32 %v929, %v1077
  %v1110 = vmul.f32 %v931, %v1078
  %v1111 = vmul.f32 %v933, %v1079
  %v1112 = vmul.f32 %v935, %v1080
  %v1113 = vmul.f32 %v937, %v1081
  %v1114 = vmul.f32 %v939, %v1082
  %v1115 = vmul.f32 %v941, %v1083
  %v1116 = vmul.f32 %v943, %v1084
  %v1117 = vmul.f32 %v945, %v1085
  %v1118 = vmul.f32 %v947, %v1086
  %v1119 = vmul.f32 %v949, %v1087
  %v1120 = vmul.f32 %v951, %v1088
  %v1121 = vmul.f32 %v953, %v1089
  %v1122 = vmul.f32 %v955, %v1090
  %v1123 = vmul.f32 %v957, %v1091
  %v1124 = vmul.f32 %v959, %v1092
  %v1125 = vmul.f32 %v961, %v1093
  %v1126 = vmul.f32 %v963, %v1094
  %v1127 = vmul.f32 %v965, %v1095
  %v1128 = vmul.f32 %v967, %v1096
  %v1129 = vmul.f32 %v969, %v1097
  %vm1130 = vcmask 23552
  %v1132 = vsel %vm1130, %v1098, 0
  %vm1134 = vcmask 1042432
  %v1135 = vsel %vm1134, %v8, 0
  %1137 = vmatpush.msra.mxu0 0.0
  %1138 = vmatpush.msra.mxu0 0.0
  %1139 = vmatpush.msra.mxu0 0.0
  %1140 = vmatpush.msra.mxu0 0.0
  %1141 = vmatpush.msra.mxu0 0.0
  %1142 = vmatpush.msra.mxu0 0.0
  %1143 = vmatpush.msra.mxu0 0.0
  %1144 = vmatpush.msra.mxu0 0.0
  %1145 = vmatpush.msra.mxu0 0.0
  %1146 = vmatpush.msra.mxu0 0.0
  %1147 = vmatpush.msra.mxu0 0.0
  %1148 = vmatpush.msra.mxu0 0.0
  %1149 = vmatpush.msra.mxu0 0.0
  %1150 = vmatpush.msra.mxu0 0.0
  %1151 = vmatpush.msra.mxu0 0.0
  %1152 = vmatpush.msra.mxu0 %v1135
  %1153 = vmatmul.f32.gmra.mxu0 %v1132
  %v1154 = vpop.f32.mrf.mxu0
  %v1155 = vadd.f32 0.0, %v1154
  %1156 = vdwg.mxu0
  %v1158 = vsel %vm1130, %v1099, 0
  %v1160 = vsel %vm1134, %v9, 0
  %1162 = vmatpush.msra.mxu0 0.0
  %1163 = vmatpush.msra.mxu0 0.0
  %1164 = vmatpush.msra.mxu0 0.0
  %1165 = vmatpush.msra.mxu0 0.0
  %1166 = vmatpush.msra.mxu0 0.0
  %1167 = vmatpush.msra.mxu0 0.0
  %1168 = vmatpush.msra.mxu0 0.0
  %1169 = vmatpush.msra.mxu0 0.0
  %1170 = vmatpush.msra.mxu0 0.0
  %1171 = vmatpush.msra.mxu0 0.0
  %1172 = vmatpush.msra.mxu0 0.0
  %1173 = vmatpush.msra.mxu0 0.0
  %1174 = vmatpush.msra.mxu0 0.0
  %1175 = vmatpush.msra.mxu0 0.0
  %1176 = vmatpush.msra.mxu0 0.0
  %1177 = vmatpush.msra.mxu0 %v1160
  %1178 = vmatmul.f32.gmra.mxu0 %v1158
  %v1179 = vpop.f32.mrf.mxu0
  %v1180 = vadd.f32 0.0, %v1179
  %1181 = vdwg.mxu0
  %v1183 = vsel %vm1130, %v1100, 0
  %v1185 = vsel %vm1134, %v10, 0
  %1187 = vmatpush.msra.mxu0 0.0
  %1188 = vmatpush.msra.mxu0 0.0
  %1189 = vmatpush.msra.mxu0 0.0
  %1190 = vmatpush.msra.mxu0 0.0
  %1191 = vmatpush.msra.mxu0 0.0
  %1192 = vmatpush.msra.mxu0 0.0
  %1193 = vmatpush.msra.mxu0 0.0
  %1194 = vmatpush.msra.mxu0 0.0
  %1195 = vmatpush.msra.mxu0 0.0
  %1196 = vmatpush.msra.mxu0 0.0
  %1197 = vmatpush.msra.mxu0 0.0
  %1198 = vmatpush.msra.mxu0 0.0
  %1199 = vmatpush.msra.mxu0 0.0
  %1200 = vmatpush.msra.mxu0 0.0
  %1201 = vmatpush.msra.mxu0 0.0
  %1202 = vmatpush.msra.mxu0 %v1185
  %1203 = vmatmul.f32.gmra.mxu0 %v1183
  %v1204 = vpop.f32.mrf.mxu0
  %v1205 = vadd.f32 0.0, %v1204
  %1206 = vdwg.mxu0
  %v1208 = vsel %vm1130, %v1101, 0
  %v1210 = vsel %vm1134, %v11, 0
  %1212 = vmatpush.msra.mxu0 0.0
  %1213 = vmatpush.msra.mxu0 0.0
  %1214 = vmatpush.msra.mxu0 0.0
  %1215 = vmatpush.msra.mxu0 0.0
  %1216 = vmatpush.msra.mxu0 0.0
  %1217 = vmatpush.msra.mxu0 0.0
  %1218 = vmatpush.msra.mxu0 0.0
  %1219 = vmatpush.msra.mxu0 0.0
  %1220 = vmatpush.msra.mxu0 0.0
  %1221 = vmatpush.msra.mxu0 0.0
  %1222 = vmatpush.msra.mxu0 0.0
  %1223 = vmatpush.msra.mxu0 0.0
  %1224 = vmatpush.msra.mxu0 0.0
  %1225 = vmatpush.msra.mxu0 0.0
  %1226 = vmatpush.msra.mxu0 0.0
  %1227 = vmatpush.msra.mxu0 %v1210
  %1228 = vmatmul.f32.gmra.mxu0 %v1208
  %v1229 = vpop.f32.mrf.mxu0
  %v1230 = vadd.f32 0.0, %v1229
  %1231 = vdwg.mxu0
  %v1233 = vsel %vm1130, %v1102, 0
  %v1235 = vsel %vm1134, %v12, 0
  %1237 = vmatpush.msra.mxu0 0.0
  %1238 = vmatpush.msra.mxu0 0.0
  %1239 = vmatpush.msra.mxu0 0.0
  %1240 = vmatpush.msra.mxu0 0.0
  %1241 = vmatpush.msra.mxu0 0.0
  %1242 = vmatpush.msra.mxu0 0.0
  %1243 = vmatpush.msra.mxu0 0.0
  %1244 = vmatpush.msra.mxu0 0.0
  %1245 = vmatpush.msra.mxu0 0.0
  %1246 = vmatpush.msra.mxu0 0.0
  %1247 = vmatpush.msra.mxu0 0.0
  %1248 = vmatpush.msra.mxu0 0.0
  %1249 = vmatpush.msra.mxu0 0.0
  %1250 = vmatpush.msra.mxu0 0.0
  %1251 = vmatpush.msra.mxu0 0.0
  %1252 = vmatpush.msra.mxu0 %v1235
  %1253 = vmatmul.f32.gmra.mxu0 %v1233
  %v1254 = vpop.f32.mrf.mxu0
  %v1255 = vadd.f32 0.0, %v1254
  %1256 = vdwg.mxu0
  %v1258 = vsel %vm1130, %v1103, 0
  %v1260 = vsel %vm1134, %v13, 0
  %1262 = vmatpush.msra.mxu0 0.0
  %1263 = vmatpush.msra.mxu0 0.0
  %1264 = vmatpush.msra.mxu0 0.0
  %1265 = vmatpush.msra.mxu0 0.0
  %1266 = vmatpush.msra.mxu0 0.0
  %1267 = vmatpush.msra.mxu0 0.0
  %1268 = vmatpush.msra.mxu0 0.0
  %1269 = vmatpush.msra.mxu0 0.0
  %1270 = vmatpush.msra.mxu0 0.0
  %1271 = vmatpush.msra.mxu0 0.0
  %1272 = vmatpush.msra.mxu0 0.0
  %1273 = vmatpush.msra.mxu0 0.0
  %1274 = vmatpush.msra.mxu0 0.0
  %1275 = vmatpush.msra.mxu0 0.0
  %1276 = vmatpush.msra.mxu0 0.0
  %1277 = vmatpush.msra.mxu0 %v1260
  %1278 = vmatmul.f32.gmra.mxu0 %v1258
  %v1279 = vpop.f32.mrf.mxu0
  %v1280 = vadd.f32 0.0, %v1279
  %1281 = vdwg.mxu0
  %v1283 = vsel %vm1130, %v1104, 0
  %v1285 = vsel %vm1134, %v14, 0
  %1287 = vmatpush.msra.mxu0 0.0
  %1288 = vmatpush.msra.mxu0 0.0
  %1289 = vmatpush.msra.mxu0 0.0
  %1290 = vmatpush.msra.mxu0 0.0
  %1291 = vmatpush.msra.mxu0 0.0
  %1292 = vmatpush.msra.mxu0 0.0
  %1293 = vmatpush.msra.mxu0 0.0
  %1294 = vmatpush.msra.mxu0 0.0
  %1295 = vmatpush.msra.mxu0 0.0
  %1296 = vmatpush.msra.mxu0 0.0
  %1297 = vmatpush.msra.mxu0 0.0
  %1298 = vmatpush.msra.mxu0 0.0
  %1299 = vmatpush.msra.mxu0 0.0
  %1300 = vmatpush.msra.mxu0 0.0
  %1301 = vmatpush.msra.mxu0 0.0
  %1302 = vmatpush.msra.mxu0 %v1285
  %1303 = vmatmul.f32.gmra.mxu0 %v1283
  %v1304 = vpop.f32.mrf.mxu0
  %v1305 = vadd.f32 0.0, %v1304
  %1306 = vdwg.mxu0
  %v1308 = vsel %vm1130, %v1105, 0
  %v1310 = vsel %vm1134, %v15, 0
  %1312 = vmatpush.msra.mxu0 0.0
  %1313 = vmatpush.msra.mxu0 0.0
  %1314 = vmatpush.msra.mxu0 0.0
  %1315 = vmatpush.msra.mxu0 0.0
  %1316 = vmatpush.msra.mxu0 0.0
  %1317 = vmatpush.msra.mxu0 0.0
  %1318 = vmatpush.msra.mxu0 0.0
  %1319 = vmatpush.msra.mxu0 0.0
  %1320 = vmatpush.msra.mxu0 0.0
  %1321 = vmatpush.msra.mxu0 0.0
  %1322 = vmatpush.msra.mxu0 0.0
  %1323 = vmatpush.msra.mxu0 0.0
  %1324 = vmatpush.msra.mxu0 0.0
  %1325 = vmatpush.msra.mxu0 0.0
  %1326 = vmatpush.msra.mxu0 0.0
  %1327 = vmatpush.msra.mxu0 %v1310
  %1328 = vmatmul.f32.gmra.mxu0 %v1308
  %v1329 = vpop.f32.mrf.mxu0
  %v1330 = vadd.f32 0.0, %v1329
  %1331 = vdwg.mxu0
  %v1333 = vsel %vm1130, %v1106, 0
  %v1335 = vsel %vm1134, %v16, 0
  %1337 = vmatpush.msra.mxu0 0.0
  %1338 = vmatpush.msra.mxu0 0.0
  %1339 = vmatpush.msra.mxu0 0.0
  %1340 = vmatpush.msra.mxu0 0.0
  %1341 = vmatpush.msra.mxu0 0.0
  %1342 = vmatpush.msra.mxu0 0.0
  %1343 = vmatpush.msra.mxu0 0.0
  %1344 = vmatpush.msra.mxu0 0.0
  %1345 = vmatpush.msra.mxu0 0.0
  %1346 = vmatpush.msra.mxu0 0.0
  %1347 = vmatpush.msra.mxu0 0.0
  %1348 = vmatpush.msra.mxu0 0.0
  %1349 = vmatpush.msra.mxu0 0.0
  %1350 = vmatpush.msra.mxu0 0.0
  %1351 = vmatpush.msra.mxu0 0.0
  %1352 = vmatpush.msra.mxu0 %v1335
  %1353 = vmatmul.f32.gmra.mxu0 %v1333
  %v1354 = vpop.f32.mrf.mxu0
  %v1355 = vadd.f32 0.0, %v1354
  %1356 = vdwg.mxu0
  %v1358 = vsel %vm1130, %v1107, 0
  %v1360 = vsel %vm1134, %v17, 0
  %1362 = vmatpush.msra.mxu0 0.0
  %1363 = vmatpush.msra.mxu0 0.0
  %1364 = vmatpush.msra.mxu0 0.0
  %1365 = vmatpush.msra.mxu0 0.0
  %1366 = vmatpush.msra.mxu0 0.0
  %1367 = vmatpush.msra.mxu0 0.0
  %1368 = vmatpush.msra.mxu0 0.0
  %1369 = vmatpush.msra.mxu0 0.0
  %1370 = vmatpush.msra.mxu0 0.0
  %1371 = vmatpush.msra.mxu0 0.0
  %1372 = vmatpush.msra.mxu0 0.0
  %1373 = vmatpush.msra.mxu0 0.0
  %1374 = vmatpush.msra.mxu0 0.0
  %1375 = vmatpush.msra.mxu0 0.0
  %1376 = vmatpush.msra.mxu0 0.0
  %1377 = vmatpush.msra.mxu0 %v1360
  %1378 = vmatmul.f32.gmra.mxu0 %v1358
  %v1379 = vpop.f32.mrf.mxu0
  %v1380 = vadd.f32 0.0, %v1379
  %1381 = vdwg.mxu0
  %v1383 = vsel %vm1130, %v1108, 0
  %v1385 = vsel %vm1134, %v18, 0
  %1387 = vmatpush.msra.mxu0 0.0
  %1388 = vmatpush.msra.mxu0 0.0
  %1389 = vmatpush.msra.mxu0 0.0
  %1390 = vmatpush.msra.mxu0 0.0
  %1391 = vmatpush.msra.mxu0 0.0
  %1392 = vmatpush.msra.mxu0 0.0
  %1393 = vmatpush.msra.mxu0 0.0
  %1394 = vmatpush.msra.mxu0 0.0
  %1395 = vmatpush.msra.mxu0 0.0
  %1396 = vmatpush.msra.mxu0 0.0
  %1397 = vmatpush.msra.mxu0 0.0
  %1398 = vmatpush.msra.mxu0 0.0
  %1399 = vmatpush.msra.mxu0 0.0
  %1400 = vmatpush.msra.mxu0 0.0
  %1401 = vmatpush.msra.mxu0 0.0
  %1402 = vmatpush.msra.mxu0 %v1385
  %1403 = vmatmul.f32.gmra.mxu0 %v1383
  %v1404 = vpop.f32.mrf.mxu0
  %v1405 = vadd.f32 0.0, %v1404
  %1406 = vdwg.mxu0
  %v1408 = vsel %vm1130, %v1109, 0
  %v1410 = vsel %vm1134, %v19, 0
  %1412 = vmatpush.msra.mxu0 0.0
  %1413 = vmatpush.msra.mxu0 0.0
  %1414 = vmatpush.msra.mxu0 0.0
  %1415 = vmatpush.msra.mxu0 0.0
  %1416 = vmatpush.msra.mxu0 0.0
  %1417 = vmatpush.msra.mxu0 0.0
  %1418 = vmatpush.msra.mxu0 0.0
  %1419 = vmatpush.msra.mxu0 0.0
  %1420 = vmatpush.msra.mxu0 0.0
  %1421 = vmatpush.msra.mxu0 0.0
  %1422 = vmatpush.msra.mxu0 0.0
  %1423 = vmatpush.msra.mxu0 0.0
  %1424 = vmatpush.msra.mxu0 0.0
  %1425 = vmatpush.msra.mxu0 0.0
  %1426 = vmatpush.msra.mxu0 0.0
  %1427 = vmatpush.msra.mxu0 %v1410
  %1428 = vmatmul.f32.gmra.mxu0 %v1408
  %v1429 = vpop.f32.mrf.mxu0
  %v1430 = vadd.f32 0.0, %v1429
  %1431 = vdwg.mxu0
  %v1433 = vsel %vm1130, %v1110, 0
  %v1435 = vsel %vm1134, %v20, 0
  %1437 = vmatpush.msra.mxu0 0.0
  %1438 = vmatpush.msra.mxu0 0.0
  %1439 = vmatpush.msra.mxu0 0.0
  %1440 = vmatpush.msra.mxu0 0.0
  %1441 = vmatpush.msra.mxu0 0.0
  %1442 = vmatpush.msra.mxu0 0.0
  %1443 = vmatpush.msra.mxu0 0.0
  %1444 = vmatpush.msra.mxu0 0.0
  %1445 = vmatpush.msra.mxu0 0.0
  %1446 = vmatpush.msra.mxu0 0.0
  %1447 = vmatpush.msra.mxu0 0.0
  %1448 = vmatpush.msra.mxu0 0.0
  %1449 = vmatpush.msra.mxu0 0.0
  %1450 = vmatpush.msra.mxu0 0.0
  %1451 = vmatpush.msra.mxu0 0.0
  %1452 = vmatpush.msra.mxu0 %v1435
  %1453 = vmatmul.f32.gmra.mxu0 %v1433
  %v1454 = vpop.f32.mrf.mxu0
  %v1455 = vadd.f32 0.0, %v1454
  %1456 = vdwg.mxu0
  %v1458 = vsel %vm1130, %v1111, 0
  %v1460 = vsel %vm1134, %v21, 0
  %1462 = vmatpush.msra.mxu0 0.0
  %1463 = vmatpush.msra.mxu0 0.0
  %1464 = vmatpush.msra.mxu0 0.0
  %1465 = vmatpush.msra.mxu0 0.0
  %1466 = vmatpush.msra.mxu0 0.0
  %1467 = vmatpush.msra.mxu0 0.0
  %1468 = vmatpush.msra.mxu0 0.0
  %1469 = vmatpush.msra.mxu0 0.0
  %1470 = vmatpush.msra.mxu0 0.0
  %1471 = vmatpush.msra.mxu0 0.0
  %1472 = vmatpush.msra.mxu0 0.0
  %1473 = vmatpush.msra.mxu0 0.0
  %1474 = vmatpush.msra.mxu0 0.0
  %1475 = vmatpush.msra.mxu0 0.0
  %1476 = vmatpush.msra.mxu0 0.0
  %1477 = vmatpush.msra.mxu0 %v1460
  %1478 = vmatmul.f32.gmra.mxu0 %v1458
  %v1479 = vpop.f32.mrf.mxu0
  %v1480 = vadd.f32 0.0, %v1479
  %1481 = vdwg.mxu0
  %v1483 = vsel %vm1130, %v1112, 0
  %v1485 = vsel %vm1134, %v22, 0
  %1487 = vmatpush.msra.mxu0 0.0
  %1488 = vmatpush.msra.mxu0 0.0
  %1489 = vmatpush.msra.mxu0 0.0
  %1490 = vmatpush.msra.mxu0 0.0
  %1491 = vmatpush.msra.mxu0 0.0
  %1492 = vmatpush.msra.mxu0 0.0
  %1493 = vmatpush.msra.mxu0 0.0
  %1494 = vmatpush.msra.mxu0 0.0
  %1495 = vmatpush.msra.mxu0 0.0
  %1496 = vmatpush.msra.mxu0 0.0
  %1497 = vmatpush.msra.mxu0 0.0
  %1498 = vmatpush.msra.mxu0 0.0
  %1499 = vmatpush.msra.mxu0 0.0
  %1500 = vmatpush.msra.mxu0 0.0
  %1501 = vmatpush.msra.mxu0 0.0
  %1502 = vmatpush.msra.mxu0 %v1485
  %1503 = vmatmul.f32.gmra.mxu0 %v1483
  %v1504 = vpop.f32.mrf.mxu0
  %v1505 = vadd.f32 0.0, %v1504
  %1506 = vdwg.mxu0
  %v1508 = vsel %vm1130, %v1113, 0
  %v1510 = vsel %vm1134, %v23, 0
  %1512 = vmatpush.msra.mxu0 0.0
  %1513 = vmatpush.msra.mxu0 0.0
  %1514 = vmatpush.msra.mxu0 0.0
  %1515 = vmatpush.msra.mxu0 0.0
  %1516 = vmatpush.msra.mxu0 0.0
  %1517 = vmatpush.msra.mxu0 0.0
  %1518 = vmatpush.msra.mxu0 0.0
  %1519 = vmatpush.msra.mxu0 0.0
  %1520 = vmatpush.msra.mxu0 0.0
  %1521 = vmatpush.msra.mxu0 0.0
  %1522 = vmatpush.msra.mxu0 0.0
  %1523 = vmatpush.msra.mxu0 0.0
  %1524 = vmatpush.msra.mxu0 0.0
  %1525 = vmatpush.msra.mxu0 0.0
  %1526 = vmatpush.msra.mxu0 0.0
  %1527 = vmatpush.msra.mxu0 %v1510
  %1528 = vmatmul.f32.gmra.mxu0 %v1508
  %v1529 = vpop.f32.mrf.mxu0
  %v1530 = vadd.f32 0.0, %v1529
  %1531 = vdwg.mxu0
  %v1533 = vsel %vm1130, %v1114, 0
  %v1535 = vsel %vm1134, %v24, 0
  %1537 = vmatpush.msra.mxu0 0.0
  %1538 = vmatpush.msra.mxu0 0.0
  %1539 = vmatpush.msra.mxu0 0.0
  %1540 = vmatpush.msra.mxu0 0.0
  %1541 = vmatpush.msra.mxu0 0.0
  %1542 = vmatpush.msra.mxu0 0.0
  %1543 = vmatpush.msra.mxu0 0.0
  %1544 = vmatpush.msra.mxu0 0.0
  %1545 = vmatpush.msra.mxu0 0.0
  %1546 = vmatpush.msra.mxu0 0.0
  %1547 = vmatpush.msra.mxu0 0.0
  %1548 = vmatpush.msra.mxu0 0.0
  %1549 = vmatpush.msra.mxu0 0.0
  %1550 = vmatpush.msra.mxu0 0.0
  %1551 = vmatpush.msra.mxu0 0.0
  %1552 = vmatpush.msra.mxu0 %v1535
  %1553 = vmatmul.f32.gmra.mxu0 %v1533
  %v1554 = vpop.f32.mrf.mxu0
  %v1555 = vadd.f32 0.0, %v1554
  %1556 = vdwg.mxu0
  %v1558 = vsel %vm1130, %v1115, 0
  %v1560 = vsel %vm1134, %v25, 0
  %1562 = vmatpush.msra.mxu0 0.0
  %1563 = vmatpush.msra.mxu0 0.0
  %1564 = vmatpush.msra.mxu0 0.0
  %1565 = vmatpush.msra.mxu0 0.0
  %1566 = vmatpush.msra.mxu0 0.0
  %1567 = vmatpush.msra.mxu0 0.0
  %1568 = vmatpush.msra.mxu0 0.0
  %1569 = vmatpush.msra.mxu0 0.0
  %1570 = vmatpush.msra.mxu0 0.0
  %1571 = vmatpush.msra.mxu0 0.0
  %1572 = vmatpush.msra.mxu0 0.0
  %1573 = vmatpush.msra.mxu0 0.0
  %1574 = vmatpush.msra.mxu0 0.0
  %1575 = vmatpush.msra.mxu0 0.0
  %1576 = vmatpush.msra.mxu0 0.0
  %1577 = vmatpush.msra.mxu0 %v1560
  %1578 = vmatmul.f32.gmra.mxu0 %v1558
  %v1579 = vpop.f32.mrf.mxu0
  %v1580 = vadd.f32 0.0, %v1579
  %1581 = vdwg.mxu0
  %v1583 = vsel %vm1130, %v1116, 0
  %v1585 = vsel %vm1134, %v26, 0
  %1587 = vmatpush.msra.mxu0 0.0
  %1588 = vmatpush.msra.mxu0 0.0
  %1589 = vmatpush.msra.mxu0 0.0
  %1590 = vmatpush.msra.mxu0 0.0
  %1591 = vmatpush.msra.mxu0 0.0
  %1592 = vmatpush.msra.mxu0 0.0
  %1593 = vmatpush.msra.mxu0 0.0
  %1594 = vmatpush.msra.mxu0 0.0
  %1595 = vmatpush.msra.mxu0 0.0
  %1596 = vmatpush.msra.mxu0 0.0
  %1597 = vmatpush.msra.mxu0 0.0
  %1598 = vmatpush.msra.mxu0 0.0
  %1599 = vmatpush.msra.mxu0 0.0
  %1600 = vmatpush.msra.mxu0 0.0
  %1601 = vmatpush.msra.mxu0 0.0
  %1602 = vmatpush.msra.mxu0 %v1585
  %1603 = vmatmul.f32.gmra.mxu0 %v1583
  %v1604 = vpop.f32.mrf.mxu0
  %v1605 = vadd.f32 0.0, %v1604
  %1606 = vdwg.mxu0
  %v1608 = vsel %vm1130, %v1117, 0
  %v1610 = vsel %vm1134, %v27, 0
  %1612 = vmatpush.msra.mxu0 0.0
  %1613 = vmatpush.msra.mxu0 0.0
  %1614 = vmatpush.msra.mxu0 0.0
  %1615 = vmatpush.msra.mxu0 0.0
  %1616 = vmatpush.msra.mxu0 0.0
  %1617 = vmatpush.msra.mxu0 0.0
  %1618 = vmatpush.msra.mxu0 0.0
  %1619 = vmatpush.msra.mxu0 0.0
  %1620 = vmatpush.msra.mxu0 0.0
  %1621 = vmatpush.msra.mxu0 0.0
  %1622 = vmatpush.msra.mxu0 0.0
  %1623 = vmatpush.msra.mxu0 0.0
  %1624 = vmatpush.msra.mxu0 0.0
  %1625 = vmatpush.msra.mxu0 0.0
  %1626 = vmatpush.msra.mxu0 0.0
  %1627 = vmatpush.msra.mxu0 %v1610
  %1628 = vmatmul.f32.gmra.mxu0 %v1608
  %v1629 = vpop.f32.mrf.mxu0
  %v1630 = vadd.f32 0.0, %v1629
  %1631 = vdwg.mxu0
  %v1633 = vsel %vm1130, %v1118, 0
  %v1635 = vsel %vm1134, %v28, 0
  %1637 = vmatpush.msra.mxu0 0.0
  %1638 = vmatpush.msra.mxu0 0.0
  %1639 = vmatpush.msra.mxu0 0.0
  %1640 = vmatpush.msra.mxu0 0.0
  %1641 = vmatpush.msra.mxu0 0.0
  %1642 = vmatpush.msra.mxu0 0.0
  %1643 = vmatpush.msra.mxu0 0.0
  %1644 = vmatpush.msra.mxu0 0.0
  %1645 = vmatpush.msra.mxu0 0.0
  %1646 = vmatpush.msra.mxu0 0.0
  %1647 = vmatpush.msra.mxu0 0.0
  %1648 = vmatpush.msra.mxu0 0.0
  %1649 = vmatpush.msra.mxu0 0.0
  %1650 = vmatpush.msra.mxu0 0.0
  %1651 = vmatpush.msra.mxu0 0.0
  %1652 = vmatpush.msra.mxu0 %v1635
  %1653 = vmatmul.f32.gmra.mxu0 %v1633
  %v1654 = vpop.f32.mrf.mxu0
  %v1655 = vadd.f32 0.0, %v1654
  %1656 = vdwg.mxu0
  %v1658 = vsel %vm1130, %v1119, 0
  %v1660 = vsel %vm1134, %v29, 0
  %1662 = vmatpush.msra.mxu0 0.0
  %1663 = vmatpush.msra.mxu0 0.0
  %1664 = vmatpush.msra.mxu0 0.0
  %1665 = vmatpush.msra.mxu0 0.0
  %1666 = vmatpush.msra.mxu0 0.0
  %1667 = vmatpush.msra.mxu0 0.0
  %1668 = vmatpush.msra.mxu0 0.0
  %1669 = vmatpush.msra.mxu0 0.0
  %1670 = vmatpush.msra.mxu0 0.0
  %1671 = vmatpush.msra.mxu0 0.0
  %1672 = vmatpush.msra.mxu0 0.0
  %1673 = vmatpush.msra.mxu0 0.0
  %1674 = vmatpush.msra.mxu0 0.0
  %1675 = vmatpush.msra.mxu0 0.0
  %1676 = vmatpush.msra.mxu0 0.0
  %1677 = vmatpush.msra.mxu0 %v1660
  %1678 = vmatmul.f32.gmra.mxu0 %v1658
  %v1679 = vpop.f32.mrf.mxu0
  %v1680 = vadd.f32 0.0, %v1679
  %1681 = vdwg.mxu0
  %v1683 = vsel %vm1130, %v1120, 0
  %v1685 = vsel %vm1134, %v30, 0
  %1687 = vmatpush.msra.mxu0 0.0
  %1688 = vmatpush.msra.mxu0 0.0
  %1689 = vmatpush.msra.mxu0 0.0
  %1690 = vmatpush.msra.mxu0 0.0
  %1691 = vmatpush.msra.mxu0 0.0
  %1692 = vmatpush.msra.mxu0 0.0
  %1693 = vmatpush.msra.mxu0 0.0
  %1694 = vmatpush.msra.mxu0 0.0
  %1695 = vmatpush.msra.mxu0 0.0
  %1696 = vmatpush.msra.mxu0 0.0
  %1697 = vmatpush.msra.mxu0 0.0
  %1698 = vmatpush.msra.mxu0 0.0
  %1699 = vmatpush.msra.mxu0 0.0
  %1700 = vmatpush.msra.mxu0 0.0
  %1701 = vmatpush.msra.mxu0 0.0
  %1702 = vmatpush.msra.mxu0 %v1685
  %1703 = vmatmul.f32.gmra.mxu0 %v1683
  %v1704 = vpop.f32.mrf.mxu0
  %v1705 = vadd.f32 0.0, %v1704
  %1706 = vdwg.mxu0
  %v1708 = vsel %vm1130, %v1121, 0
  %v1710 = vsel %vm1134, %v31, 0
  %1712 = vmatpush.msra.mxu0 0.0
  %1713 = vmatpush.msra.mxu0 0.0
  %1714 = vmatpush.msra.mxu0 0.0
  %1715 = vmatpush.msra.mxu0 0.0
  %1716 = vmatpush.msra.mxu0 0.0
  %1717 = vmatpush.msra.mxu0 0.0
  %1718 = vmatpush.msra.mxu0 0.0
  %1719 = vmatpush.msra.mxu0 0.0
  %1720 = vmatpush.msra.mxu0 0.0
  %1721 = vmatpush.msra.mxu0 0.0
  %1722 = vmatpush.msra.mxu0 0.0
  %1723 = vmatpush.msra.mxu0 0.0
  %1724 = vmatpush.msra.mxu0 0.0
  %1725 = vmatpush.msra.mxu0 0.0
  %1726 = vmatpush.msra.mxu0 0.0
  %1727 = vmatpush.msra.mxu0 %v1710
  %1728 = vmatmul.f32.gmra.mxu0 %v1708
  %v1729 = vpop.f32.mrf.mxu0
  %v1730 = vadd.f32 0.0, %v1729
  %1731 = vdwg.mxu0
  %v1733 = vsel %vm1130, %v1122, 0
  %v1735 = vsel %vm1134, %v32, 0
  %1737 = vmatpush.msra.mxu0 0.0
  %1738 = vmatpush.msra.mxu0 0.0
  %1739 = vmatpush.msra.mxu0 0.0
  %1740 = vmatpush.msra.mxu0 0.0
  %1741 = vmatpush.msra.mxu0 0.0
  %1742 = vmatpush.msra.mxu0 0.0
  %1743 = vmatpush.msra.mxu0 0.0
  %1744 = vmatpush.msra.mxu0 0.0
  %1745 = vmatpush.msra.mxu0 0.0
  %1746 = vmatpush.msra.mxu0 0.0
  %1747 = vmatpush.msra.mxu0 0.0
  %1748 = vmatpush.msra.mxu0 0.0
  %1749 = vmatpush.msra.mxu0 0.0
  %1750 = vmatpush.msra.mxu0 0.0
  %1751 = vmatpush.msra.mxu0 0.0
  %1752 = vmatpush.msra.mxu0 %v1735
  %1753 = vmatmul.f32.gmra.mxu0 %v1733
  %v1754 = vpop.f32.mrf.mxu0
  %v1755 = vadd.f32 0.0, %v1754
  %1756 = vdwg.mxu0
  %v1758 = vsel %vm1130, %v1123, 0
  %v1760 = vsel %vm1134, %v33, 0
  %1762 = vmatpush.msra.mxu0 0.0
  %1763 = vmatpush.msra.mxu0 0.0
  %1764 = vmatpush.msra.mxu0 0.0
  %1765 = vmatpush.msra.mxu0 0.0
  %1766 = vmatpush.msra.mxu0 0.0
  %1767 = vmatpush.msra.mxu0 0.0
  %1768 = vmatpush.msra.mxu0 0.0
  %1769 = vmatpush.msra.mxu0 0.0
  %1770 = vmatpush.msra.mxu0 0.0
  %1771 = vmatpush.msra.mxu0 0.0
  %1772 = vmatpush.msra.mxu0 0.0
  %1773 = vmatpush.msra.mxu0 0.0
  %1774 = vmatpush.msra.mxu0 0.0
  %1775 = vmatpush.msra.mxu0 0.0
  %1776 = vmatpush.msra.mxu0 0.0
  %1777 = vmatpush.msra.mxu0 %v1760
  %1778 = vmatmul.f32.gmra.mxu0 %v1758
  %v1779 = vpop.f32.mrf.mxu0
  %v1780 = vadd.f32 0.0, %v1779
  %1781 = vdwg.mxu0
  %v1783 = vsel %vm1130, %v1124, 0
  %v1785 = vsel %vm1134, %v34, 0
  %1787 = vmatpush.msra.mxu0 0.0
  %1788 = vmatpush.msra.mxu0 0.0
  %1789 = vmatpush.msra.mxu0 0.0
  %1790 = vmatpush.msra.mxu0 0.0
  %1791 = vmatpush.msra.mxu0 0.0
  %1792 = vmatpush.msra.mxu0 0.0
  %1793 = vmatpush.msra.mxu0 0.0
  %1794 = vmatpush.msra.mxu0 0.0
  %1795 = vmatpush.msra.mxu0 0.0
  %1796 = vmatpush.msra.mxu0 0.0
  %1797 = vmatpush.msra.mxu0 0.0
  %1798 = vmatpush.msra.mxu0 0.0
  %1799 = vmatpush.msra.mxu0 0.0
  %1800 = vmatpush.msra.mxu0 0.0
  %1801 = vmatpush.msra.mxu0 0.0
  %1802 = vmatpush.msra.mxu0 %v1785
  %1803 = vmatmul.f32.gmra.mxu0 %v1783
  %v1804 = vpop.f32.mrf.mxu0
  %v1805 = vadd.f32 0.0, %v1804
  %1806 = vdwg.mxu0
  %v1808 = vsel %vm1130, %v1125, 0
  %v1810 = vsel %vm1134, %v35, 0
  %1812 = vmatpush.msra.mxu0 0.0
  %1813 = vmatpush.msra.mxu0 0.0
  %1814 = vmatpush.msra.mxu0 0.0
  %1815 = vmatpush.msra.mxu0 0.0
  %1816 = vmatpush.msra.mxu0 0.0
  %1817 = vmatpush.msra.mxu0 0.0
  %1818 = vmatpush.msra.mxu0 0.0
  %1819 = vmatpush.msra.mxu0 0.0
  %1820 = vmatpush.msra.mxu0 0.0
  %1821 = vmatpush.msra.mxu0 0.0
  %1822 = vmatpush.msra.mxu0 0.0
  %1823 = vmatpush.msra.mxu0 0.0
  %1824 = vmatpush.msra.mxu0 0.0
  %1825 = vmatpush.msra.mxu0 0.0
  %1826 = vmatpush.msra.mxu0 0.0
  %1827 = vmatpush.msra.mxu0 %v1810
  %1828 = vmatmul.f32.gmra.mxu0 %v1808
  %v1829 = vpop.f32.mrf.mxu0
  %v1830 = vadd.f32 0.0, %v1829
  %1831 = vdwg.mxu0
  %v1833 = vsel %vm1130, %v1126, 0
  %v1835 = vsel %vm1134, %v36, 0
  %1837 = vmatpush.msra.mxu0 0.0
  %1838 = vmatpush.msra.mxu0 0.0
  %1839 = vmatpush.msra.mxu0 0.0
  %1840 = vmatpush.msra.mxu0 0.0
  %1841 = vmatpush.msra.mxu0 0.0
  %1842 = vmatpush.msra.mxu0 0.0
  %1843 = vmatpush.msra.mxu0 0.0
  %1844 = vmatpush.msra.mxu0 0.0
  %1845 = vmatpush.msra.mxu0 0.0
  %1846 = vmatpush.msra.mxu0 0.0
  %1847 = vmatpush.msra.mxu0 0.0
  %1848 = vmatpush.msra.mxu0 0.0
  %1849 = vmatpush.msra.mxu0 0.0
  %1850 = vmatpush.msra.mxu0 0.0
  %1851 = vmatpush.msra.mxu0 0.0
  %1852 = vmatpush.msra.mxu0 %v1835
  %1853 = vmatmul.f32.gmra.mxu0 %v1833
  %v1854 = vpop.f32.mrf.mxu0
  %v1855 = vadd.f32 0.0, %v1854
  %1856 = vdwg.mxu0
  %v1858 = vsel %vm1130, %v1127, 0
  %v1860 = vsel %vm1134, %v37, 0
  %1862 = vmatpush.msra.mxu0 0.0
  %1863 = vmatpush.msra.mxu0 0.0
  %1864 = vmatpush.msra.mxu0 0.0
  %1865 = vmatpush.msra.mxu0 0.0
  %1866 = vmatpush.msra.mxu0 0.0
  %1867 = vmatpush.msra.mxu0 0.0
  %1868 = vmatpush.msra.mxu0 0.0
  %1869 = vmatpush.msra.mxu0 0.0
  %1870 = vmatpush.msra.mxu0 0.0
  %1871 = vmatpush.msra.mxu0 0.0
  %1872 = vmatpush.msra.mxu0 0.0
  %1873 = vmatpush.msra.mxu0 0.0
  %1874 = vmatpush.msra.mxu0 0.0
  %1875 = vmatpush.msra.mxu0 0.0
  %1876 = vmatpush.msra.mxu0 0.0
  %1877 = vmatpush.msra.mxu0 %v1860
  %1878 = vmatmul.f32.gmra.mxu0 %v1858
  %v1879 = vpop.f32.mrf.mxu0
  %v1880 = vadd.f32 0.0, %v1879
  %1881 = vdwg.mxu0
  %v1883 = vsel %vm1130, %v1128, 0
  %v1885 = vsel %vm1134, %v38, 0
  %1887 = vmatpush.msra.mxu0 0.0
  %1888 = vmatpush.msra.mxu0 0.0
  %1889 = vmatpush.msra.mxu0 0.0
  %1890 = vmatpush.msra.mxu0 0.0
  %1891 = vmatpush.msra.mxu0 0.0
  %1892 = vmatpush.msra.mxu0 0.0
  %1893 = vmatpush.msra.mxu0 0.0
  %1894 = vmatpush.msra.mxu0 0.0
  %1895 = vmatpush.msra.mxu0 0.0
  %1896 = vmatpush.msra.mxu0 0.0
  %1897 = vmatpush.msra.mxu0 0.0
  %1898 = vmatpush.msra.mxu0 0.0
  %1899 = vmatpush.msra.mxu0 0.0
  %1900 = vmatpush.msra.mxu0 0.0
  %1901 = vmatpush.msra.mxu0 0.0
  %1902 = vmatpush.msra.mxu0 %v1885
  %1903 = vmatmul.f32.gmra.mxu0 %v1883
  %v1904 = vpop.f32.mrf.mxu0
  %v1905 = vadd.f32 0.0, %v1904
  %1906 = vdwg.mxu0
  %v1908 = vsel %vm1130, %v1129, 0
  %v1910 = vsel %vm1134, %v39, 0
  %1912 = vmatpush.msra.mxu0 0.0
  %1913 = vmatpush.msra.mxu0 0.0
  %1914 = vmatpush.msra.mxu0 0.0
  %1915 = vmatpush.msra.mxu0 0.0
  %1916 = vmatpush.msra.mxu0 0.0
  %1917 = vmatpush.msra.mxu0 0.0
  %1918 = vmatpush.msra.mxu0 0.0
  %1919 = vmatpush.msra.mxu0 0.0
  %1920 = vmatpush.msra.mxu0 0.0
  %1921 = vmatpush.msra.mxu0 0.0
  %1922 = vmatpush.msra.mxu0 0.0
  %1923 = vmatpush.msra.mxu0 0.0
  %1924 = vmatpush.msra.mxu0 0.0
  %1925 = vmatpush.msra.mxu0 0.0
  %1926 = vmatpush.msra.mxu0 0.0
  %1927 = vmatpush.msra.mxu0 %v1910
  %1928 = vmatmul.f32.gmra.mxu0 %v1908
  %v1929 = vpop.f32.mrf.mxu0
  %v1930 = vadd.f32 0.0, %v1929
  %1931 = vdwg.mxu0
  %v1932 = vmul.f32 %v1155, 0.5
  %v1933 = vmul.f32 %v1180, 0.5
  %v1934 = vmul.f32 %v1205, 0.5
  %v1935 = vmul.f32 %v1230, 0.5
  %v1936 = vmul.f32 %v1255, 0.5
  %v1937 = vmul.f32 %v1280, 0.5
  %v1938 = vmul.f32 %v1305, 0.5
  %v1939 = vmul.f32 %v1330, 0.5
  %v1940 = vmul.f32 %v1355, 0.5
  %v1941 = vmul.f32 %v1380, 0.5
  %v1942 = vmul.f32 %v1405, 0.5
  %v1943 = vmul.f32 %v1430, 0.5
  %v1944 = vmul.f32 %v1455, 0.5
  %v1945 = vmul.f32 %v1480, 0.5
  %v1946 = vmul.f32 %v1505, 0.5
  %v1947 = vmul.f32 %v1530, 0.5
  %v1948 = vmul.f32 %v1555, 0.5
  %v1949 = vmul.f32 %v1580, 0.5
  %v1950 = vmul.f32 %v1605, 0.5
  %v1951 = vmul.f32 %v1630, 0.5
  %v1952 = vmul.f32 %v1655, 0.5
  %v1953 = vmul.f32 %v1680, 0.5
  %v1954 = vmul.f32 %v1705, 0.5
  %v1955 = vmul.f32 %v1730, 0.5
  %v1956 = vmul.f32 %v1755, 0.5
  %v1957 = vmul.f32 %v1780, 0.5
  %v1958 = vmul.f32 %v1805, 0.5
  %v1959 = vmul.f32 %v1830, 0.5
  %v1960 = vmul.f32 %v1855, 0.5
  %v1961 = vmul.f32 %v1880, 0.5
  %v1962 = vmul.f32 %v1905, 0.5
  %v1963 = vmul.f32 %v1930, 0.5
  %v1964 = vadd.f32 %v1932, %v8
  %v1965 = vadd.f32 %v1933, %v9
  %v1966 = vadd.f32 %v1934, %v10
  %v1967 = vadd.f32 %v1935, %v11
  %v1968 = vadd.f32 %v1936, %v12
  %v1969 = vadd.f32 %v1937, %v13
  %v1970 = vadd.f32 %v1938, %v14
  %v1971 = vadd.f32 %v1939, %v15
  %v1972 = vadd.f32 %v1940, %v16
  %v1973 = vadd.f32 %v1941, %v17
  %v1974 = vadd.f32 %v1942, %v18
  %v1975 = vadd.f32 %v1943, %v19
  %v1976 = vadd.f32 %v1944, %v20
  %v1977 = vadd.f32 %v1945, %v21
  %v1978 = vadd.f32 %v1946, %v22
  %v1979 = vadd.f32 %v1947, %v23
  %v1980 = vadd.f32 %v1948, %v24
  %v1981 = vadd.f32 %v1949, %v25
  %v1982 = vadd.f32 %v1950, %v26
  %v1983 = vadd.f32 %v1951, %v27
  %v1984 = vadd.f32 %v1952, %v28
  %v1985 = vadd.f32 %v1953, %v29
  %v1986 = vadd.f32 %v1954, %v30
  %v1987 = vadd.f32 %v1955, %v31
  %v1988 = vadd.f32 %v1956, %v32
  %v1989 = vadd.f32 %v1957, %v33
  %v1990 = vadd.f32 %v1958, %v34
  %v1991 = vadd.f32 %v1959, %v35
  %v1992 = vadd.f32 %v1960, %v36
  %v1993 = vadd.f32 %v1961, %v37
  %v1994 = vadd.f32 %v1962, %v38
  %v1995 = vadd.f32 %v1963, %v39
  %vm1996 = vcmask 518144
  %1997 = vst.msk [vmem:[%s1] sm:$0x7] %vm1996, %v1964
  %1998 = vst.msk [vmem:[%s1 + $0x4] sm:$0x7] %vm1996, %v1965
  %1999 = vst.msk [vmem:[%s1 + $0x8] sm:$0x7] %vm1996, %v1966
  %2000 = vst.msk [vmem:[%s1 + $0xc] sm:$0x7] %vm1996, %v1967
  %2001 = vst.msk [vmem:[%s1 + $0x10] sm:$0x7] %vm1996, %v1968
  %2002 = vst.msk [vmem:[%s1 + $0x14] sm:$0x7] %vm1996, %v1969
  %2003 = vst.msk [vmem:[%s1 + $0x18] sm:$0x7] %vm1996, %v1970
  %2004 = vst.msk [vmem:[%s1 + $0x1c] sm:$0x7] %vm1996, %v1971
  %2005 = vst.msk [vmem:[%s1 + $0x20] sm:$0x7] %vm1996, %v1972
  %2006 = vst.msk [vmem:[%s1 + $0x24] sm:$0x7] %vm1996, %v1973
  %2007 = vst.msk [vmem:[%s1 + $0x28] sm:$0x7] %vm1996, %v1974
  %2008 = vst.msk [vmem:[%s1 + $0x2c] sm:$0x7] %vm1996, %v1975
  %2009 = vst.msk [vmem:[%s1 + $0x30] sm:$0x7] %vm1996, %v1976
  %2010 = vst.msk [vmem:[%s1 + $0x34] sm:$0x7] %vm1996, %v1977
  %2011 = vst.msk [vmem:[%s1 + $0x38] sm:$0x7] %vm1996, %v1978
  %2012 = vst.msk [vmem:[%s1 + $0x3c] sm:$0x7] %vm1996, %v1979
  %2013 = vst.msk [vmem:[%s1 + $0x40] sm:$0x7] %vm1996, %v1980
  %2014 = vst.msk [vmem:[%s1 + $0x44] sm:$0x7] %vm1996, %v1981
  %2015 = vst.msk [vmem:[%s1 + $0x48] sm:$0x7] %vm1996, %v1982
  %2016 = vst.msk [vmem:[%s1 + $0x4c] sm:$0x7] %vm1996, %v1983
  %2017 = vst.msk [vmem:[%s1 + $0x50] sm:$0x7] %vm1996, %v1984
  %2018 = vst.msk [vmem:[%s1 + $0x54] sm:$0x7] %vm1996, %v1985
  %2019 = vst.msk [vmem:[%s1 + $0x58] sm:$0x7] %vm1996, %v1986
  %2020 = vst.msk [vmem:[%s1 + $0x5c] sm:$0x7] %vm1996, %v1987
  %2021 = vst.msk [vmem:[%s1 + $0x60] sm:$0x7] %vm1996, %v1988
  %2022 = vst.msk [vmem:[%s1 + $0x64] sm:$0x7] %vm1996, %v1989
  %2023 = vst.msk [vmem:[%s1 + $0x68] sm:$0x7] %vm1996, %v1990
  %2024 = vst.msk [vmem:[%s1 + $0x6c] sm:$0x7] %vm1996, %v1991
  %2025 = vst.msk [vmem:[%s1 + $0x70] sm:$0x7] %vm1996, %v1992
  %2026 = vst.msk [vmem:[%s1 + $0x74] sm:$0x7] %vm1996, %v1993
  %2027 = vst.msk [vmem:[%s1 + $0x78] sm:$0x7] %vm1996, %v1994
  %2028 = vst.msk [vmem:[%s1 + $0x7c] sm:$0x7] %vm1996, %v1995
  // Predicated region
  $region6: #{_lambda_.17} parent=0 // pred_check
    _
  $region7: #{_lambda_.17} parent=0 // pred_check_branch
    %2030 = sbr.rel (0) target = $region9
  $region8: #{_lambda_.17} parent=0 // pred_region
    _
  $region9: #{_lambda_.17} parent=0 // pred_fallthru
    _
  // Predicated region
  $region10: #{_lambda_.17} parent=0 // pred_check
    _
  $region11: #{_lambda_.17} parent=0 // pred_check_branch
    %2032 = sbr.rel (0) target = $region13
  $region12: #{_lambda_.17} parent=0 // pred_region
    _
  $region13: #{_lambda_.17} parent=0 // pred_fallthru
    _

// kernel: _lambda_.13
$region0: #{_lambda_.13}
  #allocation0 [shape = 'u32[]', space=smem, size = 0x4, offset = 0x4, fixed_abs, tag = 'smem constant byte address 0x4 - core index']
  #allocation1 [shape = 'u32[72,128]{1,0:T(1,128)}', space=vmem, size = 0x9000, scoped, tag = 'internal scratch']
  %s0 = inlined_call_operand.vmem [shape: bf16[16,144], index: 0, kind: input, shape index: {}]
  %s1 = inlined_call_operand.vmem [shape: bf16[144,384], index: 1, kind: input, shape index: {}]
  %s2 = inlined_call_operand.vmem [shape: f32[16,384], index: 2, kind: output, shape index: {}]
  %s3 = sld [smem:[#allocation0]]
  $region18: #{_lambda_.13} parent=0
    _
  %s5 = ssub.s32 1, %s3
  %s6 = scalar_select 0, %s5, %s3
  // Predicated region
  $region2: #{_lambda_.13} parent=0 // pred_check
    _
  $region3: #{_lambda_.13} parent=0 // pred_check_branch
    %8 = sbr.rel (0) target = $region5
  $region4: #{_lambda_.13} parent=0 // pred_region
    _
  $region5: #{_lambda_.13} parent=0 // pred_fallthru
    _
  // Predicated region
  $region6: #{_lambda_.13} parent=0 // pred_check
    _
  $region7: #{_lambda_.13} parent=0 // pred_check_branch
    %10 = sbr.rel (0) target = $region9
  $region8: #{_lambda_.13} parent=0 // pred_region
    _
  $region9: #{_lambda_.13} parent=0 // pred_fallthru
    _
  %v12 = vld [vmem:[%s0] sm:$0xff]
  %v13 = vld [vmem:[%s0 + $0x8] sm:$0xff]
  %v14 = vld [vmem:[%s1] sm:$0xff]
  %v15 = vld [vmem:[%s1 + $0x8] sm:$0xf]
  %v16 = vld [vmem:[%s1 + $0xc] sm:$0xff]
  %v17 = vld [vmem:[%s1 + $0x14] sm:$0xf]
  %v18 = vld [vmem:[%s1 + $0x18] sm:$0xff]
  %v19 = vld [vmem:[%s1 + $0x20] sm:$0xf]
  %v20 = vld [vmem:[%s1 + $0x24] sm:$0xff]
  %v21 = vld [vmem:[%s1 + $0x2c] sm:$0xf]
  %v22 = vld [vmem:[%s1 + $0x30] sm:$0xff]
  %v23 = vld [vmem:[%s1 + $0x38] sm:$0xf]
  %v24 = vld [vmem:[%s1 + $0x3c] sm:$0xff]
  %v25 = vld [vmem:[%s1 + $0x44] sm:$0xf]
  %v26 = vld [vmem:[%s1 + $0x48] sm:$0xff]
  %v27 = vld [vmem:[%s1 + $0x50] sm:$0xf]
  %v28 = vld [vmem:[%s1 + $0x54] sm:$0xff]
  %v29 = vld [vmem:[%s1 + $0x5c] sm:$0xf]
  %v30 = vld [vmem:[%s1 + $0x60] sm:$0xff]
  %v31 = vld [vmem:[%s1 + $0x68] sm:$0xf]
  %v32 = vld [vmem:[%s1 + $0x6c] sm:$0xff]
  %v33 = vld [vmem:[%s1 + $0x74] sm:$0xf]
  %v34 = vld [vmem:[%s1 + $0x78] sm:$0xff]
  %v35 = vld [vmem:[%s1 + $0x80] sm:$0xf]
  %v36 = vld [vmem:[%s1 + $0x84] sm:$0xff]
  %v37 = vld [vmem:[%s1 + $0x8c] sm:$0xf]
  %v38 = vld [vmem:[%s1 + $0x90] sm:$0xff]
  %v39 = vld [vmem:[%s1 + $0x98] sm:$0xf]
  %v40 = vld [vmem:[%s1 + $0x9c] sm:$0xff]
  %v41 = vld [vmem:[%s1 + $0xa4] sm:$0xf]
  %v42 = vld [vmem:[%s1 + $0xa8] sm:$0xff]
  %v43 = vld [vmem:[%s1 + $0xb0] sm:$0xf]
  %v44 = vld [vmem:[%s1 + $0xb4] sm:$0xff]
  %v45 = vld [vmem:[%s1 + $0xbc] sm:$0xf]
  %v46 = vld [vmem:[%s1 + $0xc0] sm:$0xff]
  %v47 = vld [vmem:[%s1 + $0xc8] sm:$0xf]
  %v48 = vld [vmem:[%s1 + $0xcc] sm:$0xff]
  %v49 = vld [vmem:[%s1 + $0xd4] sm:$0xf]
  %v52 = vunpack.c.l.b16 %v12
  %v53 = vunpack.c.h.b16 %v12
  %v54 = vunpack.c.l.b16 %v13
  %v55 = vunpack.c.h.b16 %v13
  %v56 = vpack.c.b16 %v54, %v52
  %v57 = vpack.c.b16 %v55, %v53
  %v95 = vunpack.c.l.b16 %v14
  %v96 = vunpack.c.h.b16 %v14
  %v97 = vunpack.c.l.b16 %v15
  %v98 = vunpack.c.l.b16 %v16
  %v99 = vunpack.c.h.b16 %v16
  %v100 = vunpack.c.l.b16 %v17
  %v101 = vunpack.c.l.b16 %v18
  %v102 = vunpack.c.h.b16 %v18
  %v103 = vunpack.c.l.b16 %v19
  %v104 = vunpack.c.l.b16 %v20
  %v105 = vunpack.c.h.b16 %v20
  %v106 = vunpack.c.l.b16 %v21
  %v107 = vunpack.c.l.b16 %v22
  %v108 = vunpack.c.h.b16 %v22
  %v109 = vunpack.c.l.b16 %v23
  %v110 = vunpack.c.l.b16 %v24
  %v111 = vunpack.c.h.b16 %v24
  %v112 = vunpack.c.l.b16 %v25
  %v113 = vunpack.c.l.b16 %v26
  %v114 = vunpack.c.h.b16 %v26
  %v115 = vunpack.c.l.b16 %v27
  %v116 = vunpack.c.l.b16 %v28
  %v117 = vunpack.c.h.b16 %v28
  %v118 = vunpack.c.l.b16 %v29
  %v119 = vunpack.c.l.b16 %v30
  %v120 = vunpack.c.h.b16 %v30
  %v121 = vunpack.c.l.b16 %v31
  %v122 = vunpack.c.l.b16 %v32
  %v123 = vunpack.c.h.b16 %v32
  %v124 = vunpack.c.l.b16 %v33
  %v125 = vunpack.c.l.b16 %v34
  %v126 = vunpack.c.h.b16 %v34
  %v127 = vunpack.c.l.b16 %v35
  %v128 = vunpack.c.l.b16 %v36
  %v129 = vunpack.c.h.b16 %v36
  %v130 = vunpack.c.l.b16 %v37
  %v131 = vunpack.c.l.b16 %v38
  %v132 = vunpack.c.h.b16 %v38
  %v133 = vunpack.c.l.b16 %v39
  %v134 = vunpack.c.l.b16 %v40
  %v135 = vunpack.c.h.b16 %v40
  %v136 = vunpack.c.l.b16 %v41
  %v137 = vunpack.c.l.b16 %v42
  %v138 = vunpack.c.h.b16 %v42
  %v139 = vunpack.c.l.b16 %v43
  %v140 = vunpack.c.l.b16 %v44
  %v141 = vunpack.c.h.b16 %v44
  %v142 = vunpack.c.l.b16 %v45
  %v143 = vunpack.c.l.b16 %v46
  %v144 = vunpack.c.h.b16 %v46
  %v145 = vunpack.c.l.b16 %v47
  %v146 = vunpack.c.l.b16 %v48
  %v147 = vunpack.c.h.b16 %v48
  %v148 = vunpack.c.l.b16 %v49
  %v149 = vpack.c.b16 %v98, %v95
  %v150 = vpack.c.b16 %v99, %v96
  %v151 = vpack.c.b16 %v100, %v97
  %v152 = vpack.c.b16 %v104, %v101
  %v153 = vpack.c.b16 %v105, %v102
  %v154 = vpack.c.b16 %v106, %v103
  %v155 = vpack.c.b16 %v110, %v107
  %v156 = vpack.c.b16 %v111, %v108
  %v157 = vpack.c.b16 %v112, %v109
  %v158 = vpack.c.b16 %v116, %v113
  %v159 = vpack.c.b16 %v117, %v114
  %v160 = vpack.c.b16 %v118, %v115
  %v161 = vpack.c.b16 %v122, %v119
  %v162 = vpack.c.b16 %v123, %v120
  %v163 = vpack.c.b16 %v124, %v121
  %v164 = vpack.c.b16 %v128, %v125
  %v165 = vpack.c.b16 %v129, %v126
  %v166 = vpack.c.b16 %v130, %v127
  %v167 = vpack.c.b16 %v134, %v131
  %v168 = vpack.c.b16 %v135, %v132
  %v169 = vpack.c.b16 %v136, %v133
  %v170 = vpack.c.b16 %v140, %v137
  %v171 = vpack.c.b16 %v141, %v138
  %v172 = vpack.c.b16 %v142, %v139
  %v173 = vpack.c.b16 %v146, %v143
  %v174 = vpack.c.b16 %v147, %v144
  %v175 = vpack.c.b16 %v148, %v145
  %vm203 = vcmask 130048
  %v205 = vsel %vm203, %v57, 0
  %207 = vmatpush.bf16.msra.mxu0 %v170
  %208 = vmatpush.bf16.msra.mxu0 %v167
  %209 = vmatpush.bf16.msra.mxu0 %v164
  %210 = vmatpush.bf16.msra.mxu0 %v161
  %211 = vmatpush.bf16.msra.mxu0 %v158
  %212 = vmatpush.bf16.msra.mxu0 %v155
  %213 = vmatpush.bf16.msra.mxu0 %v152
  %214 = vmatpush.bf16.msra.mxu0 %v149
  %215 = vmatmul.bf16.gmra.mxu0 %v56
  %v216 = vpop.f32.mrf.mxu0
  %v217 = vadd.f32 0.0, %v216
  %v218 = vpop.f32.mrf.mxu0
  %v219 = vadd.f32 0.0, %v218
  %220 = vdwg.mxu0
  %221 = vmatpush.bf16.msra.mxu0 0
  %222 = vmatpush.bf16.msra.mxu0 0
  %223 = vmatpush.bf16.msra.mxu0 0
  %224 = vmatpush.bf16.msra.mxu0 0
  %225 = vmatpush.bf16.msra.mxu0 0
  %226 = vmatpush.bf16.msra.mxu0 0
  %227 = vmatpush.bf16.msra.mxu0 0
  %228 = vmatpush.bf16.msra.mxu0 %v173
  %229 = vmatmul.bf16.gmra.mxu0 %v205
  %v230 = vpop.f32.mrf.mxu0
  %v231 = vadd.f32 %v217, %v230
  %v232 = vpop.f32.mrf.mxu0
  %v233 = vadd.f32 %v219, %v232
  %234 = vdwg.mxu0
  %235 = vmatpush.bf16.msra.mxu0 %v171
  %236 = vmatpush.bf16.msra.mxu0 %v168
  %237 = vmatpush.bf16.msra.mxu0 %v165
  %238 = vmatpush.bf16.msra.mxu0 %v162
  %239 = vmatpush.bf16.msra.mxu0 %v159
  %240 = vmatpush.bf16.msra.mxu0 %v156
  %241 = vmatpush.bf16.msra.mxu0 %v153
  %242 = vmatpush.bf16.msra.mxu0 %v150
  %243 = vmatmul.bf16.gmra.mxu0 %v56
  %v244 = vpop.f32.mrf.mxu0
  %v245 = vadd.f32 0.0, %v244
  %v246 = vpop.f32.mrf.mxu0
  %v247 = vadd.f32 0.0, %v246
  %248 = vdwg.mxu0
  %249 = vmatpush.bf16.msra.mxu0 0
  %250 = vmatpush.bf16.msra.mxu0 0
  %251 = vmatpush.bf16.msra.mxu0 0
  %252 = vmatpush.bf16.msra.mxu0 0
  %253 = vmatpush.bf16.msra.mxu0 0
  %254 = vmatpush.bf16.msra.mxu0 0
  %255 = vmatpush.bf16.msra.mxu0 0
  %256 = vmatpush.bf16.msra.mxu0 %v174
  %257 = vmatmul.bf16.gmra.mxu0 %v205
  %v258 = vpop.f32.mrf.mxu0
  %v259 = vadd.f32 %v245, %v258
  %v260 = vpop.f32.mrf.mxu0
  %v261 = vadd.f32 %v247, %v260
  %262 = vdwg.mxu0
  %263 = vmatpush.bf16.msra.mxu0 %v172
  %264 = vmatpush.bf16.msra.mxu0 %v169
  %265 = vmatpush.bf16.msra.mxu0 %v166
  %266 = vmatpush.bf16.msra.mxu0 %v163
  %267 = vmatpush.bf16.msra.mxu0 %v160
  %268 = vmatpush.bf16.msra.mxu0 %v157
  %269 = vmatpush.bf16.msra.mxu0 %v154
  %270 = vmatpush.bf16.msra.mxu0 %v151
  %271 = vmatmul.bf16.gmra.mxu0 %v56
  %v272 = vpop.f32.mrf.mxu0
  %v273 = vadd.f32 0.0, %v272
  %v274 = vpop.f32.mrf.mxu0
  %v275 = vadd.f32 0.0, %v274
  %276 = vdwg.mxu0
  %277 = vmatpush.bf16.msra.mxu0 0
  %278 = vmatpush.bf16.msra.mxu0 0
  %279 = vmatpush.bf16.msra.mxu0 0
  %280 = vmatpush.bf16.msra.mxu0 0
  %281 = vmatpush.bf16.msra.mxu0 0
  %282 = vmatpush.bf16.msra.mxu0 0
  %283 = vmatpush.bf16.msra.mxu0 0
  %284 = vmatpush.bf16.msra.mxu0 %v175
  %285 = vmatmul.bf16.gmra.mxu0 %v205
  %v286 = vpop.f32.mrf.mxu0
  %v287 = vadd.f32 %v273, %v286
  %v288 = vpop.f32.mrf.mxu0
  %v289 = vadd.f32 %v275, %v288
  %290 = vdwg.mxu0
  %v291 = vmax.f32 %v231, 0.0
  %v292 = vmax.f32 %v259, 0.0
  %v293 = vmax.f32 %v287, 0.0
  %v294 = vmax.f32 %v233, 0.0
  %v295 = vmax.f32 %v261, 0.0
  %v296 = vmax.f32 %v289, 0.0
  %297 = vst [vmem:[%s2] sm:$0xff] %v291
  %298 = vst [vmem:[%s2 + $0x8] sm:$0xff] %v292
  %299 = vst [vmem:[%s2 + $0x10] sm:$0xff] %v293
  %300 = vst [vmem:[%s2 + $0x18] sm:$0xff] %v294
  %301 = vst [vmem:[%s2 + $0x20] sm:$0xff] %v295
  %302 = vst [vmem:[%s2 + $0x28] sm:$0xff] %v296
  // Predicated region
  $region10: #{_lambda_.13} parent=0 // pred_check
    _
  $region11: #{_lambda_.13} parent=0 // pred_check_branch
    %304 = sbr.rel (0) target = $region13
  $region12: #{_lambda_.13} parent=0 // pred_region
    _
  $region13: #{_lambda_.13} parent=0 // pred_fallthru
    _
  // Predicated region
  $region14: #{_lambda_.13} parent=0 // pred_check
    _
  $region15: #{_lambda_.13} parent=0 // pred_check_branch
    %306 = sbr.rel (0) target = $region17
  $region16: #{_lambda_.13} parent=0 // pred_region
    _
  $region17: #{_lambda_.13} parent=0 // pred_fallthru
    _

// kernel: _lambda_.14
$region0: #{_lambda_.14}
  #allocation0 [shape = 'u32[]', space=smem, size = 0x4, offset = 0x4, fixed_abs, tag = 'smem constant byte address 0x4 - core index']
  #allocation1 [shape = 'u32[72,128]{1,0:T(1,128)}', space=vmem, size = 0x9000, scoped, tag = 'internal scratch']
  %s0 = inlined_call_operand.vmem [shape: f32[6,16,64], index: 0, kind: input, shape index: {}]
  %s1 = inlined_call_operand.vmem [shape: f32[6,16,64], index: 1, kind: output, shape index: {}]
  %s2 = sld [smem:[#allocation0]]
  $region14: #{_lambda_.14} parent=0
    _
  %s4 = ssub.s32 1, %s2
  %s5 = scalar_select 0, %s4, %s2
  // Predicated region
  $region2: #{_lambda_.14} parent=0 // pred_check
    _
  $region3: #{_lambda_.14} parent=0 // pred_check_branch
    %7 = sbr.rel (0) target = $region5
  $region4: #{_lambda_.14} parent=0 // pred_region
    _
  $region5: #{_lambda_.14} parent=0 // pred_fallthru
    _
  %v8 = vld [vmem:[%s0] sm:$0xff]
  %v9 = vld [vmem:[%s0 + $0x8] sm:$0xff]
  %v10 = vld [vmem:[%s0 + $0x10] sm:$0xff]
  %v11 = vld [vmem:[%s0 + $0x18] sm:$0xff]
  %v12 = vld [vmem:[%s0 + $0x20] sm:$0xff]
  %v13 = vld [vmem:[%s0 + $0x28] sm:$0xff]
  %v14 = vld [vmem:[%s0 + $0x30] sm:$0xff]
  %v15 = vld [vmem:[%s0 + $0x38] sm:$0xff]
  %v16 = vld [vmem:[%s0 + $0x40] sm:$0xff]
  %v17 = vld [vmem:[%s0 + $0x48] sm:$0xff]
  %v18 = vld [vmem:[%s0 + $0x50] sm:$0xff]
  %v19 = vld [vmem:[%s0 + $0x58] sm:$0xff]
  %vm20 = vcmask 523264
  %v22 = vsel %vm20, %v8, 0
  %v25 = vsel %vm20, %v9, 0
  %27 = vmatpush.xpose.msra.mxu0 0.0
  %28 = vmatpush.xpose.msra.mxu0 0.0
  %29 = vmatpush.xpose.msra.mxu0 0.0
  %30 = vmatpush.xpose.msra.mxu0 0.0
  %31 = vmatpush.xpose.msra.mxu0 0.0
  %32 = vmatpush.xpose.msra.mxu0 0.0
  %33 = vmatpush.xpose.msra.mxu0 0.0
  %34 = vmatpush.xpose.msra.mxu0 0.0
  %35 = vmatpush.xpose.msra.mxu0 0.0
  %36 = vmatpush.xpose.msra.mxu0 0.0
  %37 = vmatpush.xpose.msra.mxu0 0.0
  %38 = vmatpush.xpose.msra.mxu0 0.0
  %39 = vmatpush.xpose.msra.mxu0 0.0
  %40 = vmatpush.xpose.msra.mxu0 0.0
  %41 = vmatpush.xpose.msra.mxu0 %v25
  %42 = vmatpush.xpose.msra.mxu0 %v22
  %43 = vmatmul.f32.gmra.mxu0 %v22
  %v44 = vpop.f32.mrf.mxu0
  %v45 = vadd.f32 0.0, %v44
  %46 = vmatmul.f32.gmra.mxu0 %v25
  %v47 = vpop.f32.mrf.mxu0
  %v48 = vadd.f32 0.0, %v47
  %49 = vdwg.mxu0
  %v51 = vsel %vm20, %v10, 0
  %v54 = vsel %vm20, %v11, 0
  %56 = vmatpush.xpose.msra.mxu0 0.0
  %57 = vmatpush.xpose.msra.mxu0 0.0
  %58 = vmatpush.xpose.msra.mxu0 0.0
  %59 = vmatpush.xpose.msra.mxu0 0.0
  %60 = vmatpush.xpose.msra.mxu0 0.0
  %61 = vmatpush.xpose.msra.mxu0 0.0
  %62 = vmatpush.xpose.msra.mxu0 0.0
  %63 = vmatpush.xpose.msra.mxu0 0.0
  %64 = vmatpush.xpose.msra.mxu0 0.0
  %65 = vmatpush.xpose.msra.mxu0 0.0
  %66 = vmatpush.xpose.msra.mxu0 0.0
  %67 = vmatpush.xpose.msra.mxu0 0.0
  %68 = vmatpush.xpose.msra.mxu0 0.0
  %69 = vmatpush.xpose.msra.mxu0 0.0
  %70 = vmatpush.xpose.msra.mxu0 %v54
  %71 = vmatpush.xpose.msra.mxu0 %v51
  %72 = vmatmul.f32.gmra.mxu0 %v51
  %v73 = vpop.f32.mrf.mxu0
  %v74 = vadd.f32 0.0, %v73
  %75 = vmatmul.f32.gmra.mxu0 %v54
  %v76 = vpop.f32.mrf.mxu0
  %v77 = vadd.f32 0.0, %v76
  %78 = vdwg.mxu0
  %v80 = vsel %vm20, %v12, 0
  %v83 = vsel %vm20, %v13, 0
  %85 = vmatpush.xpose.msra.mxu0 0.0
  %86 = vmatpush.xpose.msra.mxu0 0.0
  %87 = vmatpush.xpose.msra.mxu0 0.0
  %88 = vmatpush.xpose.msra.mxu0 0.0
  %89 = vmatpush.xpose.msra.mxu0 0.0
  %90 = vmatpush.xpose.msra.mxu0 0.0
  %91 = vmatpush.xpose.msra.mxu0 0.0
  %92 = vmatpush.xpose.msra.mxu0 0.0
  %93 = vmatpush.xpose.msra.mxu0 0.0
  %94 = vmatpush.xpose.msra.mxu0 0.0
  %95 = vmatpush.xpose.msra.mxu0 0.0
  %96 = vmatpush.xpose.msra.mxu0 0.0
  %97 = vmatpush.xpose.msra.mxu0 0.0
  %98 = vmatpush.xpose.msra.mxu0 0.0
  %99 = vmatpush.xpose.msra.mxu0 %v83
  %100 = vmatpush.xpose.msra.mxu0 %v80
  %101 = vmatmul.f32.gmra.mxu0 %v80
  %v102 = vpop.f32.mrf.mxu0
  %v103 = vadd.f32 0.0, %v102
  %104 = vmatmul.f32.gmra.mxu0 %v83
  %v105 = vpop.f32.mrf.mxu0
  %v106 = vadd.f32 0.0, %v105
  %107 = vdwg.mxu0
  %v109 = vsel %vm20, %v14, 0
  %v112 = vsel %vm20, %v15, 0
  %114 = vmatpush.xpose.msra.mxu0 0.0
  %115 = vmatpush.xpose.msra.mxu0 0.0
  %116 = vmatpush.xpose.msra.mxu0 0.0
  %117 = vmatpush.xpose.msra.mxu0 0.0
  %118 = vmatpush.xpose.msra.mxu0 0.0
  %119 = vmatpush.xpose.msra.mxu0 0.0
  %120 = vmatpush.xpose.msra.mxu0 0.0
  %121 = vmatpush.xpose.msra.mxu0 0.0
  %122 = vmatpush.xpose.msra.mxu0 0.0
  %123 = vmatpush.xpose.msra.mxu0 0.0
  %124 = vmatpush.xpose.msra.mxu0 0.0
  %125 = vmatpush.xpose.msra.mxu0 0.0
  %126 = vmatpush.xpose.msra.mxu0 0.0
  %127 = vmatpush.xpose.msra.mxu0 0.0
  %128 = vmatpush.xpose.msra.mxu0 %v112
  %129 = vmatpush.xpose.msra.mxu0 %v109
  %130 = vmatmul.f32.gmra.mxu0 %v109
  %v131 = vpop.f32.mrf.mxu0
  %v132 = vadd.f32 0.0, %v131
  %133 = vmatmul.f32.gmra.mxu0 %v112
  %v134 = vpop.f32.mrf.mxu0
  %v135 = vadd.f32 0.0, %v134
  %136 = vdwg.mxu0
  %v138 = vsel %vm20, %v16, 0
  %v141 = vsel %vm20, %v17, 0
  %143 = vmatpush.xpose.msra.mxu0 0.0
  %144 = vmatpush.xpose.msra.mxu0 0.0
  %145 = vmatpush.xpose.msra.mxu0 0.0
  %146 = vmatpush.xpose.msra.mxu0 0.0
  %147 = vmatpush.xpose.msra.mxu0 0.0
  %148 = vmatpush.xpose.msra.mxu0 0.0
  %149 = vmatpush.xpose.msra.mxu0 0.0
  %150 = vmatpush.xpose.msra.mxu0 0.0
  %151 = vmatpush.xpose.msra.mxu0 0.0
  %152 = vmatpush.xpose.msra.mxu0 0.0
  %153 = vmatpush.xpose.msra.mxu0 0.0
  %154 = vmatpush.xpose.msra.mxu0 0.0
  %155 = vmatpush.xpose.msra.mxu0 0.0
  %156 = vmatpush.xpose.msra.mxu0 0.0
  %157 = vmatpush.xpose.msra.mxu0 %v141
  %158 = vmatpush.xpose.msra.mxu0 %v138
  %159 = vmatmul.f32.gmra.mxu0 %v138
  %v160 = vpop.f32.mrf.mxu0
  %v161 = vadd.f32 0.0, %v160
  %162 = vmatmul.f32.gmra.mxu0 %v141
  %v163 = vpop.f32.mrf.mxu0
  %v164 = vadd.f32 0.0, %v163
  %165 = vdwg.mxu0
  %v167 = vsel %vm20, %v18, 0
  %v170 = vsel %vm20, %v19, 0
  %172 = vmatpush.xpose.msra.mxu0 0.0
  %173 = vmatpush.xpose.msra.mxu0 0.0
  %174 = vmatpush.xpose.msra.mxu0 0.0
  %175 = vmatpush.xpose.msra.mxu0 0.0
  %176 = vmatpush.xpose.msra.mxu0 0.0
  %177 = vmatpush.xpose.msra.mxu0 0.0
  %178 = vmatpush.xpose.msra.mxu0 0.0
  %179 = vmatpush.xpose.msra.mxu0 0.0
  %180 = vmatpush.xpose.msra.mxu0 0.0
  %181 = vmatpush.xpose.msra.mxu0 0.0
  %182 = vmatpush.xpose.msra.mxu0 0.0
  %183 = vmatpush.xpose.msra.mxu0 0.0
  %184 = vmatpush.xpose.msra.mxu0 0.0
  %185 = vmatpush.xpose.msra.mxu0 0.0
  %186 = vmatpush.xpose.msra.mxu0 %v170
  %187 = vmatpush.xpose.msra.mxu0 %v167
  %188 = vmatmul.f32.gmra.mxu0 %v167
  %v189 = vpop.f32.mrf.mxu0
  %v190 = vadd.f32 0.0, %v189
  %191 = vmatmul.f32.gmra.mxu0 %v170
  %v192 = vpop.f32.mrf.mxu0
  %v193 = vadd.f32 0.0, %v192
  %194 = vdwg.mxu0
  %vm195 = vcmask 130048
  %v196 = vsel %vm195, %v45, inf
  %197 = vmin.xlane.f32.xlu0 %v196
  %v198 = vpop.xlane.xlu0 %197
  %v199 = vsel %vm195, %v48, inf
  %200 = vmin.xlane.f32.xlu0 %v199
  %v201 = vpop.xlane.xlu0 %200
  %v202 = vsel %vm195, %v74, inf
  %203 = vmin.xlane.f32.xlu0 %v202
  %v204 = vpop.xlane.xlu0 %203
  %v205 = vsel %vm195, %v77, inf
  %206 = vmin.xlane.f32.xlu0 %v205
  %v207 = vpop.xlane.xlu0 %206
  %v208 = vsel %vm195, %v103, inf
  %209 = vmin.xlane.f32.xlu0 %v208
  %v210 = vpop.xlane.xlu0 %209
  %v211 = vsel %vm195, %v106, inf
  %212 = vmin.xlane.f32.xlu0 %v211
  %v213 = vpop.xlane.xlu0 %212
  %v214 = vsel %vm195, %v132, inf
  %215 = vmin.xlane.f32.xlu0 %v214
  %v216 = vpop.xlane.xlu0 %215
  %v217 = vsel %vm195, %v135, inf
  %218 = vmin.xlane.f32.xlu0 %v217
  %v219 = vpop.xlane.xlu0 %218
  %v220 = vsel %vm195, %v161, inf
  %221 = vmin.xlane.f32.xlu0 %v220
  %v222 = vpop.xlane.xlu0 %221
  %v223 = vsel %vm195, %v164, inf
  %224 = vmin.xlane.f32.xlu0 %v223
  %v225 = vpop.xlane.xlu0 %224
  %v226 = vsel %vm195, %v190, inf
  %227 = vmin.xlane.f32.xlu0 %v226
  %v228 = vpop.xlane.xlu0 %227
  %v229 = vsel %vm195, %v193, inf
  %230 = vmin.xlane.f32.xlu0 %v229
  %v231 = vpop.xlane.xlu0 %230
  %v232 = vsub.f32 %v198, %v45
  %v233 = vsub.f32 %v201, %v48
  %v234 = vsub.f32 %v204, %v74
  %v235 = vsub.f32 %v207, %v77
  %v236 = vsub.f32 %v210, %v103
  %v237 = vsub.f32 %v213, %v106
  %v238 = vsub.f32 %v216, %v132
  %v239 = vsub.f32 %v219, %v135
  %v240 = vsub.f32 %v222, %v161
  %v241 = vsub.f32 %v225, %v164
  %v242 = vsub.f32 %v228, %v190
  %v243 = vsub.f32 %v231, %v193
  %v244 = vmul.f32 %v232, 1.442695
  %v245 = vpow.pop %v244
  %v246 = vmul.f32 %v233, 1.442695
  %v247 = vpow.pop %v246
  %v248 = vmul.f32 %v234, 1.442695
  %v249 = vpow.pop %v248
  %v250 = vmul.f32 %v235, 1.442695
  %v251 = vpow.pop %v250
  %v252 = vmul.f32 %v236, 1.442695
  %v253 = vpow.pop %v252
  %v254 = vmul.f32 %v237, 1.442695
  %v255 = vpow.pop %v254
  %v256 = vmul.f32 %v238, 1.442695
  %v257 = vpow.pop %v256
  %v258 = vmul.f32 %v239, 1.442695
  %v259 = vpow.pop %v258
  %v260 = vmul.f32 %v240, 1.442695
  %v261 = vpow.pop %v260
  %v262 = vmul.f32 %v241, 1.442695
  %v263 = vpow.pop %v262
  %v264 = vmul.f32 %v242, 1.442695
  %v265 = vpow.pop %v264
  %v266 = vmul.f32 %v243, 1.442695
  %v267 = vpow.pop %v266
  %v268 = vsel %vm195, %v245, 0.0
  %269 = vadd.xlane.f32.xlu0 %v268
  %v270 = vpop.xlane.xlu0 %269
  %v271 = vsel %vm195, %v247, 0.0
  %272 = vadd.xlane.f32.xlu0 %v271
  %v273 = vpop.xlane.xlu0 %272
  %v274 = vsel %vm195, %v249, 0.0
  %275 = vadd.xlane.f32.xlu0 %v274
  %v276 = vpop.xlane.xlu0 %275
  %v277 = vsel %vm195, %v251, 0.0
  %278 = vadd.xlane.f32.xlu0 %v277
  %v279 = vpop.xlane.xlu0 %278
  %v280 = vsel %vm195, %v253, 0.0
  %281 = vadd.xlane.f32.xlu0 %v280
  %v282 = vpop.xlane.xlu0 %281
  %v283 = vsel %vm195, %v255, 0.0
  %284 = vadd.xlane.f32.xlu0 %v283
  %v285 = vpop.xlane.xlu0 %284
  %v286 = vsel %vm195, %v257, 0.0
  %287 = vadd.xlane.f32.xlu0 %v286
  %v288 = vpop.xlane.xlu0 %287
  %v289 = vsel %vm195, %v259, 0.0
  %290 = vadd.xlane.f32.xlu0 %v289
  %v291 = vpop.xlane.xlu0 %290
  %v292 = vsel %vm195, %v261, 0.0
  %293 = vadd.xlane.f32.xlu0 %v292
  %v294 = vpop.xlane.xlu0 %293
  %v295 = vsel %vm195, %v263, 0.0
  %296 = vadd.xlane.f32.xlu0 %v295
  %v297 = vpop.xlane.xlu0 %296
  %v298 = vsel %vm195, %v265, 0.0
  %299 = vadd.xlane.f32.xlu0 %v298
  %v300 = vpop.xlane.xlu0 %299
  %v301 = vsel %vm195, %v267, 0.0
  %302 = vadd.xlane.f32.xlu0 %v301
  %v303 = vpop.xlane.xlu0 %302
  %v304 = vrcp.pop %v270
  %v305 = vrcp.pop %v273
  %v306 = vrcp.pop %v276
  %v307 = vrcp.pop %v279
  %v308 = vrcp.pop %v282
  %v309 = vrcp.pop %v285
  %v310 = vrcp.pop %v288
  %v311 = vrcp.pop %v291
  %v312 = vrcp.pop %v294
  %v313 = vrcp.pop %v297
  %v314 = vrcp.pop %v300
  %v315 = vrcp.pop %v303
  %v316 = vmul.f32 %v245, %v304
  %v317 = vmul.f32 %v247, %v305
  %v318 = vmul.f32 %v249, %v306
  %v319 = vmul.f32 %v251, %v307
  %v320 = vmul.f32 %v253, %v308
  %v321 = vmul.f32 %v255, %v309
  %v322 = vmul.f32 %v257, %v310
  %v323 = vmul.f32 %v259, %v311
  %v324 = vmul.f32 %v261, %v312
  %v325 = vmul.f32 %v263, %v313
  %v326 = vmul.f32 %v265, %v314
  %v327 = vmul.f32 %v267, %v315
  %v329 = vsel %vm195, %v316, 0
  %v332 = vsel %vm195, %v317, 0
  %334 = vmatpush.msra.mxu0 0.0
  %335 = vmatpush.msra.mxu0 0.0
  %336 = vmatpush.msra.mxu0 0.0
  %337 = vmatpush.msra.mxu0 0.0
  %338 = vmatpush.msra.mxu0 0.0
  %339 = vmatpush.msra.mxu0 0.0
  %340 = vmatpush.msra.mxu0 0.0
  %341 = vmatpush.msra.mxu0 0.0
  %342 = vmatpush.msra.mxu0 0.0
  %343 = vmatpush.msra.mxu0 0.0
  %344 = vmatpush.msra.mxu0 0.0
  %345 = vmatpush.msra.mxu0 0.0
  %346 = vmatpush.msra.mxu0 0.0
  %347 = vmatpush.msra.mxu0 0.0
  %348 = vmatpush.msra.mxu0 %v9
  %349 = vmatpush.msra.mxu0 %v8
  %350 = vmatmul.f32.gmra.mxu0 %v329
  %v351 = vpop.f32.mrf.mxu0
  %v352 = vadd.f32 0.0, %v351
  %353 = vmatmul.f32.gmra.mxu0 %v332
  %v354 = vpop.f32.mrf.mxu0
  %v355 = vadd.f32 0.0, %v354
  %356 = vdwg.mxu0
  %v358 = vsel %vm195, %v318, 0
  %v361 = vsel %vm195, %v319, 0
  %363 = vmatpush.msra.mxu0 0.0
  %364 = vmatpush.msra.mxu0 0.0
  %365 = vmatpush.msra.mxu0 0.0
  %366 = vmatpush.msra.mxu0 0.0
  %367 = vmatpush.msra.mxu0 0.0
  %368 = vmatpush.msra.mxu0 0.0
  %369 = vmatpush.msra.mxu0 0.0
  %370 = vmatpush.msra.mxu0 0.0
  %371 = vmatpush.msra.mxu0 0.0
  %372 = vmatpush.msra.mxu0 0.0
  %373 = vmatpush.msra.mxu0 0.0
  %374 = vmatpush.msra.mxu0 0.0
  %375 = vmatpush.msra.mxu0 0.0
  %376 = vmatpush.msra.mxu0 0.0
  %377 = vmatpush.msra.mxu0 %v11
  %378 = vmatpush.msra.mxu0 %v10
  %379 = vmatmul.f32.gmra.mxu0 %v358
  %v380 = vpop.f32.mrf.mxu0
  %v381 = vadd.f32 0.0, %v380
  %382 = vmatmul.f32.gmra.mxu0 %v361
  %v383 = vpop.f32.mrf.mxu0
  %v384 = vadd.f32 0.0, %v383
  %385 = vdwg.mxu0
  %v387 = vsel %vm195, %v320, 0
  %v390 = vsel %vm195, %v321, 0
  %392 = vmatpush.msra.mxu0 0.0
  %393 = vmatpush.msra.mxu0 0.0
  %394 = vmatpush.msra.mxu0 0.0
  %395 = vmatpush.msra.mxu0 0.0
  %396 = vmatpush.msra.mxu0 0.0
  %397 = vmatpush.msra.mxu0 0.0
  %398 = vmatpush.msra.mxu0 0.0
  %399 = vmatpush.msra.mxu0 0.0
  %400 = vmatpush.msra.mxu0 0.0
  %401 = vmatpush.msra.mxu0 0.0
  %402 = vmatpush.msra.mxu0 0.0
  %403 = vmatpush.msra.mxu0 0.0
  %404 = vmatpush.msra.mxu0 0.0
  %405 = vmatpush.msra.mxu0 0.0
  %406 = vmatpush.msra.mxu0 %v13
  %407 = vmatpush.msra.mxu0 %v12
  %408 = vmatmul.f32.gmra.mxu0 %v387
  %v409 = vpop.f32.mrf.mxu0
  %v410 = vadd.f32 0.0, %v409
  %411 = vmatmul.f32.gmra.mxu0 %v390
  %v412 = vpop.f32.mrf.mxu0
  %v413 = vadd.f32 0.0, %v412
  %414 = vdwg.mxu0
  %v416 = vsel %vm195, %v322, 0
  %v419 = vsel %vm195, %v323, 0
  %421 = vmatpush.msra.mxu0 0.0
  %422 = vmatpush.msra.mxu0 0.0
  %423 = vmatpush.msra.mxu0 0.0
  %424 = vmatpush.msra.mxu0 0.0
  %425 = vmatpush.msra.mxu0 0.0
  %426 = vmatpush.msra.mxu0 0.0
  %427 = vmatpush.msra.mxu0 0.0
  %428 = vmatpush.msra.mxu0 0.0
  %429 = vmatpush.msra.mxu0 0.0
  %430 = vmatpush.msra.mxu0 0.0
  %431 = vmatpush.msra.mxu0 0.0
  %432 = vmatpush.msra.mxu0 0.0
  %433 = vmatpush.msra.mxu0 0.0
  %434 = vmatpush.msra.mxu0 0.0
  %435 = vmatpush.msra.mxu0 %v15
  %436 = vmatpush.msra.mxu0 %v14
  %437 = vmatmul.f32.gmra.mxu0 %v416
  %v438 = vpop.f32.mrf.mxu0
  %v439 = vadd.f32 0.0, %v438
  %440 = vmatmul.f32.gmra.mxu0 %v419
  %v441 = vpop.f32.mrf.mxu0
  %v442 = vadd.f32 0.0, %v441
  %443 = vdwg.mxu0
  %v445 = vsel %vm195, %v324, 0
  %v448 = vsel %vm195, %v325, 0
  %450 = vmatpush.msra.mxu0 0.0
  %451 = vmatpush.msra.mxu0 0.0
  %452 = vmatpush.msra.mxu0 0.0
  %453 = vmatpush.msra.mxu0 0.0
  %454 = vmatpush.msra.mxu0 0.0
  %455 = vmatpush.msra.mxu0 0.0
  %456 = vmatpush.msra.mxu0 0.0
  %457 = vmatpush.msra.mxu0 0.0
  %458 = vmatpush.msra.mxu0 0.0
  %459 = vmatpush.msra.mxu0 0.0
  %460 = vmatpush.msra.mxu0 0.0
  %461 = vmatpush.msra.mxu0 0.0
  %462 = vmatpush.msra.mxu0 0.0
  %463 = vmatpush.msra.mxu0 0.0
  %464 = vmatpush.msra.mxu0 %v17
  %465 = vmatpush.msra.mxu0 %v16
  %466 = vmatmul.f32.gmra.mxu0 %v445
  %v467 = vpop.f32.mrf.mxu0
  %v468 = vadd.f32 0.0, %v467
  %469 = vmatmul.f32.gmra.mxu0 %v448
  %v470 = vpop.f32.mrf.mxu0
  %v471 = vadd.f32 0.0, %v470
  %472 = vdwg.mxu0
  %v474 = vsel %vm195, %v326, 0
  %v477 = vsel %vm195, %v327, 0
  %479 = vmatpush.msra.mxu0 0.0
  %480 = vmatpush.msra.mxu0 0.0
  %481 = vmatpush.msra.mxu0 0.0
  %482 = vmatpush.msra.mxu0 0.0
  %483 = vmatpush.msra.mxu0 0.0
  %484 = vmatpush.msra.mxu0 0.0
  %485 = vmatpush.msra.mxu0 0.0
  %486 = vmatpush.msra.mxu0 0.0
  %487 = vmatpush.msra.mxu0 0.0
  %488 = vmatpush.msra.mxu0 0.0
  %489 = vmatpush.msra.mxu0 0.0
  %490 = vmatpush.msra.mxu0 0.0
  %491 = vmatpush.msra.mxu0 0.0
  %492 = vmatpush.msra.mxu0 0.0
  %493 = vmatpush.msra.mxu0 %v19
  %494 = vmatpush.msra.mxu0 %v18
  %495 = vmatmul.f32.gmra.mxu0 %v474
  %v496 = vpop.f32.mrf.mxu0
  %v497 = vadd.f32 0.0, %v496
  %498 = vmatmul.f32.gmra.mxu0 %v477
  %v499 = vpop.f32.mrf.mxu0
  %v500 = vadd.f32 0.0, %v499
  %501 = vdwg.mxu0
  %v502 = vmul.f32 %v352, 0.5
  %v503 = vmul.f32 %v355, 0.5
  %v504 = vmul.f32 %v381, 0.5
  %v505 = vmul.f32 %v384, 0.5
  %v506 = vmul.f32 %v410, 0.5
  %v507 = vmul.f32 %v413, 0.5
  %v508 = vmul.f32 %v439, 0.5
  %v509 = vmul.f32 %v442, 0.5
  %v510 = vmul.f32 %v468, 0.5
  %v511 = vmul.f32 %v471, 0.5
  %v512 = vmul.f32 %v497, 0.5
  %v513 = vmul.f32 %v500, 0.5
  %v514 = vadd.f32 %v502, %v8
  %v515 = vadd.f32 %v503, %v9
  %v516 = vadd.f32 %v504, %v10
  %v517 = vadd.f32 %v505, %v11
  %v518 = vadd.f32 %v506, %v12
  %v519 = vadd.f32 %v507, %v13
  %v520 = vadd.f32 %v508, %v14
  %v521 = vadd.f32 %v509, %v15
  %v522 = vadd.f32 %v510, %v16
  %v523 = vadd.f32 %v511, %v17
  %v524 = vadd.f32 %v512, %v18
  %v525 = vadd.f32 %v513, %v19
  %526 = vst.msk [vmem:[%s1] sm:$0xff] %vm20, %v514
  %527 = vst.msk [vmem:[%s1 + $0x8] sm:$0xff] %vm20, %v515
  %528 = vst.msk [vmem:[%s1 + $0x10] sm:$0xff] %vm20, %v516
  %529 = vst.msk [vmem:[%s1 + $0x18] sm:$0xff] %vm20, %v517
  %530 = vst.msk [vmem:[%s1 + $0x20] sm:$0xff] %vm20, %v518
  %531 = vst.msk [vmem:[%s1 + $0x28] sm:$0xff] %vm20, %v519
  %532 = vst.msk [vmem:[%s1 + $0x30] sm:$0xff] %vm20, %v520
  %533 = vst.msk [vmem:[%s1 + $0x38] sm:$0xff] %vm20, %v521
  %534 = vst.msk [vmem:[%s1 + $0x40] sm:$0xff] %vm20, %v522
  %535 = vst.msk [vmem:[%s1 + $0x48] sm:$0xff] %vm20, %v523
  %536 = vst.msk [vmem:[%s1 + $0x50] sm:$0xff] %vm20, %v524
  %537 = vst.msk [vmem:[%s1 + $0x58] sm:$0xff] %vm20, %v525
  // Predicated region
  $region6: #{_lambda_.14} parent=0 // pred_check
    _
  $region7: #{_lambda_.14} parent=0 // pred_check_branch
    %539 = sbr.rel (0) target = $region9
  $region8: #{_lambda_.14} parent=0 // pred_region
    _
  $region9: #{_lambda_.14} parent=0 // pred_fallthru
    _
  // Predicated region
  $region10: #{_lambda_.14} parent=0 // pred_check
    _
  $region11: #{_lambda_.14} parent=0 // pred_check_branch
    %541 = sbr.rel (0) target = $region13
  $region12: #{_lambda_.14} parent=0 // pred_region
    _
  $region13: #{_lambda_.14} parent=0 // pred_fallthru
    _

// kernel: _lambda_.19
$region0: #{_lambda_.19}
  #allocation0 [shape = 'u32[]', space=smem, size = 0x4, offset = 0x4, fixed_abs, tag = 'smem constant byte address 0x4 - core index']
  #allocation1 [shape = 'u32[72,128]{1,0:T(1,128)}', space=vmem, size = 0x9000, scoped, tag = 'internal scratch']
  %s0 = inlined_call_operand.vmem [shape: f32[16,384], index: 0, kind: input, shape index: {}]
  %s1 = inlined_call_operand.vmem [shape: f32[16,384], index: 1, kind: input, shape index: {}]
  %s2 = inlined_call_operand.vmem [shape: f32[16,384], index: 2, kind: input, shape index: {}]
  %s3 = inlined_call_operand.vmem [shape: f32[16,384], index: 3, kind: input, shape index: {}]
  %s4 = inlined_call_operand.vmem [shape: bf16[16,16], index: 4, kind: input, shape index: {}]
  %s5 = inlined_call_operand.vmem [shape: f32[16,1], index: 5, kind: input, shape index: {}]
  %s6 = inlined_call_operand.vmem [shape: f32[16,384], index: 6, kind: output, shape index: {}]
  %s7 = sld [smem:[#allocation0]]
  $region34: #{_lambda_.19} parent=0
    _
  %s9 = ssub.s32 1, %s7
  %s10 = scalar_select 0, %s9, %s7
  // Predicated region
  $region2: #{_lambda_.19} parent=0 // pred_check
    _
  $region3: #{_lambda_.19} parent=0 // pred_check_branch
    %12 = sbr.rel (0) target = $region5
  $region4: #{_lambda_.19} parent=0 // pred_region
    _
  $region5: #{_lambda_.19} parent=0 // pred_fallthru
    _
  // Predicated region
  $region6: #{_lambda_.19} parent=0 // pred_check
    _
  $region7: #{_lambda_.19} parent=0 // pred_check_branch
    %14 = sbr.rel (0) target = $region9
  $region8: #{_lambda_.19} parent=0 // pred_region
    _
  $region9: #{_lambda_.19} parent=0 // pred_fallthru
    _
  // Predicated region
  $region10: #{_lambda_.19} parent=0 // pred_check
    _
  $region11: #{_lambda_.19} parent=0 // pred_check_branch
    %16 = sbr.rel (0) target = $region13
  $region12: #{_lambda_.19} parent=0 // pred_region
    _
  $region13: #{_lambda_.19} parent=0 // pred_fallthru
    _
  // Predicated region
  $region14: #{_lambda_.19} parent=0 // pred_check
    _
  $region15: #{_lambda_.19} parent=0 // pred_check_branch
    %18 = sbr.rel (0) target = $region17
  $region16: #{_lambda_.19} parent=0 // pred_region
    _
  $region17: #{_lambda_.19} parent=0 // pred_fallthru
    _
  // Predicated region
  $region18: #{_lambda_.19} parent=0 // pred_check
    _
  $region19: #{_lambda_.19} parent=0 // pred_check_branch
    %20 = sbr.rel (0) target = $region21
  $region20: #{_lambda_.19} parent=0 // pred_region
    _
  $region21: #{_lambda_.19} parent=0 // pred_fallthru
    _
  // Predicated region
  $region22: #{_lambda_.19} parent=0 // pred_check
    _
  $region23: #{_lambda_.19} parent=0 // pred_check_branch
    %22 = sbr.rel (0) target = $region25
  $region24: #{_lambda_.19} parent=0 // pred_region
    _
  $region25: #{_lambda_.19} parent=0 // pred_fallthru
    _
  %v24 = vld [vmem:[%s0] sm:$0xff]
  %v25 = vld [vmem:[%s0 + $0x8] sm:$0xff]
  %v26 = vld [vmem:[%s0 + $0x10] sm:$0xff]
  %v27 = vld [vmem:[%s0 + $0x18] sm:$0xff]
  %v28 = vld [vmem:[%s0 + $0x20] sm:$0xff]
  %v29 = vld [vmem:[%s0 + $0x28] sm:$0xff]
  %v30 = vld [vmem:[%s1] sm:$0xff]
  %v31 = vld [vmem:[%s1 + $0x8] sm:$0xff]
  %v32 = vld [vmem:[%s1 + $0x10] sm:$0xff]
  %v33 = vld [vmem:[%s1 + $0x18] sm:$0xff]
  %v34 = vld [vmem:[%s1 + $0x20] sm:$0xff]
  %v35 = vld [vmem:[%s1 + $0x28] sm:$0xff]
  %v36 = vadd.f32 %v24, %v30
  %v37 = vadd.f32 %v25, %v31
  %v38 = vadd.f32 %v26, %v32
  %v39 = vadd.f32 %v27, %v33
  %v40 = vadd.f32 %v28, %v34
  %v41 = vadd.f32 %v29, %v35
  %v42 = vld [vmem:[%s2] sm:$0xff]
  %v43 = vld [vmem:[%s2 + $0x8] sm:$0xff]
  %v44 = vld [vmem:[%s2 + $0x10] sm:$0xff]
  %v45 = vld [vmem:[%s2 + $0x18] sm:$0xff]
  %v46 = vld [vmem:[%s2 + $0x20] sm:$0xff]
  %v47 = vld [vmem:[%s2 + $0x28] sm:$0xff]
  %v48 = vadd.f32 %v36, %v42
  %v49 = vadd.f32 %v37, %v43
  %v50 = vadd.f32 %v38, %v44
  %v51 = vadd.f32 %v39, %v45
  %v52 = vadd.f32 %v40, %v46
  %v53 = vadd.f32 %v41, %v47
  %v54 = vld [vmem:[%s4] sm:$0xf]
  %v55 = vld [vmem:[%s4 + $0x4] sm:$0xf]
  %v56 = vpack.c.bf16 %v51, %v48
  %v57 = vpack.c.bf16 %v52, %v49
  %v58 = vpack.c.bf16 %v53, %v50
  %v59 = vld [vmem:[%s5] sm:$0xff]
  %v60 = vld [vmem:[%s5 + $0x8] sm:$0xff]
  %62 = vset.pattern.permute.xlu0 0
  %63 = vperm.xlu0 %62, %v59
  %v64 = vpop.permute.xlu0 %63
  %67 = vset.pattern.permute.xlu0 0
  %68 = vperm.xlu0 %67, %v60
  %v69 = vpop.permute.xlu0 %68
  %v73 = vunpack.c.l.b16 %v54
  %v74 = vunpack.c.l.b16 %v55
  %v75 = vpack.c.b16 %v74, %v73
  %vm76 = vcmask 130048
  %v78 = vsel %vm76, %v75, 0
  %80 = vmatpush.bf16.msra.mxu0 0
  %81 = vmatpush.bf16.msra.mxu0 0
  %82 = vmatpush.bf16.msra.mxu0 0
  %83 = vmatpush.bf16.msra.mxu0 0
  %84 = vmatpush.bf16.msra.mxu0 0
  %85 = vmatpush.bf16.msra.mxu0 0
  %86 = vmatpush.bf16.msra.mxu0 0
  %87 = vmatpush.bf16.msra.mxu0 %v56
  %88 = vmatmul.bf16.gmra.mxu0 %v78
  %v89 = vpop.f32.mrf.mxu0
  %v90 = vadd.f32 %v64, %v89
  %v91 = vpop.f32.mrf.mxu0
  %v92 = vadd.f32 %v69, %v91
  %93 = vdwg.mxu0
  %94 = vmatpush.bf16.msra.mxu0 0
  %95 = vmatpush.bf16.msra.mxu0 0
  %96 = vmatpush.bf16.msra.mxu0 0
  %97 = vmatpush.bf16.msra.mxu0 0
  %98 = vmatpush.bf16.msra.mxu0 0
  %99 = vmatpush.bf16.msra.mxu0 0
  %100 = vmatpush.bf16.msra.mxu0 0
  %101 = vmatpush.bf16.msra.mxu0 %v57
  %102 = vmatmul.bf16.gmra.mxu0 %v78
  %v103 = vpop.f32.mrf.mxu0
  %v104 = vadd.f32 %v64, %v103
  %v105 = vpop.f32.mrf.mxu0
  %v106 = vadd.f32 %v69, %v105
  %107 = vdwg.mxu0
  %108 = vmatpush.bf16.msra.mxu0 0
  %109 = vmatpush.bf16.msra.mxu0 0
  %110 = vmatpush.bf16.msra.mxu0 0
  %111 = vmatpush.bf16.msra.mxu0 0
  %112 = vmatpush.bf16.msra.mxu0 0
  %113 = vmatpush.bf16.msra.mxu0 0
  %114 = vmatpush.bf16.msra.mxu0 0
  %115 = vmatpush.bf16.msra.mxu0 %v58
  %116 = vmatmul.bf16.gmra.mxu0 %v78
  %v117 = vpop.f32.mrf.mxu0
  %v118 = vadd.f32 %v64, %v117
  %v119 = vpop.f32.mrf.mxu0
  %v120 = vadd.f32 %v69, %v119
  %121 = vdwg.mxu0
  %v122 = vld [vmem:[%s3] sm:$0xff]
  %v123 = vld [vmem:[%s3 + $0x8] sm:$0xff]
  %v124 = vld [vmem:[%s3 + $0x10] sm:$0xff]
  %v125 = vld [vmem:[%s3 + $0x18] sm:$0xff]
  %v126 = vld [vmem:[%s3 + $0x20] sm:$0xff]
  %v127 = vld [vmem:[%s3 + $0x28] sm:$0xff]
  %v128 = vadd.f32 %v90, %v122
  %v129 = vadd.f32 %v104, %v123
  %v130 = vadd.f32 %v118, %v124
  %v131 = vadd.f32 %v92, %v125
  %v132 = vadd.f32 %v106, %v126
  %v133 = vadd.f32 %v120, %v127
  %134 = vst [vmem:[%s6] sm:$0xff] %v128
  %135 = vst [vmem:[%s6 + $0x8] sm:$0xff] %v129
  %136 = vst [vmem:[%s6 + $0x10] sm:$0xff] %v130
  %137 = vst [vmem:[%s6 + $0x18] sm:$0xff] %v131
  %138 = vst [vmem:[%s6 + $0x20] sm:$0xff] %v132
  %139 = vst [vmem:[%s6 + $0x28] sm:$0xff] %v133
  // Predicated region
  $region26: #{_lambda_.19} parent=0 // pred_check
    _
  $region27: #{_lambda_.19} parent=0 // pred_check_branch
    %141 = sbr.rel (0) target = $region29
  $region28: #{_lambda_.19} parent=0 // pred_region
    _
  $region29: #{_lambda_.19} parent=0 // pred_fallthru
    _
  // Predicated region
  $region30: #{_lambda_.19} parent=0 // pred_check
    _
  $region31: #{_lambda_.19} parent=0 // pred_check_branch
    %143 = sbr.rel (0) target = $region33
  $region32: #{_lambda_.19} parent=0 // pred_region
    _
  $region33: #{_lambda_.19} parent=0 // pred_fallthru
    _

// kernel: _lambda_.11
$region0: #{_lambda_.11}
  #allocation0 [shape = 'u32[]', space=smem, size = 0x4, offset = 0x4, fixed_abs, tag = 'smem constant byte address 0x4 - core index']
  #allocation1 [shape = 'u32[72,128]{1,0:T(1,128)}', space=vmem, size = 0x9000, scoped, tag = 'internal scratch']
  %s0 = inlined_call_operand.vmem [shape: f32[6,8,8,16], index: 0, kind: input, shape index: {}]
  %s1 = inlined_call_operand.vmem [shape: bf16[16,20], index: 1, kind: input, shape index: {}]
  %s2 = inlined_call_operand.vmem [shape: f32[1,20], index: 2, kind: input, shape index: {}]
  %s3 = inlined_call_operand.vmem [shape: f32[6,8,8,16], index: 3, kind: output, shape index: {}]
  %s4 = sld [smem:[#allocation0]]
  $region45: #{_lambda_.11} parent=0
    _
  %s6 = ssub.s32 1, %s4
  %s7 = scalar_select 0, %s6, %s4
  loop: start=0, step=1, limit=8
  $region2: #{_lambda_.11} parent=0 // loop_pre_header
    _
  $region3: #{_lambda_.11} parent=0 // loop_header
    %s9 = sphi 0, %s13
    %p10 = scmp.ge.s32.totalorder %s9, 8
    %s19 = sphi 0, %s21
    %s22 = sphi 0, %s19
    %s23 = sphi 0, %s22
    %s39 = sphi 0, %s23
    %s43 = sphi 0, %s43
    %s45 = sphi 0, %s43
    %s46 = sphi 0, %s45
    %s60 = sphi 0, %s46
    %s64 = sphi 0, %s64
    %s66 = sphi 0, %s64
    %s67 = sphi 0, %s66
    %s81 = sphi 0, %s67
    %s87 = sphi 0, %s89
    %s90 = sphi 0, %s87
    %s91 = sphi 0, %s90
    %s107 = sphi 0, %s91
  $region4: #{_lambda_.11} parent=0 // loop_header_branch
    %12 = sbr.rel (%p10) target = $region8
  $region5: #{_lambda_.11} parent=0 // loop_body
    %s14 = ssub.s32 %s9, 1
    %s15 = ssub.s32 %s9, 2
    %s16 = sadd.s32 %s9, 1
    %s17 = ssub.s32 %s9, %s16
    %p18 = scmp.eq.s32.totalorder %s17, 0
    %s20 = sadd.s32 %s19, 1
    %s21 = scalar_select %p18, %s19, %s20
    %p24 = pneg %p18
    %p25 = scmp.eq.s32.totalorder %s9, 5
    %p26 = por %p24, %p25
    %p27 = scmp.ne.s32.totalorder %s19, %s22
    %p28 = scmp.eq.s32.totalorder %s9, 0
    %p29 = por %p27, %p28
    %p30 = scmp.ne.s32.totalorder %s19, %s22
    %p31 = scmp.eq.s32.totalorder %s14, 5
    %p32 = por %p30, %p31
    %p33 = scmp.ne.s32.totalorder %s22, %s23
    %p34 = scmp.eq.s32.totalorder %s14, 0
    %p35 = por %p33, %p34
    %p36 = scmp.ne.s32.totalorder %s22, %s23
    %p37 = scmp.eq.s32.totalorder %s15, 5
    %p38 = por %p36, %p37
    %p40 = scmp.ne.s32.totalorder %s23, %s39
    %p41 = scmp.eq.s32.totalorder %s15, 0
    %p42 = por %p40, %p41
    %s44 = sadd.s32 %s43, 1
    %p47 = scmp.eq.s32.totalorder %s9, 5
    %p48 = scmp.ne.s32.totalorder %s43, %s45
    %p49 = scmp.eq.s32.totalorder %s9, 0
    %p50 = por %p48, %p49
    %p51 = scmp.ne.s32.totalorder %s43, %s45
    %p52 = scmp.eq.s32.totalorder %s14, 5
    %p53 = por %p51, %p52
    %p54 = scmp.ne.s32.totalorder %s45, %s46
    %p55 = scmp.eq.s32.totalorder %s14, 0
    %p56 = por %p54, %p55
    %p57 = scmp.ne.s32.totalorder %s45, %s46
    %p58 = scmp.eq.s32.totalorder %s15, 5
    %p59 = por %p57, %p58
    %p61 = scmp.ne.s32.totalorder %s46, %s60
    %p62 = scmp.eq.s32.totalorder %s15, 0
    %p63 = por %p61, %p62
    %s65 = sadd.s32 %s64, 1
    %p68 = scmp.eq.s32.totalorder %s9, 5
    %p69 = scmp.ne.s32.totalorder %s64, %s66
    %p70 = scmp.eq.s32.totalorder %s9, 0
    %p71 = por %p69, %p70
    %p72 = scmp.ne.s32.totalorder %s64, %s66
    %p73 = scmp.eq.s32.totalorder %s14, 5
    %p74 = por %p72, %p73
    %p75 = scmp.ne.s32.totalorder %s66, %s67
    %p76 = scmp.eq.s32.totalorder %s14, 0
    %p77 = por %p75, %p76
    %p78 = scmp.ne.s32.totalorder %s66, %s67
    %p79 = scmp.eq.s32.totalorder %s15, 5
    %p80 = por %p78, %p79
    %p82 = scmp.ne.s32.totalorder %s67, %s81
    %p83 = scmp.eq.s32.totalorder %s15, 0
    %p84 = por %p82, %p83
    %s85 = ssub.s32 %s9, %s16
    %p86 = scmp.eq.s32.totalorder %s85, 0
    %s88 = sadd.s32 %s87, 1
    %s89 = scalar_select %p86, %s87, %s88
    %p92 = pneg %p86
    %p93 = scmp.eq.s32.totalorder %s9, 5
    %p94 = por %p92, %p93
    %p95 = scmp.ne.s32.totalorder %s87, %s90
    %p96 = scmp.eq.s32.totalorder %s9, 0
    %p97 = por %p95, %p96
    %p98 = scmp.ne.s32.totalorder %s87, %s90
    %p99 = scmp.eq.s32.totalorder %s14, 5
    %p100 = por %p98, %p99
    %p101 = scmp.ne.s32.totalorder %s90, %s91
    %p102 = scmp.eq.s32.totalorder %s14, 0
    %p103 = por %p101, %p102
    %p104 = scmp.ne.s32.totalorder %s90, %s91
    %p105 = scmp.eq.s32.totalorder %s15, 5
    %p106 = por %p104, %p105
    %p108 = scmp.ne.s32.totalorder %s91, %s107
    %p109 = scmp.eq.s32.totalorder %s15, 0
    %p110 = por %p108, %p109
    %p111 = scmp.le.s32.totalorder 1, %s9
    %p112 = scmp.lt.s32.totalorder %s9, 7
    %p113 = pnand %p111, %p112
    %p114 = pneg %p113
    // Predicated region
    $region9: #{_lambda_.11} parent=5 // pred_check
      _
    $region10: #{_lambda_.11} parent=5 // pred_check_branch
      %116 = sbr.rel (%p113) target = $region12
    $region11: #{_lambda_.11} parent=5 // pred_region
      %s117 = ssub.s32 %s9, 1
      // Predicated region
      $region13: #{_lambda_.11} parent=11 // pred_check
        %p118 = pneg %p56
      $region14: #{_lambda_.11} parent=11 // pred_check_branch
        %120 = sbr.rel (%p118) target = $region16
      $region15: #{_lambda_.11} parent=11 // pred_region
        _
      $region16: #{_lambda_.11} parent=11 // pred_fallthru
        _
      // Predicated region
      $region17: #{_lambda_.11} parent=11 // pred_check
        %p121 = pneg %p77
      $region18: #{_lambda_.11} parent=11 // pred_check_branch
        %123 = sbr.rel (%p121) target = $region20
      $region19: #{_lambda_.11} parent=11 // pred_region
        _
      $region20: #{_lambda_.11} parent=11 // pred_fallthru
        _
    $region12: #{_lambda_.11} parent=5 // pred_fallthru
      _
    %p124 = scmp.lt.s32.totalorder %s9, 6
    // Predicated region
    $region21: #{_lambda_.11} parent=5 // pred_check
      %p125 = pneg %p124
    $region22: #{_lambda_.11} parent=5 // pred_check_branch
      %127 = sbr.rel (%p125) target = $region24
    $region23: #{_lambda_.11} parent=5 // pred_region
      // Predicated region
      $region25: #{_lambda_.11} parent=23 // pred_check
        %p128 = pneg %p29
      $region26: #{_lambda_.11} parent=23 // pred_check_branch
        %130 = sbr.rel (%p128) target = $region28
      $region27: #{_lambda_.11} parent=23 // pred_region
        %p131 = scmp.lt.s32.totalorder %s9, 5
        %s132 = scalar_select %p131, %s9, 5
        %s133 = smul.addr %s132, 8
        %s134 = smul.addr %s133, 8
        %s135 = scalar_lea.vmem %s0, %s134
      $region28: #{_lambda_.11} parent=23 // pred_fallthru
        _
    $region24: #{_lambda_.11} parent=5 // pred_fallthru
      _
    %p136 = scmp.le.s32.totalorder 1, %s9
    %p137 = scmp.lt.s32.totalorder %s9, 7
    %p138 = pnand %p136, %p137
    %p139 = pneg %p138
    // Predicated region
    $region29: #{_lambda_.11} parent=5 // pred_check
      _
    $region30: #{_lambda_.11} parent=5 // pred_check_branch
      %141 = sbr.rel (%p138) target = $region32
    $region31: #{_lambda_.11} parent=5 // pred_region
      %s142 = ssub.s32 %s9, 1
      %p143 = scmp.lt.s32.totalorder %s14, 5
      %s144 = scalar_select %p143, %s14, 5
      %s145 = smul.addr %s144, 8
      %s146 = smul.addr %s145, 8
      %s147 = scalar_lea.vmem %s0, %s146
      %p148 = pneg %p35
      %p149 = pneg %p32
      %p150 = pneg %p56
      %p151 = pneg %p53
      %p152 = pneg %p77
      %p153 = pneg %p74
      %p154 = pneg %p103
      %p155 = pneg %p100
      %p156 = scmp.lt.s32.totalorder %s14, 5
      %s157 = scalar_select %p156, %s14, 5
      %s158 = smul.addr %s157, 8
      %s159 = smul.addr %s158, 8
      %s160 = scalar_lea.vmem %s3, %s159
      %p161 = scmp.lt.s32.totalorder %s14, 5
      %s162 = scalar_select %p161, %s14, 5
      %s163 = smul.addr %s162, 8
      %s164 = smul.addr %s163, 8
      %s165 = scalar_lea.vmem %s0, %s164
      %p166 = scmp.lt.s32.totalorder %s14, 5
      %s167 = scalar_select %p166, %s14, 5
      %s168 = smul.addr %s167, 8
      %s169 = smul.addr %s168, 8
      %s170 = scalar_lea.vmem %s3, %s169
      %v172 = vld [vmem:[%s165] sm:$0xff]
      %v173 = vld [vmem:[%s165 + $0x8] sm:$0xff]
      %v174 = vld [vmem:[%s165 + $0x10] sm:$0xff]
      %v175 = vld [vmem:[%s165 + $0x18] sm:$0xff]
      %v176 = vld [vmem:[%s165 + $0x20] sm:$0xff]
      %v177 = vld [vmem:[%s165 + $0x28] sm:$0xff]
      %v178 = vld [vmem:[%s165 + $0x30] sm:$0xff]
      %v179 = vld [vmem:[%s165 + $0x38] sm:$0xff]
      %v180 = vld [vmem:[%s1] sm:$0xf]
      %v181 = vld [vmem:[%s1 + $0x4] sm:$0xf]
      %v182 = vld [vmem:[%s2] sm:$0x1]
      %v183 = vpack.c.bf16 %v173, %v172
      %v184 = vpack.c.bf16 %v175, %v174
      %v185 = vpack.c.bf16 %v177, %v176
      %v186 = vpack.c.bf16 %v179, %v178
      %v188 = vperm.slane %v182, 0
      %v192 = vunpack.c.l.b16 %v180
      %v193 = vunpack.c.l.b16 %v181
      %v194 = vpack.c.b16 %v193, %v192
      %vm196 = vcmask 130048
      %v198 = vsel %vm196, %v183, 0
      %v201 = vsel %vm196, %v184, 0
      %v204 = vsel %vm196, %v185, 0
      %v207 = vsel %vm196, %v186, 0
      %209 = vmatpush.bf16.msra.mxu0 0
      %210 = vmatpush.bf16.msra.mxu0 0
      %211 = vmatpush.bf16.msra.mxu0 0
      %212 = vmatpush.bf16.msra.mxu0 0
      %213 = vmatpush.bf16.msra.mxu0 0
      %214 = vmatpush.bf16.msra.mxu0 0
      %215 = vmatpush.bf16.msra.mxu0 0
      %216 = vmatpush.bf16.msra.mxu0 %v194
      %217 = vmatmul.bf16.gmra.mxu0 %v198
      %v218 = vpop.f32.mrf.mxu0
      %v219 = vadd.f32 %v188, %v218
      %v220 = vpop.f32.mrf.mxu0
      %v221 = vadd.f32 %v188, %v220
      %222 = vmatmul.bf16.gmra.mxu0 %v201
      %v223 = vpop.f32.mrf.mxu0
      %v224 = vadd.f32 %v188, %v223
      %v225 = vpop.f32.mrf.mxu0
      %v226 = vadd.f32 %v188, %v225
      %227 = vmatmul.bf16.gmra.mxu0 %v204
      %v228 = vpop.f32.mrf.mxu0
      %v229 = vadd.f32 %v188, %v228
      %v230 = vpop.f32.mrf.mxu0
      %v231 = vadd.f32 %v188, %v230
      %232 = vmatmul.bf16.gmra.mxu0 %v207
      %v233 = vpop.f32.mrf.mxu0
      %v234 = vadd.f32 %v188, %v233
      %v235 = vpop.f32.mrf.mxu0
      %v236 = vadd.f32 %v188, %v235
      %237 = vdwg.mxu0
      %v246 = vrot.slane %v219, 1
      %v247 = vrot.slane %v221, 1
      %v248 = vrot.slane %v224, 1
      %v249 = vrot.slane %v226, 1
      %v250 = vrot.slane %v229, 1
      %v251 = vrot.slane %v231, 1
      %v252 = vrot.slane %v234, 1
      %v253 = vrot.slane %v236, 1
      %v254 = vrot.slane %v219, 2
      %v255 = vrot.slane %v221, 2
      %v256 = vrot.slane %v224, 2
      %v257 = vrot.slane %v226, 2
      %v258 = vrot.slane %v229, 2
      %v259 = vrot.slane %v231, 2
      %v260 = vrot.slane %v234, 2
      %v261 = vrot.slane %v236, 2
      %v262 = vrot.slane %v219, 3
      %v263 = vrot.slane %v221, 3
      %v264 = vrot.slane %v224, 3
      %v265 = vrot.slane %v226, 3
      %v266 = vrot.slane %v229, 3
      %v267 = vrot.slane %v231, 3
      %v268 = vrot.slane %v234, 3
      %v269 = vrot.slane %v236, 3
      %v270 = vrot.slane %v219, 4
      %v271 = vrot.slane %v221, 4
      %v272 = vrot.slane %v224, 4
      %v273 = vrot.slane %v226, 4
      %v274 = vrot.slane %v229, 4
      %v275 = vrot.slane %v231, 4
      %v276 = vrot.slane %v234, 4
      %v277 = vrot.slane %v236, 4
      %v278 = vrot.slane %v219, 5
      %v279 = vrot.slane %v221, 5
      %v280 = vrot.slane %v224, 5
      %v281 = vrot.slane %v226, 5
      %v282 = vrot.slane %v229, 5
      %v283 = vrot.slane %v231, 5
      %v284 = vrot.slane %v234, 5
      %v285 = vrot.slane %v236, 5
      %v286 = vrot.slane %v219, 6
      %v287 = vrot.slane %v221, 6
      %v288 = vrot.slane %v224, 6
      %v289 = vrot.slane %v226, 6
      %v290 = vrot.slane %v229, 6
      %v291 = vrot.slane %v231, 6
      %v292 = vrot.slane %v234, 6
      %v293 = vrot.slane %v236, 6
      %v294 = vrot.slane %v219, 7
      %v295 = vrot.slane %v221, 7
      %v296 = vrot.slane %v224, 7
      %v297 = vrot.slane %v226, 7
      %v298 = vrot.slane %v229, 7
      %v299 = vrot.slane %v231, 7
      %v300 = vrot.slane %v234, 7
      %v301 = vrot.slane %v236, 7
      %302 = vrot.lane.b32.xlu0 %v219, 126
      %v303 = vpop.permute.xlu0 %302
      %vm304 = vcmask 15360
      %v305 = vsel %vm304, %v219, 0
      %v307 = vsel %vm304, %v303, 0
      %309 = vmatpush.xpose.msra.mxu0 0.0
      %310 = vmatpush.xpose.msra.mxu0 0.0
      %311 = vmatpush.xpose.msra.mxu0 0.0
      %312 = vmatpush.xpose.msra.mxu0 0.0
      %313 = vmatpush.xpose.msra.mxu0 0.0
      %314 = vmatpush.xpose.msra.mxu0 0.0
      %315 = vmatpush.xpose.msra.mxu0 0.0
      %316 = vmatpush.xpose.msra.mxu0 0.0
      %317 = vmatpush.xpose.msra.mxu0 0.0
      %318 = vmatpush.xpose.msra.mxu0 0.0
      %319 = vmatpush.xpose.msra.mxu0 0.0
      %320 = vmatpush.xpose.msra.mxu0 0.0
      %321 = vmatpush.xpose.msra.mxu0 0.0
      %322 = vmatpush.xpose.msra.mxu0 0.0
      %323 = vmatpush.xpose.msra.mxu0 0.0
      %324 = vmatpush.xpose.msra.mxu0 %v307
      %325 = vmatmul.f32.gmra.mxu0 %v305
      %v326 = vpop.f32.mrf.mxu0
      %v327 = vadd.f32 0.0, %v326
      %328 = vdwg.mxu0
      %329 = vrot.lane.b32.xlu0 %v221, 126
      %v330 = vpop.permute.xlu0 %329
      %v331 = vsel %vm304, %v221, 0
      %v333 = vsel %vm304, %v330, 0
      %335 = vmatpush.xpose.msra.mxu0 0.0
      %336 = vmatpush.xpose.msra.mxu0 0.0
      %337 = vmatpush.xpose.msra.mxu0 0.0
      %338 = vmatpush.xpose.msra.mxu0 0.0
      %339 = vmatpush.xpose.msra.mxu0 0.0
      %340 = vmatpush.xpose.msra.mxu0 0.0
      %341 = vmatpush.xpose.msra.mxu0 0.0
      %342 = vmatpush.xpose.msra.mxu0 0.0
      %343 = vmatpush.xpose.msra.mxu0 0.0
      %344 = vmatpush.xpose.msra.mxu0 0.0
      %345 = vmatpush.xpose.msra.mxu0 0.0
      %346 = vmatpush.xpose.msra.mxu0 0.0
      %347 = vmatpush.xpose.msra.mxu0 0.0
      %348 = vmatpush.xpose.msra.mxu0 0.0
      %349 = vmatpush.xpose.msra.mxu0 0.0
      %350 = vmatpush.xpose.msra.mxu0 %v333
      %351 = vmatmul.f32.gmra.mxu0 %v331
      %v352 = vpop.f32.mrf.mxu0
      %v353 = vadd.f32 0.0, %v352
      %354 = vdwg.mxu0
      %355 = vrot.lane.b32.xlu0 %v224, 126
      %v356 = vpop.permute.xlu0 %355
      %v357 = vsel %vm304, %v224, 0
      %v359 = vsel %vm304, %v356, 0
      %361 = vmatpush.xpose.msra.mxu0 0.0
      %362 = vmatpush.xpose.msra.mxu0 0.0
      %363 = vmatpush.xpose.msra.mxu0 0.0
      %364 = vmatpush.xpose.msra.mxu0 0.0
      %365 = vmatpush.xpose.msra.mxu0 0.0
      %366 = vmatpush.xpose.msra.mxu0 0.0
      %367 = vmatpush.xpose.msra.mxu0 0.0
      %368 = vmatpush.xpose.msra.mxu0 0.0
      %369 = vmatpush.xpose.msra.mxu0 0.0
      %370 = vmatpush.xpose.msra.mxu0 0.0
      %371 = vmatpush.xpose.msra.mxu0 0.0
      %372 = vmatpush.xpose.msra.mxu0 0.0
      %373 = vmatpush.xpose.msra.mxu0 0.0
      %374 = vmatpush.xpose.msra.mxu0 0.0
      %375 = vmatpush.xpose.msra.mxu0 0.0
      %376 = vmatpush.xpose.msra.mxu0 %v359
      %377 = vmatmul.f32.gmra.mxu0 %v357
      %v378 = vpop.f32.mrf.mxu0
      %v379 = vadd.f32 0.0, %v378
      %380 = vdwg.mxu0
      %381 = vrot.lane.b32.xlu0 %v226, 126
      %v382 = vpop.permute.xlu0 %381
      %v383 = vsel %vm304, %v226, 0
      %v385 = vsel %vm304, %v382, 0
      %387 = vmatpush.xpose.msra.mxu0 0.0
      %388 = vmatpush.xpose.msra.mxu0 0.0
      %389 = vmatpush.xpose.msra.mxu0 0.0
      %390 = vmatpush.xpose.msra.mxu0 0.0
      %391 = vmatpush.xpose.msra.mxu0 0.0
      %392 = vmatpush.xpose.msra.mxu0 0.0
      %393 = vmatpush.xpose.msra.mxu0 0.0
      %394 = vmatpush.xpose.msra.mxu0 0.0
      %395 = vmatpush.xpose.msra.mxu0 0.0
      %396 = vmatpush.xpose.msra.mxu0 0.0
      %397 = vmatpush.xpose.msra.mxu0 0.0
      %398 = vmatpush.xpose.msra.mxu0 0.0
      %399 = vmatpush.xpose.msra.mxu0 0.0
      %400 = vmatpush.xpose.msra.mxu0 0.0
      %401 = vmatpush.xpose.msra.mxu0 0.0
      %402 = vmatpush.xpose.msra.mxu0 %v385
      %403 = vmatmul.f32.gmra.mxu0 %v383
      %v404 = vpop.f32.mrf.mxu0
      %v405 = vadd.f32 0.0, %v404
      %406 = vdwg.mxu0
      %407 = vrot.lane.b32.xlu0 %v229, 126
      %v408 = vpop.permute.xlu0 %407
      %v409 = vsel %vm304, %v229, 0
      %v411 = vsel %vm304, %v408, 0
      %413 = vmatpush.xpose.msra.mxu0 0.0
      %414 = vmatpush.xpose.msra.mxu0 0.0
      %415 = vmatpush.xpose.msra.mxu0 0.0
      %416 = vmatpush.xpose.msra.mxu0 0.0
      %417 = vmatpush.xpose.msra.mxu0 0.0
      %418 = vmatpush.xpose.msra.mxu0 0.0
      %419 = vmatpush.xpose.msra.mxu0 0.0
      %420 = vmatpush.xpose.msra.mxu0 0.0
      %421 = vmatpush.xpose.msra.mxu0 0.0
      %422 = vmatpush.xpose.msra.mxu0 0.0
      %423 = vmatpush.xpose.msra.mxu0 0.0
      %424 = vmatpush.xpose.msra.mxu0 0.0
      %425 = vmatpush.xpose.msra.mxu0 0.0
      %426 = vmatpush.xpose.msra.mxu0 0.0
      %427 = vmatpush.xpose.msra.mxu0 0.0
      %428 = vmatpush.xpose.msra.mxu0 %v411
      %429 = vmatmul.f32.gmra.mxu0 %v409
      %v430 = vpop.f32.mrf.mxu0
      %v431 = vadd.f32 0.0, %v430
      %432 = vdwg.mxu0
      %433 = vrot.lane.b32.xlu0 %v231, 126
      %v434 = vpop.permute.xlu0 %433
      %v435 = vsel %vm304, %v231, 0
      %v437 = vsel %vm304, %v434, 0
      %439 = vmatpush.xpose.msra.mxu0 0.0
      %440 = vmatpush.xpose.msra.mxu0 0.0
      %441 = vmatpush.xpose.msra.mxu0 0.0
      %442 = vmatpush.xpose.msra.mxu0 0.0
      %443 = vmatpush.xpose.msra.mxu0 0.0
      %444 = vmatpush.xpose.msra.mxu0 0.0
      %445 = vmatpush.xpose.msra.mxu0 0.0
      %446 = vmatpush.xpose.msra.mxu0 0.0
      %447 = vmatpush.xpose.msra.mxu0 0.0
      %448 = vmatpush.xpose.msra.mxu0 0.0
      %449 = vmatpush.xpose.msra.mxu0 0.0
      %450 = vmatpush.xpose.msra.mxu0 0.0
      %451 = vmatpush.xpose.msra.mxu0 0.0
      %452 = vmatpush.xpose.msra.mxu0 0.0
      %453 = vmatpush.xpose.msra.mxu0 0.0
      %454 = vmatpush.xpose.msra.mxu0 %v437
      %455 = vmatmul.f32.gmra.mxu0 %v435
      %v456 = vpop.f32.mrf.mxu0
      %v457 = vadd.f32 0.0, %v456
      %458 = vdwg.mxu0
      %459 = vrot.lane.b32.xlu0 %v234, 126
      %v460 = vpop.permute.xlu0 %459
      %v461 = vsel %vm304, %v234, 0
      %v463 = vsel %vm304, %v460, 0
      %465 = vmatpush.xpose.msra.mxu0 0.0
      %466 = vmatpush.xpose.msra.mxu0 0.0
      %467 = vmatpush.xpose.msra.mxu0 0.0
      %468 = vmatpush.xpose.msra.mxu0 0.0
      %469 = vmatpush.xpose.msra.mxu0 0.0
      %470 = vmatpush.xpose.msra.mxu0 0.0
      %471 = vmatpush.xpose.msra.mxu0 0.0
      %472 = vmatpush.xpose.msra.mxu0 0.0
      %473 = vmatpush.xpose.msra.mxu0 0.0
      %474 = vmatpush.xpose.msra.mxu0 0.0
      %475 = vmatpush.xpose.msra.mxu0 0.0
      %476 = vmatpush.xpose.msra.mxu0 0.0
      %477 = vmatpush.xpose.msra.mxu0 0.0
      %478 = vmatpush.xpose.msra.mxu0 0.0
      %479 = vmatpush.xpose.msra.mxu0 0.0
      %480 = vmatpush.xpose.msra.mxu0 %v463
      %481 = vmatmul.f32.gmra.mxu0 %v461
      %v482 = vpop.f32.mrf.mxu0
      %v483 = vadd.f32 0.0, %v482
      %484 = vdwg.mxu0
      %485 = vrot.lane.b32.xlu0 %v236, 126
      %v486 = vpop.permute.xlu0 %485
      %v487 = vsel %vm304, %v236, 0
      %v489 = vsel %vm304, %v486, 0
      %491 = vmatpush.xpose.msra.mxu0 0.0
      %492 = vmatpush.xpose.msra.mxu0 0.0
      %493 = vmatpush.xpose.msra.mxu0 0.0
      %494 = vmatpush.xpose.msra.mxu0 0.0
      %495 = vmatpush.xpose.msra.mxu0 0.0
      %496 = vmatpush.xpose.msra.mxu0 0.0
      %497 = vmatpush.xpose.msra.mxu0 0.0
      %498 = vmatpush.xpose.msra.mxu0 0.0
      %499 = vmatpush.xpose.msra.mxu0 0.0
      %500 = vmatpush.xpose.msra.mxu0 0.0
      %501 = vmatpush.xpose.msra.mxu0 0.0
      %502 = vmatpush.xpose.msra.mxu0 0.0
      %503 = vmatpush.xpose.msra.mxu0 0.0
      %504 = vmatpush.xpose.msra.mxu0 0.0
      %505 = vmatpush.xpose.msra.mxu0 0.0
      %506 = vmatpush.xpose.msra.mxu0 %v489
      %507 = vmatmul.f32.gmra.mxu0 %v487
      %v508 = vpop.f32.mrf.mxu0
      %v509 = vadd.f32 0.0, %v508
      %510 = vdwg.mxu0
      %v511 = vlaneseq
      %v512 = vshrl.u32 %v511, 7
      %v513 = vlaneseq
      %v514 = vand.u32 %v513, 127
      %vm515 = vcmp.eq.s32.totalorder %v512, %v514
      %v516 = vsel %vm515, -1e+30, 0.0
      %vm517 = vcmask 1041409
      %v518 = vsel %vm517, %v295, %v219
      %vm519 = vcmask 1042434
      %v520 = vsel %vm519, %v288, %v518
      %vm521 = vcmask 1043459
      %v522 = vsel %vm521, %v281, %v520
      %vm523 = vcmask 1044484
      %v524 = vsel %vm523, %v274, %v522
      %vm525 = vcmask 1045509
      %v526 = vsel %vm525, %v267, %v524
      %vm527 = vcmask 1046534
      %v528 = vsel %vm527, %v260, %v526
      %vm529 = vcmask 1047559
      %v530 = vsel %vm529, %v253, %v528
      %531 = vrot.lane.b32.xlu0 %v530, 126
      %v532 = vpop.permute.xlu0 %531
      %v533 = vsel %vm304, %v530, 0
      %v535 = vsel %vm304, %v532, 0
      %537 = vmatpush.xpose.msra.mxu0 0.0
      %538 = vmatpush.xpose.msra.mxu0 0.0
      %539 = vmatpush.xpose.msra.mxu0 0.0
      %540 = vmatpush.xpose.msra.mxu0 0.0
      %541 = vmatpush.xpose.msra.mxu0 0.0
      %542 = vmatpush.xpose.msra.mxu0 0.0
      %543 = vmatpush.xpose.msra.mxu0 0.0
      %544 = vmatpush.xpose.msra.mxu0 0.0
      %545 = vmatpush.xpose.msra.mxu0 0.0
      %546 = vmatpush.xpose.msra.mxu0 0.0
      %547 = vmatpush.xpose.msra.mxu0 0.0
      %548 = vmatpush.xpose.msra.mxu0 0.0
      %549 = vmatpush.xpose.msra.mxu0 0.0
      %550 = vmatpush.xpose.msra.mxu0 0.0
      %551 = vmatpush.xpose.msra.mxu0 0.0
      %552 = vmatpush.xpose.msra.mxu0 %v535
      %553 = vmatmul.f32.gmra.mxu0 %v533
      %v554 = vpop.f32.mrf.mxu0
      %v555 = vadd.f32 %v516, %v554
      %556 = vdwg.mxu0
      %v557 = vrot.slane %v247, 7
      %v558 = vsel %vm517, %v557, %v246
      %v559 = vrot.slane %v248, 6
      %v560 = vsel %vm519, %v559, %v558
      %v561 = vrot.slane %v249, 5
      %v562 = vsel %vm521, %v561, %v560
      %v563 = vrot.slane %v250, 4
      %v564 = vsel %vm523, %v563, %v562
      %v565 = vrot.slane %v251, 3
      %v566 = vsel %vm525, %v565, %v564
      %v567 = vrot.slane %v252, 2
      %v568 = vsel %vm527, %v567, %v566
      %v569 = vrot.slane %v253, 1
      %v570 = vsel %vm529, %v569, %v568
      %571 = vrot.lane.b32.xlu0 %v570, 126
      %v572 = vpop.permute.xlu0 %571
      %v573 = vsel %vm304, %v570, 0
      %v575 = vsel %vm304, %v572, 0
      %577 = vmatpush.xpose.msra.mxu0 0.0
      %578 = vmatpush.xpose.msra.mxu0 0.0
      %579 = vmatpush.xpose.msra.mxu0 0.0
      %580 = vmatpush.xpose.msra.mxu0 0.0
      %581 = vmatpush.xpose.msra.mxu0 0.0
      %582 = vmatpush.xpose.msra.mxu0 0.0
      %583 = vmatpush.xpose.msra.mxu0 0.0
      %584 = vmatpush.xpose.msra.mxu0 0.0
      %585 = vmatpush.xpose.msra.mxu0 0.0
      %586 = vmatpush.xpose.msra.mxu0 0.0
      %587 = vmatpush.xpose.msra.mxu0 0.0
      %588 = vmatpush.xpose.msra.mxu0 0.0
      %589 = vmatpush.xpose.msra.mxu0 0.0
      %590 = vmatpush.xpose.msra.mxu0 0.0
      %591 = vmatpush.xpose.msra.mxu0 0.0
      %592 = vmatpush.xpose.msra.mxu0 %v575
      %593 = vmatmul.f32.gmra.mxu0 %v573
      %v594 = vpop.f32.mrf.mxu0
      %v595 = vadd.f32 %v516, %v594
      %596 = vdwg.mxu0
      %v597 = vrot.slane %v255, 7
      %v598 = vsel %vm517, %v597, %v254
      %v599 = vrot.slane %v256, 6
      %v600 = vsel %vm519, %v599, %v598
      %v601 = vrot.slane %v257, 5
      %v602 = vsel %vm521, %v601, %v600
      %v603 = vrot.slane %v258, 4
      %v604 = vsel %vm523, %v603, %v602
      %v605 = vrot.slane %v259, 3
      %v606 = vsel %vm525, %v605, %v604
      %v607 = vrot.slane %v260, 2
      %v608 = vsel %vm527, %v607, %v606
      %v609 = vrot.slane %v261, 1
      %v610 = vsel %vm529, %v609, %v608
      %611 = vrot.lane.b32.xlu0 %v610, 126
      %v612 = vpop.permute.xlu0 %611
      %v613 = vsel %vm304, %v610, 0
      %v615 = vsel %vm304, %v612, 0
      %617 = vmatpush.xpose.msra.mxu0 0.0
      %618 = vmatpush.xpose.msra.mxu0 0.0
      %619 = vmatpush.xpose.msra.mxu0 0.0
      %620 = vmatpush.xpose.msra.mxu0 0.0
      %621 = vmatpush.xpose.msra.mxu0 0.0
      %622 = vmatpush.xpose.msra.mxu0 0.0
      %623 = vmatpush.xpose.msra.mxu0 0.0
      %624 = vmatpush.xpose.msra.mxu0 0.0
      %625 = vmatpush.xpose.msra.mxu0 0.0
      %626 = vmatpush.xpose.msra.mxu0 0.0
      %627 = vmatpush.xpose.msra.mxu0 0.0
      %628 = vmatpush.xpose.msra.mxu0 0.0
      %629 = vmatpush.xpose.msra.mxu0 0.0
      %630 = vmatpush.xpose.msra.mxu0 0.0
      %631 = vmatpush.xpose.msra.mxu0 0.0
      %632 = vmatpush.xpose.msra.mxu0 %v615
      %633 = vmatmul.f32.gmra.mxu0 %v613
      %v634 = vpop.f32.mrf.mxu0
      %v635 = vadd.f32 %v516, %v634
      %636 = vdwg.mxu0
      %v637 = vrot.slane %v263, 7
      %v638 = vsel %vm517, %v637, %v262
      %v639 = vrot.slane %v264, 6
      %v640 = vsel %vm519, %v639, %v638
      %v641 = vrot.slane %v265, 5
      %v642 = vsel %vm521, %v641, %v640
      %v643 = vrot.slane %v266, 4
      %v644 = vsel %vm523, %v643, %v642
      %v645 = vrot.slane %v267, 3
      %v646 = vsel %vm525, %v645, %v644
      %v647 = vrot.slane %v268, 2
      %v648 = vsel %vm527, %v647, %v646
      %v649 = vrot.slane %v269, 1
      %v650 = vsel %vm529, %v649, %v648
      %651 = vrot.lane.b32.xlu0 %v650, 126
      %v652 = vpop.permute.xlu0 %651
      %v653 = vsel %vm304, %v650, 0
      %v655 = vsel %vm304, %v652, 0
      %657 = vmatpush.xpose.msra.mxu0 0.0
      %658 = vmatpush.xpose.msra.mxu0 0.0
      %659 = vmatpush.xpose.msra.mxu0 0.0
      %660 = vmatpush.xpose.msra.mxu0 0.0
      %661 = vmatpush.xpose.msra.mxu0 0.0
      %662 = vmatpush.xpose.msra.mxu0 0.0
      %663 = vmatpush.xpose.msra.mxu0 0.0
      %664 = vmatpush.xpose.msra.mxu0 0.0
      %665 = vmatpush.xpose.msra.mxu0 0.0
      %666 = vmatpush.xpose.msra.mxu0 0.0
      %667 = vmatpush.xpose.msra.mxu0 0.0
      %668 = vmatpush.xpose.msra.mxu0 0.0
      %669 = vmatpush.xpose.msra.mxu0 0.0
      %670 = vmatpush.xpose.msra.mxu0 0.0
      %671 = vmatpush.xpose.msra.mxu0 0.0
      %672 = vmatpush.xpose.msra.mxu0 %v655
      %673 = vmatmul.f32.gmra.mxu0 %v653
      %v674 = vpop.f32.mrf.mxu0
      %v675 = vadd.f32 %v516, %v674
      %676 = vdwg.mxu0
      %v677 = vrot.slane %v271, 7
      %v678 = vsel %vm517, %v677, %v270
      %v679 = vrot.slane %v272, 6
      %v680 = vsel %vm519, %v679, %v678
      %v681 = vrot.slane %v273, 5
      %v682 = vsel %vm521, %v681, %v680
      %v683 = vrot.slane %v274, 4
      %v684 = vsel %vm523, %v683, %v682
      %v685 = vrot.slane %v275, 3
      %v686 = vsel %vm525, %v685, %v684
      %v687 = vrot.slane %v276, 2
      %v688 = vsel %vm527, %v687, %v686
      %v689 = vrot.slane %v277, 1
      %v690 = vsel %vm529, %v689, %v688
      %691 = vrot.lane.b32.xlu0 %v690, 126
      %v692 = vpop.permute.xlu0 %691
      %v693 = vsel %vm304, %v690, 0
      %v695 = vsel %vm304, %v692, 0
      %697 = vmatpush.xpose.msra.mxu0 0.0
      %698 = vmatpush.xpose.msra.mxu0 0.0
      %699 = vmatpush.xpose.msra.mxu0 0.0
      %700 = vmatpush.xpose.msra.mxu0 0.0
      %701 = vmatpush.xpose.msra.mxu0 0.0
      %702 = vmatpush.xpose.msra.mxu0 0.0
      %703 = vmatpush.xpose.msra.mxu0 0.0
      %704 = vmatpush.xpose.msra.mxu0 0.0
      %705 = vmatpush.xpose.msra.mxu0 0.0
      %706 = vmatpush.xpose.msra.mxu0 0.0
      %707 = vmatpush.xpose.msra.mxu0 0.0
      %708 = vmatpush.xpose.msra.mxu0 0.0
      %709 = vmatpush.xpose.msra.mxu0 0.0
      %710 = vmatpush.xpose.msra.mxu0 0.0
      %711 = vmatpush.xpose.msra.mxu0 0.0
      %712 = vmatpush.xpose.msra.mxu0 %v695
      %713 = vmatmul.f32.gmra.mxu0 %v693
      %v714 = vpop.f32.mrf.mxu0
      %v715 = vadd.f32 %v516, %v714
      %716 = vdwg.mxu0
      %v717 = vrot.slane %v279, 7
      %v718 = vsel %vm517, %v717, %v278
      %v719 = vrot.slane %v280, 6
      %v720 = vsel %vm519, %v719, %v718
      %v721 = vrot.slane %v281, 5
      %v722 = vsel %vm521, %v721, %v720
      %v723 = vrot.slane %v282, 4
      %v724 = vsel %vm523, %v723, %v722
      %v725 = vrot.slane %v283, 3
      %v726 = vsel %vm525, %v725, %v724
      %v727 = vrot.slane %v284, 2
      %v728 = vsel %vm527, %v727, %v726
      %v729 = vrot.slane %v285, 1
      %v730 = vsel %vm529, %v729, %v728
      %731 = vrot.lane.b32.xlu0 %v730, 126
      %v732 = vpop.permute.xlu0 %731
      %v733 = vsel %vm304, %v730, 0
      %v735 = vsel %vm304, %v732, 0
      %737 = vmatpush.xpose.msra.mxu0 0.0
      %738 = vmatpush.xpose.msra.mxu0 0.0
      %739 = vmatpush.xpose.msra.mxu0 0.0
      %740 = vmatpush.xpose.msra.mxu0 0.0
      %741 = vmatpush.xpose.msra.mxu0 0.0
      %742 = vmatpush.xpose.msra.mxu0 0.0
      %743 = vmatpush.xpose.msra.mxu0 0.0
      %744 = vmatpush.xpose.msra.mxu0 0.0
      %745 = vmatpush.xpose.msra.mxu0 0.0
      %746 = vmatpush.xpose.msra.mxu0 0.0
      %747 = vmatpush.xpose.msra.mxu0 0.0
      %748 = vmatpush.xpose.msra.mxu0 0.0
      %749 = vmatpush.xpose.msra.mxu0 0.0
      %750 = vmatpush.xpose.msra.mxu0 0.0
      %751 = vmatpush.xpose.msra.mxu0 0.0
      %752 = vmatpush.xpose.msra.mxu0 %v735
      %753 = vmatmul.f32.gmra.mxu0 %v733
      %v754 = vpop.f32.mrf.mxu0
      %v755 = vadd.f32 %v516, %v754
      %756 = vdwg.mxu0
      %v757 = vrot.slane %v287, 7
      %v758 = vsel %vm517, %v757, %v286
      %v759 = vrot.slane %v288, 6
      %v760 = vsel %vm519, %v759, %v758
      %v761 = vrot.slane %v289, 5
      %v762 = vsel %vm521, %v761, %v760
      %v763 = vrot.slane %v290, 4
      %v764 = vsel %vm523, %v763, %v762
      %v765 = vrot.slane %v291, 3
      %v766 = vsel %vm525, %v765, %v764
      %v767 = vrot.slane %v292, 2
      %v768 = vsel %vm527, %v767, %v766
      %v769 = vrot.slane %v293, 1
      %v770 = vsel %vm529, %v769, %v768
      %771 = vrot.lane.b32.xlu0 %v770, 126
      %v772 = vpop.permute.xlu0 %771
      %v773 = vsel %vm304, %v770, 0
      %v775 = vsel %vm304, %v772, 0
      %777 = vmatpush.xpose.msra.mxu0 0.0
      %778 = vmatpush.xpose.msra.mxu0 0.0
      %779 = vmatpush.xpose.msra.mxu0 0.0
      %780 = vmatpush.xpose.msra.mxu0 0.0
      %781 = vmatpush.xpose.msra.mxu0 0.0
      %782 = vmatpush.xpose.msra.mxu0 0.0
      %783 = vmatpush.xpose.msra.mxu0 0.0
      %784 = vmatpush.xpose.msra.mxu0 0.0
      %785 = vmatpush.xpose.msra.mxu0 0.0
      %786 = vmatpush.xpose.msra.mxu0 0.0
      %787 = vmatpush.xpose.msra.mxu0 0.0
      %788 = vmatpush.xpose.msra.mxu0 0.0
      %789 = vmatpush.xpose.msra.mxu0 0.0
      %790 = vmatpush.xpose.msra.mxu0 0.0
      %791 = vmatpush.xpose.msra.mxu0 0.0
      %792 = vmatpush.xpose.msra.mxu0 %v775
      %793 = vmatmul.f32.gmra.mxu0 %v773
      %v794 = vpop.f32.mrf.mxu0
      %v795 = vadd.f32 %v516, %v794
      %796 = vdwg.mxu0
      %v797 = vrot.slane %v295, 7
      %v798 = vsel %vm517, %v797, %v294
      %v799 = vrot.slane %v296, 6
      %v800 = vsel %vm519, %v799, %v798
      %v801 = vrot.slane %v297, 5
      %v802 = vsel %vm521, %v801, %v800
      %v803 = vrot.slane %v298, 4
      %v804 = vsel %vm523, %v803, %v802
      %v805 = vrot.slane %v299, 3
      %v806 = vsel %vm525, %v805, %v804
      %v807 = vrot.slane %v300, 2
      %v808 = vsel %vm527, %v807, %v806
      %v809 = vrot.slane %v301, 1
      %v810 = vsel %vm529, %v809, %v808
      %811 = vrot.lane.b32.xlu0 %v810, 126
      %v812 = vpop.permute.xlu0 %811
      %v813 = vsel %vm304, %v810, 0
      %v815 = vsel %vm304, %v812, 0
      %817 = vmatpush.xpose.msra.mxu0 0.0
      %818 = vmatpush.xpose.msra.mxu0 0.0
      %819 = vmatpush.xpose.msra.mxu0 0.0
      %820 = vmatpush.xpose.msra.mxu0 0.0
      %821 = vmatpush.xpose.msra.mxu0 0.0
      %822 = vmatpush.xpose.msra.mxu0 0.0
      %823 = vmatpush.xpose.msra.mxu0 0.0
      %824 = vmatpush.xpose.msra.mxu0 0.0
      %825 = vmatpush.xpose.msra.mxu0 0.0
      %826 = vmatpush.xpose.msra.mxu0 0.0
      %827 = vmatpush.xpose.msra.mxu0 0.0
      %828 = vmatpush.xpose.msra.mxu0 0.0
      %829 = vmatpush.xpose.msra.mxu0 0.0
      %830 = vmatpush.xpose.msra.mxu0 0.0
      %831 = vmatpush.xpose.msra.mxu0 0.0
      %832 = vmatpush.xpose.msra.mxu0 %v815
      %833 = vmatmul.f32.gmra.mxu0 %v813
      %v834 = vpop.f32.mrf.mxu0
      %v835 = vadd.f32 %v516, %v834
      %836 = vdwg.mxu0
      %vm837 = vcmask 64512
      %v838 = vsel %vm837, %v555, -inf
      %839 = vmax.xlane.f32.xlu0 %v838
      %v840 = vpop.xlane.xlu0 %839
      %v841 = vsel %vm837, %v595, -inf
      %842 = vmax.xlane.f32.xlu0 %v841
      %v843 = vpop.xlane.xlu0 %842
      %v844 = vsel %vm837, %v635, -inf
      %845 = vmax.xlane.f32.xlu0 %v844
      %v846 = vpop.xlane.xlu0 %845
      %v847 = vsel %vm837, %v675, -inf
      %848 = vmax.xlane.f32.xlu0 %v847
      %v849 = vpop.xlane.xlu0 %848
      %v850 = vsel %vm837, %v715, -inf
      %851 = vmax.xlane.f32.xlu0 %v850
      %v852 = vpop.xlane.xlu0 %851
      %v853 = vsel %vm837, %v755, -inf
      %854 = vmax.xlane.f32.xlu0 %v853
      %v855 = vpop.xlane.xlu0 %854
      %v856 = vsel %vm837, %v795, -inf
      %857 = vmax.xlane.f32.xlu0 %v856
      %v858 = vpop.xlane.xlu0 %857
      %v859 = vsel %vm837, %v835, -inf
      %860 = vmax.xlane.f32.xlu0 %v859
      %v861 = vpop.xlane.xlu0 %860
      %v862 = vsel %vm837, %v327, -inf
      %863 = vmax.xlane.f32.xlu0 %v862
      %v864 = vpop.xlane.xlu0 %863
      %v865 = vsel %vm837, %v353, -inf
      %866 = vmax.xlane.f32.xlu0 %v865
      %v867 = vpop.xlane.xlu0 %866
      %v868 = vsel %vm837, %v379, -inf
      %869 = vmax.xlane.f32.xlu0 %v868
      %v870 = vpop.xlane.xlu0 %869
      %v871 = vsel %vm837, %v405, -inf
      %872 = vmax.xlane.f32.xlu0 %v871
      %v873 = vpop.xlane.xlu0 %872
      %v874 = vsel %vm837, %v431, -inf
      %875 = vmax.xlane.f32.xlu0 %v874
      %v876 = vpop.xlane.xlu0 %875
      %v877 = vsel %vm837, %v457, -inf
      %878 = vmax.xlane.f32.xlu0 %v877
      %v879 = vpop.xlane.xlu0 %878
      %v880 = vsel %vm837, %v483, -inf
      %881 = vmax.xlane.f32.xlu0 %v880
      %v882 = vpop.xlane.xlu0 %881
      %v883 = vsel %vm837, %v509, -inf
      %884 = vmax.xlane.f32.xlu0 %v883
      %v885 = vpop.xlane.xlu0 %884
      %v894 = vperm.slane %v840, %v514
      %v895 = vperm.slane %v843, %v514
      %v896 = vperm.slane %v846, %v514
      %v897 = vperm.slane %v849, %v514
      %v898 = vperm.slane %v852, %v514
      %v899 = vperm.slane %v855, %v514
      %v900 = vperm.slane %v858, %v514
      %v901 = vperm.slane %v861, %v514
      %v902 = vsel %vm517, %v895, %v894
      %v903 = vsel %vm519, %v896, %v902
      %v904 = vsel %vm521, %v897, %v903
      %v905 = vsel %vm523, %v898, %v904
      %v906 = vsel %vm525, %v899, %v905
      %v907 = vsel %vm527, %v900, %v906
      %v908 = vsel %vm529, %v901, %v907
      %910 = vxpose.xlu0.b32.start [1/16] %v908, 128
      %911 = vxpose.xlu0.b32.cont [2/16] 0.0, 128
      %912 = vxpose.xlu0.b32.cont [3/16] 0.0, 128
      %913 = vxpose.xlu0.b32.cont [4/16] 0.0, 128
      %914 = vxpose.xlu0.b32.cont [5/16] 0.0, 128
      %915 = vxpose.xlu0.b32.cont [6/16] 0.0, 128
      %916 = vxpose.xlu0.b32.cont [7/16] 0.0, 128
      %917 = vxpose.xlu0.b32.cont [8/16] 0.0, 128
      %918 = vxpose.xlu0.b32.cont [9/16] 0.0, 128
      %919 = vxpose.xlu0.b32.cont [10/16] 0.0, 128
      %920 = vxpose.xlu0.b32.cont [11/16] 0.0, 128
      %921 = vxpose.xlu0.b32.cont [12/16] 0.0, 128
      %922 = vxpose.xlu0.b32.cont [13/16] 0.0, 128
      %923 = vxpose.xlu0.b32.cont [14/16] 0.0, 128
      %924 = vxpose.xlu0.b32.cont [15/16] 0.0, 128
      %925 = vxpose.xlu0.b32.end [16/16] 0.0, 128
      %v926 = vpop.trf.xlu0
      %v927 = vpop.trf.xlu0
      %v928 = vpop.trf.xlu0
      %v929 = vpop.trf.xlu0
      %v930 = vpop.trf.xlu0
      %v931 = vpop.trf.xlu0
      %v932 = vpop.trf.xlu0
      %v933 = vpop.trf.xlu0
      %v934 = vpop.trf.xlu0
      %v935 = vpop.trf.xlu0
      %v936 = vpop.trf.xlu0
      %v937 = vpop.trf.xlu0
      %v938 = vpop.trf.xlu0
      %v939 = vpop.trf.xlu0
      %v940 = vpop.trf.xlu0
      %v941 = vpop.trf.xlu0
      %v950 = vperm.slane %v864, %v514
      %v951 = vperm.slane %v867, %v514
      %v952 = vperm.slane %v870, %v514
      %v953 = vperm.slane %v873, %v514
      %v954 = vperm.slane %v876, %v514
      %v955 = vperm.slane %v879, %v514
      %v956 = vperm.slane %v882, %v514
      %v957 = vperm.slane %v885, %v514
      %v958 = vsel %vm517, %v951, %v950
      %v959 = vsel %vm519, %v952, %v958
      %v960 = vsel %vm521, %v953, %v959
      %v961 = vsel %vm523, %v954, %v960
      %v962 = vsel %vm525, %v955, %v961
      %v963 = vsel %vm527, %v956, %v962
      %v964 = vsel %vm529, %v957, %v963
      %v966 = vmax.f32 %v926, %v964
      %967 = vxpose.xlu0.b32.start [1/16] %v966, 128
      %968 = vxpose.xlu0.b32.cont [2/16] 0.0, 128
      %969 = vxpose.xlu0.b32.cont [3/16] 0.0, 128
      %970 = vxpose.xlu0.b32.cont [4/16] 0.0, 128
      %971 = vxpose.xlu0.b32.cont [5/16] 0.0, 128
      %972 = vxpose.xlu0.b32.cont [6/16] 0.0, 128
      %973 = vxpose.xlu0.b32.cont [7/16] 0.0, 128
      %974 = vxpose.xlu0.b32.cont [8/16] 0.0, 128
      %975 = vxpose.xlu0.b32.cont [9/16] 0.0, 128
      %976 = vxpose.xlu0.b32.cont [10/16] 0.0, 128
      %977 = vxpose.xlu0.b32.cont [11/16] 0.0, 128
      %978 = vxpose.xlu0.b32.cont [12/16] 0.0, 128
      %979 = vxpose.xlu0.b32.cont [13/16] 0.0, 128
      %980 = vxpose.xlu0.b32.cont [14/16] 0.0, 128
      %981 = vxpose.xlu0.b32.cont [15/16] 0.0, 128
      %982 = vxpose.xlu0.b32.end [16/16] 0.0, 128
      %v983 = vpop.trf.xlu0
      %v984 = vpop.trf.xlu0
      %v985 = vpop.trf.xlu0
      %v986 = vpop.trf.xlu0
      %v987 = vpop.trf.xlu0
      %v988 = vpop.trf.xlu0
      %v989 = vpop.trf.xlu0
      %v990 = vpop.trf.xlu0
      %v991 = vpop.trf.xlu0
      %v992 = vpop.trf.xlu0
      %v993 = vpop.trf.xlu0
      %v994 = vpop.trf.xlu0
      %v995 = vpop.trf.xlu0
      %v996 = vpop.trf.xlu0
      %v997 = vpop.trf.xlu0
      %v998 = vpop.trf.xlu0
      %v999 = vperm.slane %v983, 0
      %v1000 = vlaneseq
      %v1001 = vshrl.u32 %v1000, 7
      %1003 = vset.pattern.permute.xlu0 %v1001
      %1004 = vperm.xlu0 %1003, %v999
      %v1005 = vpop.permute.xlu0 %1004
      %v1006 = vperm.slane %v983, 1
      %v1007 = vlaneseq
      %v1008 = vshrl.u32 %v1007, 7
      %1010 = vset.pattern.permute.xlu0 %v1008
      %1011 = vperm.xlu0 %1010, %v1006
      %v1012 = vpop.permute.xlu0 %1011
      %v1013 = vperm.slane %v983, 2
      %v1014 = vlaneseq
      %v1015 = vshrl.u32 %v1014, 7
      %1017 = vset.pattern.permute.xlu0 %v1015
      %1018 = vperm.xlu0 %1017, %v1013
      %v1019 = vpop.permute.xlu0 %1018
      %v1020 = vperm.slane %v983, 3
      %v1021 = vlaneseq
      %v1022 = vshrl.u32 %v1021, 7
      %1024 = vset.pattern.permute.xlu0 %v1022
      %1025 = vperm.xlu0 %1024, %v1020
      %v1026 = vpop.permute.xlu0 %1025
      %v1027 = vperm.slane %v983, 4
      %v1028 = vlaneseq
      %v1029 = vshrl.u32 %v1028, 7
      %1031 = vset.pattern.permute.xlu0 %v1029
      %1032 = vperm.xlu0 %1031, %v1027
      %v1033 = vpop.permute.xlu0 %1032
      %v1034 = vperm.slane %v983, 5
      %v1035 = vlaneseq
      %v1036 = vshrl.u32 %v1035, 7
      %1038 = vset.pattern.permute.xlu0 %v1036
      %1039 = vperm.xlu0 %1038, %v1034
      %v1040 = vpop.permute.xlu0 %1039
      %v1041 = vperm.slane %v983, 6
      %v1042 = vlaneseq
      %v1043 = vshrl.u32 %v1042, 7
      %1045 = vset.pattern.permute.xlu0 %v1043
      %1046 = vperm.xlu0 %1045, %v1041
      %v1047 = vpop.permute.xlu0 %1046
      %v1048 = vperm.slane %v983, 7
      %v1049 = vlaneseq
      %v1050 = vshrl.u32 %v1049, 7
      %1052 = vset.pattern.permute.xlu0 %v1050
      %1053 = vperm.xlu0 %1052, %v1048
      %v1054 = vpop.permute.xlu0 %1053
      %v1055 = vsub.f32 %v555, %v1005
      %v1056 = vsub.f32 %v595, %v1012
      %v1057 = vsub.f32 %v635, %v1019
      %v1058 = vsub.f32 %v675, %v1026
      %v1059 = vsub.f32 %v715, %v1033
      %v1060 = vsub.f32 %v755, %v1040
      %v1061 = vsub.f32 %v795, %v1047
      %v1062 = vsub.f32 %v835, %v1054
      %v1063 = vmul.f32 %v1055, 1.442695
      %v1064 = vpow.pop %v1063
      %v1065 = vmul.f32 %v1056, 1.442695
      %v1066 = vpow.pop %v1065
      %v1067 = vmul.f32 %v1057, 1.442695
      %v1068 = vpow.pop %v1067
      %v1069 = vmul.f32 %v1058, 1.442695
      %v1070 = vpow.pop %v1069
      %v1071 = vmul.f32 %v1059, 1.442695
      %v1072 = vpow.pop %v1071
      %v1073 = vmul.f32 %v1060, 1.442695
      %v1074 = vpow.pop %v1073
      %v1075 = vmul.f32 %v1061, 1.442695
      %v1076 = vpow.pop %v1075
      %v1077 = vmul.f32 %v1062, 1.442695
      %v1078 = vpow.pop %v1077
      %v1079 = vperm.slane %v966, 0
      %v1080 = vlaneseq
      %v1081 = vshrl.u32 %v1080, 7
      %1083 = vset.pattern.permute.xlu0 %v1081
      %1084 = vperm.xlu0 %1083, %v1079
      %v1085 = vpop.permute.xlu0 %1084
      %v1086 = vperm.slane %v966, 1
      %v1087 = vlaneseq
      %v1088 = vshrl.u32 %v1087, 7
      %1090 = vset.pattern.permute.xlu0 %v1088
      %1091 = vperm.xlu0 %1090, %v1086
      %v1092 = vpop.permute.xlu0 %1091
      %v1093 = vperm.slane %v966, 2
      %v1094 = vlaneseq
      %v1095 = vshrl.u32 %v1094, 7
      %1097 = vset.pattern.permute.xlu0 %v1095
      %1098 = vperm.xlu0 %1097, %v1093
      %v1099 = vpop.permute.xlu0 %1098
      %v1100 = vperm.slane %v966, 3
      %v1101 = vlaneseq
      %v1102 = vshrl.u32 %v1101, 7
      %1104 = vset.pattern.permute.xlu0 %v1102
      %1105 = vperm.xlu0 %1104, %v1100
      %v1106 = vpop.permute.xlu0 %1105
      %v1107 = vperm.slane %v966, 4
      %v1108 = vlaneseq
      %v1109 = vshrl.u32 %v1108, 7
      %1111 = vset.pattern.permute.xlu0 %v1109
      %1112 = vperm.xlu0 %1111, %v1107
      %v1113 = vpop.permute.xlu0 %1112
      %v1114 = vperm.slane %v966, 5
      %v1115 = vlaneseq
      %v1116 = vshrl.u32 %v1115, 7
      %1118 = vset.pattern.permute.xlu0 %v1116
      %1119 = vperm.xlu0 %1118, %v1114
      %v1120 = vpop.permute.xlu0 %1119
      %v1121 = vperm.slane %v966, 6
      %v1122 = vlaneseq
      %v1123 = vshrl.u32 %v1122, 7
      %1125 = vset.pattern.permute.xlu0 %v1123
      %1126 = vperm.xlu0 %1125, %v1121
      %v1127 = vpop.permute.xlu0 %1126
      %v1128 = vperm.slane %v966, 7
      %v1129 = vlaneseq
      %v1130 = vshrl.u32 %v1129, 7
      %1132 = vset.pattern.permute.xlu0 %v1130
      %1133 = vperm.xlu0 %1132, %v1128
      %v1134 = vpop.permute.xlu0 %1133
      %v1135 = vsub.f32 %v327, %v1085
      %v1136 = vsub.f32 %v353, %v1092
      %v1137 = vsub.f32 %v379, %v1099
      %v1138 = vsub.f32 %v405, %v1106
      %v1139 = vsub.f32 %v431, %v1113
      %v1140 = vsub.f32 %v457, %v1120
      %v1141 = vsub.f32 %v483, %v1127
      %v1142 = vsub.f32 %v509, %v1134
      %v1143 = vmul.f32 %v1135, 1.442695
      %v1144 = vpow.pop %v1143
      %v1145 = vmul.f32 %v1136, 1.442695
      %v1146 = vpow.pop %v1145
      %v1147 = vmul.f32 %v1137, 1.442695
      %v1148 = vpow.pop %v1147
      %v1149 = vmul.f32 %v1138, 1.442695
      %v1150 = vpow.pop %v1149
      %v1151 = vmul.f32 %v1139, 1.442695
      %v1152 = vpow.pop %v1151
      %v1153 = vmul.f32 %v1140, 1.442695
      %v1154 = vpow.pop %v1153
      %v1155 = vmul.f32 %v1141, 1.442695
      %v1156 = vpow.pop %v1155
      %v1157 = vmul.f32 %v1142, 1.442695
      %v1158 = vpow.pop %v1157
      %v1159 = vsel %vm837, %v1064, 0.0
      %1160 = vadd.xlane.f32.xlu0 %v1159
      %v1161 = vpop.xlane.xlu0 %1160
      %v1162 = vsel %vm837, %v1066, 0.0
      %1163 = vadd.xlane.f32.xlu0 %v1162
      %v1164 = vpop.xlane.xlu0 %1163
      %v1165 = vsel %vm837, %v1068, 0.0
      %1166 = vadd.xlane.f32.xlu0 %v1165
      %v1167 = vpop.xlane.xlu0 %1166
      %v1168 = vsel %vm837, %v1070, 0.0
      %1169 = vadd.xlane.f32.xlu0 %v1168
      %v1170 = vpop.xlane.xlu0 %1169
      %v1171 = vsel %vm837, %v1072, 0.0
      %1172 = vadd.xlane.f32.xlu0 %v1171
      %v1173 = vpop.xlane.xlu0 %1172
      %v1174 = vsel %vm837, %v1074, 0.0
      %1175 = vadd.xlane.f32.xlu0 %v1174
      %v1176 = vpop.xlane.xlu0 %1175
      %v1177 = vsel %vm837, %v1076, 0.0
      %1178 = vadd.xlane.f32.xlu0 %v1177
      %v1179 = vpop.xlane.xlu0 %1178
      %v1180 = vsel %vm837, %v1078, 0.0
      %1181 = vadd.xlane.f32.xlu0 %v1180
      %v1182 = vpop.xlane.xlu0 %1181
      %v1191 = vperm.slane %v1161, %v514
      %v1192 = vperm.slane %v1164, %v514
      %v1193 = vperm.slane %v1167, %v514
      %v1194 = vperm.slane %v1170, %v514
      %v1195 = vperm.slane %v1173, %v514
      %v1196 = vperm.slane %v1176, %v514
      %v1197 = vperm.slane %v1179, %v514
      %v1198 = vperm.slane %v1182, %v514
      %v1199 = vsel %vm517, %v1192, %v1191
      %v1200 = vsel %vm519, %v1193, %v1199
      %v1201 = vsel %vm521, %v1194, %v1200
      %v1202 = vsel %vm523, %v1195, %v1201
      %v1203 = vsel %vm525, %v1196, %v1202
      %v1204 = vsel %vm527, %v1197, %v1203
      %v1205 = vsel %vm529, %v1198, %v1204
      %1207 = vxpose.xlu0.b32.start [1/16] %v1205, 128
      %1208 = vxpose.xlu0.b32.cont [2/16] 0.0, 128
      %1209 = vxpose.xlu0.b32.cont [3/16] 0.0, 128
      %1210 = vxpose.xlu0.b32.cont [4/16] 0.0, 128
      %1211 = vxpose.xlu0.b32.cont [5/16] 0.0, 128
      %1212 = vxpose.xlu0.b32.cont [6/16] 0.0, 128
      %1213 = vxpose.xlu0.b32.cont [7/16] 0.0, 128
      %1214 = vxpose.xlu0.b32.cont [8/16] 0.0, 128
      %1215 = vxpose.xlu0.b32.cont [9/16] 0.0, 128
      %1216 = vxpose.xlu0.b32.cont [10/16] 0.0, 128
      %1217 = vxpose.xlu0.b32.cont [11/16] 0.0, 128
      %1218 = vxpose.xlu0.b32.cont [12/16] 0.0, 128
      %1219 = vxpose.xlu0.b32.cont [13/16] 0.0, 128
      %1220 = vxpose.xlu0.b32.cont [14/16] 0.0, 128
      %1221 = vxpose.xlu0.b32.cont [15/16] 0.0, 128
      %1222 = vxpose.xlu0.b32.end [16/16] 0.0, 128
      %v1223 = vpop.trf.xlu0
      %v1224 = vpop.trf.xlu0
      %v1225 = vpop.trf.xlu0
      %v1226 = vpop.trf.xlu0
      %v1227 = vpop.trf.xlu0
      %v1228 = vpop.trf.xlu0
      %v1229 = vpop.trf.xlu0
      %v1230 = vpop.trf.xlu0
      %v1231 = vpop.trf.xlu0
      %v1232 = vpop.trf.xlu0
      %v1233 = vpop.trf.xlu0
      %v1234 = vpop.trf.xlu0
      %v1235 = vpop.trf.xlu0
      %v1236 = vpop.trf.xlu0
      %v1237 = vpop.trf.xlu0
      %v1238 = vpop.trf.xlu0
      %v1239 = vsel %vm837, %v1144, 0.0
      %1240 = vadd.xlane.f32.xlu0 %v1239
      %v1241 = vpop.xlane.xlu0 %1240
      %v1242 = vsel %vm837, %v1146, 0.0
      %1243 = vadd.xlane.f32.xlu0 %v1242
      %v1244 = vpop.xlane.xlu0 %1243
      %v1245 = vsel %vm837, %v1148, 0.0
      %1246 = vadd.xlane.f32.xlu0 %v1245
      %v1247 = vpop.xlane.xlu0 %1246
      %v1248 = vsel %vm837, %v1150, 0.0
      %1249 = vadd.xlane.f32.xlu0 %v1248
      %v1250 = vpop.xlane.xlu0 %1249
      %v1251 = vsel %vm837, %v1152, 0.0
      %1252 = vadd.xlane.f32.xlu0 %v1251
      %v1253 = vpop.xlane.xlu0 %1252
      %v1254 = vsel %vm837, %v1154, 0.0
      %1255 = vadd.xlane.f32.xlu0 %v1254
      %v1256 = vpop.xlane.xlu0 %1255
      %v1257 = vsel %vm837, %v1156, 0.0
      %1258 = vadd.xlane.f32.xlu0 %v1257
      %v1259 = vpop.xlane.xlu0 %1258
      %v1260 = vsel %vm837, %v1158, 0.0
      %1261 = vadd.xlane.f32.xlu0 %v1260
      %v1262 = vpop.xlane.xlu0 %1261
      %v1271 = vperm.slane %v1241, %v514
      %v1272 = vperm.slane %v1244, %v514
      %v1273 = vperm.slane %v1247, %v514
      %v1274 = vperm.slane %v1250, %v514
      %v1275 = vperm.slane %v1253, %v514
      %v1276 = vperm.slane %v1256, %v514
      %v1277 = vperm.slane %v1259, %v514
      %v1278 = vperm.slane %v1262, %v514
      %v1279 = vsel %vm517, %v1272, %v1271
      %v1280 = vsel %vm519, %v1273, %v1279
      %v1281 = vsel %vm521, %v1274, %v1280
      %v1282 = vsel %vm523, %v1275, %v1281
      %v1283 = vsel %vm525, %v1276, %v1282
      %v1284 = vsel %vm527, %v1277, %v1283
      %v1285 = vsel %vm529, %v1278, %v1284
      %v1287 = vadd.f32 %v1223, %v1285
      %v1288 = vrcp.pop %v1287
      %1289 = vxpose.xlu0.b32.start [1/16] %v1288, 128
      %1290 = vxpose.xlu0.b32.cont [2/16] 0.0, 128
      %1291 = vxpose.xlu0.b32.cont [3/16] 0.0, 128
      %1292 = vxpose.xlu0.b32.cont [4/16] 0.0, 128
      %1293 = vxpose.xlu0.b32.cont [5/16] 0.0, 128
      %1294 = vxpose.xlu0.b32.cont [6/16] 0.0, 128
      %1295 = vxpose.xlu0.b32.cont [7/16] 0.0, 128
      %1296 = vxpose.xlu0.b32.cont [8/16] 0.0, 128
      %1297 = vxpose.xlu0.b32.cont [9/16] 0.0, 128
      %1298 = vxpose.xlu0.b32.cont [10/16] 0.0, 128
      %1299 = vxpose.xlu0.b32.cont [11/16] 0.0, 128
      %1300 = vxpose.xlu0.b32.cont [12/16] 0.0, 128
      %1301 = vxpose.xlu0.b32.cont [13/16] 0.0, 128
      %1302 = vxpose.xlu0.b32.cont [14/16] 0.0, 128
      %1303 = vxpose.xlu0.b32.cont [15/16] 0.0, 128
      %1304 = vxpose.xlu0.b32.end [16/16] 0.0, 128
      %v1305 = vpop.trf.xlu0
      %v1306 = vpop.trf.xlu0
      %v1307 = vpop.trf.xlu0
      %v1308 = vpop.trf.xlu0
      %v1309 = vpop.trf.xlu0
      %v1310 = vpop.trf.xlu0
      %v1311 = vpop.trf.xlu0
      %v1312 = vpop.trf.xlu0
      %v1313 = vpop.trf.xlu0
      %v1314 = vpop.trf.xlu0
      %v1315 = vpop.trf.xlu0
      %v1316 = vpop.trf.xlu0
      %v1317 = vpop.trf.xlu0
      %v1318 = vpop.trf.xlu0
      %v1319 = vpop.trf.xlu0
      %v1320 = vpop.trf.xlu0
      %v1321 = vperm.slane %v1305, 0
      %v1322 = vlaneseq
      %v1323 = vshrl.u32 %v1322, 7
      %1325 = vset.pattern.permute.xlu0 %v1323
      %1326 = vperm.xlu0 %1325, %v1321
      %v1327 = vpop.permute.xlu0 %1326
      %v1328 = vperm.slane %v1305, 1
      %v1329 = vlaneseq
      %v1330 = vshrl.u32 %v1329, 7
      %1332 = vset.pattern.permute.xlu0 %v1330
      %1333 = vperm.xlu0 %1332, %v1328
      %v1334 = vpop.permute.xlu0 %1333
      %v1335 = vperm.slane %v1305, 2
      %v1336 = vlaneseq
      %v1337 = vshrl.u32 %v1336, 7
      %1339 = vset.pattern.permute.xlu0 %v1337
      %1340 = vperm.xlu0 %1339, %v1335
      %v1341 = vpop.permute.xlu0 %1340
      %v1342 = vperm.slane %v1305, 3
      %v1343 = vlaneseq
      %v1344 = vshrl.u32 %v1343, 7
      %1346 = vset.pattern.permute.xlu0 %v1344
      %1347 = vperm.xlu0 %1346, %v1342
      %v1348 = vpop.permute.xlu0 %1347
      %v1349 = vperm.slane %v1305, 4
      %v1350 = vlaneseq
      %v1351 = vshrl.u32 %v1350, 7
      %1353 = vset.pattern.permute.xlu0 %v1351
      %1354 = vperm.xlu0 %1353, %v1349
      %v1355 = vpop.permute.xlu0 %1354
      %v1356 = vperm.slane %v1305, 5
      %v1357 = vlaneseq
      %v1358 = vshrl.u32 %v1357, 7
      %1360 = vset.pattern.permute.xlu0 %v1358
      %1361 = vperm.xlu0 %1360, %v1356
      %v1362 = vpop.permute.xlu0 %1361
      %v1363 = vperm.slane %v1305, 6
      %v1364 = vlaneseq
      %v1365 = vshrl.u32 %v1364, 7
      %1367 = vset.pattern.permute.xlu0 %v1365
      %1368 = vperm.xlu0 %1367, %v1363
      %v1369 = vpop.permute.xlu0 %1368
      %v1370 = vperm.slane %v1305, 7
      %v1371 = vlaneseq
      %v1372 = vshrl.u32 %v1371, 7
      %1374 = vset.pattern.permute.xlu0 %v1372
      %1375 = vperm.xlu0 %1374, %v1370
      %v1376 = vpop.permute.xlu0 %1375
      %v1377 = vmul.f32 %v1064, %v1327
      %v1378 = vmul.f32 %v1066, %v1334
      %v1379 = vmul.f32 %v1068, %v1341
      %v1380 = vmul.f32 %v1070, %v1348
      %v1381 = vmul.f32 %v1072, %v1355
      %v1382 = vmul.f32 %v1074, %v1362
      %v1383 = vmul.f32 %v1076, %v1369
      %v1384 = vmul.f32 %v1078, %v1376
      %v1385 = vperm.slane %v1288, 0
      %v1386 = vlaneseq
      %v1387 = vshrl.u32 %v1386, 7
      %1389 = vset.pattern.permute.xlu0 %v1387
      %1390 = vperm.xlu0 %1389, %v1385
      %v1391 = vpop.permute.xlu0 %1390
      %v1392 = vperm.slane %v1288, 1
      %v1393 = vlaneseq
      %v1394 = vshrl.u32 %v1393, 7
      %1396 = vset.pattern.permute.xlu0 %v1394
      %1397 = vperm.xlu0 %1396, %v1392
      %v1398 = vpop.permute.xlu0 %1397
      %v1399 = vperm.slane %v1288, 2
      %v1400 = vlaneseq
      %v1401 = vshrl.u32 %v1400, 7
      %1403 = vset.pattern.permute.xlu0 %v1401
      %1404 = vperm.xlu0 %1403, %v1399
      %v1405 = vpop.permute.xlu0 %1404
      %v1406 = vperm.slane %v1288, 3
      %v1407 = vlaneseq
      %v1408 = vshrl.u32 %v1407, 7
      %1410 = vset.pattern.permute.xlu0 %v1408
      %1411 = vperm.xlu0 %1410, %v1406
      %v1412 = vpop.permute.xlu0 %1411
      %v1413 = vperm.slane %v1288, 4
      %v1414 = vlaneseq
      %v1415 = vshrl.u32 %v1414, 7
      %1417 = vset.pattern.permute.xlu0 %v1415
      %1418 = vperm.xlu0 %1417, %v1413
      %v1419 = vpop.permute.xlu0 %1418
      %v1420 = vperm.slane %v1288, 5
      %v1421 = vlaneseq
      %v1422 = vshrl.u32 %v1421, 7
      %1424 = vset.pattern.permute.xlu0 %v1422
      %1425 = vperm.xlu0 %1424, %v1420
      %v1426 = vpop.permute.xlu0 %1425
      %v1427 = vperm.slane %v1288, 6
      %v1428 = vlaneseq
      %v1429 = vshrl.u32 %v1428, 7
      %1431 = vset.pattern.permute.xlu0 %v1429
      %1432 = vperm.xlu0 %1431, %v1427
      %v1433 = vpop.permute.xlu0 %1432
      %v1434 = vperm.slane %v1288, 7
      %v1435 = vlaneseq
      %v1436 = vshrl.u32 %v1435, 7
      %1438 = vset.pattern.permute.xlu0 %v1436
      %1439 = vperm.xlu0 %1438, %v1434
      %v1440 = vpop.permute.xlu0 %1439
      %v1441 = vmul.f32 %v1144, %v1391
      %v1442 = vmul.f32 %v1146, %v1398
      %v1443 = vmul.f32 %v1148, %v1405
      %v1444 = vmul.f32 %v1150, %v1412
      %v1445 = vmul.f32 %v1152, %v1419
      %v1446 = vmul.f32 %v1154, %v1426
      %v1447 = vmul.f32 %v1156, %v1433
      %v1448 = vmul.f32 %v1158, %v1440
      %1449 = vrot.lane.b32.xlu0 %v530, 124
      %v1450 = vpop.permute.xlu0 %1449
      %v1453 = vsel %vm837, %v1377, 0
      %1455 = vmatpush.msra.mxu0 0.0
      %1456 = vmatpush.msra.mxu0 0.0
      %1457 = vmatpush.msra.mxu0 0.0
      %1458 = vmatpush.msra.mxu0 0.0
      %1459 = vmatpush.msra.mxu0 0.0
      %1460 = vmatpush.msra.mxu0 0.0
      %1461 = vmatpush.msra.mxu0 0.0
      %1462 = vmatpush.msra.mxu0 0.0
      %1463 = vmatpush.msra.mxu0 0.0
      %1464 = vmatpush.msra.mxu0 0.0
      %1465 = vmatpush.msra.mxu0 0.0
      %1466 = vmatpush.msra.mxu0 0.0
      %1467 = vmatpush.msra.mxu0 0.0
      %1468 = vmatpush.msra.mxu0 0.0
      %1469 = vmatpush.msra.mxu0 0.0
      %1470 = vmatpush.msra.mxu0 %v1450
      %1471 = vmatmul.f32.gmra.mxu0 %v1453
      %v1472 = vpop.f32.mrf.mxu0
      %v1473 = vadd.f32 0.0, %v1472
      %1474 = vdwg.mxu0
      %1475 = vrot.lane.b32.xlu0 %v570, 124
      %v1476 = vpop.permute.xlu0 %1475
      %v1479 = vsel %vm837, %v1378, 0
      %1481 = vmatpush.msra.mxu0 0.0
      %1482 = vmatpush.msra.mxu0 0.0
      %1483 = vmatpush.msra.mxu0 0.0
      %1484 = vmatpush.msra.mxu0 0.0
      %1485 = vmatpush.msra.mxu0 0.0
      %1486 = vmatpush.msra.mxu0 0.0
      %1487 = vmatpush.msra.mxu0 0.0
      %1488 = vmatpush.msra.mxu0 0.0
      %1489 = vmatpush.msra.mxu0 0.0
      %1490 = vmatpush.msra.mxu0 0.0
      %1491 = vmatpush.msra.mxu0 0.0
      %1492 = vmatpush.msra.mxu0 0.0
      %1493 = vmatpush.msra.mxu0 0.0
      %1494 = vmatpush.msra.mxu0 0.0
      %1495 = vmatpush.msra.mxu0 0.0
      %1496 = vmatpush.msra.mxu0 %v1476
      %1497 = vmatmul.f32.gmra.mxu0 %v1479
      %v1498 = vpop.f32.mrf.mxu0
      %v1499 = vadd.f32 0.0, %v1498
      %1500 = vdwg.mxu0
      %1501 = vrot.lane.b32.xlu0 %v610, 124
      %v1502 = vpop.permute.xlu0 %1501
      %v1505 = vsel %vm837, %v1379, 0
      %1507 = vmatpush.msra.mxu0 0.0
      %1508 = vmatpush.msra.mxu0 0.0
      %1509 = vmatpush.msra.mxu0 0.0
      %1510 = vmatpush.msra.mxu0 0.0
      %1511 = vmatpush.msra.mxu0 0.0
      %1512 = vmatpush.msra.mxu0 0.0
      %1513 = vmatpush.msra.mxu0 0.0
      %1514 = vmatpush.msra.mxu0 0.0
      %1515 = vmatpush.msra.mxu0 0.0
      %1516 = vmatpush.msra.mxu0 0.0
      %1517 = vmatpush.msra.mxu0 0.0
      %1518 = vmatpush.msra.mxu0 0.0
      %1519 = vmatpush.msra.mxu0 0.0
      %1520 = vmatpush.msra.mxu0 0.0
      %1521 = vmatpush.msra.mxu0 0.0
      %1522 = vmatpush.msra.mxu0 %v1502
      %1523 = vmatmul.f32.gmra.mxu0 %v1505
      %v1524 = vpop.f32.mrf.mxu0
      %v1525 = vadd.f32 0.0, %v1524
      %1526 = vdwg.mxu0
      %1527 = vrot.lane.b32.xlu0 %v650, 124
      %v1528 = vpop.permute.xlu0 %1527
      %v1531 = vsel %vm837, %v1380, 0
      %1533 = vmatpush.msra.mxu0 0.0
      %1534 = vmatpush.msra.mxu0 0.0
      %1535 = vmatpush.msra.mxu0 0.0
      %1536 = vmatpush.msra.mxu0 0.0
      %1537 = vmatpush.msra.mxu0 0.0
      %1538 = vmatpush.msra.mxu0 0.0
      %1539 = vmatpush.msra.mxu0 0.0
      %1540 = vmatpush.msra.mxu0 0.0
      %1541 = vmatpush.msra.mxu0 0.0
      %1542 = vmatpush.msra.mxu0 0.0
      %1543 = vmatpush.msra.mxu0 0.0
      %1544 = vmatpush.msra.mxu0 0.0
      %1545 = vmatpush.msra.mxu0 0.0
      %1546 = vmatpush.msra.mxu0 0.0
      %1547 = vmatpush.msra.mxu0 0.0
      %1548 = vmatpush.msra.mxu0 %v1528
      %1549 = vmatmul.f32.gmra.mxu0 %v1531
      %v1550 = vpop.f32.mrf.mxu0
      %v1551 = vadd.f32 0.0, %v1550
      %1552 = vdwg.mxu0
      %1553 = vrot.lane.b32.xlu0 %v690, 124
      %v1554 = vpop.permute.xlu0 %1553
      %v1557 = vsel %vm837, %v1381, 0
      %1559 = vmatpush.msra.mxu0 0.0
      %1560 = vmatpush.msra.mxu0 0.0
      %1561 = vmatpush.msra.mxu0 0.0
      %1562 = vmatpush.msra.mxu0 0.0
      %1563 = vmatpush.msra.mxu0 0.0
      %1564 = vmatpush.msra.mxu0 0.0
      %1565 = vmatpush.msra.mxu0 0.0
      %1566 = vmatpush.msra.mxu0 0.0
      %1567 = vmatpush.msra.mxu0 0.0
      %1568 = vmatpush.msra.mxu0 0.0
      %1569 = vmatpush.msra.mxu0 0.0
      %1570 = vmatpush.msra.mxu0 0.0
      %1571 = vmatpush.msra.mxu0 0.0
      %1572 = vmatpush.msra.mxu0 0.0
      %1573 = vmatpush.msra.mxu0 0.0
      %1574 = vmatpush.msra.mxu0 %v1554
      %1575 = vmatmul.f32.gmra.mxu0 %v1557
      %v1576 = vpop.f32.mrf.mxu0
      %v1577 = vadd.f32 0.0, %v1576
      %1578 = vdwg.mxu0
      %1579 = vrot.lane.b32.xlu0 %v730, 124
      %v1580 = vpop.permute.xlu0 %1579
      %v1583 = vsel %vm837, %v1382, 0
      %1585 = vmatpush.msra.mxu0 0.0
      %1586 = vmatpush.msra.mxu0 0.0
      %1587 = vmatpush.msra.mxu0 0.0
      %1588 = vmatpush.msra.mxu0 0.0
      %1589 = vmatpush.msra.mxu0 0.0
      %1590 = vmatpush.msra.mxu0 0.0
      %1591 = vmatpush.msra.mxu0 0.0
      %1592 = vmatpush.msra.mxu0 0.0
      %1593 = vmatpush.msra.mxu0 0.0
      %1594 = vmatpush.msra.mxu0 0.0
      %1595 = vmatpush.msra.mxu0 0.0
      %1596 = vmatpush.msra.mxu0 0.0
      %1597 = vmatpush.msra.mxu0 0.0
      %1598 = vmatpush.msra.mxu0 0.0
      %1599 = vmatpush.msra.mxu0 0.0
      %1600 = vmatpush.msra.mxu0 %v1580
      %1601 = vmatmul.f32.gmra.mxu0 %v1583
      %v1602 = vpop.f32.mrf.mxu0
      %v1603 = vadd.f32 0.0, %v1602
      %1604 = vdwg.mxu0
      %1605 = vrot.lane.b32.xlu0 %v770, 124
      %v1606 = vpop.permute.xlu0 %1605
      %v1609 = vsel %vm837, %v1383, 0
      %1611 = vmatpush.msra.mxu0 0.0
      %1612 = vmatpush.msra.mxu0 0.0
      %1613 = vmatpush.msra.mxu0 0.0
      %1614 = vmatpush.msra.mxu0 0.0
      %1615 = vmatpush.msra.mxu0 0.0
      %1616 = vmatpush.msra.mxu0 0.0
      %1617 = vmatpush.msra.mxu0 0.0
      %1618 = vmatpush.msra.mxu0 0.0
      %1619 = vmatpush.msra.mxu0 0.0
      %1620 = vmatpush.msra.mxu0 0.0
      %1621 = vmatpush.msra.mxu0 0.0
      %1622 = vmatpush.msra.mxu0 0.0
      %1623 = vmatpush.msra.mxu0 0.0
      %1624 = vmatpush.msra.mxu0 0.0
      %1625 = vmatpush.msra.mxu0 0.0
      %1626 = vmatpush.msra.mxu0 %v1606
      %1627 = vmatmul.f32.gmra.mxu0 %v1609
      %v1628 = vpop.f32.mrf.mxu0
      %v1629 = vadd.f32 0.0, %v1628
      %1630 = vdwg.mxu0
      %1631 = vrot.lane.b32.xlu0 %v810, 124
      %v1632 = vpop.permute.xlu0 %1631
      %v1635 = vsel %vm837, %v1384, 0
      %1637 = vmatpush.msra.mxu0 0.0
      %1638 = vmatpush.msra.mxu0 0.0
      %1639 = vmatpush.msra.mxu0 0.0
      %1640 = vmatpush.msra.mxu0 0.0
      %1641 = vmatpush.msra.mxu0 0.0
      %1642 = vmatpush.msra.mxu0 0.0
      %1643 = vmatpush.msra.mxu0 0.0
      %1644 = vmatpush.msra.mxu0 0.0
      %1645 = vmatpush.msra.mxu0 0.0
      %1646 = vmatpush.msra.mxu0 0.0
      %1647 = vmatpush.msra.mxu0 0.0
      %1648 = vmatpush.msra.mxu0 0.0
      %1649 = vmatpush.msra.mxu0 0.0
      %1650 = vmatpush.msra.mxu0 0.0
      %1651 = vmatpush.msra.mxu0 0.0
      %1652 = vmatpush.msra.mxu0 %v1632
      %1653 = vmatmul.f32.gmra.mxu0 %v1635
      %v1654 = vpop.f32.mrf.mxu0
      %v1655 = vadd.f32 0.0, %v1654
      %1656 = vdwg.mxu0
      %1657 = vrot.lane.b32.xlu0 %v219, 124
      %v1658 = vpop.permute.xlu0 %1657
      %v1661 = vsel %vm837, %v1441, 0
      %1663 = vmatpush.msra.mxu0 0.0
      %1664 = vmatpush.msra.mxu0 0.0
      %1665 = vmatpush.msra.mxu0 0.0
      %1666 = vmatpush.msra.mxu0 0.0
      %1667 = vmatpush.msra.mxu0 0.0
      %1668 = vmatpush.msra.mxu0 0.0
      %1669 = vmatpush.msra.mxu0 0.0
      %1670 = vmatpush.msra.mxu0 0.0
      %1671 = vmatpush.msra.mxu0 0.0
      %1672 = vmatpush.msra.mxu0 0.0
      %1673 = vmatpush.msra.mxu0 0.0
      %1674 = vmatpush.msra.mxu0 0.0
      %1675 = vmatpush.msra.mxu0 0.0
      %1676 = vmatpush.msra.mxu0 0.0
      %1677 = vmatpush.msra.mxu0 0.0
      %1678 = vmatpush.msra.mxu0 %v1658
      %1679 = vmatmul.f32.gmra.mxu0 %v1661
      %v1680 = vpop.f32.mrf.mxu0
      %v1681 = vadd.f32 0.0, %v1680
      %1682 = vdwg.mxu0
      %1683 = vrot.lane.b32.xlu0 %v221, 124
      %v1684 = vpop.permute.xlu0 %1683
      %v1687 = vsel %vm837, %v1442, 0
      %1689 = vmatpush.msra.mxu0 0.0
      %1690 = vmatpush.msra.mxu0 0.0
      %1691 = vmatpush.msra.mxu0 0.0
      %1692 = vmatpush.msra.mxu0 0.0
      %1693 = vmatpush.msra.mxu0 0.0
      %1694 = vmatpush.msra.mxu0 0.0
      %1695 = vmatpush.msra.mxu0 0.0
      %1696 = vmatpush.msra.mxu0 0.0
      %1697 = vmatpush.msra.mxu0 0.0
      %1698 = vmatpush.msra.mxu0 0.0
      %1699 = vmatpush.msra.mxu0 0.0
      %1700 = vmatpush.msra.mxu0 0.0
      %1701 = vmatpush.msra.mxu0 0.0
      %1702 = vmatpush.msra.mxu0 0.0
      %1703 = vmatpush.msra.mxu0 0.0
      %1704 = vmatpush.msra.mxu0 %v1684
      %1705 = vmatmul.f32.gmra.mxu0 %v1687
      %v1706 = vpop.f32.mrf.mxu0
      %v1707 = vadd.f32 0.0, %v1706
      %1708 = vdwg.mxu0
      %1709 = vrot.lane.b32.xlu0 %v224, 124
      %v1710 = vpop.permute.xlu0 %1709
      %v1713 = vsel %vm837, %v1443, 0
      %1715 = vmatpush.msra.mxu0 0.0
      %1716 = vmatpush.msra.mxu0 0.0
      %1717 = vmatpush.msra.mxu0 0.0
      %1718 = vmatpush.msra.mxu0 0.0
      %1719 = vmatpush.msra.mxu0 0.0
      %1720 = vmatpush.msra.mxu0 0.0
      %1721 = vmatpush.msra.mxu0 0.0
      %1722 = vmatpush.msra.mxu0 0.0
      %1723 = vmatpush.msra.mxu0 0.0
      %1724 = vmatpush.msra.mxu0 0.0
      %1725 = vmatpush.msra.mxu0 0.0
      %1726 = vmatpush.msra.mxu0 0.0
      %1727 = vmatpush.msra.mxu0 0.0
      %1728 = vmatpush.msra.mxu0 0.0
      %1729 = vmatpush.msra.mxu0 0.0
      %1730 = vmatpush.msra.mxu0 %v1710
      %1731 = vmatmul.f32.gmra.mxu0 %v1713
      %v1732 = vpop.f32.mrf.mxu0
      %v1733 = vadd.f32 0.0, %v1732
      %1734 = vdwg.mxu0
      %1735 = vrot.lane.b32.xlu0 %v226, 124
      %v1736 = vpop.permute.xlu0 %1735
      %v1739 = vsel %vm837, %v1444, 0
      %1741 = vmatpush.msra.mxu0 0.0
      %1742 = vmatpush.msra.mxu0 0.0
      %1743 = vmatpush.msra.mxu0 0.0
      %1744 = vmatpush.msra.mxu0 0.0
      %1745 = vmatpush.msra.mxu0 0.0
      %1746 = vmatpush.msra.mxu0 0.0
      %1747 = vmatpush.msra.mxu0 0.0
      %1748 = vmatpush.msra.mxu0 0.0
      %1749 = vmatpush.msra.mxu0 0.0
      %1750 = vmatpush.msra.mxu0 0.0
      %1751 = vmatpush.msra.mxu0 0.0
      %1752 = vmatpush.msra.mxu0 0.0
      %1753 = vmatpush.msra.mxu0 0.0
      %1754 = vmatpush.msra.mxu0 0.0
      %1755 = vmatpush.msra.mxu0 0.0
      %1756 = vmatpush.msra.mxu0 %v1736
      %1757 = vmatmul.f32.gmra.mxu0 %v1739
      %v1758 = vpop.f32.mrf.mxu0
      %v1759 = vadd.f32 0.0, %v1758
      %1760 = vdwg.mxu0
      %1761 = vrot.lane.b32.xlu0 %v229, 124
      %v1762 = vpop.permute.xlu0 %1761
      %v1765 = vsel %vm837, %v1445, 0
      %1767 = vmatpush.msra.mxu0 0.0
      %1768 = vmatpush.msra.mxu0 0.0
      %1769 = vmatpush.msra.mxu0 0.0
      %1770 = vmatpush.msra.mxu0 0.0
      %1771 = vmatpush.msra.mxu0 0.0
      %1772 = vmatpush.msra.mxu0 0.0
      %1773 = vmatpush.msra.mxu0 0.0
      %1774 = vmatpush.msra.mxu0 0.0
      %1775 = vmatpush.msra.mxu0 0.0
      %1776 = vmatpush.msra.mxu0 0.0
      %1777 = vmatpush.msra.mxu0 0.0
      %1778 = vmatpush.msra.mxu0 0.0
      %1779 = vmatpush.msra.mxu0 0.0
      %1780 = vmatpush.msra.mxu0 0.0
      %1781 = vmatpush.msra.mxu0 0.0
      %1782 = vmatpush.msra.mxu0 %v1762
      %1783 = vmatmul.f32.gmra.mxu0 %v1765
      %v1784 = vpop.f32.mrf.mxu0
      %v1785 = vadd.f32 0.0, %v1784
      %1786 = vdwg.mxu0
      %1787 = vrot.lane.b32.xlu0 %v231, 124
      %v1788 = vpop.permute.xlu0 %1787
      %v1791 = vsel %vm837, %v1446, 0
      %1793 = vmatpush.msra.mxu0 0.0
      %1794 = vmatpush.msra.mxu0 0.0
      %1795 = vmatpush.msra.mxu0 0.0
      %1796 = vmatpush.msra.mxu0 0.0
      %1797 = vmatpush.msra.mxu0 0.0
      %1798 = vmatpush.msra.mxu0 0.0
      %1799 = vmatpush.msra.mxu0 0.0
      %1800 = vmatpush.msra.mxu0 0.0
      %1801 = vmatpush.msra.mxu0 0.0
      %1802 = vmatpush.msra.mxu0 0.0
      %1803 = vmatpush.msra.mxu0 0.0
      %1804 = vmatpush.msra.mxu0 0.0
      %1805 = vmatpush.msra.mxu0 0.0
      %1806 = vmatpush.msra.mxu0 0.0
      %1807 = vmatpush.msra.mxu0 0.0
      %1808 = vmatpush.msra.mxu0 %v1788
      %1809 = vmatmul.f32.gmra.mxu0 %v1791
      %v1810 = vpop.f32.mrf.mxu0
      %v1811 = vadd.f32 0.0, %v1810
      %1812 = vdwg.mxu0
      %1813 = vrot.lane.b32.xlu0 %v234, 124
      %v1814 = vpop.permute.xlu0 %1813
      %v1817 = vsel %vm837, %v1447, 0
      %1819 = vmatpush.msra.mxu0 0.0
      %1820 = vmatpush.msra.mxu0 0.0
      %1821 = vmatpush.msra.mxu0 0.0
      %1822 = vmatpush.msra.mxu0 0.0
      %1823 = vmatpush.msra.mxu0 0.0
      %1824 = vmatpush.msra.mxu0 0.0
      %1825 = vmatpush.msra.mxu0 0.0
      %1826 = vmatpush.msra.mxu0 0.0
      %1827 = vmatpush.msra.mxu0 0.0
      %1828 = vmatpush.msra.mxu0 0.0
      %1829 = vmatpush.msra.mxu0 0.0
      %1830 = vmatpush.msra.mxu0 0.0
      %1831 = vmatpush.msra.mxu0 0.0
      %1832 = vmatpush.msra.mxu0 0.0
      %1833 = vmatpush.msra.mxu0 0.0
      %1834 = vmatpush.msra.mxu0 %v1814
      %1835 = vmatmul.f32.gmra.mxu0 %v1817
      %v1836 = vpop.f32.mrf.mxu0
      %v1837 = vadd.f32 0.0, %v1836
      %1838 = vdwg.mxu0
      %1839 = vrot.lane.b32.xlu0 %v236, 124
      %v1840 = vpop.permute.xlu0 %1839
      %v1843 = vsel %vm837, %v1448, 0
      %1845 = vmatpush.msra.mxu0 0.0
      %1846 = vmatpush.msra.mxu0 0.0
      %1847 = vmatpush.msra.mxu0 0.0
      %1848 = vmatpush.msra.mxu0 0.0
      %1849 = vmatpush.msra.mxu0 0.0
      %1850 = vmatpush.msra.mxu0 0.0
      %1851 = vmatpush.msra.mxu0 0.0
      %1852 = vmatpush.msra.mxu0 0.0
      %1853 = vmatpush.msra.mxu0 0.0
      %1854 = vmatpush.msra.mxu0 0.0
      %1855 = vmatpush.msra.mxu0 0.0
      %1856 = vmatpush.msra.mxu0 0.0
      %1857 = vmatpush.msra.mxu0 0.0
      %1858 = vmatpush.msra.mxu0 0.0
      %1859 = vmatpush.msra.mxu0 0.0
      %1860 = vmatpush.msra.mxu0 %v1840
      %1861 = vmatmul.f32.gmra.mxu0 %v1843
      %v1862 = vpop.f32.mrf.mxu0
      %v1863 = vadd.f32 0.0, %v1862
      %1864 = vdwg.mxu0
      %v1873 = vrot.slane %v1473, 1
      %v1874 = vrot.slane %v1499, 1
      %v1875 = vrot.slane %v1525, 1
      %v1876 = vrot.slane %v1551, 1
      %v1877 = vrot.slane %v1577, 1
      %v1878 = vrot.slane %v1603, 1
      %v1879 = vrot.slane %v1629, 1
      %v1880 = vrot.slane %v1655, 1
      %v1889 = vrot.slane %v1473, 2
      %v1890 = vrot.slane %v1499, 2
      %v1891 = vrot.slane %v1525, 2
      %v1892 = vrot.slane %v1551, 2
      %v1893 = vrot.slane %v1577, 2
      %v1894 = vrot.slane %v1603, 2
      %v1895 = vrot.slane %v1629, 2
      %v1896 = vrot.slane %v1655, 2
      %v1905 = vrot.slane %v1473, 3
      %v1906 = vrot.slane %v1499, 3
      %v1907 = vrot.slane %v1525, 3
      %v1908 = vrot.slane %v1551, 3
      %v1909 = vrot.slane %v1577, 3
      %v1910 = vrot.slane %v1603, 3
      %v1911 = vrot.slane %v1629, 3
      %v1912 = vrot.slane %v1655, 3
      %v1921 = vrot.slane %v1473, 4
      %v1922 = vrot.slane %v1499, 4
      %v1923 = vrot.slane %v1525, 4
      %v1924 = vrot.slane %v1551, 4
      %v1925 = vrot.slane %v1577, 4
      %v1926 = vrot.slane %v1603, 4
      %v1927 = vrot.slane %v1629, 4
      %v1928 = vrot.slane %v1655, 4
      %v1937 = vrot.slane %v1473, 5
      %v1938 = vrot.slane %v1499, 5
      %v1939 = vrot.slane %v1525, 5
      %v1940 = vrot.slane %v1551, 5
      %v1941 = vrot.slane %v1577, 5
      %v1942 = vrot.slane %v1603, 5
      %v1943 = vrot.slane %v1629, 5
      %v1944 = vrot.slane %v1655, 5
      %v1953 = vrot.slane %v1473, 6
      %v1954 = vrot.slane %v1499, 6
      %v1955 = vrot.slane %v1525, 6
      %v1956 = vrot.slane %v1551, 6
      %v1957 = vrot.slane %v1577, 6
      %v1958 = vrot.slane %v1603, 6
      %v1959 = vrot.slane %v1629, 6
      %v1960 = vrot.slane %v1655, 6
      %v1969 = vrot.slane %v1473, 7
      %v1970 = vrot.slane %v1499, 7
      %v1971 = vrot.slane %v1525, 7
      %v1972 = vrot.slane %v1551, 7
      %v1973 = vrot.slane %v1577, 7
      %v1974 = vrot.slane %v1603, 7
      %v1975 = vrot.slane %v1629, 7
      %v1976 = vrot.slane %v1655, 7
      %v1993 = vrot.slane %v1681, 1
      %v1994 = vrot.slane %v1681, 2
      %v1995 = vrot.slane %v1681, 3
      %v1996 = vrot.slane %v1681, 4
      %v1997 = vrot.slane %v1681, 5
      %v1998 = vrot.slane %v1681, 6
      %v1999 = vrot.slane %v1681, 7
      %v2000 = vrot.slane %v1707, 1
      %v2001 = vrot.slane %v1707, 2
      %v2002 = vrot.slane %v1707, 3
      %v2003 = vrot.slane %v1707, 4
      %v2004 = vrot.slane %v1707, 5
      %v2005 = vrot.slane %v1707, 6
      %v2006 = vrot.slane %v1707, 7
      %v2007 = vrot.slane %v1733, 1
      %v2008 = vrot.slane %v1733, 2
      %v2009 = vrot.slane %v1733, 3
      %v2010 = vrot.slane %v1733, 4
      %v2011 = vrot.slane %v1733, 5
      %v2012 = vrot.slane %v1733, 6
      %v2013 = vrot.slane %v1733, 7
      %v2014 = vrot.slane %v1759, 1
      %v2015 = vrot.slane %v1759, 2
      %v2016 = vrot.slane %v1759, 3
      %v2017 = vrot.slane %v1759, 4
      %v2018 = vrot.slane %v1759, 5
      %v2019 = vrot.slane %v1759, 6
      %v2020 = vrot.slane %v1759, 7
      %v2021 = vrot.slane %v1785, 1
      %v2022 = vrot.slane %v1785, 2
      %v2023 = vrot.slane %v1785, 3
      %v2024 = vrot.slane %v1785, 4
      %v2025 = vrot.slane %v1785, 5
      %v2026 = vrot.slane %v1785, 6
      %v2027 = vrot.slane %v1785, 7
      %v2028 = vrot.slane %v1811, 1
      %v2029 = vrot.slane %v1811, 2
      %v2030 = vrot.slane %v1811, 3
      %v2031 = vrot.slane %v1811, 4
      %v2032 = vrot.slane %v1811, 5
      %v2033 = vrot.slane %v1811, 6
      %v2034 = vrot.slane %v1811, 7
      %v2035 = vrot.slane %v1837, 1
      %v2036 = vrot.slane %v1837, 2
      %v2037 = vrot.slane %v1837, 3
      %v2038 = vrot.slane %v1837, 4
      %v2039 = vrot.slane %v1837, 5
      %v2040 = vrot.slane %v1837, 6
      %v2041 = vrot.slane %v1837, 7
      %v2042 = vrot.slane %v1863, 1
      %v2043 = vrot.slane %v1863, 2
      %v2044 = vrot.slane %v1863, 3
      %v2045 = vrot.slane %v1863, 4
      %v2046 = vrot.slane %v1863, 5
      %v2047 = vrot.slane %v1863, 6
      %v2048 = vrot.slane %v1863, 7
      %v2113 = vadd.f32 %v1473, %v1681
      %v2114 = vadd.f32 %v1499, %v1993
      %v2115 = vadd.f32 %v1525, %v1994
      %v2116 = vadd.f32 %v1551, %v1995
      %v2117 = vadd.f32 %v1577, %v1996
      %v2118 = vadd.f32 %v1603, %v1997
      %v2119 = vadd.f32 %v1629, %v1998
      %v2120 = vadd.f32 %v1655, %v1999
      %v2121 = vadd.f32 %v1873, %v1707
      %v2122 = vadd.f32 %v1874, %v2000
      %v2123 = vadd.f32 %v1875, %v2001
      %v2124 = vadd.f32 %v1876, %v2002
      %v2125 = vadd.f32 %v1877, %v2003
      %v2126 = vadd.f32 %v1878, %v2004
      %v2127 = vadd.f32 %v1879, %v2005
      %v2128 = vadd.f32 %v1880, %v2006
      %v2129 = vadd.f32 %v1889, %v1733
      %v2130 = vadd.f32 %v1890, %v2007
      %v2131 = vadd.f32 %v1891, %v2008
      %v2132 = vadd.f32 %v1892, %v2009
      %v2133 = vadd.f32 %v1893, %v2010
      %v2134 = vadd.f32 %v1894, %v2011
      %v2135 = vadd.f32 %v1895, %v2012
      %v2136 = vadd.f32 %v1896, %v2013
      %v2137 = vadd.f32 %v1905, %v1759
      %v2138 = vadd.f32 %v1906, %v2014
      %v2139 = vadd.f32 %v1907, %v2015
      %v2140 = vadd.f32 %v1908, %v2016
      %v2141 = vadd.f32 %v1909, %v2017
      %v2142 = vadd.f32 %v1910, %v2018
      %v2143 = vadd.f32 %v1911, %v2019
      %v2144 = vadd.f32 %v1912, %v2020
      %v2145 = vadd.f32 %v1921, %v1785
      %v2146 = vadd.f32 %v1922, %v2021
      %v2147 = vadd.f32 %v1923, %v2022
      %v2148 = vadd.f32 %v1924, %v2023
      %v2149 = vadd.f32 %v1925, %v2024
      %v2150 = vadd.f32 %v1926, %v2025
      %v2151 = vadd.f32 %v1927, %v2026
      %v2152 = vadd.f32 %v1928, %v2027
      %v2153 = vadd.f32 %v1937, %v1811
      %v2154 = vadd.f32 %v1938, %v2028
      %v2155 = vadd.f32 %v1939, %v2029
      %v2156 = vadd.f32 %v1940, %v2030
      %v2157 = vadd.f32 %v1941, %v2031
      %v2158 = vadd.f32 %v1942, %v2032
      %v2159 = vadd.f32 %v1943, %v2033
      %v2160 = vadd.f32 %v1944, %v2034
      %v2161 = vadd.f32 %v1953, %v1837
      %v2162 = vadd.f32 %v1954, %v2035
      %v2163 = vadd.f32 %v1955, %v2036
      %v2164 = vadd.f32 %v1956, %v2037
      %v2165 = vadd.f32 %v1957, %v2038
      %v2166 = vadd.f32 %v1958, %v2039
      %v2167 = vadd.f32 %v1959, %v2040
      %v2168 = vadd.f32 %v1960, %v2041
      %v2169 = vadd.f32 %v1969, %v1863
      %v2170 = vadd.f32 %v1970, %v2042
      %v2171 = vadd.f32 %v1971, %v2043
      %v2172 = vadd.f32 %v1972, %v2044
      %v2173 = vadd.f32 %v1973, %v2045
      %v2174 = vadd.f32 %v1974, %v2046
      %v2175 = vadd.f32 %v1975, %v2047
      %v2176 = vadd.f32 %v1976, %v2048
      %v2177 = vmul.f32 %v2113, 0.5
      %v2178 = vmul.f32 %v2114, 0.5
      %v2179 = vmul.f32 %v2115, 0.5
      %v2180 = vmul.f32 %v2116, 0.5
      %v2181 = vmul.f32 %v2117, 0.5
      %v2182 = vmul.f32 %v2118, 0.5
      %v2183 = vmul.f32 %v2119, 0.5
      %v2184 = vmul.f32 %v2120, 0.5
      %v2185 = vmul.f32 %v2121, 0.5
      %v2186 = vmul.f32 %v2122, 0.5
      %v2187 = vmul.f32 %v2123, 0.5
      %v2188 = vmul.f32 %v2124, 0.5
      %v2189 = vmul.f32 %v2125, 0.5
      %v2190 = vmul.f32 %v2126, 0.5
      %v2191 = vmul.f32 %v2127, 0.5
      %v2192 = vmul.f32 %v2128, 0.5
      %v2193 = vmul.f32 %v2129, 0.5
      %v2194 = vmul.f32 %v2130, 0.5
      %v2195 = vmul.f32 %v2131, 0.5
      %v2196 = vmul.f32 %v2132, 0.5
      %v2197 = vmul.f32 %v2133, 0.5
      %v2198 = vmul.f32 %v2134, 0.5
      %v2199 = vmul.f32 %v2135, 0.5
      %v2200 = vmul.f32 %v2136, 0.5
      %v2201 = vmul.f32 %v2137, 0.5
      %v2202 = vmul.f32 %v2138, 0.5
      %v2203 = vmul.f32 %v2139, 0.5
      %v2204 = vmul.f32 %v2140, 0.5
      %v2205 = vmul.f32 %v2141, 0.5
      %v2206 = vmul.f32 %v2142, 0.5
      %v2207 = vmul.f32 %v2143, 0.5
      %v2208 = vmul.f32 %v2144, 0.5
      %v2209 = vmul.f32 %v2145, 0.5
      %v2210 = vmul.f32 %v2146, 0.5
      %v2211 = vmul.f32 %v2147, 0.5
      %v2212 = vmul.f32 %v2148, 0.5
      %v2213 = vmul.f32 %v2149, 0.5
      %v2214 = vmul.f32 %v2150, 0.5
      %v2215 = vmul.f32 %v2151, 0.5
      %v2216 = vmul.f32 %v2152, 0.5
      %v2217 = vmul.f32 %v2153, 0.5
      %v2218 = vmul.f32 %v2154, 0.5
      %v2219 = vmul.f32 %v2155, 0.5
      %v2220 = vmul.f32 %v2156, 0.5
      %v2221 = vmul.f32 %v2157, 0.5
      %v2222 = vmul.f32 %v2158, 0.5
      %v2223 = vmul.f32 %v2159, 0.5
      %v2224 = vmul.f32 %v2160, 0.5
      %v2225 = vmul.f32 %v2161, 0.5
      %v2226 = vmul.f32 %v2162, 0.5
      %v2227 = vmul.f32 %v2163, 0.5
      %v2228 = vmul.f32 %v2164, 0.5
      %v2229 = vmul.f32 %v2165, 0.5
      %v2230 = vmul.f32 %v2166, 0.5
      %v2231 = vmul.f32 %v2167, 0.5
      %v2232 = vmul.f32 %v2168, 0.5
      %v2233 = vmul.f32 %v2169, 0.5
      %v2234 = vmul.f32 %v2170, 0.5
      %v2235 = vmul.f32 %v2171, 0.5
      %v2236 = vmul.f32 %v2172, 0.5
      %v2237 = vmul.f32 %v2173, 0.5
      %v2238 = vmul.f32 %v2174, 0.5
      %v2239 = vmul.f32 %v2175, 0.5
      %v2240 = vmul.f32 %v2176, 0.5
      %v2249 = vrot.slane %v172, 1
      %v2250 = vrot.slane %v172, 2
      %v2251 = vrot.slane %v172, 3
      %v2252 = vrot.slane %v172, 4
      %v2253 = vrot.slane %v172, 5
      %v2254 = vrot.slane %v172, 6
      %v2255 = vrot.slane %v172, 7
      %v2256 = vrot.slane %v173, 1
      %v2257 = vrot.slane %v173, 2
      %v2258 = vrot.slane %v173, 3
      %v2259 = vrot.slane %v173, 4
      %v2260 = vrot.slane %v173, 5
      %v2261 = vrot.slane %v173, 6
      %v2262 = vrot.slane %v173, 7
      %v2263 = vrot.slane %v174, 1
      %v2264 = vrot.slane %v174, 2
      %v2265 = vrot.slane %v174, 3
      %v2266 = vrot.slane %v174, 4
      %v2267 = vrot.slane %v174, 5
      %v2268 = vrot.slane %v174, 6
      %v2269 = vrot.slane %v174, 7
      %v2270 = vrot.slane %v175, 1
      %v2271 = vrot.slane %v175, 2
      %v2272 = vrot.slane %v175, 3
      %v2273 = vrot.slane %v175, 4
      %v2274 = vrot.slane %v175, 5
      %v2275 = vrot.slane %v175, 6
      %v2276 = vrot.slane %v175, 7
      %v2277 = vrot.slane %v176, 1
      %v2278 = vrot.slane %v176, 2
      %v2279 = vrot.slane %v176, 3
      %v2280 = vrot.slane %v176, 4
      %v2281 = vrot.slane %v176, 5
      %v2282 = vrot.slane %v176, 6
      %v2283 = vrot.slane %v176, 7
      %v2284 = vrot.slane %v177, 1
      %v2285 = vrot.slane %v177, 2
      %v2286 = vrot.slane %v177, 3
      %v2287 = vrot.slane %v177, 4
      %v2288 = vrot.slane %v177, 5
      %v2289 = vrot.slane %v177, 6
      %v2290 = vrot.slane %v177, 7
      %v2291 = vrot.slane %v178, 1
      %v2292 = vrot.slane %v178, 2
      %v2293 = vrot.slane %v178, 3
      %v2294 = vrot.slane %v178, 4
      %v2295 = vrot.slane %v178, 5
      %v2296 = vrot.slane %v178, 6
      %v2297 = vrot.slane %v178, 7
      %v2298 = vrot.slane %v179, 1
      %v2299 = vrot.slane %v179, 2
      %v2300 = vrot.slane %v179, 3
      %v2301 = vrot.slane %v179, 4
      %v2302 = vrot.slane %v179, 5
      %v2303 = vrot.slane %v179, 6
      %v2304 = vrot.slane %v179, 7
      %v2369 = vadd.f32 %v2177, %v172
      %v2370 = vadd.f32 %v2178, %v2249
      %v2371 = vadd.f32 %v2179, %v2250
      %v2372 = vadd.f32 %v2180, %v2251
      %v2373 = vadd.f32 %v2181, %v2252
      %v2374 = vadd.f32 %v2182, %v2253
      %v2375 = vadd.f32 %v2183, %v2254
      %v2376 = vadd.f32 %v2184, %v2255
      %v2377 = vadd.f32 %v2185, %v173
      %v2378 = vadd.f32 %v2186, %v2256
      %v2379 = vadd.f32 %v2187, %v2257
      %v2380 = vadd.f32 %v2188, %v2258
      %v2381 = vadd.f32 %v2189, %v2259
      %v2382 = vadd.f32 %v2190, %v2260
      %v2383 = vadd.f32 %v2191, %v2261
      %v2384 = vadd.f32 %v2192, %v2262
      %v2385 = vadd.f32 %v2193, %v174
      %v2386 = vadd.f32 %v2194, %v2263
      %v2387 = vadd.f32 %v2195, %v2264
      %v2388 = vadd.f32 %v2196, %v2265
      %v2389 = vadd.f32 %v2197, %v2266
      %v2390 = vadd.f32 %v2198, %v2267
      %v2391 = vadd.f32 %v2199, %v2268
      %v2392 = vadd.f32 %v2200, %v2269
      %v2393 = vadd.f32 %v2201, %v175
      %v2394 = vadd.f32 %v2202, %v2270
      %v2395 = vadd.f32 %v2203, %v2271
      %v2396 = vadd.f32 %v2204, %v2272
      %v2397 = vadd.f32 %v2205, %v2273
      %v2398 = vadd.f32 %v2206, %v2274
      %v2399 = vadd.f32 %v2207, %v2275
      %v2400 = vadd.f32 %v2208, %v2276
      %v2401 = vadd.f32 %v2209, %v176
      %v2402 = vadd.f32 %v2210, %v2277
      %v2403 = vadd.f32 %v2211, %v2278
      %v2404 = vadd.f32 %v2212, %v2279
      %v2405 = vadd.f32 %v2213, %v2280
      %v2406 = vadd.f32 %v2214, %v2281
      %v2407 = vadd.f32 %v2215, %v2282
      %v2408 = vadd.f32 %v2216, %v2283
      %v2409 = vadd.f32 %v2217, %v177
      %v2410 = vadd.f32 %v2218, %v2284
      %v2411 = vadd.f32 %v2219, %v2285
      %v2412 = vadd.f32 %v2220, %v2286
      %v2413 = vadd.f32 %v2221, %v2287
      %v2414 = vadd.f32 %v2222, %v2288
      %v2415 = vadd.f32 %v2223, %v2289
      %v2416 = vadd.f32 %v2224, %v2290
      %v2417 = vadd.f32 %v2225, %v178
      %v2418 = vadd.f32 %v2226, %v2291
      %v2419 = vadd.f32 %v2227, %v2292
      %v2420 = vadd.f32 %v2228, %v2293
      %v2421 = vadd.f32 %v2229, %v2294
      %v2422 = vadd.f32 %v2230, %v2295
      %v2423 = vadd.f32 %v2231, %v2296
      %v2424 = vadd.f32 %v2232, %v2297
      %v2425 = vadd.f32 %v2233, %v179
      %v2426 = vadd.f32 %v2234, %v2298
      %v2427 = vadd.f32 %v2235, %v2299
      %v2428 = vadd.f32 %v2236, %v2300
      %v2429 = vadd.f32 %v2237, %v2301
      %v2430 = vadd.f32 %v2238, %v2302
      %v2431 = vadd.f32 %v2239, %v2303
      %v2432 = vadd.f32 %v2240, %v2304
      %v2433 = vpack.c.bf16 %v2369, %v2369
      %v2434 = vpack.c.bf16 %v2370, %v2370
      %v2435 = vpack.c.bf16 %v2371, %v2371
      %v2436 = vpack.c.bf16 %v2372, %v2372
      %v2437 = vpack.c.bf16 %v2373, %v2373
      %v2438 = vpack.c.bf16 %v2374, %v2374
      %v2439 = vpack.c.bf16 %v2375, %v2375
      %v2440 = vpack.c.bf16 %v2376, %v2376
      %v2441 = vpack.c.bf16 %v2377, %v2377
      %v2442 = vpack.c.bf16 %v2378, %v2378
      %v2443 = vpack.c.bf16 %v2379, %v2379
      %v2444 = vpack.c.bf16 %v2380, %v2380
      %v2445 = vpack.c.bf16 %v2381, %v2381
      %v2446 = vpack.c.bf16 %v2382, %v2382
      %v2447 = vpack.c.bf16 %v2383, %v2383
      %v2448 = vpack.c.bf16 %v2384, %v2384
      %v2449 = vpack.c.bf16 %v2385, %v2385
      %v2450 = vpack.c.bf16 %v2386, %v2386
      %v2451 = vpack.c.bf16 %v2387, %v2387
      %v2452 = vpack.c.bf16 %v2388, %v2388
      %v2453 = vpack.c.bf16 %v2389, %v2389
      %v2454 = vpack.c.bf16 %v2390, %v2390
      %v2455 = vpack.c.bf16 %v2391, %v2391
      %v2456 = vpack.c.bf16 %v2392, %v2392
      %v2457 = vpack.c.bf16 %v2393, %v2393
      %v2458 = vpack.c.bf16 %v2394, %v2394
      %v2459 = vpack.c.bf16 %v2395, %v2395
      %v2460 = vpack.c.bf16 %v2396, %v2396
      %v2461 = vpack.c.bf16 %v2397, %v2397
      %v2462 = vpack.c.bf16 %v2398, %v2398
      %v2463 = vpack.c.bf16 %v2399, %v2399
      %v2464 = vpack.c.bf16 %v2400, %v2400
      %v2465 = vpack.c.bf16 %v2401, %v2401
      %v2466 = vpack.c.bf16 %v2402, %v2402
      %v2467 = vpack.c.bf16 %v2403, %v2403
      %v2468 = vpack.c.bf16 %v2404, %v2404
      %v2469 = vpack.c.bf16 %v2405, %v2405
      %v2470 = vpack.c.bf16 %v2406, %v2406
      %v2471 = vpack.c.bf16 %v2407, %v2407
      %v2472 = vpack.c.bf16 %v2408, %v2408
      %v2473 = vpack.c.bf16 %v2409, %v2409
      %v2474 = vpack.c.bf16 %v2410, %v2410
      %v2475 = vpack.c.bf16 %v2411, %v2411
      %v2476 = vpack.c.bf16 %v2412, %v2412
      %v2477 = vpack.c.bf16 %v2413, %v2413
      %v2478 = vpack.c.bf16 %v2414, %v2414
      %v2479 = vpack.c.bf16 %v2415, %v2415
      %v2480 = vpack.c.bf16 %v2416, %v2416
      %v2481 = vpack.c.bf16 %v2417, %v2417
      %v2482 = vpack.c.bf16 %v2418, %v2418
      %v2483 = vpack.c.bf16 %v2419, %v2419
      %v2484 = vpack.c.bf16 %v2420, %v2420
      %v2485 = vpack.c.bf16 %v2421, %v2421
      %v2486 = vpack.c.bf16 %v2422, %v2422
      %v2487 = vpack.c.bf16 %v2423, %v2423
      %v2488 = vpack.c.bf16 %v2424, %v2424
      %v2489 = vpack.c.bf16 %v2425, %v2425
      %v2490 = vpack.c.bf16 %v2426, %v2426
      %v2491 = vpack.c.bf16 %v2427, %v2427
      %v2492 = vpack.c.bf16 %v2428, %v2428
      %v2493 = vpack.c.bf16 %v2429, %v2429
      %v2494 = vpack.c.bf16 %v2430, %v2430
      %v2495 = vpack.c.bf16 %v2431, %v2431
      %v2496 = vpack.c.bf16 %v2432, %v2432
      %v2561 = vunpack.c.l.b16 %v2433
      %v2562 = vunpack.c.l.b16 %v2434
      %v2563 = vunpack.c.l.b16 %v2435
      %v2564 = vunpack.c.l.b16 %v2436
      %v2565 = vunpack.c.l.b16 %v2437
      %v2566 = vunpack.c.l.b16 %v2438
      %v2567 = vunpack.c.l.b16 %v2439
      %v2568 = vunpack.c.l.b16 %v2440
      %v2569 = vunpack.c.l.b16 %v2441
      %v2570 = vunpack.c.l.b16 %v2442
      %v2571 = vunpack.c.l.b16 %v2443
      %v2572 = vunpack.c.l.b16 %v2444
      %v2573 = vunpack.c.l.b16 %v2445
      %v2574 = vunpack.c.l.b16 %v2446
      %v2575 = vunpack.c.l.b16 %v2447
      %v2576 = vunpack.c.l.b16 %v2448
      %v2577 = vunpack.c.l.b16 %v2449
      %v2578 = vunpack.c.l.b16 %v2450
      %v2579 = vunpack.c.l.b16 %v2451
      %v2580 = vunpack.c.l.b16 %v2452
      %v2581 = vunpack.c.l.b16 %v2453
      %v2582 = vunpack.c.l.b16 %v2454
      %v2583 = vunpack.c.l.b16 %v2455
      %v2584 = vunpack.c.l.b16 %v2456
      %v2585 = vunpack.c.l.b16 %v2457
      %v2586 = vunpack.c.l.b16 %v2458
      %v2587 = vunpack.c.l.b16 %v2459
      %v2588 = vunpack.c.l.b16 %v2460
      %v2589 = vunpack.c.l.b16 %v2461
      %v2590 = vunpack.c.l.b16 %v2462
      %v2591 = vunpack.c.l.b16 %v2463
      %v2592 = vunpack.c.l.b16 %v2464
      %v2593 = vunpack.c.l.b16 %v2465
      %v2594 = vunpack.c.l.b16 %v2466
      %v2595 = vunpack.c.l.b16 %v2467
      %v2596 = vunpack.c.l.b16 %v2468
      %v2597 = vunpack.c.l.b16 %v2469
      %v2598 = vunpack.c.l.b16 %v2470
      %v2599 = vunpack.c.l.b16 %v2471
      %v2600 = vunpack.c.l.b16 %v2472
      %v2601 = vunpack.c.l.b16 %v2473
      %v2602 = vunpack.c.l.b16 %v2474
      %v2603 = vunpack.c.l.b16 %v2475
      %v2604 = vunpack.c.l.b16 %v2476
      %v2605 = vunpack.c.l.b16 %v2477
      %v2606 = vunpack.c.l.b16 %v2478
      %v2607 = vunpack.c.l.b16 %v2479
      %v2608 = vunpack.c.l.b16 %v2480
      %v2609 = vunpack.c.l.b16 %v2481
      %v2610 = vunpack.c.l.b16 %v2482
      %v2611 = vunpack.c.l.b16 %v2483
      %v2612 = vunpack.c.l.b16 %v2484
      %v2613 = vunpack.c.l.b16 %v2485
      %v2614 = vunpack.c.l.b16 %v2486
      %v2615 = vunpack.c.l.b16 %v2487
      %v2616 = vunpack.c.l.b16 %v2488
      %v2617 = vunpack.c.l.b16 %v2489
      %v2618 = vunpack.c.l.b16 %v2490
      %v2619 = vunpack.c.l.b16 %v2491
      %v2620 = vunpack.c.l.b16 %v2492
      %v2621 = vunpack.c.l.b16 %v2493
      %v2622 = vunpack.c.l.b16 %v2494
      %v2623 = vunpack.c.l.b16 %v2495
      %v2624 = vunpack.c.l.b16 %v2496
      %v2625 = vrot.slane %v2562, 7
      %v2626 = vsel %vm517, %v2625, %v2561
      %v2627 = vrot.slane %v2563, 6
      %v2628 = vsel %vm519, %v2627, %v2626
      %v2629 = vrot.slane %v2564, 5
      %v2630 = vsel %vm521, %v2629, %v2628
      %v2631 = vrot.slane %v2565, 4
      %v2632 = vsel %vm523, %v2631, %v2630
      %v2633 = vrot.slane %v2566, 3
      %v2634 = vsel %vm525, %v2633, %v2632
      %v2635 = vrot.slane %v2567, 2
      %v2636 = vsel %vm527, %v2635, %v2634
      %v2637 = vrot.slane %v2568, 1
      %v2638 = vsel %vm529, %v2637, %v2636
      %v2639 = vrot.slane %v2570, 7
      %v2640 = vsel %vm517, %v2639, %v2569
      %v2641 = vrot.slane %v2571, 6
      %v2642 = vsel %vm519, %v2641, %v2640
      %v2643 = vrot.slane %v2572, 5
      %v2644 = vsel %vm521, %v2643, %v2642
      %v2645 = vrot.slane %v2573, 4
      %v2646 = vsel %vm523, %v2645, %v2644
      %v2647 = vrot.slane %v2574, 3
      %v2648 = vsel %vm525, %v2647, %v2646
      %v2649 = vrot.slane %v2575, 2
      %v2650 = vsel %vm527, %v2649, %v2648
      %v2651 = vrot.slane %v2576, 1
      %v2652 = vsel %vm529, %v2651, %v2650
      %v2653 = vrot.slane %v2578, 7
      %v2654 = vsel %vm517, %v2653, %v2577
      %v2655 = vrot.slane %v2579, 6
      %v2656 = vsel %vm519, %v2655, %v2654
      %v2657 = vrot.slane %v2580, 5
      %v2658 = vsel %vm521, %v2657, %v2656
      %v2659 = vrot.slane %v2581, 4
      %v2660 = vsel %vm523, %v2659, %v2658
      %v2661 = vrot.slane %v2582, 3
      %v2662 = vsel %vm525, %v2661, %v2660
      %v2663 = vrot.slane %v2583, 2
      %v2664 = vsel %vm527, %v2663, %v2662
      %v2665 = vrot.slane %v2584, 1
      %v2666 = vsel %vm529, %v2665, %v2664
      %v2667 = vrot.slane %v2586, 7
      %v2668 = vsel %vm517, %v2667, %v2585
      %v2669 = vrot.slane %v2587, 6
      %v2670 = vsel %vm519, %v2669, %v2668
      %v2671 = vrot.slane %v2588, 5
      %v2672 = vsel %vm521, %v2671, %v2670
      %v2673 = vrot.slane %v2589, 4
      %v2674 = vsel %vm523, %v2673, %v2672
      %v2675 = vrot.slane %v2590, 3
      %v2676 = vsel %vm525, %v2675, %v2674
      %v2677 = vrot.slane %v2591, 2
      %v2678 = vsel %vm527, %v2677, %v2676
      %v2679 = vrot.slane %v2592, 1
      %v2680 = vsel %vm529, %v2679, %v2678
      %v2681 = vrot.slane %v2594, 7
      %v2682 = vsel %vm517, %v2681, %v2593
      %v2683 = vrot.slane %v2595, 6
      %v2684 = vsel %vm519, %v2683, %v2682
      %v2685 = vrot.slane %v2596, 5
      %v2686 = vsel %vm521, %v2685, %v2684
      %v2687 = vrot.slane %v2597, 4
      %v2688 = vsel %vm523, %v2687, %v2686
      %v2689 = vrot.slane %v2598, 3
      %v2690 = vsel %vm525, %v2689, %v2688
      %v2691 = vrot.slane %v2599, 2
      %v2692 = vsel %vm527, %v2691, %v2690
      %v2693 = vrot.slane %v2600, 1
      %v2694 = vsel %vm529, %v2693, %v2692
      %v2695 = vrot.slane %v2602, 7
      %v2696 = vsel %vm517, %v2695, %v2601
      %v2697 = vrot.slane %v2603, 6
      %v2698 = vsel %vm519, %v2697, %v2696
      %v2699 = vrot.slane %v2604, 5
      %v2700 = vsel %vm521, %v2699, %v2698
      %v2701 = vrot.slane %v2605, 4
      %v2702 = vsel %vm523, %v2701, %v2700
      %v2703 = vrot.slane %v2606, 3
      %v2704 = vsel %vm525, %v2703, %v2702
      %v2705 = vrot.slane %v2607, 2
      %v2706 = vsel %vm527, %v2705, %v2704
      %v2707 = vrot.slane %v2608, 1
      %v2708 = vsel %vm529, %v2707, %v2706
      %v2709 = vrot.slane %v2610, 7
      %v2710 = vsel %vm517, %v2709, %v2609
      %v2711 = vrot.slane %v2611, 6
      %v2712 = vsel %vm519, %v2711, %v2710
      %v2713 = vrot.slane %v2612, 5
      %v2714 = vsel %vm521, %v2713, %v2712
      %v2715 = vrot.slane %v2613, 4
      %v2716 = vsel %vm523, %v2715, %v2714
      %v2717 = vrot.slane %v2614, 3
      %v2718 = vsel %vm525, %v2717, %v2716
      %v2719 = vrot.slane %v2615, 2
      %v2720 = vsel %vm527, %v2719, %v2718
      %v2721 = vrot.slane %v2616, 1
      %v2722 = vsel %vm529, %v2721, %v2720
      %v2723 = vrot.slane %v2618, 7
      %v2724 = vsel %vm517, %v2723, %v2617
      %v2725 = vrot.slane %v2619, 6
      %v2726 = vsel %vm519, %v2725, %v2724
      %v2727 = vrot.slane %v2620, 5
      %v2728 = vsel %vm521, %v2727, %v2726
      %v2729 = vrot.slane %v2621, 4
      %v2730 = vsel %vm523, %v2729, %v2728
      %v2731 = vrot.slane %v2622, 3
      %v2732 = vsel %vm525, %v2731, %v2730
      %v2733 = vrot.slane %v2623, 2
      %v2734 = vsel %vm527, %v2733, %v2732
      %v2735 = vrot.slane %v2624, 1
      %v2736 = vsel %vm529, %v2735, %v2734
      %v2737 = vpack.c.b16 %v2652, %v2638
      %v2738 = vpack.c.b16 %v2680, %v2666
      %v2739 = vpack.c.b16 %v2708, %v2694
      %v2740 = vpack.c.b16 %v2736, %v2722
      %v2742 = vsel %vm196, %v2737, 0
      %v2745 = vsel %vm196, %v2738, 0
      %v2748 = vsel %vm196, %v2739, 0
      %v2751 = vsel %vm196, %v2740, 0
      %2753 = vmatpush.bf16.msra.mxu0 0
      %2754 = vmatpush.bf16.msra.mxu0 0
      %2755 = vmatpush.bf16.msra.mxu0 0
      %2756 = vmatpush.bf16.msra.mxu0 0
      %2757 = vmatpush.bf16.msra.mxu0 0
      %2758 = vmatpush.bf16.msra.mxu0 0
      %2759 = vmatpush.bf16.msra.mxu0 0
      %2760 = vmatpush.bf16.msra.mxu0 %v194
      %2761 = vmatmul.bf16.gmra.mxu0 %v2742
      %v2762 = vpop.f32.mrf.mxu0
      %v2763 = vadd.f32 %v188, %v2762
      %v2764 = vpop.f32.mrf.mxu0
      %v2765 = vadd.f32 %v188, %v2764
      %2766 = vmatmul.bf16.gmra.mxu0 %v2745
      %v2767 = vpop.f32.mrf.mxu0
      %v2768 = vadd.f32 %v188, %v2767
      %v2769 = vpop.f32.mrf.mxu0
      %v2770 = vadd.f32 %v188, %v2769
      %2771 = vmatmul.bf16.gmra.mxu0 %v2748
      %v2772 = vpop.f32.mrf.mxu0
      %v2773 = vadd.f32 %v188, %v2772
      %v2774 = vpop.f32.mrf.mxu0
      %v2775 = vadd.f32 %v188, %v2774
      %2776 = vmatmul.bf16.gmra.mxu0 %v2751
      %v2777 = vpop.f32.mrf.mxu0
      %v2778 = vadd.f32 %v188, %v2777
      %v2779 = vpop.f32.mrf.mxu0
      %v2780 = vadd.f32 %v188, %v2779
      %2781 = vdwg.mxu0
      %v2790 = vrot.slane %v2763, 1
      %v2791 = vrot.slane %v2765, 1
      %v2792 = vrot.slane %v2768, 1
      %v2793 = vrot.slane %v2770, 1
      %v2794 = vrot.slane %v2773, 1
      %v2795 = vrot.slane %v2775, 1
      %v2796 = vrot.slane %v2778, 1
      %v2797 = vrot.slane %v2780, 1
      %v2798 = vrot.slane %v2763, 2
      %v2799 = vrot.slane %v2765, 2
      %v2800 = vrot.slane %v2768, 2
      %v2801 = vrot.slane %v2770, 2
      %v2802 = vrot.slane %v2773, 2
      %v2803 = vrot.slane %v2775, 2
      %v2804 = vrot.slane %v2778, 2
      %v2805 = vrot.slane %v2780, 2
      %v2806 = vrot.slane %v2763, 3
      %v2807 = vrot.slane %v2765, 3
      %v2808 = vrot.slane %v2768, 3
      %v2809 = vrot.slane %v2770, 3
      %v2810 = vrot.slane %v2773, 3
      %v2811 = vrot.slane %v2775, 3
      %v2812 = vrot.slane %v2778, 3
      %v2813 = vrot.slane %v2780, 3
      %v2814 = vrot.slane %v2763, 4
      %v2815 = vrot.slane %v2765, 4
      %v2816 = vrot.slane %v2768, 4
      %v2817 = vrot.slane %v2770, 4
      %v2818 = vrot.slane %v2773, 4
      %v2819 = vrot.slane %v2775, 4
      %v2820 = vrot.slane %v2778, 4
      %v2821 = vrot.slane %v2780, 4
      %v2822 = vrot.slane %v2763, 5
      %v2823 = vrot.slane %v2765, 5
      %v2824 = vrot.slane %v2768, 5
      %v2825 = vrot.slane %v2770, 5
      %v2826 = vrot.slane %v2773, 5
      %v2827 = vrot.slane %v2775, 5
      %v2828 = vrot.slane %v2778, 5
      %v2829 = vrot.slane %v2780, 5
      %v2830 = vrot.slane %v2763, 6
      %v2831 = vrot.slane %v2765, 6
      %v2832 = vrot.slane %v2768, 6
      %v2833 = vrot.slane %v2770, 6
      %v2834 = vrot.slane %v2773, 6
      %v2835 = vrot.slane %v2775, 6
      %v2836 = vrot.slane %v2778, 6
      %v2837 = vrot.slane %v2780, 6
      %v2838 = vrot.slane %v2763, 7
      %v2839 = vrot.slane %v2765, 7
      %v2840 = vrot.slane %v2768, 7
      %v2841 = vrot.slane %v2770, 7
      %v2842 = vrot.slane %v2773, 7
      %v2843 = vrot.slane %v2775, 7
      %v2844 = vrot.slane %v2778, 7
      %v2845 = vrot.slane %v2780, 7
      %2846 = vrot.lane.b32.xlu0 %v2763, 126
      %v2847 = vpop.permute.xlu0 %2846
      %v2848 = vsel %vm304, %v2763, 0
      %v2850 = vsel %vm304, %v2847, 0
      %2852 = vmatpush.xpose.msra.mxu0 0.0
      %2853 = vmatpush.xpose.msra.mxu0 0.0
      %2854 = vmatpush.xpose.msra.mxu0 0.0
      %2855 = vmatpush.xpose.msra.mxu0 0.0
      %2856 = vmatpush.xpose.msra.mxu0 0.0
      %2857 = vmatpush.xpose.msra.mxu0 0.0
      %2858 = vmatpush.xpose.msra.mxu0 0.0
      %2859 = vmatpush.xpose.msra.mxu0 0.0
      %2860 = vmatpush.xpose.msra.mxu0 0.0
      %2861 = vmatpush.xpose.msra.mxu0 0.0
      %2862 = vmatpush.xpose.msra.mxu0 0.0
      %2863 = vmatpush.xpose.msra.mxu0 0.0
      %2864 = vmatpush.xpose.msra.mxu0 0.0
      %2865 = vmatpush.xpose.msra.mxu0 0.0
      %2866 = vmatpush.xpose.msra.mxu0 0.0
      %2867 = vmatpush.xpose.msra.mxu0 %v2850
      %2868 = vmatmul.f32.gmra.mxu0 %v2848
      %v2869 = vpop.f32.mrf.mxu0
      %v2870 = vadd.f32 0.0, %v2869
      %2871 = vdwg.mxu0
      %2872 = vrot.lane.b32.xlu0 %v2765, 126
      %v2873 = vpop.permute.xlu0 %2872
      %v2874 = vsel %vm304, %v2765, 0
      %v2876 = vsel %vm304, %v2873, 0
      %2878 = vmatpush.xpose.msra.mxu0 0.0
      %2879 = vmatpush.xpose.msra.mxu0 0.0
      %2880 = vmatpush.xpose.msra.mxu0 0.0
      %2881 = vmatpush.xpose.msra.mxu0 0.0
      %2882 = vmatpush.xpose.msra.mxu0 0.0
      %2883 = vmatpush.xpose.msra.mxu0 0.0
      %2884 = vmatpush.xpose.msra.mxu0 0.0
      %2885 = vmatpush.xpose.msra.mxu0 0.0
      %2886 = vmatpush.xpose.msra.mxu0 0.0
      %2887 = vmatpush.xpose.msra.mxu0 0.0
      %2888 = vmatpush.xpose.msra.mxu0 0.0
      %2889 = vmatpush.xpose.msra.mxu0 0.0
      %2890 = vmatpush.xpose.msra.mxu0 0.0
      %2891 = vmatpush.xpose.msra.mxu0 0.0
      %2892 = vmatpush.xpose.msra.mxu0 0.0
      %2893 = vmatpush.xpose.msra.mxu0 %v2876
      %2894 = vmatmul.f32.gmra.mxu0 %v2874
      %v2895 = vpop.f32.mrf.mxu0
      %v2896 = vadd.f32 0.0, %v2895
      %2897 = vdwg.mxu0
      %2898 = vrot.lane.b32.xlu0 %v2768, 126
      %v2899 = vpop.permute.xlu0 %2898
      %v2900 = vsel %vm304, %v2768, 0
      %v2902 = vsel %vm304, %v2899, 0
      %2904 = vmatpush.xpose.msra.mxu0 0.0
      %2905 = vmatpush.xpose.msra.mxu0 0.0
      %2906 = vmatpush.xpose.msra.mxu0 0.0
      %2907 = vmatpush.xpose.msra.mxu0 0.0
      %2908 = vmatpush.xpose.msra.mxu0 0.0
      %2909 = vmatpush.xpose.msra.mxu0 0.0
      %2910 = vmatpush.xpose.msra.mxu0 0.0
      %2911 = vmatpush.xpose.msra.mxu0 0.0
      %2912 = vmatpush.xpose.msra.mxu0 0.0
      %2913 = vmatpush.xpose.msra.mxu0 0.0
      %2914 = vmatpush.xpose.msra.mxu0 0.0
      %2915 = vmatpush.xpose.msra.mxu0 0.0
      %2916 = vmatpush.xpose.msra.mxu0 0.0
      %2917 = vmatpush.xpose.msra.mxu0 0.0
      %2918 = vmatpush.xpose.msra.mxu0 0.0
      %2919 = vmatpush.xpose.msra.mxu0 %v2902
      %2920 = vmatmul.f32.gmra.mxu0 %v2900
      %v2921 = vpop.f32.mrf.mxu0
      %v2922 = vadd.f32 0.0, %v2921
      %2923 = vdwg.mxu0
      %2924 = vrot.lane.b32.xlu0 %v2770, 126
      %v2925 = vpop.permute.xlu0 %2924
      %v2926 = vsel %vm304, %v2770, 0
      %v2928 = vsel %vm304, %v2925, 0
      %2930 = vmatpush.xpose.msra.mxu0 0.0
      %2931 = vmatpush.xpose.msra.mxu0 0.0
      %2932 = vmatpush.xpose.msra.mxu0 0.0
      %2933 = vmatpush.xpose.msra.mxu0 0.0
      %2934 = vmatpush.xpose.msra.mxu0 0.0
      %2935 = vmatpush.xpose.msra.mxu0 0.0
      %2936 = vmatpush.xpose.msra.mxu0 0.0
      %2937 = vmatpush.xpose.msra.mxu0 0.0
      %2938 = vmatpush.xpose.msra.mxu0 0.0
      %2939 = vmatpush.xpose.msra.mxu0 0.0
      %2940 = vmatpush.xpose.msra.mxu0 0.0
      %2941 = vmatpush.xpose.msra.mxu0 0.0
      %2942 = vmatpush.xpose.msra.mxu0 0.0
      %2943 = vmatpush.xpose.msra.mxu0 0.0
      %2944 = vmatpush.xpose.msra.mxu0 0.0
      %2945 = vmatpush.xpose.msra.mxu0 %v2928
      %2946 = vmatmul.f32.gmra.mxu0 %v2926
      %v2947 = vpop.f32.mrf.mxu0
      %v2948 = vadd.f32 0.0, %v2947
      %2949 = vdwg.mxu0
      %2950 = vrot.lane.b32.xlu0 %v2773, 126
      %v2951 = vpop.permute.xlu0 %2950
      %v2952 = vsel %vm304, %v2773, 0
      %v2954 = vsel %vm304, %v2951, 0
      %2956 = vmatpush.xpose.msra.mxu0 0.0
      %2957 = vmatpush.xpose.msra.mxu0 0.0
      %2958 = vmatpush.xpose.msra.mxu0 0.0
      %2959 = vmatpush.xpose.msra.mxu0 0.0
      %2960 = vmatpush.xpose.msra.mxu0 0.0
      %2961 = vmatpush.xpose.msra.mxu0 0.0
      %2962 = vmatpush.xpose.msra.mxu0 0.0
      %2963 = vmatpush.xpose.msra.mxu0 0.0
      %2964 = vmatpush.xpose.msra.mxu0 0.0
      %2965 = vmatpush.xpose.msra.mxu0 0.0
      %2966 = vmatpush.xpose.msra.mxu0 0.0
      %2967 = vmatpush.xpose.msra.mxu0 0.0
      %2968 = vmatpush.xpose.msra.mxu0 0.0
      %2969 = vmatpush.xpose.msra.mxu0 0.0
      %2970 = vmatpush.xpose.msra.mxu0 0.0
      %2971 = vmatpush.xpose.msra.mxu0 %v2954
      %2972 = vmatmul.f32.gmra.mxu0 %v2952
      %v2973 = vpop.f32.mrf.mxu0
      %v2974 = vadd.f32 0.0, %v2973
      %2975 = vdwg.mxu0
      %2976 = vrot.lane.b32.xlu0 %v2775, 126
      %v2977 = vpop.permute.xlu0 %2976
      %v2978 = vsel %vm304, %v2775, 0
      %v2980 = vsel %vm304, %v2977, 0
      %2982 = vmatpush.xpose.msra.mxu0 0.0
      %2983 = vmatpush.xpose.msra.mxu0 0.0
      %2984 = vmatpush.xpose.msra.mxu0 0.0
      %2985 = vmatpush.xpose.msra.mxu0 0.0
      %2986 = vmatpush.xpose.msra.mxu0 0.0
      %2987 = vmatpush.xpose.msra.mxu0 0.0
      %2988 = vmatpush.xpose.msra.mxu0 0.0
      %2989 = vmatpush.xpose.msra.mxu0 0.0
      %2990 = vmatpush.xpose.msra.mxu0 0.0
      %2991 = vmatpush.xpose.msra.mxu0 0.0
      %2992 = vmatpush.xpose.msra.mxu0 0.0
      %2993 = vmatpush.xpose.msra.mxu0 0.0
      %2994 = vmatpush.xpose.msra.mxu0 0.0
      %2995 = vmatpush.xpose.msra.mxu0 0.0
      %2996 = vmatpush.xpose.msra.mxu0 0.0
      %2997 = vmatpush.xpose.msra.mxu0 %v2980
      %2998 = vmatmul.f32.gmra.mxu0 %v2978
      %v2999 = vpop.f32.mrf.mxu0
      %v3000 = vadd.f32 0.0, %v2999
      %3001 = vdwg.mxu0
      %3002 = vrot.lane.b32.xlu0 %v2778, 126
      %v3003 = vpop.permute.xlu0 %3002
      %v3004 = vsel %vm304, %v2778, 0
      %v3006 = vsel %vm304, %v3003, 0
      %3008 = vmatpush.xpose.msra.mxu0 0.0
      %3009 = vmatpush.xpose.msra.mxu0 0.0
      %3010 = vmatpush.xpose.msra.mxu0 0.0
      %3011 = vmatpush.xpose.msra.mxu0 0.0
      %3012 = vmatpush.xpose.msra.mxu0 0.0
      %3013 = vmatpush.xpose.msra.mxu0 0.0
      %3014 = vmatpush.xpose.msra.mxu0 0.0
      %3015 = vmatpush.xpose.msra.mxu0 0.0
      %3016 = vmatpush.xpose.msra.mxu0 0.0
      %3017 = vmatpush.xpose.msra.mxu0 0.0
      %3018 = vmatpush.xpose.msra.mxu0 0.0
      %3019 = vmatpush.xpose.msra.mxu0 0.0
      %3020 = vmatpush.xpose.msra.mxu0 0.0
      %3021 = vmatpush.xpose.msra.mxu0 0.0
      %3022 = vmatpush.xpose.msra.mxu0 0.0
      %3023 = vmatpush.xpose.msra.mxu0 %v3006
      %3024 = vmatmul.f32.gmra.mxu0 %v3004
      %v3025 = vpop.f32.mrf.mxu0
      %v3026 = vadd.f32 0.0, %v3025
      %3027 = vdwg.mxu0
      %3028 = vrot.lane.b32.xlu0 %v2780, 126
      %v3029 = vpop.permute.xlu0 %3028
      %v3030 = vsel %vm304, %v2780, 0
      %v3032 = vsel %vm304, %v3029, 0
      %3034 = vmatpush.xpose.msra.mxu0 0.0
      %3035 = vmatpush.xpose.msra.mxu0 0.0
      %3036 = vmatpush.xpose.msra.mxu0 0.0
      %3037 = vmatpush.xpose.msra.mxu0 0.0
      %3038 = vmatpush.xpose.msra.mxu0 0.0
      %3039 = vmatpush.xpose.msra.mxu0 0.0
      %3040 = vmatpush.xpose.msra.mxu0 0.0
      %3041 = vmatpush.xpose.msra.mxu0 0.0
      %3042 = vmatpush.xpose.msra.mxu0 0.0
      %3043 = vmatpush.xpose.msra.mxu0 0.0
      %3044 = vmatpush.xpose.msra.mxu0 0.0
      %3045 = vmatpush.xpose.msra.mxu0 0.0
      %3046 = vmatpush.xpose.msra.mxu0 0.0
      %3047 = vmatpush.xpose.msra.mxu0 0.0
      %3048 = vmatpush.xpose.msra.mxu0 0.0
      %3049 = vmatpush.xpose.msra.mxu0 %v3032
      %3050 = vmatmul.f32.gmra.mxu0 %v3030
      %v3051 = vpop.f32.mrf.mxu0
      %v3052 = vadd.f32 0.0, %v3051
      %3053 = vdwg.mxu0
      %v3054 = vsel %vm517, %v2839, %v2763
      %v3055 = vsel %vm519, %v2832, %v3054
      %v3056 = vsel %vm521, %v2825, %v3055
      %v3057 = vsel %vm523, %v2818, %v3056
      %v3058 = vsel %vm525, %v2811, %v3057
      %v3059 = vsel %vm527, %v2804, %v3058
      %v3060 = vsel %vm529, %v2797, %v3059
      %3061 = vrot.lane.b32.xlu0 %v3060, 126
      %v3062 = vpop.permute.xlu0 %3061
      %v3063 = vsel %vm304, %v3060, 0
      %v3065 = vsel %vm304, %v3062, 0
      %3067 = vmatpush.xpose.msra.mxu0 0.0
      %3068 = vmatpush.xpose.msra.mxu0 0.0
      %3069 = vmatpush.xpose.msra.mxu0 0.0
      %3070 = vmatpush.xpose.msra.mxu0 0.0
      %3071 = vmatpush.xpose.msra.mxu0 0.0
      %3072 = vmatpush.xpose.msra.mxu0 0.0
      %3073 = vmatpush.xpose.msra.mxu0 0.0
      %3074 = vmatpush.xpose.msra.mxu0 0.0
      %3075 = vmatpush.xpose.msra.mxu0 0.0
      %3076 = vmatpush.xpose.msra.mxu0 0.0
      %3077 = vmatpush.xpose.msra.mxu0 0.0
      %3078 = vmatpush.xpose.msra.mxu0 0.0
      %3079 = vmatpush.xpose.msra.mxu0 0.0
      %3080 = vmatpush.xpose.msra.mxu0 0.0
      %3081 = vmatpush.xpose.msra.mxu0 0.0
      %3082 = vmatpush.xpose.msra.mxu0 %v3065
      %3083 = vmatmul.f32.gmra.mxu0 %v3063
      %v3084 = vpop.f32.mrf.mxu0
      %v3085 = vadd.f32 %v516, %v3084
      %3086 = vdwg.mxu0
      %v3087 = vrot.slane %v2791, 7
      %v3088 = vsel %vm517, %v3087, %v2790
      %v3089 = vrot.slane %v2792, 6
      %v3090 = vsel %vm519, %v3089, %v3088
      %v3091 = vrot.slane %v2793, 5
      %v3092 = vsel %vm521, %v3091, %v3090
      %v3093 = vrot.slane %v2794, 4
      %v3094 = vsel %vm523, %v3093, %v3092
      %v3095 = vrot.slane %v2795, 3
      %v3096 = vsel %vm525, %v3095, %v3094
      %v3097 = vrot.slane %v2796, 2
      %v3098 = vsel %vm527, %v3097, %v3096
      %v3099 = vrot.slane %v2797, 1
      %v3100 = vsel %vm529, %v3099, %v3098
      %3101 = vrot.lane.b32.xlu0 %v3100, 126
      %v3102 = vpop.permute.xlu0 %3101
      %v3103 = vsel %vm304, %v3100, 0
      %v3105 = vsel %vm304, %v3102, 0
      %3107 = vmatpush.xpose.msra.mxu0 0.0
      %3108 = vmatpush.xpose.msra.mxu0 0.0
      %3109 = vmatpush.xpose.msra.mxu0 0.0
      %3110 = vmatpush.xpose.msra.mxu0 0.0
      %3111 = vmatpush.xpose.msra.mxu0 0.0
      %3112 = vmatpush.xpose.msra.mxu0 0.0
      %3113 = vmatpush.xpose.msra.mxu0 0.0
      %3114 = vmatpush.xpose.msra.mxu0 0.0
      %3115 = vmatpush.xpose.msra.mxu0 0.0
      %3116 = vmatpush.xpose.msra.mxu0 0.0
      %3117 = vmatpush.xpose.msra.mxu0 0.0
      %3118 = vmatpush.xpose.msra.mxu0 0.0
      %3119 = vmatpush.xpose.msra.mxu0 0.0
      %3120 = vmatpush.xpose.msra.mxu0 0.0
      %3121 = vmatpush.xpose.msra.mxu0 0.0
      %3122 = vmatpush.xpose.msra.mxu0 %v3105
      %3123 = vmatmul.f32.gmra.mxu0 %v3103
      %v3124 = vpop.f32.mrf.mxu0
      %v3125 = vadd.f32 %v516, %v3124
      %3126 = vdwg.mxu0
      %v3127 = vrot.slane %v2799, 7
      %v3128 = vsel %vm517, %v3127, %v2798
      %v3129 = vrot.slane %v2800, 6
      %v3130 = vsel %vm519, %v3129, %v3128
      %v3131 = vrot.slane %v2801, 5
      %v3132 = vsel %vm521, %v3131, %v3130
      %v3133 = vrot.slane %v2802, 4
      %v3134 = vsel %vm523, %v3133, %v3132
      %v3135 = vrot.slane %v2803, 3
      %v3136 = vsel %vm525, %v3135, %v3134
      %v3137 = vrot.slane %v2804, 2
      %v3138 = vsel %vm527, %v3137, %v3136
      %v3139 = vrot.slane %v2805, 1
      %v3140 = vsel %vm529, %v3139, %v3138
      %3141 = vrot.lane.b32.xlu0 %v3140, 126
      %v3142 = vpop.permute.xlu0 %3141
      %v3143 = vsel %vm304, %v3140, 0
      %v3145 = vsel %vm304, %v3142, 0
      %3147 = vmatpush.xpose.msra.mxu0 0.0
      %3148 = vmatpush.xpose.msra.mxu0 0.0
      %3149 = vmatpush.xpose.msra.mxu0 0.0
      %3150 = vmatpush.xpose.msra.mxu0 0.0
      %3151 = vmatpush.xpose.msra.mxu0 0.0
      %3152 = vmatpush.xpose.msra.mxu0 0.0
      %3153 = vmatpush.xpose.msra.mxu0 0.0
      %3154 = vmatpush.xpose.msra.mxu0 0.0
      %3155 = vmatpush.xpose.msra.mxu0 0.0
      %3156 = vmatpush.xpose.msra.mxu0 0.0
      %3157 = vmatpush.xpose.msra.mxu0 0.0
      %3158 = vmatpush.xpose.msra.mxu0 0.0
      %3159 = vmatpush.xpose.msra.mxu0 0.0
      %3160 = vmatpush.xpose.msra.mxu0 0.0
      %3161 = vmatpush.xpose.msra.mxu0 0.0
      %3162 = vmatpush.xpose.msra.mxu0 %v3145
      %3163 = vmatmul.f32.gmra.mxu0 %v3143
      %v3164 = vpop.f32.mrf.mxu0
      %v3165 = vadd.f32 %v516, %v3164
      %3166 = vdwg.mxu0
      %v3167 = vrot.slane %v2807, 7
      %v3168 = vsel %vm517, %v3167, %v2806
      %v3169 = vrot.slane %v2808, 6
      %v3170 = vsel %vm519, %v3169, %v3168
      %v3171 = vrot.slane %v2809, 5
      %v3172 = vsel %vm521, %v3171, %v3170
      %v3173 = vrot.slane %v2810, 4
      %v3174 = vsel %vm523, %v3173, %v3172
      %v3175 = vrot.slane %v2811, 3
      %v3176 = vsel %vm525, %v3175, %v3174
      %v3177 = vrot.slane %v2812, 2
      %v3178 = vsel %vm527, %v3177, %v3176
      %v3179 = vrot.slane %v2813, 1
      %v3180 = vsel %vm529, %v3179, %v3178
      %3181 = vrot.lane.b32.xlu0 %v3180, 126
      %v3182 = vpop.permute.xlu0 %3181
      %v3183 = vsel %vm304, %v3180, 0
      %v3185 = vsel %vm304, %v3182, 0
      %3187 = vmatpush.xpose.msra.mxu0 0.0
      %3188 = vmatpush.xpose.msra.mxu0 0.0
      %3189 = vmatpush.xpose.msra.mxu0 0.0
      %3190 = vmatpush.xpose.msra.mxu0 0.0
      %3191 = vmatpush.xpose.msra.mxu0 0.0
      %3192 = vmatpush.xpose.msra.mxu0 0.0
      %3193 = vmatpush.xpose.msra.mxu0 0.0
      %3194 = vmatpush.xpose.msra.mxu0 0.0
      %3195 = vmatpush.xpose.msra.mxu0 0.0
      %3196 = vmatpush.xpose.msra.mxu0 0.0
      %3197 = vmatpush.xpose.msra.mxu0 0.0
      %3198 = vmatpush.xpose.msra.mxu0 0.0
      %3199 = vmatpush.xpose.msra.mxu0 0.0
      %3200 = vmatpush.xpose.msra.mxu0 0.0
      %3201 = vmatpush.xpose.msra.mxu0 0.0
      %3202 = vmatpush.xpose.msra.mxu0 %v3185
      %3203 = vmatmul.f32.gmra.mxu0 %v3183
      %v3204 = vpop.f32.mrf.mxu0
      %v3205 = vadd.f32 %v516, %v3204
      %3206 = vdwg.mxu0
      %v3207 = vrot.slane %v2815, 7
      %v3208 = vsel %vm517, %v3207, %v2814
      %v3209 = vrot.slane %v2816, 6
      %v3210 = vsel %vm519, %v3209, %v3208
      %v3211 = vrot.slane %v2817, 5
      %v3212 = vsel %vm521, %v3211, %v3210
      %v3213 = vrot.slane %v2818, 4
      %v3214 = vsel %vm523, %v3213, %v3212
      %v3215 = vrot.slane %v2819, 3
      %v3216 = vsel %vm525, %v3215, %v3214
      %v3217 = vrot.slane %v2820, 2
      %v3218 = vsel %vm527, %v3217, %v3216
      %v3219 = vrot.slane %v2821, 1
      %v3220 = vsel %vm529, %v3219, %v3218
      %3221 = vrot.lane.b32.xlu0 %v3220, 126
      %v3222 = vpop.permute.xlu0 %3221
      %v3223 = vsel %vm304, %v3220, 0
      %v3225 = vsel %vm304, %v3222, 0
      %3227 = vmatpush.xpose.msra.mxu0 0.0
      %3228 = vmatpush.xpose.msra.mxu0 0.0
      %3229 = vmatpush.xpose.msra.mxu0 0.0
      %3230 = vmatpush.xpose.msra.mxu0 0.0
      %3231 = vmatpush.xpose.msra.mxu0 0.0
      %3232 = vmatpush.xpose.msra.mxu0 0.0
      %3233 = vmatpush.xpose.msra.mxu0 0.0
      %3234 = vmatpush.xpose.msra.mxu0 0.0
      %3235 = vmatpush.xpose.msra.mxu0 0.0
      %3236 = vmatpush.xpose.msra.mxu0 0.0
      %3237 = vmatpush.xpose.msra.mxu0 0.0
      %3238 = vmatpush.xpose.msra.mxu0 0.0
      %3239 = vmatpush.xpose.msra.mxu0 0.0
      %3240 = vmatpush.xpose.msra.mxu0 0.0
      %3241 = vmatpush.xpose.msra.mxu0 0.0
      %3242 = vmatpush.xpose.msra.mxu0 %v3225
      %3243 = vmatmul.f32.gmra.mxu0 %v3223
      %v3244 = vpop.f32.mrf.mxu0
      %v3245 = vadd.f32 %v516, %v3244
      %3246 = vdwg.mxu0
      %v3247 = vrot.slane %v2823, 7
      %v3248 = vsel %vm517, %v3247, %v2822
      %v3249 = vrot.slane %v2824, 6
      %v3250 = vsel %vm519, %v3249, %v3248
      %v3251 = vrot.slane %v2825, 5
      %v3252 = vsel %vm521, %v3251, %v3250
      %v3253 = vrot.slane %v2826, 4
      %v3254 = vsel %vm523, %v3253, %v3252
      %v3255 = vrot.slane %v2827, 3
      %v3256 = vsel %vm525, %v3255, %v3254
      %v3257 = vrot.slane %v2828, 2
      %v3258 = vsel %vm527, %v3257, %v3256
      %v3259 = vrot.slane %v2829, 1
      %v3260 = vsel %vm529, %v3259, %v3258
      %3261 = vrot.lane.b32.xlu0 %v3260, 126
      %v3262 = vpop.permute.xlu0 %3261
      %v3263 = vsel %vm304, %v3260, 0
      %v3265 = vsel %vm304, %v3262, 0
      %3267 = vmatpush.xpose.msra.mxu0 0.0
      %3268 = vmatpush.xpose.msra.mxu0 0.0
      %3269 = vmatpush.xpose.msra.mxu0 0.0
      %3270 = vmatpush.xpose.msra.mxu0 0.0
      %3271 = vmatpush.xpose.msra.mxu0 0.0
      %3272 = vmatpush.xpose.msra.mxu0 0.0
      %3273 = vmatpush.xpose.msra.mxu0 0.0
      %3274 = vmatpush.xpose.msra.mxu0 0.0
      %3275 = vmatpush.xpose.msra.mxu0 0.0
      %3276 = vmatpush.xpose.msra.mxu0 0.0
      %3277 = vmatpush.xpose.msra.mxu0 0.0
      %3278 = vmatpush.xpose.msra.mxu0 0.0
      %3279 = vmatpush.xpose.msra.mxu0 0.0
      %3280 = vmatpush.xpose.msra.mxu0 0.0
      %3281 = vmatpush.xpose.msra.mxu0 0.0
      %3282 = vmatpush.xpose.msra.mxu0 %v3265
      %3283 = vmatmul.f32.gmra.mxu0 %v3263
      %v3284 = vpop.f32.mrf.mxu0
      %v3285 = vadd.f32 %v516, %v3284
      %3286 = vdwg.mxu0
      %v3287 = vrot.slane %v2831, 7
      %v3288 = vsel %vm517, %v3287, %v2830
      %v3289 = vrot.slane %v2832, 6
      %v3290 = vsel %vm519, %v3289, %v3288
      %v3291 = vrot.slane %v2833, 5
      %v3292 = vsel %vm521, %v3291, %v3290
      %v3293 = vrot.slane %v2834, 4
      %v3294 = vsel %vm523, %v3293, %v3292
      %v3295 = vrot.slane %v2835, 3
      %v3296 = vsel %vm525, %v3295, %v3294
      %v3297 = vrot.slane %v2836, 2
      %v3298 = vsel %vm527, %v3297, %v3296
      %v3299 = vrot.slane %v2837, 1
      %v3300 = vsel %vm529, %v3299, %v3298
      %3301 = vrot.lane.b32.xlu0 %v3300, 126
      %v3302 = vpop.permute.xlu0 %3301
      %v3303 = vsel %vm304, %v3300, 0
      %v3305 = vsel %vm304, %v3302, 0
      %3307 = vmatpush.xpose.msra.mxu0 0.0
      %3308 = vmatpush.xpose.msra.mxu0 0.0
      %3309 = vmatpush.xpose.msra.mxu0 0.0
      %3310 = vmatpush.xpose.msra.mxu0 0.0
      %3311 = vmatpush.xpose.msra.mxu0 0.0
      %3312 = vmatpush.xpose.msra.mxu0 0.0
      %3313 = vmatpush.xpose.msra.mxu0 0.0
      %3314 = vmatpush.xpose.msra.mxu0 0.0
      %3315 = vmatpush.xpose.msra.mxu0 0.0
      %3316 = vmatpush.xpose.msra.mxu0 0.0
      %3317 = vmatpush.xpose.msra.mxu0 0.0
      %3318 = vmatpush.xpose.msra.mxu0 0.0
      %3319 = vmatpush.xpose.msra.mxu0 0.0
      %3320 = vmatpush.xpose.msra.mxu0 0.0
      %3321 = vmatpush.xpose.msra.mxu0 0.0
      %3322 = vmatpush.xpose.msra.mxu0 %v3305
      %3323 = vmatmul.f32.gmra.mxu0 %v3303
      %v3324 = vpop.f32.mrf.mxu0
      %v3325 = vadd.f32 %v516, %v3324
      %3326 = vdwg.mxu0
      %v3327 = vrot.slane %v2839, 7
      %v3328 = vsel %vm517, %v3327, %v2838
      %v3329 = vrot.slane %v2840, 6
      %v3330 = vsel %vm519, %v3329, %v3328
      %v3331 = vrot.slane %v2841, 5
      %v3332 = vsel %vm521, %v3331, %v3330
      %v3333 = vrot.slane %v2842, 4
      %v3334 = vsel %vm523, %v3333, %v3332
      %v3335 = vrot.slane %v2843, 3
      %v3336 = vsel %vm525, %v3335, %v3334
      %v3337 = vrot.slane %v2844, 2
      %v3338 = vsel %vm527, %v3337, %v3336
      %v3339 = vrot.slane %v2845, 1
      %v3340 = vsel %vm529, %v3339, %v3338
      %3341 = vrot.lane.b32.xlu0 %v3340, 126
      %v3342 = vpop.permute.xlu0 %3341
      %v3343 = vsel %vm304, %v3340, 0
      %v3345 = vsel %vm304, %v3342, 0
      %3347 = vmatpush.xpose.msra.mxu0 0.0
      %3348 = vmatpush.xpose.msra.mxu0 0.0
      %3349 = vmatpush.xpose.msra.mxu0 0.0
      %3350 = vmatpush.xpose.msra.mxu0 0.0
      %3351 = vmatpush.xpose.msra.mxu0 0.0
      %3352 = vmatpush.xpose.msra.mxu0 0.0
      %3353 = vmatpush.xpose.msra.mxu0 0.0
      %3354 = vmatpush.xpose.msra.mxu0 0.0
      %3355 = vmatpush.xpose.msra.mxu0 0.0
      %3356 = vmatpush.xpose.msra.mxu0 0.0
      %3357 = vmatpush.xpose.msra.mxu0 0.0
      %3358 = vmatpush.xpose.msra.mxu0 0.0
      %3359 = vmatpush.xpose.msra.mxu0 0.0
      %3360 = vmatpush.xpose.msra.mxu0 0.0
      %3361 = vmatpush.xpose.msra.mxu0 0.0
      %3362 = vmatpush.xpose.msra.mxu0 %v3345
      %3363 = vmatmul.f32.gmra.mxu0 %v3343
      %v3364 = vpop.f32.mrf.mxu0
      %v3365 = vadd.f32 %v516, %v3364
      %3366 = vdwg.mxu0
      %v3367 = vsel %vm837, %v3085, -inf
      %3368 = vmax.xlane.f32.xlu0 %v3367
      %v3369 = vpop.xlane.xlu0 %3368
      %v3370 = vsel %vm837, %v3125, -inf
      %3371 = vmax.xlane.f32.xlu0 %v3370
      %v3372 = vpop.xlane.xlu0 %3371
      %v3373 = vsel %vm837, %v3165, -inf
      %3374 = vmax.xlane.f32.xlu0 %v3373
      %v3375 = vpop.xlane.xlu0 %3374
      %v3376 = vsel %vm837, %v3205, -inf
      %3377 = vmax.xlane.f32.xlu0 %v3376
      %v3378 = vpop.xlane.xlu0 %3377
      %v3379 = vsel %vm837, %v3245, -inf
      %3380 = vmax.xlane.f32.xlu0 %v3379
      %v3381 = vpop.xlane.xlu0 %3380
      %v3382 = vsel %vm837, %v3285, -inf
      %3383 = vmax.xlane.f32.xlu0 %v3382
      %v3384 = vpop.xlane.xlu0 %3383
      %v3385 = vsel %vm837, %v3325, -inf
      %3386 = vmax.xlane.f32.xlu0 %v3385
      %v3387 = vpop.xlane.xlu0 %3386
      %v3388 = vsel %vm837, %v3365, -inf
      %3389 = vmax.xlane.f32.xlu0 %v3388
      %v3390 = vpop.xlane.xlu0 %3389
      %v3391 = vsel %vm837, %v2870, -inf
      %3392 = vmax.xlane.f32.xlu0 %v3391
      %v3393 = vpop.xlane.xlu0 %3392
      %v3394 = vsel %vm837, %v2896, -inf
      %3395 = vmax.xlane.f32.xlu0 %v3394
      %v3396 = vpop.xlane.xlu0 %3395
      %v3397 = vsel %vm837, %v2922, -inf
      %3398 = vmax.xlane.f32.xlu0 %v3397
      %v3399 = vpop.xlane.xlu0 %3398
      %v3400 = vsel %vm837, %v2948, -inf
      %3401 = vmax.xlane.f32.xlu0 %v3400
      %v3402 = vpop.xlane.xlu0 %3401
      %v3403 = vsel %vm837, %v2974, -inf
      %3404 = vmax.xlane.f32.xlu0 %v3403
      %v3405 = vpop.xlane.xlu0 %3404
      %v3406 = vsel %vm837, %v3000, -inf
      %3407 = vmax.xlane.f32.xlu0 %v3406
      %v3408 = vpop.xlane.xlu0 %3407
      %v3409 = vsel %vm837, %v3026, -inf
      %3410 = vmax.xlane.f32.xlu0 %v3409
      %v3411 = vpop.xlane.xlu0 %3410
      %v3412 = vsel %vm837, %v3052, -inf
      %3413 = vmax.xlane.f32.xlu0 %v3412
      %v3414 = vpop.xlane.xlu0 %3413
      %v3423 = vperm.slane %v3369, %v514
      %v3424 = vperm.slane %v3372, %v514
      %v3425 = vperm.slane %v3375, %v514
      %v3426 = vperm.slane %v3378, %v514
      %v3427 = vperm.slane %v3381, %v514
      %v3428 = vperm.slane %v3384, %v514
      %v3429 = vperm.slane %v3387, %v514
      %v3430 = vperm.slane %v3390, %v514
      %v3431 = vsel %vm517, %v3424, %v3423
      %v3432 = vsel %vm519, %v3425, %v3431
      %v3433 = vsel %vm521, %v3426, %v3432
      %v3434 = vsel %vm523, %v3427, %v3433
      %v3435 = vsel %vm525, %v3428, %v3434
      %v3436 = vsel %vm527, %v3429, %v3435
      %v3437 = vsel %vm529, %v3430, %v3436
      %3439 = vxpose.xlu0.b32.start [1/16] %v3437, 128
      %3440 = vxpose.xlu0.b32.cont [2/16] 0.0, 128
      %3441 = vxpose.xlu0.b32.cont [3/16] 0.0, 128
      %3442 = vxpose.xlu0.b32.cont [4/16] 0.0, 128
      %3443 = vxpose.xlu0.b32.cont [5/16] 0.0, 128
      %3444 = vxpose.xlu0.b32.cont [6/16] 0.0, 128
      %3445 = vxpose.xlu0.b32.cont [7/16] 0.0, 128
      %3446 = vxpose.xlu0.b32.cont [8/16] 0.0, 128
      %3447 = vxpose.xlu0.b32.cont [9/16] 0.0, 128
      %3448 = vxpose.xlu0.b32.cont [10/16] 0.0, 128
      %3449 = vxpose.xlu0.b32.cont [11/16] 0.0, 128
      %3450 = vxpose.xlu0.b32.cont [12/16] 0.0, 128
      %3451 = vxpose.xlu0.b32.cont [13/16] 0.0, 128
      %3452 = vxpose.xlu0.b32.cont [14/16] 0.0, 128
      %3453 = vxpose.xlu0.b32.cont [15/16] 0.0, 128
      %3454 = vxpose.xlu0.b32.end [16/16] 0.0, 128
      %v3455 = vpop.trf.xlu0
      %v3456 = vpop.trf.xlu0
      %v3457 = vpop.trf.xlu0
      %v3458 = vpop.trf.xlu0
      %v3459 = vpop.trf.xlu0
      %v3460 = vpop.trf.xlu0
      %v3461 = vpop.trf.xlu0
      %v3462 = vpop.trf.xlu0
      %v3463 = vpop.trf.xlu0
      %v3464 = vpop.trf.xlu0
      %v3465 = vpop.trf.xlu0
      %v3466 = vpop.trf.xlu0
      %v3467 = vpop.trf.xlu0
      %v3468 = vpop.trf.xlu0
      %v3469 = vpop.trf.xlu0
      %v3470 = vpop.trf.xlu0
      %v3479 = vperm.slane %v3393, %v514
      %v3480 = vperm.slane %v3396, %v514
      %v3481 = vperm.slane %v3399, %v514
      %v3482 = vperm.slane %v3402, %v514
      %v3483 = vperm.slane %v3405, %v514
      %v3484 = vperm.slane %v3408, %v514
      %v3485 = vperm.slane %v3411, %v514
      %v3486 = vperm.slane %v3414, %v514
      %v3487 = vsel %vm517, %v3480, %v3479
      %v3488 = vsel %vm519, %v3481, %v3487
      %v3489 = vsel %vm521, %v3482, %v3488
      %v3490 = vsel %vm523, %v3483, %v3489
      %v3491 = vsel %vm525, %v3484, %v3490
      %v3492 = vsel %vm527, %v3485, %v3491
      %v3493 = vsel %vm529, %v3486, %v3492
      %v3495 = vmax.f32 %v3455, %v3493
      %3496 = vxpose.xlu0.b32.start [1/16] %v3495, 128
      %3497 = vxpose.xlu0.b32.cont [2/16] 0.0, 128
      %3498 = vxpose.xlu0.b32.cont [3/16] 0.0, 128
      %3499 = vxpose.xlu0.b32.cont [4/16] 0.0, 128
      %3500 = vxpose.xlu0.b32.cont [5/16] 0.0, 128
      %3501 = vxpose.xlu0.b32.cont [6/16] 0.0, 128
      %3502 = vxpose.xlu0.b32.cont [7/16] 0.0, 128
      %3503 = vxpose.xlu0.b32.cont [8/16] 0.0, 128
      %3504 = vxpose.xlu0.b32.cont [9/16] 0.0, 128
      %3505 = vxpose.xlu0.b32.cont [10/16] 0.0, 128
      %3506 = vxpose.xlu0.b32.cont [11/16] 0.0, 128
      %3507 = vxpose.xlu0.b32.cont [12/16] 0.0, 128
      %3508 = vxpose.xlu0.b32.cont [13/16] 0.0, 128
      %3509 = vxpose.xlu0.b32.cont [14/16] 0.0, 128
      %3510 = vxpose.xlu0.b32.cont [15/16] 0.0, 128
      %3511 = vxpose.xlu0.b32.end [16/16] 0.0, 128
      %v3512 = vpop.trf.xlu0
      %v3513 = vpop.trf.xlu0
      %v3514 = vpop.trf.xlu0
      %v3515 = vpop.trf.xlu0
      %v3516 = vpop.trf.xlu0
      %v3517 = vpop.trf.xlu0
      %v3518 = vpop.trf.xlu0
      %v3519 = vpop.trf.xlu0
      %v3520 = vpop.trf.xlu0
      %v3521 = vpop.trf.xlu0
      %v3522 = vpop.trf.xlu0
      %v3523 = vpop.trf.xlu0
      %v3524 = vpop.trf.xlu0
      %v3525 = vpop.trf.xlu0
      %v3526 = vpop.trf.xlu0
      %v3527 = vpop.trf.xlu0
      %v3528 = vperm.slane %v3512, 0
      %v3529 = vlaneseq
      %v3530 = vshrl.u32 %v3529, 7
      %3532 = vset.pattern.permute.xlu0 %v3530
      %3533 = vperm.xlu0 %3532, %v3528
      %v3534 = vpop.permute.xlu0 %3533
      %v3535 = vperm.slane %v3512, 1
      %v3536 = vlaneseq
      %v3537 = vshrl.u32 %v3536, 7
      %3539 = vset.pattern.permute.xlu0 %v3537
      %3540 = vperm.xlu0 %3539, %v3535
      %v3541 = vpop.permute.xlu0 %3540
      %v3542 = vperm.slane %v3512, 2
      %v3543 = vlaneseq
      %v3544 = vshrl.u32 %v3543, 7
      %3546 = vset.pattern.permute.xlu0 %v3544
      %3547 = vperm.xlu0 %3546, %v3542
      %v3548 = vpop.permute.xlu0 %3547
      %v3549 = vperm.slane %v3512, 3
      %v3550 = vlaneseq
      %v3551 = vshrl.u32 %v3550, 7
      %3553 = vset.pattern.permute.xlu0 %v3551
      %3554 = vperm.xlu0 %3553, %v3549
      %v3555 = vpop.permute.xlu0 %3554
      %v3556 = vperm.slane %v3512, 4
      %v3557 = vlaneseq
      %v3558 = vshrl.u32 %v3557, 7
      %3560 = vset.pattern.permute.xlu0 %v3558
      %3561 = vperm.xlu0 %3560, %v3556
      %v3562 = vpop.permute.xlu0 %3561
      %v3563 = vperm.slane %v3512, 5
      %v3564 = vlaneseq
      %v3565 = vshrl.u32 %v3564, 7
      %3567 = vset.pattern.permute.xlu0 %v3565
      %3568 = vperm.xlu0 %3567, %v3563
      %v3569 = vpop.permute.xlu0 %3568
      %v3570 = vperm.slane %v3512, 6
      %v3571 = vlaneseq
      %v3572 = vshrl.u32 %v3571, 7
      %3574 = vset.pattern.permute.xlu0 %v3572
      %3575 = vperm.xlu0 %3574, %v3570
      %v3576 = vpop.permute.xlu0 %3575
      %v3577 = vperm.slane %v3512, 7
      %v3578 = vlaneseq
      %v3579 = vshrl.u32 %v3578, 7
      %3581 = vset.pattern.permute.xlu0 %v3579
      %3582 = vperm.xlu0 %3581, %v3577
      %v3583 = vpop.permute.xlu0 %3582
      %v3584 = vsub.f32 %v3085, %v3534
      %v3585 = vsub.f32 %v3125, %v3541
      %v3586 = vsub.f32 %v3165, %v3548
      %v3587 = vsub.f32 %v3205, %v3555
      %v3588 = vsub.f32 %v3245, %v3562
      %v3589 = vsub.f32 %v3285, %v3569
      %v3590 = vsub.f32 %v3325, %v3576
      %v3591 = vsub.f32 %v3365, %v3583
      %v3592 = vmul.f32 %v3584, 1.442695
      %v3593 = vpow.pop %v3592
      %v3594 = vmul.f32 %v3585, 1.442695
      %v3595 = vpow.pop %v3594
      %v3596 = vmul.f32 %v3586, 1.442695
      %v3597 = vpow.pop %v3596
      %v3598 = vmul.f32 %v3587, 1.442695
      %v3599 = vpow.pop %v3598
      %v3600 = vmul.f32 %v3588, 1.442695
      %v3601 = vpow.pop %v3600
      %v3602 = vmul.f32 %v3589, 1.442695
      %v3603 = vpow.pop %v3602
      %v3604 = vmul.f32 %v3590, 1.442695
      %v3605 = vpow.pop %v3604
      %v3606 = vmul.f32 %v3591, 1.442695
      %v3607 = vpow.pop %v3606
      %v3608 = vperm.slane %v3495, 0
      %v3609 = vlaneseq
      %v3610 = vshrl.u32 %v3609, 7
      %3612 = vset.pattern.permute.xlu0 %v3610
      %3613 = vperm.xlu0 %3612, %v3608
      %v3614 = vpop.permute.xlu0 %3613
      %v3615 = vperm.slane %v3495, 1
      %v3616 = vlaneseq
      %v3617 = vshrl.u32 %v3616, 7
      %3619 = vset.pattern.permute.xlu0 %v3617
      %3620 = vperm.xlu0 %3619, %v3615
      %v3621 = vpop.permute.xlu0 %3620
      %v3622 = vperm.slane %v3495, 2
      %v3623 = vlaneseq
      %v3624 = vshrl.u32 %v3623, 7
      %3626 = vset.pattern.permute.xlu0 %v3624
      %3627 = vperm.xlu0 %3626, %v3622
      %v3628 = vpop.permute.xlu0 %3627
      %v3629 = vperm.slane %v3495, 3
      %v3630 = vlaneseq
      %v3631 = vshrl.u32 %v3630, 7
      %3633 = vset.pattern.permute.xlu0 %v3631
      %3634 = vperm.xlu0 %3633, %v3629
      %v3635 = vpop.permute.xlu0 %3634
      %v3636 = vperm.slane %v3495, 4
      %v3637 = vlaneseq
      %v3638 = vshrl.u32 %v3637, 7
      %3640 = vset.pattern.permute.xlu0 %v3638
      %3641 = vperm.xlu0 %3640, %v3636
      %v3642 = vpop.permute.xlu0 %3641
      %v3643 = vperm.slane %v3495, 5
      %v3644 = vlaneseq
      %v3645 = vshrl.u32 %v3644, 7
      %3647 = vset.pattern.permute.xlu0 %v3645
      %3648 = vperm.xlu0 %3647, %v3643
      %v3649 = vpop.permute.xlu0 %3648
      %v3650 = vperm.slane %v3495, 6
      %v3651 = vlaneseq
      %v3652 = vshrl.u32 %v3651, 7
      %3654 = vset.pattern.permute.xlu0 %v3652
      %3655 = vperm.xlu0 %3654, %v3650
      %v3656 = vpop.permute.xlu0 %3655
      %v3657 = vperm.slane %v3495, 7
      %v3658 = vlaneseq
      %v3659 = vshrl.u32 %v3658, 7
      %3661 = vset.pattern.permute.xlu0 %v3659
      %3662 = vperm.xlu0 %3661, %v3657
      %v3663 = vpop.permute.xlu0 %3662
      %v3664 = vsub.f32 %v2870, %v3614
      %v3665 = vsub.f32 %v2896, %v3621
      %v3666 = vsub.f32 %v2922, %v3628
      %v3667 = vsub.f32 %v2948, %v3635
      %v3668 = vsub.f32 %v2974, %v3642
      %v3669 = vsub.f32 %v3000, %v3649
      %v3670 = vsub.f32 %v3026, %v3656
      %v3671 = vsub.f32 %v3052, %v3663
      %v3672 = vmul.f32 %v3664, 1.442695
      %v3673 = vpow.pop %v3672
      %v3674 = vmul.f32 %v3665, 1.442695
      %v3675 = vpow.pop %v3674
      %v3676 = vmul.f32 %v3666, 1.442695
      %v3677 = vpow.pop %v3676
      %v3678 = vmul.f32 %v3667, 1.442695
      %v3679 = vpow.pop %v3678
      %v3680 = vmul.f32 %v3668, 1.442695
      %v3681 = vpow.pop %v3680
      %v3682 = vmul.f32 %v3669, 1.442695
      %v3683 = vpow.pop %v3682
      %v3684 = vmul.f32 %v3670, 1.442695
      %v3685 = vpow.pop %v3684
      %v3686 = vmul.f32 %v3671, 1.442695
      %v3687 = vpow.pop %v3686
      %v3688 = vsel %vm837, %v3593, 0.0
      %3689 = vadd.xlane.f32.xlu0 %v3688
      %v3690 = vpop.xlane.xlu0 %3689
      %v3691 = vsel %vm837, %v3595, 0.0
      %3692 = vadd.xlane.f32.xlu0 %v3691
      %v3693 = vpop.xlane.xlu0 %3692
      %v3694 = vsel %vm837, %v3597, 0.0
      %3695 = vadd.xlane.f32.xlu0 %v3694
      %v3696 = vpop.xlane.xlu0 %3695
      %v3697 = vsel %vm837, %v3599, 0.0
      %3698 = vadd.xlane.f32.xlu0 %v3697
      %v3699 = vpop.xlane.xlu0 %3698
      %v3700 = vsel %vm837, %v3601, 0.0
      %3701 = vadd.xlane.f32.xlu0 %v3700
      %v3702 = vpop.xlane.xlu0 %3701
      %v3703 = vsel %vm837, %v3603, 0.0
      %3704 = vadd.xlane.f32.xlu0 %v3703
      %v3705 = vpop.xlane.xlu0 %3704
      %v3706 = vsel %vm837, %v3605, 0.0
      %3707 = vadd.xlane.f32.xlu0 %v3706
      %v3708 = vpop.xlane.xlu0 %3707
      %v3709 = vsel %vm837, %v3607, 0.0
      %3710 = vadd.xlane.f32.xlu0 %v3709
      %v3711 = vpop.xlane.xlu0 %3710
      %v3720 = vperm.slane %v3690, %v514
      %v3721 = vperm.slane %v3693, %v514
      %v3722 = vperm.slane %v3696, %v514
      %v3723 = vperm.slane %v3699, %v514
      %v3724 = vperm.slane %v3702, %v514
      %v3725 = vperm.slane %v3705, %v514
      %v3726 = vperm.slane %v3708, %v514
      %v3727 = vperm.slane %v3711, %v514
      %v3728 = vsel %vm517, %v3721, %v3720
      %v3729 = vsel %vm519, %v3722, %v3728
      %v3730 = vsel %vm521, %v3723, %v3729
      %v3731 = vsel %vm523, %v3724, %v3730
      %v3732 = vsel %vm525, %v3725, %v3731
      %v3733 = vsel %vm527, %v3726, %v3732
      %v3734 = vsel %vm529, %v3727, %v3733
      %3736 = vxpose.xlu0.b32.start [1/16] %v3734, 128
      %3737 = vxpose.xlu0.b32.cont [2/16] 0.0, 128
      %3738 = vxpose.xlu0.b32.cont [3/16] 0.0, 128
      %3739 = vxpose.xlu0.b32.cont [4/16] 0.0, 128
      %3740 = vxpose.xlu0.b32.cont [5/16] 0.0, 128
      %3741 = vxpose.xlu0.b32.cont [6/16] 0.0, 128
      %3742 = vxpose.xlu0.b32.cont [7/16] 0.0, 128
      %3743 = vxpose.xlu0.b32.cont [8/16] 0.0, 128
      %3744 = vxpose.xlu0.b32.cont [9/16] 0.0, 128
      %3745 = vxpose.xlu0.b32.cont [10/16] 0.0, 128
      %3746 = vxpose.xlu0.b32.cont [11/16] 0.0, 128
      %3747 = vxpose.xlu0.b32.cont [12/16] 0.0, 128
      %3748 = vxpose.xlu0.b32.cont [13/16] 0.0, 128
      %3749 = vxpose.xlu0.b32.cont [14/16] 0.0, 128
      %3750 = vxpose.xlu0.b32.cont [15/16] 0.0, 128
      %3751 = vxpose.xlu0.b32.end [16/16] 0.0, 128
      %v3752 = vpop.trf.xlu0
      %v3753 = vpop.trf.xlu0
      %v3754 = vpop.trf.xlu0
      %v3755 = vpop.trf.xlu0
      %v3756 = vpop.trf.xlu0
      %v3757 = vpop.trf.xlu0
      %v3758 = vpop.trf.xlu0
      %v3759 = vpop.trf.xlu0
      %v3760 = vpop.trf.xlu0
      %v3761 = vpop.trf.xlu0
      %v3762 = vpop.trf.xlu0
      %v3763 = vpop.trf.xlu0
      %v3764 = vpop.trf.xlu0
      %v3765 = vpop.trf.xlu0
      %v3766 = vpop.trf.xlu0
      %v3767 = vpop.trf.xlu0
      %v3768 = vsel %vm837, %v3673, 0.0
      %3769 = vadd.xlane.f32.xlu0 %v3768
      %v3770 = vpop.xlane.xlu0 %3769
      %v3771 = vsel %vm837, %v3675, 0.0
      %3772 = vadd.xlane.f32.xlu0 %v3771
      %v3773 = vpop.xlane.xlu0 %3772
      %v3774 = vsel %vm837, %v3677, 0.0
      %3775 = vadd.xlane.f32.xlu0 %v3774
      %v3776 = vpop.xlane.xlu0 %3775
      %v3777 = vsel %vm837, %v3679, 0.0
      %3778 = vadd.xlane.f32.xlu0 %v3777
      %v3779 = vpop.xlane.xlu0 %3778
      %v3780 = vsel %vm837, %v3681, 0.0
      %3781 = vadd.xlane.f32.xlu0 %v3780
      %v3782 = vpop.xlane.xlu0 %3781
      %v3783 = vsel %vm837, %v3683, 0.0
      %3784 = vadd.xlane.f32.xlu0 %v3783
      %v3785 = vpop.xlane.xlu0 %3784
      %v3786 = vsel %vm837, %v3685, 0.0
      %3787 = vadd.xlane.f32.xlu0 %v3786
      %v3788 = vpop.xlane.xlu0 %3787
      %v3789 = vsel %vm837, %v3687, 0.0
      %3790 = vadd.xlane.f32.xlu0 %v3789
      %v3791 = vpop.xlane.xlu0 %3790
      %v3800 = vperm.slane %v3770, %v514
      %v3801 = vperm.slane %v3773, %v514
      %v3802 = vperm.slane %v3776, %v514
      %v3803 = vperm.slane %v3779, %v514
      %v3804 = vperm.slane %v3782, %v514
      %v3805 = vperm.slane %v3785, %v514
      %v3806 = vperm.slane %v3788, %v514
      %v3807 = vperm.slane %v3791, %v514
      %v3808 = vsel %vm517, %v3801, %v3800
      %v3809 = vsel %vm519, %v3802, %v3808
      %v3810 = vsel %vm521, %v3803, %v3809
      %v3811 = vsel %vm523, %v3804, %v3810
      %v3812 = vsel %vm525, %v3805, %v3811
      %v3813 = vsel %vm527, %v3806, %v3812
      %v3814 = vsel %vm529, %v3807, %v3813
      %v3816 = vadd.f32 %v3752, %v3814
      %v3817 = vrcp.pop %v3816
      %3818 = vxpose.xlu0.b32.start [1/16] %v3817, 128
      %3819 = vxpose.xlu0.b32.cont [2/16] 0.0, 128
      %3820 = vxpose.xlu0.b32.cont [3/16] 0.0, 128
      %3821 = vxpose.xlu0.b32.cont [4/16] 0.0, 128
      %3822 = vxpose.xlu0.b32.cont [5/16] 0.0, 128
      %3823 = vxpose.xlu0.b32.cont [6/16] 0.0, 128
      %3824 = vxpose.xlu0.b32.cont [7/16] 0.0, 128
      %3825 = vxpose.xlu0.b32.cont [8/16] 0.0, 128
      %3826 = vxpose.xlu0.b32.cont [9/16] 0.0, 128
      %3827 = vxpose.xlu0.b32.cont [10/16] 0.0, 128
      %3828 = vxpose.xlu0.b32.cont [11/16] 0.0, 128
      %3829 = vxpose.xlu0.b32.cont [12/16] 0.0, 128
      %3830 = vxpose.xlu0.b32.cont [13/16] 0.0, 128
      %3831 = vxpose.xlu0.b32.cont [14/16] 0.0, 128
      %3832 = vxpose.xlu0.b32.cont [15/16] 0.0, 128
      %3833 = vxpose.xlu0.b32.end [16/16] 0.0, 128
      %v3834 = vpop.trf.xlu0
      %v3835 = vpop.trf.xlu0
      %v3836 = vpop.trf.xlu0
      %v3837 = vpop.trf.xlu0
      %v3838 = vpop.trf.xlu0
      %v3839 = vpop.trf.xlu0
      %v3840 = vpop.trf.xlu0
      %v3841 = vpop.trf.xlu0
      %v3842 = vpop.trf.xlu0
      %v3843 = vpop.trf.xlu0
      %v3844 = vpop.trf.xlu0
      %v3845 = vpop.trf.xlu0
      %v3846 = vpop.trf.xlu0
      %v3847 = vpop.trf.xlu0
      %v3848 = vpop.trf.xlu0
      %v3849 = vpop.trf.xlu0
      %v3850 = vperm.slane %v3834, 0
      %v3851 = vlaneseq
      %v3852 = vshrl.u32 %v3851, 7
      %3854 = vset.pattern.permute.xlu0 %v3852
      %3855 = vperm.xlu0 %3854, %v3850
      %v3856 = vpop.permute.xlu0 %3855
      %v3857 = vperm.slane %v3834, 1
      %v3858 = vlaneseq
      %v3859 = vshrl.u32 %v3858, 7
      %3861 = vset.pattern.permute.xlu0 %v3859
      %3862 = vperm.xlu0 %3861, %v3857
      %v3863 = vpop.permute.xlu0 %3862
      %v3864 = vperm.slane %v3834, 2
      %v3865 = vlaneseq
      %v3866 = vshrl.u32 %v3865, 7
      %3868 = vset.pattern.permute.xlu0 %v3866
      %3869 = vperm.xlu0 %3868, %v3864
      %v3870 = vpop.permute.xlu0 %3869
      %v3871 = vperm.slane %v3834, 3
      %v3872 = vlaneseq
      %v3873 = vshrl.u32 %v3872, 7
      %3875 = vset.pattern.permute.xlu0 %v3873
      %3876 = vperm.xlu0 %3875, %v3871
      %v3877 = vpop.permute.xlu0 %3876
      %v3878 = vperm.slane %v3834, 4
      %v3879 = vlaneseq
      %v3880 = vshrl.u32 %v3879, 7
      %3882 = vset.pattern.permute.xlu0 %v3880
      %3883 = vperm.xlu0 %3882, %v3878
      %v3884 = vpop.permute.xlu0 %3883
      %v3885 = vperm.slane %v3834, 5
      %v3886 = vlaneseq
      %v3887 = vshrl.u32 %v3886, 7
      %3889 = vset.pattern.permute.xlu0 %v3887
      %3890 = vperm.xlu0 %3889, %v3885
      %v3891 = vpop.permute.xlu0 %3890
      %v3892 = vperm.slane %v3834, 6
      %v3893 = vlaneseq
      %v3894 = vshrl.u32 %v3893, 7
      %3896 = vset.pattern.permute.xlu0 %v3894
      %3897 = vperm.xlu0 %3896, %v3892
      %v3898 = vpop.permute.xlu0 %3897
      %v3899 = vperm.slane %v3834, 7
      %v3900 = vlaneseq
      %v3901 = vshrl.u32 %v3900, 7
      %3903 = vset.pattern.permute.xlu0 %v3901
      %3904 = vperm.xlu0 %3903, %v3899
      %v3905 = vpop.permute.xlu0 %3904
      %v3906 = vmul.f32 %v3593, %v3856
      %v3907 = vmul.f32 %v3595, %v3863
      %v3908 = vmul.f32 %v3597, %v3870
      %v3909 = vmul.f32 %v3599, %v3877
      %v3910 = vmul.f32 %v3601, %v3884
      %v3911 = vmul.f32 %v3603, %v3891
      %v3912 = vmul.f32 %v3605, %v3898
      %v3913 = vmul.f32 %v3607, %v3905
      %v3914 = vperm.slane %v3817, 0
      %v3915 = vlaneseq
      %v3916 = vshrl.u32 %v3915, 7
      %3918 = vset.pattern.permute.xlu0 %v3916
      %3919 = vperm.xlu0 %3918, %v3914
      %v3920 = vpop.permute.xlu0 %3919
      %v3921 = vperm.slane %v3817, 1
      %v3922 = vlaneseq
      %v3923 = vshrl.u32 %v3922, 7
      %3925 = vset.pattern.permute.xlu0 %v3923
      %3926 = vperm.xlu0 %3925, %v3921
      %v3927 = vpop.permute.xlu0 %3926
      %v3928 = vperm.slane %v3817, 2
      %v3929 = vlaneseq
      %v3930 = vshrl.u32 %v3929, 7
      %3932 = vset.pattern.permute.xlu0 %v3930
      %3933 = vperm.xlu0 %3932, %v3928
      %v3934 = vpop.permute.xlu0 %3933
      %v3935 = vperm.slane %v3817, 3
      %v3936 = vlaneseq
      %v3937 = vshrl.u32 %v3936, 7
      %3939 = vset.pattern.permute.xlu0 %v3937
      %3940 = vperm.xlu0 %3939, %v3935
      %v3941 = vpop.permute.xlu0 %3940
      %v3942 = vperm.slane %v3817, 4
      %v3943 = vlaneseq
      %v3944 = vshrl.u32 %v3943, 7
      %3946 = vset.pattern.permute.xlu0 %v3944
      %3947 = vperm.xlu0 %3946, %v3942
      %v3948 = vpop.permute.xlu0 %3947
      %v3949 = vperm.slane %v3817, 5
      %v3950 = vlaneseq
      %v3951 = vshrl.u32 %v3950, 7
      %3953 = vset.pattern.permute.xlu0 %v3951
      %3954 = vperm.xlu0 %3953, %v3949
      %v3955 = vpop.permute.xlu0 %3954
      %v3956 = vperm.slane %v3817, 6
      %v3957 = vlaneseq
      %v3958 = vshrl.u32 %v3957, 7
      %3960 = vset.pattern.permute.xlu0 %v3958
      %3961 = vperm.xlu0 %3960, %v3956
      %v3962 = vpop.permute.xlu0 %3961
      %v3963 = vperm.slane %v3817, 7
      %v3964 = vlaneseq
      %v3965 = vshrl.u32 %v3964, 7
      %3967 = vset.pattern.permute.xlu0 %v3965
      %3968 = vperm.xlu0 %3967, %v3963
      %v3969 = vpop.permute.xlu0 %3968
      %v3970 = vmul.f32 %v3673, %v3920
      %v3971 = vmul.f32 %v3675, %v3927
      %v3972 = vmul.f32 %v3677, %v3934
      %v3973 = vmul.f32 %v3679, %v3941
      %v3974 = vmul.f32 %v3681, %v3948
      %v3975 = vmul.f32 %v3683, %v3955
      %v3976 = vmul.f32 %v3685, %v3962
      %v3977 = vmul.f32 %v3687, %v3969
      %3978 = vrot.lane.b32.xlu0 %v3060, 124
      %v3979 = vpop.permute.xlu0 %3978
      %v3982 = vsel %vm837, %v3906, 0
      %3984 = vmatpush.msra.mxu0 0.0
      %3985 = vmatpush.msra.mxu0 0.0
      %3986 = vmatpush.msra.mxu0 0.0
      %3987 = vmatpush.msra.mxu0 0.0
      %3988 = vmatpush.msra.mxu0 0.0
      %3989 = vmatpush.msra.mxu0 0.0
      %3990 = vmatpush.msra.mxu0 0.0
      %3991 = vmatpush.msra.mxu0 0.0
      %3992 = vmatpush.msra.mxu0 0.0
      %3993 = vmatpush.msra.mxu0 0.0
      %3994 = vmatpush.msra.mxu0 0.0
      %3995 = vmatpush.msra.mxu0 0.0
      %3996 = vmatpush.msra.mxu0 0.0
      %3997 = vmatpush.msra.mxu0 0.0
      %3998 = vmatpush.msra.mxu0 0.0
      %3999 = vmatpush.msra.mxu0 %v3979
      %4000 = vmatmul.f32.gmra.mxu0 %v3982
      %v4001 = vpop.f32.mrf.mxu0
      %v4002 = vadd.f32 0.0, %v4001
      %4003 = vdwg.mxu0
      %4004 = vrot.lane.b32.xlu0 %v3100, 124
      %v4005 = vpop.permute.xlu0 %4004
      %v4008 = vsel %vm837, %v3907, 0
      %4010 = vmatpush.msra.mxu0 0.0
      %4011 = vmatpush.msra.mxu0 0.0
      %4012 = vmatpush.msra.mxu0 0.0
      %4013 = vmatpush.msra.mxu0 0.0
      %4014 = vmatpush.msra.mxu0 0.0
      %4015 = vmatpush.msra.mxu0 0.0
      %4016 = vmatpush.msra.mxu0 0.0
      %4017 = vmatpush.msra.mxu0 0.0
      %4018 = vmatpush.msra.mxu0 0.0
      %4019 = vmatpush.msra.mxu0 0.0
      %4020 = vmatpush.msra.mxu0 0.0
      %4021 = vmatpush.msra.mxu0 0.0
      %4022 = vmatpush.msra.mxu0 0.0
      %4023 = vmatpush.msra.mxu0 0.0
      %4024 = vmatpush.msra.mxu0 0.0
      %4025 = vmatpush.msra.mxu0 %v4005
      %4026 = vmatmul.f32.gmra.mxu0 %v4008
      %v4027 = vpop.f32.mrf.mxu0
      %v4028 = vadd.f32 0.0, %v4027
      %4029 = vdwg.mxu0
      %4030 = vrot.lane.b32.xlu0 %v3140, 124
      %v4031 = vpop.permute.xlu0 %4030
      %v4034 = vsel %vm837, %v3908, 0
      %4036 = vmatpush.msra.mxu0 0.0
      %4037 = vmatpush.msra.mxu0 0.0
      %4038 = vmatpush.msra.mxu0 0.0
      %4039 = vmatpush.msra.mxu0 0.0
      %4040 = vmatpush.msra.mxu0 0.0
      %4041 = vmatpush.msra.mxu0 0.0
      %4042 = vmatpush.msra.mxu0 0.0
      %4043 = vmatpush.msra.mxu0 0.0
      %4044 = vmatpush.msra.mxu0 0.0
      %4045 = vmatpush.msra.mxu0 0.0
      %4046 = vmatpush.msra.mxu0 0.0
      %4047 = vmatpush.msra.mxu0 0.0
      %4048 = vmatpush.msra.mxu0 0.0
      %4049 = vmatpush.msra.mxu0 0.0
      %4050 = vmatpush.msra.mxu0 0.0
      %4051 = vmatpush.msra.mxu0 %v4031
      %4052 = vmatmul.f32.gmra.mxu0 %v4034
      %v4053 = vpop.f32.mrf.mxu0
      %v4054 = vadd.f32 0.0, %v4053
      %4055 = vdwg.mxu0
      %4056 = vrot.lane.b32.xlu0 %v3180, 124
      %v4057 = vpop.permute.xlu0 %4056
      %v4060 = vsel %vm837, %v3909, 0
      %4062 = vmatpush.msra.mxu0 0.0
      %4063 = vmatpush.msra.mxu0 0.0
      %4064 = vmatpush.msra.mxu0 0.0
      %4065 = vmatpush.msra.mxu0 0.0
      %4066 = vmatpush.msra.mxu0 0.0
      %4067 = vmatpush.msra.mxu0 0.0
      %4068 = vmatpush.msra.mxu0 0.0
      %4069 = vmatpush.msra.mxu0 0.0
      %4070 = vmatpush.msra.mxu0 0.0
      %4071 = vmatpush.msra.mxu0 0.0
      %4072 = vmatpush.msra.mxu0 0.0
      %4073 = vmatpush.msra.mxu0 0.0
      %4074 = vmatpush.msra.mxu0 0.0
      %4075 = vmatpush.msra.mxu0 0.0
      %4076 = vmatpush.msra.mxu0 0.0
      %4077 = vmatpush.msra.mxu0 %v4057
      %4078 = vmatmul.f32.gmra.mxu0 %v4060
      %v4079 = vpop.f32.mrf.mxu0
      %v4080 = vadd.f32 0.0, %v4079
      %4081 = vdwg.mxu0
      %4082 = vrot.lane.b32.xlu0 %v3220, 124
      %v4083 = vpop.permute.xlu0 %4082
      %v4086 = vsel %vm837, %v3910, 0
      %4088 = vmatpush.msra.mxu0 0.0
      %4089 = vmatpush.msra.mxu0 0.0
      %4090 = vmatpush.msra.mxu0 0.0
      %4091 = vmatpush.msra.mxu0 0.0
      %4092 = vmatpush.msra.mxu0 0.0
      %4093 = vmatpush.msra.mxu0 0.0
      %4094 = vmatpush.msra.mxu0 0.0
      %4095 = vmatpush.msra.mxu0 0.0
      %4096 = vmatpush.msra.mxu0 0.0
      %4097 = vmatpush.msra.mxu0 0.0
      %4098 = vmatpush.msra.mxu0 0.0
      %4099 = vmatpush.msra.mxu0 0.0
      %4100 = vmatpush.msra.mxu0 0.0
      %4101 = vmatpush.msra.mxu0 0.0
      %4102 = vmatpush.msra.mxu0 0.0
      %4103 = vmatpush.msra.mxu0 %v4083
      %4104 = vmatmul.f32.gmra.mxu0 %v4086
      %v4105 = vpop.f32.mrf.mxu0
      %v4106 = vadd.f32 0.0, %v4105
      %4107 = vdwg.mxu0
      %4108 = vrot.lane.b32.xlu0 %v3260, 124
      %v4109 = vpop.permute.xlu0 %4108
      %v4112 = vsel %vm837, %v3911, 0
      %4114 = vmatpush.msra.mxu0 0.0
      %4115 = vmatpush.msra.mxu0 0.0
      %4116 = vmatpush.msra.mxu0 0.0
      %4117 = vmatpush.msra.mxu0 0.0
      %4118 = vmatpush.msra.mxu0 0.0
      %4119 = vmatpush.msra.mxu0 0.0
      %4120 = vmatpush.msra.mxu0 0.0
      %4121 = vmatpush.msra.mxu0 0.0
      %4122 = vmatpush.msra.mxu0 0.0
      %4123 = vmatpush.msra.mxu0 0.0
      %4124 = vmatpush.msra.mxu0 0.0
      %4125 = vmatpush.msra.mxu0 0.0
      %4126 = vmatpush.msra.mxu0 0.0
      %4127 = vmatpush.msra.mxu0 0.0
      %4128 = vmatpush.msra.mxu0 0.0
      %4129 = vmatpush.msra.mxu0 %v4109
      %4130 = vmatmul.f32.gmra.mxu0 %v4112
      %v4131 = vpop.f32.mrf.mxu0
      %v4132 = vadd.f32 0.0, %v4131
      %4133 = vdwg.mxu0
      %4134 = vrot.lane.b32.xlu0 %v3300, 124
      %v4135 = vpop.permute.xlu0 %4134
      %v4138 = vsel %vm837, %v3912, 0
      %4140 = vmatpush.msra.mxu0 0.0
      %4141 = vmatpush.msra.mxu0 0.0
      %4142 = vmatpush.msra.mxu0 0.0
      %4143 = vmatpush.msra.mxu0 0.0
      %4144 = vmatpush.msra.mxu0 0.0
      %4145 = vmatpush.msra.mxu0 0.0
      %4146 = vmatpush.msra.mxu0 0.0
      %4147 = vmatpush.msra.mxu0 0.0
      %4148 = vmatpush.msra.mxu0 0.0
      %4149 = vmatpush.msra.mxu0 0.0
      %4150 = vmatpush.msra.mxu0 0.0
      %4151 = vmatpush.msra.mxu0 0.0
      %4152 = vmatpush.msra.mxu0 0.0
      %4153 = vmatpush.msra.mxu0 0.0
      %4154 = vmatpush.msra.mxu0 0.0
      %4155 = vmatpush.msra.mxu0 %v4135
      %4156 = vmatmul.f32.gmra.mxu0 %v4138
      %v4157 = vpop.f32.mrf.mxu0
      %v4158 = vadd.f32 0.0, %v4157
      %4159 = vdwg.mxu0
      %4160 = vrot.lane.b32.xlu0 %v3340, 124
      %v4161 = vpop.permute.xlu0 %4160
      %v4164 = vsel %vm837, %v3913, 0
      %4166 = vmatpush.msra.mxu0 0.0
      %4167 = vmatpush.msra.mxu0 0.0
      %4168 = vmatpush.msra.mxu0 0.0
      %4169 = vmatpush.msra.mxu0 0.0
      %4170 = vmatpush.msra.mxu0 0.0
      %4171 = vmatpush.msra.mxu0 0.0
      %4172 = vmatpush.msra.mxu0 0.0
      %4173 = vmatpush.msra.mxu0 0.0
      %4174 = vmatpush.msra.mxu0 0.0
      %4175 = vmatpush.msra.mxu0 0.0
      %4176 = vmatpush.msra.mxu0 0.0
      %4177 = vmatpush.msra.mxu0 0.0
      %4178 = vmatpush.msra.mxu0 0.0
      %4179 = vmatpush.msra.mxu0 0.0
      %4180 = vmatpush.msra.mxu0 0.0
      %4181 = vmatpush.msra.mxu0 %v4161
      %4182 = vmatmul.f32.gmra.mxu0 %v4164
      %v4183 = vpop.f32.mrf.mxu0
      %v4184 = vadd.f32 0.0, %v4183
      %4185 = vdwg.mxu0
      %4186 = vrot.lane.b32.xlu0 %v2763, 124
      %v4187 = vpop.permute.xlu0 %4186
      %v4190 = vsel %vm837, %v3970, 0
      %4192 = vmatpush.msra.mxu0 0.0
      %4193 = vmatpush.msra.mxu0 0.0
      %4194 = vmatpush.msra.mxu0 0.0
      %4195 = vmatpush.msra.mxu0 0.0
      %4196 = vmatpush.msra.mxu0 0.0
      %4197 = vmatpush.msra.mxu0 0.0
      %4198 = vmatpush.msra.mxu0 0.0
      %4199 = vmatpush.msra.mxu0 0.0
      %4200 = vmatpush.msra.mxu0 0.0
      %4201 = vmatpush.msra.mxu0 0.0
      %4202 = vmatpush.msra.mxu0 0.0
      %4203 = vmatpush.msra.mxu0 0.0
      %4204 = vmatpush.msra.mxu0 0.0
      %4205 = vmatpush.msra.mxu0 0.0
      %4206 = vmatpush.msra.mxu0 0.0
      %4207 = vmatpush.msra.mxu0 %v4187
      %4208 = vmatmul.f32.gmra.mxu0 %v4190
      %v4209 = vpop.f32.mrf.mxu0
      %v4210 = vadd.f32 0.0, %v4209
      %4211 = vdwg.mxu0
      %4212 = vrot.lane.b32.xlu0 %v2765, 124
      %v4213 = vpop.permute.xlu0 %4212
      %v4216 = vsel %vm837, %v3971, 0
      %4218 = vmatpush.msra.mxu0 0.0
      %4219 = vmatpush.msra.mxu0 0.0
      %4220 = vmatpush.msra.mxu0 0.0
      %4221 = vmatpush.msra.mxu0 0.0
      %4222 = vmatpush.msra.mxu0 0.0
      %4223 = vmatpush.msra.mxu0 0.0
      %4224 = vmatpush.msra.mxu0 0.0
      %4225 = vmatpush.msra.mxu0 0.0
      %4226 = vmatpush.msra.mxu0 0.0
      %4227 = vmatpush.msra.mxu0 0.0
      %4228 = vmatpush.msra.mxu0 0.0
      %4229 = vmatpush.msra.mxu0 0.0
      %4230 = vmatpush.msra.mxu0 0.0
      %4231 = vmatpush.msra.mxu0 0.0
      %4232 = vmatpush.msra.mxu0 0.0
      %4233 = vmatpush.msra.mxu0 %v4213
      %4234 = vmatmul.f32.gmra.mxu0 %v4216
      %v4235 = vpop.f32.mrf.mxu0
      %v4236 = vadd.f32 0.0, %v4235
      %4237 = vdwg.mxu0
      %4238 = vrot.lane.b32.xlu0 %v2768, 124
      %v4239 = vpop.permute.xlu0 %4238
      %v4242 = vsel %vm837, %v3972, 0
      %4244 = vmatpush.msra.mxu0 0.0
      %4245 = vmatpush.msra.mxu0 0.0
      %4246 = vmatpush.msra.mxu0 0.0
      %4247 = vmatpush.msra.mxu0 0.0
      %4248 = vmatpush.msra.mxu0 0.0
      %4249 = vmatpush.msra.mxu0 0.0
      %4250 = vmatpush.msra.mxu0 0.0
      %4251 = vmatpush.msra.mxu0 0.0
      %4252 = vmatpush.msra.mxu0 0.0
      %4253 = vmatpush.msra.mxu0 0.0
      %4254 = vmatpush.msra.mxu0 0.0
      %4255 = vmatpush.msra.mxu0 0.0
      %4256 = vmatpush.msra.mxu0 0.0
      %4257 = vmatpush.msra.mxu0 0.0
      %4258 = vmatpush.msra.mxu0 0.0
      %4259 = vmatpush.msra.mxu0 %v4239
      %4260 = vmatmul.f32.gmra.mxu0 %v4242
      %v4261 = vpop.f32.mrf.mxu0
      %v4262 = vadd.f32 0.0, %v4261
      %4263 = vdwg.mxu0
      %4264 = vrot.lane.b32.xlu0 %v2770, 124
      %v4265 = vpop.permute.xlu0 %4264
      %v4268 = vsel %vm837, %v3973, 0
      %4270 = vmatpush.msra.mxu0 0.0
      %4271 = vmatpush.msra.mxu0 0.0
      %4272 = vmatpush.msra.mxu0 0.0
      %4273 = vmatpush.msra.mxu0 0.0
      %4274 = vmatpush.msra.mxu0 0.0
      %4275 = vmatpush.msra.mxu0 0.0
      %4276 = vmatpush.msra.mxu0 0.0
      %4277 = vmatpush.msra.mxu0 0.0
      %4278 = vmatpush.msra.mxu0 0.0
      %4279 = vmatpush.msra.mxu0 0.0
      %4280 = vmatpush.msra.mxu0 0.0
      %4281 = vmatpush.msra.mxu0 0.0
      %4282 = vmatpush.msra.mxu0 0.0
      %4283 = vmatpush.msra.mxu0 0.0
      %4284 = vmatpush.msra.mxu0 0.0
      %4285 = vmatpush.msra.mxu0 %v4265
      %4286 = vmatmul.f32.gmra.mxu0 %v4268
      %v4287 = vpop.f32.mrf.mxu0
      %v4288 = vadd.f32 0.0, %v4287
      %4289 = vdwg.mxu0
      %4290 = vrot.lane.b32.xlu0 %v2773, 124
      %v4291 = vpop.permute.xlu0 %4290
      %v4294 = vsel %vm837, %v3974, 0
      %4296 = vmatpush.msra.mxu0 0.0
      %4297 = vmatpush.msra.mxu0 0.0
      %4298 = vmatpush.msra.mxu0 0.0
      %4299 = vmatpush.msra.mxu0 0.0
      %4300 = vmatpush.msra.mxu0 0.0
      %4301 = vmatpush.msra.mxu0 0.0
      %4302 = vmatpush.msra.mxu0 0.0
      %4303 = vmatpush.msra.mxu0 0.0
      %4304 = vmatpush.msra.mxu0 0.0
      %4305 = vmatpush.msra.mxu0 0.0
      %4306 = vmatpush.msra.mxu0 0.0
      %4307 = vmatpush.msra.mxu0 0.0
      %4308 = vmatpush.msra.mxu0 0.0
      %4309 = vmatpush.msra.mxu0 0.0
      %4310 = vmatpush.msra.mxu0 0.0
      %4311 = vmatpush.msra.mxu0 %v4291
      %4312 = vmatmul.f32.gmra.mxu0 %v4294
      %v4313 = vpop.f32.mrf.mxu0
      %v4314 = vadd.f32 0.0, %v4313
      %4315 = vdwg.mxu0
      %4316 = vrot.lane.b32.xlu0 %v2775, 124
      %v4317 = vpop.permute.xlu0 %4316
      %v4320 = vsel %vm837, %v3975, 0
      %4322 = vmatpush.msra.mxu0 0.0
      %4323 = vmatpush.msra.mxu0 0.0
      %4324 = vmatpush.msra.mxu0 0.0
      %4325 = vmatpush.msra.mxu0 0.0
      %4326 = vmatpush.msra.mxu0 0.0
      %4327 = vmatpush.msra.mxu0 0.0
      %4328 = vmatpush.msra.mxu0 0.0
      %4329 = vmatpush.msra.mxu0 0.0
      %4330 = vmatpush.msra.mxu0 0.0
      %4331 = vmatpush.msra.mxu0 0.0
      %4332 = vmatpush.msra.mxu0 0.0
      %4333 = vmatpush.msra.mxu0 0.0
      %4334 = vmatpush.msra.mxu0 0.0
      %4335 = vmatpush.msra.mxu0 0.0
      %4336 = vmatpush.msra.mxu0 0.0
      %4337 = vmatpush.msra.mxu0 %v4317
      %4338 = vmatmul.f32.gmra.mxu0 %v4320
      %v4339 = vpop.f32.mrf.mxu0
      %v4340 = vadd.f32 0.0, %v4339
      %4341 = vdwg.mxu0
      %4342 = vrot.lane.b32.xlu0 %v2778, 124
      %v4343 = vpop.permute.xlu0 %4342
      %v4346 = vsel %vm837, %v3976, 0
      %4348 = vmatpush.msra.mxu0 0.0
      %4349 = vmatpush.msra.mxu0 0.0
      %4350 = vmatpush.msra.mxu0 0.0
      %4351 = vmatpush.msra.mxu0 0.0
      %4352 = vmatpush.msra.mxu0 0.0
      %4353 = vmatpush.msra.mxu0 0.0
      %4354 = vmatpush.msra.mxu0 0.0
      %4355 = vmatpush.msra.mxu0 0.0
      %4356 = vmatpush.msra.mxu0 0.0
      %4357 = vmatpush.msra.mxu0 0.0
      %4358 = vmatpush.msra.mxu0 0.0
      %4359 = vmatpush.msra.mxu0 0.0
      %4360 = vmatpush.msra.mxu0 0.0
      %4361 = vmatpush.msra.mxu0 0.0
      %4362 = vmatpush.msra.mxu0 0.0
      %4363 = vmatpush.msra.mxu0 %v4343
      %4364 = vmatmul.f32.gmra.mxu0 %v4346
      %v4365 = vpop.f32.mrf.mxu0
      %v4366 = vadd.f32 0.0, %v4365
      %4367 = vdwg.mxu0
      %4368 = vrot.lane.b32.xlu0 %v2780, 124
      %v4369 = vpop.permute.xlu0 %4368
      %v4372 = vsel %vm837, %v3977, 0
      %4374 = vmatpush.msra.mxu0 0.0
      %4375 = vmatpush.msra.mxu0 0.0
      %4376 = vmatpush.msra.mxu0 0.0
      %4377 = vmatpush.msra.mxu0 0.0
      %4378 = vmatpush.msra.mxu0 0.0
      %4379 = vmatpush.msra.mxu0 0.0
      %4380 = vmatpush.msra.mxu0 0.0
      %4381 = vmatpush.msra.mxu0 0.0
      %4382 = vmatpush.msra.mxu0 0.0
      %4383 = vmatpush.msra.mxu0 0.0
      %4384 = vmatpush.msra.mxu0 0.0
      %4385 = vmatpush.msra.mxu0 0.0
      %4386 = vmatpush.msra.mxu0 0.0
      %4387 = vmatpush.msra.mxu0 0.0
      %4388 = vmatpush.msra.mxu0 0.0
      %4389 = vmatpush.msra.mxu0 %v4369
      %4390 = vmatmul.f32.gmra.mxu0 %v4372
      %v4391 = vpop.f32.mrf.mxu0
      %v4392 = vadd.f32 0.0, %v4391
      %4393 = vdwg.mxu0
      %v4402 = vrot.slane %v4002, 1
      %v4403 = vrot.slane %v4028, 1
      %v4404 = vrot.slane %v4054, 1
      %v4405 = vrot.slane %v4080, 1
      %v4406 = vrot.slane %v4106, 1
      %v4407 = vrot.slane %v4132, 1
      %v4408 = vrot.slane %v4158, 1
      %v4409 = vrot.slane %v4184, 1
      %v4418 = vrot.slane %v4002, 2
      %v4419 = vrot.slane %v4028, 2
      %v4420 = vrot.slane %v4054, 2
      %v4421 = vrot.slane %v4080, 2
      %v4422 = vrot.slane %v4106, 2
      %v4423 = vrot.slane %v4132, 2
      %v4424 = vrot.slane %v4158, 2
      %v4425 = vrot.slane %v4184, 2
      %v4434 = vrot.slane %v4002, 3
      %v4435 = vrot.slane %v4028, 3
      %v4436 = vrot.slane %v4054, 3
      %v4437 = vrot.slane %v4080, 3
      %v4438 = vrot.slane %v4106, 3
      %v4439 = vrot.slane %v4132, 3
      %v4440 = vrot.slane %v4158, 3
      %v4441 = vrot.slane %v4184, 3
      %v4450 = vrot.slane %v4002, 4
      %v4451 = vrot.slane %v4028, 4
      %v4452 = vrot.slane %v4054, 4
      %v4453 = vrot.slane %v4080, 4
      %v4454 = vrot.slane %v4106, 4
      %v4455 = vrot.slane %v4132, 4
      %v4456 = vrot.slane %v4158, 4
      %v4457 = vrot.slane %v4184, 4
      %v4466 = vrot.slane %v4002, 5
      %v4467 = vrot.slane %v4028, 5
      %v4468 = vrot.slane %v4054, 5
      %v4469 = vrot.slane %v4080, 5
      %v4470 = vrot.slane %v4106, 5
      %v4471 = vrot.slane %v4132, 5
      %v4472 = vrot.slane %v4158, 5
      %v4473 = vrot.slane %v4184, 5
      %v4482 = vrot.slane %v4002, 6
      %v4483 = vrot.slane %v4028, 6
      %v4484 = vrot.slane %v4054, 6
      %v4485 = vrot.slane %v4080, 6
      %v4486 = vrot.slane %v4106, 6
      %v4487 = vrot.slane %v4132, 6
      %v4488 = vrot.slane %v4158, 6
      %v4489 = vrot.slane %v4184, 6
      %v4498 = vrot.slane %v4002, 7
      %v4499 = vrot.slane %v4028, 7
      %v4500 = vrot.slane %v4054, 7
      %v4501 = vrot.slane %v4080, 7
      %v4502 = vrot.slane %v4106, 7
      %v4503 = vrot.slane %v4132, 7
      %v4504 = vrot.slane %v4158, 7
      %v4505 = vrot.slane %v4184, 7
      %v4522 = vrot.slane %v4210, 1
      %v4523 = vrot.slane %v4210, 2
      %v4524 = vrot.slane %v4210, 3
      %v4525 = vrot.slane %v4210, 4
      %v4526 = vrot.slane %v4210, 5
      %v4527 = vrot.slane %v4210, 6
      %v4528 = vrot.slane %v4210, 7
      %v4529 = vrot.slane %v4236, 1
      %v4530 = vrot.slane %v4236, 2
      %v4531 = vrot.slane %v4236, 3
      %v4532 = vrot.slane %v4236, 4
      %v4533 = vrot.slane %v4236, 5
      %v4534 = vrot.slane %v4236, 6
      %v4535 = vrot.slane %v4236, 7
      %v4536 = vrot.slane %v4262, 1
      %v4537 = vrot.slane %v4262, 2
      %v4538 = vrot.slane %v4262, 3
      %v4539 = vrot.slane %v4262, 4
      %v4540 = vrot.slane %v4262, 5
      %v4541 = vrot.slane %v4262, 6
      %v4542 = vrot.slane %v4262, 7
      %v4543 = vrot.slane %v4288, 1
      %v4544 = vrot.slane %v4288, 2
      %v4545 = vrot.slane %v4288, 3
      %v4546 = vrot.slane %v4288, 4
      %v4547 = vrot.slane %v4288, 5
      %v4548 = vrot.slane %v4288, 6
      %v4549 = vrot.slane %v4288, 7
      %v4550 = vrot.slane %v4314, 1
      %v4551 = vrot.slane %v4314, 2
      %v4552 = vrot.slane %v4314, 3
      %v4553 = vrot.slane %v4314, 4
      %v4554 = vrot.slane %v4314, 5
      %v4555 = vrot.slane %v4314, 6
      %v4556 = vrot.slane %v4314, 7
      %v4557 = vrot.slane %v4340, 1
      %v4558 = vrot.slane %v4340, 2
      %v4559 = vrot.slane %v4340, 3
      %v4560 = vrot.slane %v4340, 4
      %v4561 = vrot.slane %v4340, 5
      %v4562 = vrot.slane %v4340, 6
      %v4563 = vrot.slane %v4340, 7
      %v4564 = vrot.slane %v4366, 1
      %v4565 = vrot.slane %v4366, 2
      %v4566 = vrot.slane %v4366, 3
      %v4567 = vrot.slane %v4366, 4
      %v4568 = vrot.slane %v4366, 5
      %v4569 = vrot.slane %v4366, 6
      %v4570 = vrot.slane %v4366, 7
      %v4571 = vrot.slane %v4392, 1
      %v4572 = vrot.slane %v4392, 2
      %v4573 = vrot.slane %v4392, 3
      %v4574 = vrot.slane %v4392, 4
      %v4575 = vrot.slane %v4392, 5
      %v4576 = vrot.slane %v4392, 6
      %v4577 = vrot.slane %v4392, 7
      %v4642 = vadd.f32 %v4002, %v4210
      %v4643 = vadd.f32 %v4028, %v4522
      %v4644 = vadd.f32 %v4054, %v4523
      %v4645 = vadd.f32 %v4080, %v4524
      %v4646 = vadd.f32 %v4106, %v4525
      %v4647 = vadd.f32 %v4132, %v4526
      %v4648 = vadd.f32 %v4158, %v4527
      %v4649 = vadd.f32 %v4184, %v4528
      %v4650 = vadd.f32 %v4402, %v4236
      %v4651 = vadd.f32 %v4403, %v4529
      %v4652 = vadd.f32 %v4404, %v4530
      %v4653 = vadd.f32 %v4405, %v4531
      %v4654 = vadd.f32 %v4406, %v4532
      %v4655 = vadd.f32 %v4407, %v4533
      %v4656 = vadd.f32 %v4408, %v4534
      %v4657 = vadd.f32 %v4409, %v4535
      %v4658 = vadd.f32 %v4418, %v4262
      %v4659 = vadd.f32 %v4419, %v4536
      %v4660 = vadd.f32 %v4420, %v4537
      %v4661 = vadd.f32 %v4421, %v4538
      %v4662 = vadd.f32 %v4422, %v4539
      %v4663 = vadd.f32 %v4423, %v4540
      %v4664 = vadd.f32 %v4424, %v4541
      %v4665 = vadd.f32 %v4425, %v4542
      %v4666 = vadd.f32 %v4434, %v4288
      %v4667 = vadd.f32 %v4435, %v4543
      %v4668 = vadd.f32 %v4436, %v4544
      %v4669 = vadd.f32 %v4437, %v4545
      %v4670 = vadd.f32 %v4438, %v4546
      %v4671 = vadd.f32 %v4439, %v4547
      %v4672 = vadd.f32 %v4440, %v4548
      %v4673 = vadd.f32 %v4441, %v4549
      %v4674 = vadd.f32 %v4450, %v4314
      %v4675 = vadd.f32 %v4451, %v4550
      %v4676 = vadd.f32 %v4452, %v4551
      %v4677 = vadd.f32 %v4453, %v4552
      %v4678 = vadd.f32 %v4454, %v4553
      %v4679 = vadd.f32 %v4455, %v4554
      %v4680 = vadd.f32 %v4456, %v4555
      %v4681 = vadd.f32 %v4457, %v4556
      %v4682 = vadd.f32 %v4466, %v4340
      %v4683 = vadd.f32 %v4467, %v4557
      %v4684 = vadd.f32 %v4468, %v4558
      %v4685 = vadd.f32 %v4469, %v4559
      %v4686 = vadd.f32 %v4470, %v4560
      %v4687 = vadd.f32 %v4471, %v4561
      %v4688 = vadd.f32 %v4472, %v4562
      %v4689 = vadd.f32 %v4473, %v4563
      %v4690 = vadd.f32 %v4482, %v4366
      %v4691 = vadd.f32 %v4483, %v4564
      %v4692 = vadd.f32 %v4484, %v4565
      %v4693 = vadd.f32 %v4485, %v4566
      %v4694 = vadd.f32 %v4486, %v4567
      %v4695 = vadd.f32 %v4487, %v4568
      %v4696 = vadd.f32 %v4488, %v4569
      %v4697 = vadd.f32 %v4489, %v4570
      %v4698 = vadd.f32 %v4498, %v4392
      %v4699 = vadd.f32 %v4499, %v4571
      %v4700 = vadd.f32 %v4500, %v4572
      %v4701 = vadd.f32 %v4501, %v4573
      %v4702 = vadd.f32 %v4502, %v4574
      %v4703 = vadd.f32 %v4503, %v4575
      %v4704 = vadd.f32 %v4504, %v4576
      %v4705 = vadd.f32 %v4505, %v4577
      %v4706 = vmul.f32 %v4642, 0.5
      %v4707 = vmul.f32 %v4643, 0.5
      %v4708 = vmul.f32 %v4644, 0.5
      %v4709 = vmul.f32 %v4645, 0.5
      %v4710 = vmul.f32 %v4646, 0.5
      %v4711 = vmul.f32 %v4647, 0.5
      %v4712 = vmul.f32 %v4648, 0.5
      %v4713 = vmul.f32 %v4649, 0.5
      %v4714 = vmul.f32 %v4650, 0.5
      %v4715 = vmul.f32 %v4651, 0.5
      %v4716 = vmul.f32 %v4652, 0.5
      %v4717 = vmul.f32 %v4653, 0.5
      %v4718 = vmul.f32 %v4654, 0.5
      %v4719 = vmul.f32 %v4655, 0.5
      %v4720 = vmul.f32 %v4656, 0.5
      %v4721 = vmul.f32 %v4657, 0.5
      %v4722 = vmul.f32 %v4658, 0.5
      %v4723 = vmul.f32 %v4659, 0.5
      %v4724 = vmul.f32 %v4660, 0.5
      %v4725 = vmul.f32 %v4661, 0.5
      %v4726 = vmul.f32 %v4662, 0.5
      %v4727 = vmul.f32 %v4663, 0.5
      %v4728 = vmul.f32 %v4664, 0.5
      %v4729 = vmul.f32 %v4665, 0.5
      %v4730 = vmul.f32 %v4666, 0.5
      %v4731 = vmul.f32 %v4667, 0.5
      %v4732 = vmul.f32 %v4668, 0.5
      %v4733 = vmul.f32 %v4669, 0.5
      %v4734 = vmul.f32 %v4670, 0.5
      %v4735 = vmul.f32 %v4671, 0.5
      %v4736 = vmul.f32 %v4672, 0.5
      %v4737 = vmul.f32 %v4673, 0.5
      %v4738 = vmul.f32 %v4674, 0.5
      %v4739 = vmul.f32 %v4675, 0.5
      %v4740 = vmul.f32 %v4676, 0.5
      %v4741 = vmul.f32 %v4677, 0.5
      %v4742 = vmul.f32 %v4678, 0.5
      %v4743 = vmul.f32 %v4679, 0.5
      %v4744 = vmul.f32 %v4680, 0.5
      %v4745 = vmul.f32 %v4681, 0.5
      %v4746 = vmul.f32 %v4682, 0.5
      %v4747 = vmul.f32 %v4683, 0.5
      %v4748 = vmul.f32 %v4684, 0.5
      %v4749 = vmul.f32 %v4685, 0.5
      %v4750 = vmul.f32 %v4686, 0.5
      %v4751 = vmul.f32 %v4687, 0.5
      %v4752 = vmul.f32 %v4688, 0.5
      %v4753 = vmul.f32 %v4689, 0.5
      %v4754 = vmul.f32 %v4690, 0.5
      %v4755 = vmul.f32 %v4691, 0.5
      %v4756 = vmul.f32 %v4692, 0.5
      %v4757 = vmul.f32 %v4693, 0.5
      %v4758 = vmul.f32 %v4694, 0.5
      %v4759 = vmul.f32 %v4695, 0.5
      %v4760 = vmul.f32 %v4696, 0.5
      %v4761 = vmul.f32 %v4697, 0.5
      %v4762 = vmul.f32 %v4698, 0.5
      %v4763 = vmul.f32 %v4699, 0.5
      %v4764 = vmul.f32 %v4700, 0.5
      %v4765 = vmul.f32 %v4701, 0.5
      %v4766 = vmul.f32 %v4702, 0.5
      %v4767 = vmul.f32 %v4703, 0.5
      %v4768 = vmul.f32 %v4704, 0.5
      %v4769 = vmul.f32 %v4705, 0.5
      %v4770 = vadd.f32 %v4706, %v2369
      %v4771 = vadd.f32 %v4707, %v2370
      %v4772 = vadd.f32 %v4708, %v2371
      %v4773 = vadd.f32 %v4709, %v2372
      %v4774 = vadd.f32 %v4710, %v2373
      %v4775 = vadd.f32 %v4711, %v2374
      %v4776 = vadd.f32 %v4712, %v2375
      %v4777 = vadd.f32 %v4713, %v2376
      %v4778 = vadd.f32 %v4714, %v2377
      %v4779 = vadd.f32 %v4715, %v2378
      %v4780 = vadd.f32 %v4716, %v2379
      %v4781 = vadd.f32 %v4717, %v2380
      %v4782 = vadd.f32 %v4718, %v2381
      %v4783 = vadd.f32 %v4719, %v2382
      %v4784 = vadd.f32 %v4720, %v2383
      %v4785 = vadd.f32 %v4721, %v2384
      %v4786 = vadd.f32 %v4722, %v2385
      %v4787 = vadd.f32 %v4723, %v2386
      %v4788 = vadd.f32 %v4724, %v2387
      %v4789 = vadd.f32 %v4725, %v2388
      %v4790 = vadd.f32 %v4726, %v2389
      %v4791 = vadd.f32 %v4727, %v2390
      %v4792 = vadd.f32 %v4728, %v2391
      %v4793 = vadd.f32 %v4729, %v2392
      %v4794 = vadd.f32 %v4730, %v2393
      %v4795 = vadd.f32 %v4731, %v2394
      %v4796 = vadd.f32 %v4732, %v2395
      %v4797 = vadd.f32 %v4733, %v2396
      %v4798 = vadd.f32 %v4734, %v2397
      %v4799 = vadd.f32 %v4735, %v2398
      %v4800 = vadd.f32 %v4736, %v2399
      %v4801 = vadd.f32 %v4737, %v2400
      %v4802 = vadd.f32 %v4738, %v2401
      %v4803 = vadd.f32 %v4739, %v2402
      %v4804 = vadd.f32 %v4740, %v2403
      %v4805 = vadd.f32 %v4741, %v2404
      %v4806 = vadd.f32 %v4742, %v2405
      %v4807 = vadd.f32 %v4743, %v2406
      %v4808 = vadd.f32 %v4744, %v2407
      %v4809 = vadd.f32 %v4745, %v2408
      %v4810 = vadd.f32 %v4746, %v2409
      %v4811 = vadd.f32 %v4747, %v2410
      %v4812 = vadd.f32 %v4748, %v2411
      %v4813 = vadd.f32 %v4749, %v2412
      %v4814 = vadd.f32 %v4750, %v2413
      %v4815 = vadd.f32 %v4751, %v2414
      %v4816 = vadd.f32 %v4752, %v2415
      %v4817 = vadd.f32 %v4753, %v2416
      %v4818 = vadd.f32 %v4754, %v2417
      %v4819 = vadd.f32 %v4755, %v2418
      %v4820 = vadd.f32 %v4756, %v2419
      %v4821 = vadd.f32 %v4757, %v2420
      %v4822 = vadd.f32 %v4758, %v2421
      %v4823 = vadd.f32 %v4759, %v2422
      %v4824 = vadd.f32 %v4760, %v2423
      %v4825 = vadd.f32 %v4761, %v2424
      %v4826 = vadd.f32 %v4762, %v2425
      %v4827 = vadd.f32 %v4763, %v2426
      %v4828 = vadd.f32 %v4764, %v2427
      %v4829 = vadd.f32 %v4765, %v2428
      %v4830 = vadd.f32 %v4766, %v2429
      %v4831 = vadd.f32 %v4767, %v2430
      %v4832 = vadd.f32 %v4768, %v2431
      %v4833 = vadd.f32 %v4769, %v2432
      %v4898 = vrot.slane %v4771, 7
      %v4899 = vsel %vm517, %v4898, %v4770
      %v4900 = vrot.slane %v4772, 6
      %v4901 = vsel %vm519, %v4900, %v4899
      %v4902 = vrot.slane %v4773, 5
      %v4903 = vsel %vm521, %v4902, %v4901
      %v4904 = vrot.slane %v4774, 4
      %v4905 = vsel %vm523, %v4904, %v4903
      %v4906 = vrot.slane %v4775, 3
      %v4907 = vsel %vm525, %v4906, %v4905
      %v4908 = vrot.slane %v4776, 2
      %v4909 = vsel %vm527, %v4908, %v4907
      %v4910 = vrot.slane %v4777, 1
      %v4911 = vsel %vm529, %v4910, %v4909
      %v4912 = vrot.slane %v4779, 7
      %v4913 = vsel %vm517, %v4912, %v4778
      %v4914 = vrot.slane %v4780, 6
      %v4915 = vsel %vm519, %v4914, %v4913
      %v4916 = vrot.slane %v4781, 5
      %v4917 = vsel %vm521, %v4916, %v4915
      %v4918 = vrot.slane %v4782, 4
      %v4919 = vsel %vm523, %v4918, %v4917
      %v4920 = vrot.slane %v4783, 3
      %v4921 = vsel %vm525, %v4920, %v4919
      %v4922 = vrot.slane %v4784, 2
      %v4923 = vsel %vm527, %v4922, %v4921
      %v4924 = vrot.slane %v4785, 1
      %v4925 = vsel %vm529, %v4924, %v4923
      %v4926 = vrot.slane %v4787, 7
      %v4927 = vsel %vm517, %v4926, %v4786
      %v4928 = vrot.slane %v4788, 6
      %v4929 = vsel %vm519, %v4928, %v4927
      %v4930 = vrot.slane %v4789, 5
      %v4931 = vsel %vm521, %v4930, %v4929
      %v4932 = vrot.slane %v4790, 4
      %v4933 = vsel %vm523, %v4932, %v4931
      %v4934 = vrot.slane %v4791, 3
      %v4935 = vsel %vm525, %v4934, %v4933
      %v4936 = vrot.slane %v4792, 2
      %v4937 = vsel %vm527, %v4936, %v4935
      %v4938 = vrot.slane %v4793, 1
      %v4939 = vsel %vm529, %v4938, %v4937
      %v4940 = vrot.slane %v4795, 7
      %v4941 = vsel %vm517, %v4940, %v4794
      %v4942 = vrot.slane %v4796, 6
      %v4943 = vsel %vm519, %v4942, %v4941
      %v4944 = vrot.slane %v4797, 5
      %v4945 = vsel %vm521, %v4944, %v4943
      %v4946 = vrot.slane %v4798, 4
      %v4947 = vsel %vm523, %v4946, %v4945
      %v4948 = vrot.slane %v4799, 3
      %v4949 = vsel %vm525, %v4948, %v4947
      %v4950 = vrot.slane %v4800, 2
      %v4951 = vsel %vm527, %v4950, %v4949
      %v4952 = vrot.slane %v4801, 1
      %v4953 = vsel %vm529, %v4952, %v4951
      %v4954 = vrot.slane %v4803, 7
      %v4955 = vsel %vm517, %v4954, %v4802
      %v4956 = vrot.slane %v4804, 6
      %v4957 = vsel %vm519, %v4956, %v4955
      %v4958 = vrot.slane %v4805, 5
      %v4959 = vsel %vm521, %v4958, %v4957
      %v4960 = vrot.slane %v4806, 4
      %v4961 = vsel %vm523, %v4960, %v4959
      %v4962 = vrot.slane %v4807, 3
      %v4963 = vsel %vm525, %v4962, %v4961
      %v4964 = vrot.slane %v4808, 2
      %v4965 = vsel %vm527, %v4964, %v4963
      %v4966 = vrot.slane %v4809, 1
      %v4967 = vsel %vm529, %v4966, %v4965
      %v4968 = vrot.slane %v4811, 7
      %v4969 = vsel %vm517, %v4968, %v4810
      %v4970 = vrot.slane %v4812, 6
      %v4971 = vsel %vm519, %v4970, %v4969
      %v4972 = vrot.slane %v4813, 5
      %v4973 = vsel %vm521, %v4972, %v4971
      %v4974 = vrot.slane %v4814, 4
      %v4975 = vsel %vm523, %v4974, %v4973
      %v4976 = vrot.slane %v4815, 3
      %v4977 = vsel %vm525, %v4976, %v4975
      %v4978 = vrot.slane %v4816, 2
      %v4979 = vsel %vm527, %v4978, %v4977
      %v4980 = vrot.slane %v4817, 1
      %v4981 = vsel %vm529, %v4980, %v4979
      %v4982 = vrot.slane %v4819, 7
      %v4983 = vsel %vm517, %v4982, %v4818
      %v4984 = vrot.slane %v4820, 6
      %v4985 = vsel %vm519, %v4984, %v4983
      %v4986 = vrot.slane %v4821, 5
      %v4987 = vsel %vm521, %v4986, %v4985
      %v4988 = vrot.slane %v4822, 4
      %v4989 = vsel %vm523, %v4988, %v4987
      %v4990 = vrot.slane %v4823, 3
      %v4991 = vsel %vm525, %v4990, %v4989
      %v4992 = vrot.slane %v4824, 2
      %v4993 = vsel %vm527, %v4992, %v4991
      %v4994 = vrot.slane %v4825, 1
      %v4995 = vsel %vm529, %v4994, %v4993
      %v4996 = vrot.slane %v4827, 7
      %v4997 = vsel %vm517, %v4996, %v4826
      %v4998 = vrot.slane %v4828, 6
      %v4999 = vsel %vm519, %v4998, %v4997
      %v5000 = vrot.slane %v4829, 5
      %v5001 = vsel %vm521, %v5000, %v4999
      %v5002 = vrot.slane %v4830, 4
      %v5003 = vsel %vm523, %v5002, %v5001
      %v5004 = vrot.slane %v4831, 3
      %v5005 = vsel %vm525, %v5004, %v5003
      %v5006 = vrot.slane %v4832, 2
      %v5007 = vsel %vm527, %v5006, %v5005
      %v5008 = vrot.slane %v4833, 1
      %v5009 = vsel %vm529, %v5008, %v5007
      %5018 = vst.msk [vmem:[%s170] sm:$0xff] %vm196, %v4911
      %5019 = vst.msk [vmem:[%s170 + $0x8] sm:$0xff] %vm196, %v4925
      %5020 = vst.msk [vmem:[%s170 + $0x10] sm:$0xff] %vm196, %v4939
      %5021 = vst.msk [vmem:[%s170 + $0x18] sm:$0xff] %vm196, %v4953
      %5022 = vst.msk [vmem:[%s170 + $0x20] sm:$0xff] %vm196, %v4967
      %5023 = vst.msk [vmem:[%s170 + $0x28] sm:$0xff] %vm196, %v4981
      %5024 = vst.msk [vmem:[%s170 + $0x30] sm:$0xff] %vm196, %v4995
      %5025 = vst.msk [vmem:[%s170 + $0x38] sm:$0xff] %vm196, %v5009
      %p5026 = scmp.lt.s32.totalorder %s14, 5
      %s5027 = scalar_select %p5026, %s14, 5
      %s5028 = smul.addr %s5027, 8
      %s5029 = smul.addr %s5028, 8
      %s5030 = scalar_lea.vmem %s3, %s5029
      // Predicated region
      $region33: #{_lambda_.11} parent=31 // pred_check
        %p5031 = pneg %p100
      $region34: #{_lambda_.11} parent=31 // pred_check_branch
        %5033 = sbr.rel (%p5031) target = $region36
      $region35: #{_lambda_.11} parent=31 // pred_region
        _
      $region36: #{_lambda_.11} parent=31 // pred_fallthru
        _
    $region32: #{_lambda_.11} parent=5 // pred_fallthru
      _
    %p5034 = scmp.le.s32.totalorder 2, %s9
    // Predicated region
    $region37: #{_lambda_.11} parent=5 // pred_check
      %p5035 = pneg %p5034
    $region38: #{_lambda_.11} parent=5 // pred_check_branch
      %5037 = sbr.rel (%p5035) target = $region40
    $region39: #{_lambda_.11} parent=5 // pred_region
      %s5038 = ssub.s32 %s9, 2
      // Predicated region
      $region41: #{_lambda_.11} parent=39 // pred_check
        %p5039 = pneg %p106
      $region42: #{_lambda_.11} parent=39 // pred_check_branch
        %5041 = sbr.rel (%p5039) target = $region44
      $region43: #{_lambda_.11} parent=39 // pred_region
        %p5042 = scmp.lt.s32.totalorder %s15, 5
        %s5043 = scalar_select %p5042, %s15, 5
        %s5044 = smul.addr %s5043, 8
        %s5045 = smul.addr %s5044, 8
        %s5046 = scalar_lea.vmem %s3, %s5045
      $region44: #{_lambda_.11} parent=39 // pred_fallthru
        _
    $region40: #{_lambda_.11} parent=5 // pred_fallthru
      _
  $region6: #{_lambda_.11} parent=0 // loop_footer
    %s13 = sadd.s32 1, %s9
  $region7: #{_lambda_.11} parent=0 // loop_footer_branch
    %8 = sbr.rel target = $region3
  $region8: #{_lambda_.11} parent=0 // loop_exit
    _

</llo_original>
